<compile_context>
chip_gen: v7x
topology: tpu7x:2x2x1
jax: 0.10.0
libtpu: 0.0.40
codegen_flags: <defaults>
</compile_context>

<pallas_src>
import functools

import jax
import jax.numpy as jnp
from jax import lax
from jax.experimental import pallas as pl
from jax.experimental.pallas import tpu as pltpu


def _round_up(x, m):
    return (x + m - 1) // m * m


# ----------------------------------------------------------------------------
# Hardware-derived limits
# ----------------------------------------------------------------------------
@functools.lru_cache(maxsize=None)
def _device_kind():
    try:
        return jax.devices()[0].device_kind.lower()
    except Exception:
        return ""


@functools.lru_cache(maxsize=None)
def _vmem_capacity_bytes():
    """Physical VMEM per core from hardware info, with a device_kind heuristic fallback."""
    try:
        info = pltpu.get_tpu_info()
        cap = getattr(info, "vmem_capacity_bytes", None)
        if cap:
            return int(cap)
    except Exception:
        pass
    return 64 * 1024 * 1024 if "7" in _device_kind() else 128 * 1024 * 1024


def _vmem_limit():
    return int(_vmem_capacity_bytes() * 0.55)


def _pick_tn(np_):
    # v5e's MXU is 128 wide: tn=256 buys no throughput and doubles the resident weight tile.
    if "v5" in _device_kind():
        return 128
    return 256 if np_ % 256 == 0 else 128


def _compiler_params(dimension_semantics):
    cp = getattr(pltpu, "CompilerParams", None) or getattr(pltpu, "TPUCompilerParams")
    return cp(dimension_semantics=dimension_semantics, vmem_limit_bytes=_vmem_limit())


# ----------------------------------------------------------------------------
# Fused multi-layer MLP kernel (box head, material head)
# ----------------------------------------------------------------------------
def _mlp_kernel(*refs, n_layers, relu_flags):
    x_ref = refs[0]
    o_ref = refs[1 + 2 * n_layers]
    h_refs = refs[2 + 2 * n_layers:]
    src = x_ref
    for l in range(n_layers):
        w_ref = refs[1 + 2 * l]
        b_ref = refs[2 + 2 * l]
        r = jnp.dot(src[...], w_ref[...], preferred_element_type=jnp.float32) + b_ref[...]
        if relu_flags[l]:
            r = jnp.maximum(r, 0.0)
        if l == n_layers - 1:
            o_ref[...] = r.astype(o_ref.dtype)
        else:
            h_refs[l][...] = r.astype(h_refs[l].dtype)
            src = h_refs[l]


def linear_prepared(x, prep, relu=False, out_dtype=jnp.float32):
    """Single linear layer, K split across a grid axis when the full-K weight tile would not
    fit the VMEM budget (realistic channel counts); used only as the fused-MLP fallback."""
    wp, bp, K, N = prep['w'], prep['b'], prep['K'], prep['N']
    Kp, Np = wp.shape
    M = x.shape[0]
    tm = min(_round_up(max(M, 1), 16), 256)
    Mp = _round_up(max(M, 1), tm)
    tn = _pick_tn(Np)
    budget = _vmem_limit() // 3
    tk = Kp
    while tk > 1024 and 4 * (tm * tk + tk * tn) > budget:
        tk = _round_up(tk // 2, 128)
    Kpp = _round_up(Kp, tk)
    xp = jnp.zeros((Mp, Kpp), jnp.bfloat16).at[:M, :K].set(x.astype(jnp.bfloat16))
    wpp = wp if Kpp == Kp else jnp.pad(wp, ((0, Kpp - Kp), (0, 0)))

    def kernel(x_ref, w_ref, b_ref, o_ref, acc_ref):
        k = pl.program_id(2)

        @pl.when(k == 0)
        def _():
            acc_ref[...] = jnp.zeros_like(acc_ref)

        acc_ref[...] += jnp.dot(x_ref[...], w_ref[...], preferred_element_type=jnp.float32)

        @pl.when(k == pl.num_programs(2) - 1)
        def _():
            r = acc_ref[...] + b_ref[...]
            if relu:
                r = jnp.maximum(r, 0.0)
            o_ref[...] = r.astype(o_ref.dtype)

    out = pl.pallas_call(
        kernel,
        out_shape=jax.ShapeDtypeStruct((Mp, Np), out_dtype),
        grid_spec=pltpu.PrefetchScalarGridSpec(
            num_scalar_prefetch=0,
            grid=(Mp // tm, Np // tn, Kpp // tk),
            in_specs=[
                pl.BlockSpec((tm, tk), lambda i, j, k: (i, k)),
                pl.BlockSpec((tk, tn), lambda i, j, k: (k, j)),
                pl.BlockSpec((1, tn), lambda i, j, k: (0, j)),
            ],
            out_specs=pl.BlockSpec((tm, tn), lambda i, j, k: (i, j)),
            scratch_shapes=[pltpu.VMEM((tm, tn), jnp.float32)]),
        compiler_params=_compiler_params(("parallel", "parallel", "arbitrary")),
    )(xp, wpp, bp)
    return out[:M, :N]


def fused_mlp(x, preps, relu_flags, out_dtype=jnp.float32):
    """relu?(...relu?(x@w0+b0)...) in ONE pallas_call; the (M, hidden) intermediates live in
    VMEM scratch (no HBM round trips / extra launches between layers).  Falls back to
    per-layer K-tiled matmuls when the stacked bf16 weights would not fit VMEM."""
    M = x.shape[0]
    n_layers = len(preps)
    weight_bytes = sum(int(p['w'].size) * 2 + int(p['b'].size) * 4 for p in preps)
    if weight_bytes > _vmem_capacity_bytes() // 4:
        # TODO(synk): K-split *fused* variant for huge first layers; per-layer fallback for now.
        h = x
        for i, p in enumerate(preps):
            last = i == n_layers - 1
            h = linear_prepared(h, p, relu=relu_flags[i],
                                out_dtype=out_dtype if last else jnp.bfloat16)
        return h

    K0, K0p = preps[0]['K'], preps[0]['w'].shape[0]
    n_last, n_last_p = preps[-1]['N'], preps[-1]['w'].shape[1]
    tm = min(_round_up(max(M, 1), 16), 128)          # 16-row alignment for bf16 packing
    Mp = _round_up(max(M, 1), tm)
    xp = jnp.zeros((Mp, K0p), jnp.bfloat16).at[:M, :K0].set(x.astype(jnp.bfloat16))

    in_specs = [pl.BlockSpec((tm, K0p), lambda i: (i, 0))]
    args = [xp]
    for p in preps:
        in_specs.append(pl.BlockSpec(p['w'].shape, lambda i: (0, 0)))
        in_specs.append(pl.BlockSpec(p['b'].shape, lambda i: (0, 0)))
        args.append(p['w'])
        args.append(p['b'])
    scratch = [pltpu.VMEM((tm, preps[l]['w'].shape[1]), jnp.bfloat16)
               for l in range(n_layers - 1)]

    out = pl.pallas_call(
        functools.partial(_mlp_kernel, n_layers=n_layers, relu_flags=tuple(relu_flags)),
        out_shape=jax.ShapeDtypeStruct((Mp, n_last_p), out_dtype),
        grid_spec=pltpu.PrefetchScalarGridSpec(
            num_scalar_prefetch=0,
            grid=(Mp // tm,),
            in_specs=in_specs,
            out_specs=pl.BlockSpec((tm, n_last_p), lambda i: (i, 0)),
            scratch_shapes=scratch),
        compiler_params=_compiler_params(("parallel",)),
    )(*args)
    return out[:M, :n_last]


# ----------------------------------------------------------------------------
# Fused mask head kernel: conv3x3 x4 -> deconv2x2/s2 -> 1x1 predictor
# ----------------------------------------------------------------------------
_TAPS = tuple(dy * 16 + dx for dy in (-1, 0, 1) for dx in (-1, 0, 1))
_GUARD = 32          # guard rows so every +-17 tap window stays in-bounds
_RB = 64             # row-block size -> (64, 256) f32 accumulator = 16 vregs, no spilling
_GRID_ROWS = 256     # 16 x 16 registration grid, live activation at [1:15, 1:15]


def _mask_head_kernel(feat_ref, w0_ref, b0_ref, w1_ref, b1_ref, w2_ref, b2_ref,
                      w3_ref, b3_ref, wd_ref, bd_ref, wp_ref, bp_ref,
                      o_ref, act_a, act_b, *, tp, cmid):
    def live_mask(rb):
        r = lax.broadcasted_iota(jnp.int32, (_RB, 1), 0) + rb
        gy = r >> 4
        gx = r & 15
        return (gy >= 1) & (gy <= 14) & (gx >= 1) & (gx <= 14)

    def conv_tap_layer(p, src, dst, w_ref, b_ref):
        # 9 taps accumulated per 64-row block into a register accumulator; the border ring of
        # the 16x16 registration grid is re-zeroed so it acts as padding for the next layer.
        for rb in range(0, _GRID_ROWS, _RB):
            acc = jnp.zeros((_RB, cmid), jnp.float32)
            for t, off in enumerate(_TAPS):
                patch = src[p, pl.ds(_GUARD + rb + off, _RB), :]
                acc = acc + jnp.dot(patch, w_ref[t], preferred_element_type=jnp.float32)
            r = jnp.maximum(acc + b_ref[...], 0.0)
            r = jnp.where(live_mask(rb), r, 0.0)
            dst[p, pl.ds(_GUARD + rb, _RB), :] = r.astype(dst.dtype)

    def per_proposal(p, carry):
        # layer 0: the 9 taps are pre-folded into K=9*Cin (im2col built once outside on the
        # small Cin-channel input), so every slice is 64-row aligned and one matmul feeds MXU.
        for rb in range(0, _GRID_ROWS, _RB):
            acc = jnp.dot(feat_ref[p, pl.ds(rb, _RB), :], w0_ref[...],
                          preferred_element_type=jnp.float32)
            r = jnp.maximum(acc + b0_ref[...], 0.0)
            r = jnp.where(live_mask(rb), r, 0.0)
            act_a[p, pl.ds(_GUARD + rb, _RB), :] = r.astype(act_a.dtype)
        # layers 1..3: ping-pong between the two VMEM activation buffers (never touch HBM).
        conv_tap_layer(p, act_a, act_b, w1_ref, b1_ref)
        conv_tap_layer(p, act_b, act_a, w2_ref, b2_ref)
        conv_tap_layer(p, act_a, act_b, w3_ref, b3_ref)
        # 2x2/s2 ConvTranspose fused as ONE (cmid -> 4*cmid) matmul + ReLU, then the 1x1
        # class predictor applied per sub-pixel channel group; only logits leave VMEM.
        for rb in range(0, _GRID_ROWS, _RB):
            a = act_b[p, pl.ds(_GUARD + rb, _RB), :]
            d = jnp.dot(a, wd_ref[...], preferred_element_type=jnp.float32)
            d = jnp.maximum(d + bd_ref[...], 0.0).astype(jnp.bfloat16)
            groups = []
            for g in range(4):
                lg = jnp.dot(d[:, g * cmid:(g + 1) * cmid], wp_ref[...],
                             preferred_element_type=jnp.float32) + bp_ref[...]
                groups.append(lg)
            o_ref[p, pl.ds(rb, _RB), :] = jnp.concatenate(groups, axis=-1)
        return carry

    lax.fori_loop(0, tp, per_proposal, 0)


def mask_head_pallas(x, prep, num_classes):
    """x: (P, 14, 14, Cin) pooled mask features -> (P, 28, 28, num_classes) mask logits.
    The whole MaskRCNNHeads + MaskRCNNPredictor stack runs in one pallas_call."""
    P, H, W, Cin = x.shape
    assert H == 14 and W == 14, "mask head registration grid is hard-wired to 14x14 -> 16x16"
    cmid = prep['mask_conv1']['w'].shape[-1]
    ncp = prep['mask_fcn']['w'].shape[-1]
    TP = 4                                         # proposals per grid step
    Pp = _round_up(max(P, 1), TP)
    Hp = H + 2

    # centered registration: live activation at [1:15, 1:15] of a 16x16 grid; the ring is the
    # conv zero padding.  Layer-0 im2col (9*Cin lanes) is built ONCE here on the tiny
    # Cin-channel input so the in-kernel first conv is a single aligned K=9*Cin matmul.
    g = jnp.zeros((Pp, Hp, Hp, Cin), jnp.bfloat16)
    g = g.at[:P, 1:H + 1, 1:W + 1, :].set(x.astype(jnp.bfloat16))
    gp = jnp.pad(g, ((0, 0), (1, 1), (1, 1), (0, 0)))
    parts = [gp[:, dy:dy + Hp, dx:dx + Hp, :] for dy in range(3) for dx in range(3)]
    patch = jnp.concatenate(parts, axis=-1).reshape(Pp, Hp * Hp, 9 * Cin)

    out = pl.pallas_call(
        functools.partial(_mask_head_kernel, tp=TP, cmid=cmid),
        out_shape=jax.ShapeDtypeStruct((Pp, Hp * Hp, 4 * ncp), jnp.float32),
        grid_spec=pltpu.PrefetchScalarGridSpec(
            num_scalar_prefetch=0,
            grid=(Pp // TP,),
            in_specs=[
                pl.BlockSpec((TP, Hp * Hp, 9 * Cin), lambda i: (i, 0, 0)),
                pl.BlockSpec(prep['mask_conv0']['w'].shape, lambda i: (0, 0)),
                pl.BlockSpec(prep['mask_conv0']['b'].shape, lambda i: (0, 0)),
                pl.BlockSpec(prep['mask_conv1']['w'].shape, lambda i: (0, 0, 0)),
                pl.BlockSpec(prep['mask_conv1']['b'].shape, lambda i: (0, 0)),
                pl.BlockSpec(prep['mask_conv2']['w'].shape, lambda i: (0, 0, 0)),
                pl.BlockSpec(prep['mask_conv2']['b'].shape, lambda i: (0, 0)),
                pl.BlockSpec(prep['mask_conv3']['w'].shape, lambda i: (0, 0, 0)),
                pl.BlockSpec(prep['mask_conv3']['b'].shape, lambda i: (0, 0)),
                pl.BlockSpec(prep['mask_deconv']['w'].shape, lambda i: (0, 0)),
                pl.BlockSpec(prep['mask_deconv']['b'].shape, lambda i: (0, 0)),
                pl.BlockSpec(prep['mask_fcn']['w'].shape, lambda i: (0, 0)),
                pl.BlockSpec(prep['mask_fcn']['b'].shape, lambda i: (0, 0)),
            ],
            out_specs=pl.BlockSpec((TP, Hp * Hp, 4 * ncp), lambda i: (i, 0, 0)),
            scratch_shapes=[
                pltpu.VMEM((TP, _GUARD + Hp * Hp + _GUARD, cmid), jnp.bfloat16),
                pltpu.VMEM((TP, _GUARD + Hp * Hp + _GUARD, cmid), jnp.bfloat16),
            ]),
        compiler_params=_compiler_params(("parallel",)),
    )(patch,
      prep['mask_conv0']['w'], prep['mask_conv0']['b'],
      prep['mask_conv1']['w'], prep['mask_conv1']['b'],
      prep['mask_conv2']['w'], prep['mask_conv2']['b'],
      prep['mask_conv3']['w'], prep['mask_conv3']['b'],
      prep['mask_deconv']['w'], prep['mask_deconv']['b'],
      prep['mask_fcn']['w'], prep['mask_fcn']['b'])

    # de-interleave the (tiny, num_classes-wide) logits only: (P, 28, 28, NC)
    out = out[:P].reshape(P, Hp, Hp, 2, 2, ncp)[:, 1:H + 1, 1:W + 1, :, :, :num_classes]
    return out.transpose(0, 1, 3, 2, 4, 5).reshape(P, 2 * H, 2 * W, num_classes)


# ----------------------------------------------------------------------------
# Losses (plain jnp, per review: per-pallas_call dispatch > compute at these shapes)
# ----------------------------------------------------------------------------
def cross_entropy_mean(logits, labels):
    logits = logits.astype(jnp.float32)
    m = jnp.max(logits, axis=1, keepdims=True)
    lse = jnp.log(jnp.sum(jnp.exp(logits - m), axis=1, keepdims=True)) + m
    picked = jnp.take_along_axis(logits, labels.astype(jnp.int32)[:, None], axis=1)
    return jnp.mean(lse - picked)


def smooth_l1_sum(pred, tgt, beta):
    d = jnp.abs(pred.astype(jnp.float32) - tgt.astype(jnp.float32))
    return jnp.sum(jnp.where(d < beta, 0.5 * d * d / beta, d - 0.5 * beta))


def bce_with_logits_mean(x, t):
    x = x.astype(jnp.float32)
    t = t.astype(jnp.float32)
    return jnp.mean(jnp.maximum(x, 0.0) - x * t + jnp.log1p(jnp.exp(-jnp.abs(x))))


# ----------------------------------------------------------------------------
# Plain-JAX glue: box utilities & RoIAlign
# ----------------------------------------------------------------------------
def box_iou(a, b):
    area_a = (a[:, 2] - a[:, 0]) * (a[:, 3] - a[:, 1])
    area_b = (b[:, 2] - b[:, 0]) * (b[:, 3] - b[:, 1])
    lt = jnp.maximum(a[:, None, :2], b[None, :, :2])
    rb = jnp.minimum(a[:, None, 2:], b[None, :, 2:])
    wh = jnp.clip(rb - lt, 0.0)
    inter = wh[..., 0] * wh[..., 1]
    return inter / (area_a[:, None] + area_b[None, :] - inter)


def encode_boxes(ref_boxes, proposals, weights=(10.0, 10.0, 5.0, 5.0)):
    wx, wy, ww, wh = weights
    ex_w = proposals[:, 2] - proposals[:, 0]
    ex_h = proposals[:, 3] - proposals[:, 1]
    ex_cx = proposals[:, 0] + 0.5 * ex_w
    ex_cy = proposals[:, 1] + 0.5 * ex_h
    gt_w = ref_boxes[:, 2] - ref_boxes[:, 0]
    gt_h = ref_boxes[:, 3] - ref_boxes[:, 1]
    gt_cx = ref_boxes[:, 0] + 0.5 * gt_w
    gt_cy = ref_boxes[:, 1] + 0.5 * gt_h
    return jnp.stack([wx * (gt_cx - ex_cx) / ex_w,
                      wy * (gt_cy - ex_cy) / ex_h,
                      ww * jnp.log(gt_w / ex_w),
                      wh * jnp.log(gt_h / ex_h)], axis=1)


def roi_align(feat, rois, out_size, spatial_scale, sampling_ratio=2):
    # TODO(synk): data-dependent bilinear gather kept in plain JAX (no clean Pallas equivalent).
    B, H, W, C = feat.shape
    bidx = rois[:, 0].astype(jnp.int32)
    x1 = rois[:, 1] * spatial_scale
    y1 = rois[:, 2] * spatial_scale
    x2 = rois[:, 3] * spatial_scale
    y2 = rois[:, 4] * spatial_scale
    roi_w = jnp.maximum(x2 - x1, 1.0)
    roi_h = jnp.maximum(y2 - y1, 1.0)
    bin_w = roi_w / out_size
    bin_h = roi_h / out_size
    sr = sampling_ratio
    S = out_size * sr
    q = jnp.arange(S)
    pb = q // sr
    ib = q % sr
    ys = y1[:, None] + pb[None] * bin_h[:, None] + (ib[None] + 0.5) * bin_h[:, None] / sr
    xs = x1[:, None] + pb[None] * bin_w[:, None] + (ib[None] + 0.5) * bin_w[:, None] / sr
    fmaps = feat[bidx]

    def sample_one(fmap, yr, xr):
        yy = jnp.broadcast_to(yr[:, None], (S, S))
        xx = jnp.broadcast_to(xr[None, :], (S, S))
        valid = ((yy >= -1.0) & (yy <= H) & (xx >= -1.0) & (xx <= W)).astype(jnp.float32)
        yc = jnp.clip(yy, 0.0, H - 1.0)
        xc = jnp.clip(xx, 0.0, W - 1.0)
        y0 = jnp.floor(yc).astype(jnp.int32)
        x0 = jnp.floor(xc).astype(jnp.int32)
        y1i = jnp.minimum(y0 + 1, H - 1)
        x1i = jnp.minimum(x0 + 1, W - 1)
        ly = yc - y0
        lx = xc - x0
        v = (fmap[y0, x0] * ((1 - ly) * (1 - lx))[..., None]
             + fmap[y0, x1i] * ((1 - ly) * lx)[..., None]
             + fmap[y1i, x0] * (ly * (1 - lx))[..., None]
             + fmap[y1i, x1i] * (ly * lx)[..., None])
        v = v * valid[..., None]
        v = v.reshape(out_size, sr, out_size, sr, C)
        return v.mean(axis=(1, 3))

    return jax.vmap(sample_one)(fmaps, ys, xs)


def multiscale_roi_align(features, scales, proposals_list, out_size, sampling_ratio=2):
    """MultiScaleRoIAlign with per-ROI FPN level selection done ON DEVICE (one-hot combine of
    the cheap per-level pooling) -- no host round trips, no TPU stalls."""
    rois = []
    for b, p in enumerate(proposals_list):
        idx = jnp.full((p.shape[0], 1), float(b), p.dtype)
        rois.append(jnp.concatenate([idx, p], axis=1))
    rois = jnp.concatenate(rois, axis=0)
    boxes = rois[:, 1:]
    area = jnp.clip(boxes[:, 2] - boxes[:, 0], 0.0) * jnp.clip(boxes[:, 3] - boxes[:, 1], 0.0)
    lvl = jnp.floor(4.0 + jnp.log2(jnp.sqrt(area) / 224.0 + 1e-6))
    lvl = jnp.clip(lvl, 2, 5).astype(jnp.int32) - 2
    pooled = jnp.stack(
        [roi_align(features[str(l)], rois, out_size, s, sampling_ratio)
         for l, s in enumerate(scales)], axis=0)                        # (L, R, os, os, C)
    onehot = (jnp.arange(len(scales), dtype=jnp.int32)[:, None] == lvl[None, :])
    onehot = onehot.astype(pooled.dtype)
    return jnp.sum(pooled * onehot[:, :, None, None, None], axis=0)


def project_masks_on_boxes(gt_masks, boxes, matched_idxs, size):
    if boxes.shape[0] == 0:
        return jnp.zeros((0, size, size), jnp.float32)
    rois = jnp.concatenate([matched_idxs[:, None].astype(jnp.float32), boxes], axis=1)
    feat = gt_masks[:, :, :, None]
    out = roi_align(feat, rois, size, 1.0, sampling_ratio=2)
    return out[..., 0]


# ----------------------------------------------------------------------------
# Parameters (deterministic synthetic init, shapes from RoIHeads.__init__)
# ----------------------------------------------------------------------------
def init_params(key, fpn_out_channels, num_classes, num_materials, representation_size=1024):
    keys = jax.random.split(key, 16)

    def w(k, shape):
        return 0.02 * jax.random.normal(k, shape, jnp.float32)

    p = {}
    p['box_fc6_w'] = w(keys[0], (fpn_out_channels * 7 * 7, representation_size))
    p['box_fc6_b'] = jnp.zeros((representation_size,), jnp.float32)
    p['box_fc7_w'] = w(keys[1], (representation_size, representation_size))
    p['box_fc7_b'] = jnp.zeros((representation_size,), jnp.float32)
    p['cls_w'] = w(keys[2], (representation_size, num_classes))
    p['cls_b'] = jnp.zeros((num_classes,), jnp.float32)
    p['bbox_w'] = w(keys[3], (representation_size, num_classes * 4))
    p['bbox_b'] = jnp.zeros((num_classes * 4,), jnp.float32)
    mask_layers = [256, 256, 256, 256]
    cin = fpn_out_channels
    for i, cout in enumerate(mask_layers):
        p[f'mask_conv{i}_w'] = w(keys[4 + i], (3, 3, cin, cout))
        p[f'mask_conv{i}_b'] = jnp.zeros((cout,), jnp.float32)
        cin = cout
    p['mask_deconv_w'] = w(keys[8], (2, 2, 256, 256))
    p['mask_deconv_b'] = jnp.zeros((256,), jnp.float32)
    p['mask_fcn_w'] = w(keys[9], (256, num_classes))
    p['mask_fcn_b'] = jnp.zeros((num_classes,), jnp.float32)
    # TODO(synk): MaterialRoIPool/MaterialHead/MaterialPredictor source not provided;
    # implemented as MultiScaleRoIAlign(14) -> flatten -> Linear+ReLU -> Linear.
    p['mat_fc_w'] = w(keys[10], (fpn_out_channels * 14 * 14, representation_size))
    p['mat_fc_b'] = jnp.zeros((representation_size,), jnp.float32)
    p['mat_pred_w'] = w(keys[11], (representation_size, num_materials))
    p['mat_pred_b'] = jnp.zeros((num_materials,), jnp.float32)
    return p


def _prep_linear(w, b):
    """Pre-pad + pre-cast a linear layer once (bf16 weights, f32 bias, 128-aligned K and N)."""
    K, N = w.shape
    Kp, Np = _round_up(K, 128), _round_up(N, 128)
    wp = jnp.zeros((Kp, Np), jnp.bfloat16).at[:K, :N].set(w.astype(jnp.bfloat16))
    bp = jnp.zeros((1, Np), jnp.float32).at[0, :N].set(b.astype(jnp.float32))
    return {'w': wp, 'b': bp, 'K': K, 'N': N}


def prepare_params(params):
    prep = {'num_classes': params['cls_w'].shape[1]}
    # fused box head: fc6 -> fc7 -> (cls | bbox) with the predictor as one matmul
    prep['box_head'] = [
        _prep_linear(params['box_fc6_w'], params['box_fc6_b']),
        _prep_linear(params['box_fc7_w'], params['box_fc7_b']),
        _prep_linear(jnp.concatenate([params['cls_w'], params['bbox_w']], axis=1),
                     jnp.concatenate([params['cls_b'], params['bbox_b']], axis=0)),
    ]
    # fused material head
    prep['mat_head'] = [
        _prep_linear(params['mat_fc_w'], params['mat_fc_b']),
        _prep_linear(params['mat_pred_w'], params['mat_pred_b']),
    ]
    # mask conv0: fold the 9 taps into the contraction (K = 9*Cin), one aligned matmul
    w0 = params['mask_conv0_w']
    kh, kw, cin, cout = w0.shape
    prep['mask_conv0'] = {'w': w0.reshape(kh * kw * cin, cout).astype(jnp.bfloat16),
                          'b': params['mask_conv0_b'].astype(jnp.float32).reshape(1, cout)}
    # mask conv1..3: (9, Cin, Cout) tap-major weights for in-kernel 9-tap accumulation
    for i in (1, 2, 3):
        wi = params[f'mask_conv{i}_w']
        kh, kw, cin, cout = wi.shape
        prep[f'mask_conv{i}'] = {'w': wi.reshape(kh * kw, cin, cout).astype(jnp.bfloat16),
                                 'b': params[f'mask_conv{i}_b'].astype(jnp.float32).reshape(1, cout)}
    # 2x2/s2 transposed conv fused as ONE (Cin, 4*Cout) matmul (sub-pixels don't overlap)
    wd = params['mask_deconv_w']
    kh, kw, cin, cout = wd.shape
    prep['mask_deconv'] = {
        'w': jnp.transpose(wd, (2, 0, 1, 3)).reshape(cin, kh * kw * cout).astype(jnp.bfloat16),
        'b': jnp.tile(params['mask_deconv_b'], kh * kw).astype(jnp.float32).reshape(1, kh * kw * cout)}
    # 1x1 mask predictor, num_classes padded to a 128-lane-dense output
    wf = params['mask_fcn_w']
    nc = wf.shape[1]
    ncp = _round_up(nc, 128)
    prep['mask_fcn'] = {
        'w': jnp.zeros((wf.shape[0], ncp), jnp.bfloat16).at[:, :nc].set(wf.astype(jnp.bfloat16)),
        'b': jnp.zeros((1, ncp), jnp.float32).at[0, :nc].set(params['mask_fcn_b'])}
    return prep


# ----------------------------------------------------------------------------
# RoIHeads.forward (training path) — returns the loss dict
# ----------------------------------------------------------------------------
def roi_heads_forward(prep, features, scales, proposals, image_shapes, targets):
    num_classes = prep['num_classes']
    gt_boxes = [t['boxes'] for t in targets]
    gt_labels = [t['labels'] for t in targets]

    # add_gt_proposals
    proposals = [jnp.concatenate([p, gb], axis=0) for p, gb in zip(proposals, gt_boxes)]

    # assign_targets_to_proposals (Matcher with fg==bg==0.5, no low-quality matches)
    matched_idxs, labels = [], []
    for p, gb, gl in zip(proposals, gt_boxes, gt_labels):
        iou = box_iou(gb, p)
        vals = iou.max(axis=0)
        matches = iou.argmax(axis=0).astype(jnp.int32)
        matches = jnp.where(vals < 0.5, -1, matches)
        clamped = jnp.clip(matches, 0)
        li = jnp.where(matches == -1, 0, gl[clamped])
        matched_idxs.append(clamped)
        labels.append(li)

    # TODO(synk): BalancedPositiveNegativeSampler random subsampling skipped; with
    # batch_size_per_image=512 > #proposals, all samples are kept (same result as torch here).
    matched_gt_boxes = [gb[mi] for gb, mi in zip(gt_boxes, matched_idxs)]
    regression_targets = [encode_boxes(mgb, p) for mgb, p in zip(matched_gt_boxes, proposals)]

    # ---- box branch: MultiScaleRoIAlign(7) -> fused fc6/fc7/cls+bbox (one pallas_call) ----
    box_feats = multiscale_roi_align(features, scales, proposals, out_size=7)
    N = box_feats.shape[0]
    head = fused_mlp(box_feats.reshape(N, -1), prep['box_head'], (True, True, False))
    class_logits = head[:, :num_classes]
    box_regression = head[:, num_classes:num_classes * 5]

    labels_cat = jnp.concatenate(labels, axis=0)
    reg_tgt_cat = jnp.concatenate(regression_targets, axis=0)
    loss_classifier = cross_entropy_mean(class_logits, labels_cat)
    pos_inds = jnp.where(labels_cat > 0)[0]
    if int(pos_inds.shape[0]) > 0:
        labels_pos = labels_cat[pos_inds]
        pred = box_regression.reshape(N, -1, 4)[pos_inds, labels_pos]
        loss_box_reg = smooth_l1_sum(pred, reg_tgt_cat[pos_inds], beta=1.0 / 9.0) / N
    else:
        loss_box_reg = jnp.zeros((), jnp.float32)
    losses = {'loss_classifier': loss_classifier, 'loss_box_reg': loss_box_reg}

    # positive samples (guard BEFORE the mask branch so zero-row kernels never run)
    positive_proposals = [p[jnp.where(l > 0)[0]] for p, l in zip(proposals, labels)]
    positive_indexes = [mi[jnp.where(l > 0)[0]] for mi, l in zip(matched_idxs, labels)]
    P = int(sum(int(pp.shape[0]) for pp in positive_proposals))
    if P == 0:
        losses['loss_mask'] = jnp.zeros((), jnp.float32)
        return losses

    # ---- mask branch: MultiScaleRoIAlign(14) -> fused conv/deconv/predictor kernel ----
    mask_feats = multiscale_roi_align(features, scales, positive_proposals, out_size=14)
    mask_logits = mask_head_pallas(mask_feats, prep, num_classes)          # (P, 28, 28, NC)

    gt_masks = [t['masks'] for t in targets]
    mask_labels = jnp.concatenate([gl[mi] for gl, mi in zip(gt_labels, positive_indexes)], 0)
    disc = mask_logits.shape[1]
    mask_targets = jnp.concatenate(
        [project_masks_on_boxes(mm, pp, ii, disc)
         for mm, pp, ii in zip(gt_masks, positive_proposals, positive_indexes)], axis=0)
    idx = jnp.broadcast_to(mask_labels[:, None, None, None], (P, disc, disc, 1))
    picked_logits = jnp.take_along_axis(mask_logits, idx, axis=-1)[..., 0]
    losses['loss_mask'] = bce_with_logits_mean(picked_logits, mask_targets)

    # ---- material branch (MaterialRoIPool == MultiScaleRoIAlign(14) on the same positives,
    #      so the pooled features are reused; head is a fused two-layer MLP) ----
    material_logits = fused_mlp(mask_feats.reshape(P, -1), prep['mat_head'], (True, False))
    gt_materials = [t['materials'] for t in targets]
    material_targets = jnp.concatenate(
        [gm[mi] for gm, mi in zip(gt_materials, positive_indexes)], axis=0)
    losses['loss_material'] = cross_entropy_mean(material_logits, material_targets)
    return losses


# ----------------------------------------------------------------------------
if __name__ == "__main__":
    num_classes, num_materials, fpn_out_channels = 5, 4, 32
    B, im_h, im_w = 2, 64, 64
    level_sizes = [(16, 16), (8, 8), (4, 4), (2, 2)]
    scales = [0.25, 0.125, 0.0625, 0.03125]

    key = jax.random.PRNGKey(0)
    keys = jax.random.split(key, 40)

    features = {str(i): jax.random.normal(keys[i], (B, h, w, fpn_out_channels), jnp.float32)
                for i, (h, w) in enumerate(level_sizes)}

    proposals = []
    for b in range(B):
        k1, k2 = jax.random.split(keys[10 + b])
        xy = jax.random.uniform(k1, (16, 2), minval=0.0, maxval=44.0)
        wh = jax.random.uniform(k2, (16, 2), minval=8.0, maxval=18.0)
        proposals.append(jnp.concatenate([xy, xy + wh], axis=1))

    targets = []
    for b in range(B):
        k1, k2, k3, k4 = jax.random.split(keys[20 + b], 4)
        xy = jax.random.uniform(k1, (3, 2), minval=4.0, maxval=40.0)
        wh = jax.random.uniform(k2, (3, 2), minval=10.0, maxval=20.0)
        boxes = jnp.concatenate([xy, xy + wh], axis=1)
        # note: labels/materials are int32 (JAX default); torch reference requires int64
        labels = jax.random.randint(k3, (3,), 1, num_classes)
        materials = jax.random.randint(k4, (3,), 0, num_materials)
        masks = (jax.random.uniform(keys[30 + b], (3, im_h, im_w)) > 0.5).astype(jnp.float32)
        targets.append({'boxes': boxes, 'labels': labels, 'masks': masks, 'materials': materials})

    image_shapes = [(im_h, im_w)] * B
    params = init_params(jax.random.PRNGKey(42), fpn_out_channels, num_classes, num_materials)
    prep = prepare_params(params)

    losses = roi_heads_forward(prep, features, scales, proposals, image_shapes, targets)
    for v in losses.values():
        if hasattr(v, 'block_until_ready'):
            v.block_until_ready()
    print("KERNEL_OK")
</pallas_src>

<mosaic_0001>
module attributes {stable_mosaic.version = 11 : i64} {
  func.func @_mlp_kernel(%arg0: i32, %arg1: memref<48x1664xbf16, #tpu.memory_space<vmem>>, %arg2: memref<1664x1024xbf16, #tpu.memory_space<vmem>>, %arg3: memref<1x1024xf32, #tpu.memory_space<vmem>>, %arg4: memref<1024x1024xbf16, #tpu.memory_space<vmem>>, %arg5: memref<1x1024xf32, #tpu.memory_space<vmem>>, %arg6: memref<1024x128xbf16, #tpu.memory_space<vmem>>, %arg7: memref<1x128xf32, #tpu.memory_space<vmem>>, %arg8: memref<48x128xf32, #tpu.memory_space<vmem>>, %arg9: memref<48x1024xbf16, #tpu.memory_space<vmem>>, %arg10: memref<48x1024xbf16, #tpu.memory_space<vmem>>) attributes {dimension_semantics = [#tpu.dimension_semantics<parallel>], iteration_bounds = array<i64: 1>, scalar_prefetch = 0 : i64, scratch_operands = 2 : i64, tpu.core_type = #tpu.core_type<tc>, window_params = [{transform_indices = @transform_0, window_bounds = array<i64: 48, 1664>}, {pipeline_mode = #tpu.pipeline_mode<synchronous>, transform_indices = @transform_1, window_bounds = array<i64: 1664, 1024>}, {pipeline_mode = #tpu.pipeline_mode<synchronous>, transform_indices = @transform_2, window_bounds = array<i64: 1, 1024>}, {pipeline_mode = #tpu.pipeline_mode<synchronous>, transform_indices = @transform_3, window_bounds = array<i64: 1024, 1024>}, {pipeline_mode = #tpu.pipeline_mode<synchronous>, transform_indices = @transform_4, window_bounds = array<i64: 1, 1024>}, {pipeline_mode = #tpu.pipeline_mode<synchronous>, transform_indices = @transform_5, window_bounds = array<i64: 1024, 128>}, {pipeline_mode = #tpu.pipeline_mode<synchronous>, transform_indices = @transform_6, window_bounds = array<i64: 1, 128>}, {transform_indices = @transform_7, window_bounds = array<i64: 48, 128>}]} {
    %c0 = arith.constant 0 : index
    %c0_0 = arith.constant 0 : index
    %0 = vector.load %arg1[%c0, %c0_0] : memref<48x1664xbf16, #tpu.memory_space<vmem>>, vector<48x1664xbf16>
    %c0_1 = arith.constant 0 : index
    %c0_2 = arith.constant 0 : index
    %1 = vector.load %arg2[%c0_1, %c0_2] : memref<1664x1024xbf16, #tpu.memory_space<vmem>>, vector<1664x1024xbf16>
    %cst = arith.constant dense<0.000000e+00> : vector<48x1024xf32>
    %2 = tpu.matmul %0, %1, %cst {dimension_numbers = #tpu.dot_dimension_numbers<[1], [0], [0], [1], [0, 0, 1, 1], [], []>} : vector<48x1664xbf16>, vector<1664x1024xbf16>, vector<48x1024xf32> -> vector<48x1024xf32>
    %c0_3 = arith.constant 0 : index
    %c0_4 = arith.constant 0 : index
    %3 = vector.load %arg3[%c0_3, %c0_4] : memref<1x1024xf32, #tpu.memory_space<vmem>>, vector<1x1024xf32>
    %4 = vector.broadcast %3 : vector<1x1024xf32> to vector<48x1024xf32>
    %5 = arith.addf %2, %4 : vector<48x1024xf32>
    %cst_5 = arith.constant 0.000000e+00 : f32
    %6 = vector.broadcast %cst_5 : f32 to vector<48x1024xf32>
    %7 = arith.maximumf %5, %6 : vector<48x1024xf32>
    %8 = arith.truncf %7 : vector<48x1024xf32> to vector<48x1024xbf16>
    %c0_6 = arith.constant 0 : index
    %c0_7 = arith.constant 0 : index
    %9 = vector.load %arg9[%c0_6, %c0_7] : memref<48x1024xbf16, #tpu.memory_space<vmem>>, vector<48x1024xbf16>
    tpu.vector_store %arg9[%c0_6, %c0_7], %8 {strides = array<i32>} : memref<48x1024xbf16, #tpu.memory_space<vmem>>, vector<48x1024xbf16>,
    %c0_8 = arith.constant 0 : index
    %c0_9 = arith.constant 0 : index
    %10 = vector.load %arg9[%c0_8, %c0_9] : memref<48x1024xbf16, #tpu.memory_space<vmem>>, vector<48x1024xbf16>
    %c0_10 = arith.constant 0 : index
    %c0_11 = arith.constant 0 : index
    %11 = vector.load %arg4[%c0_10, %c0_11] : memref<1024x1024xbf16, #tpu.memory_space<vmem>>, vector<1024x1024xbf16>
    %cst_12 = arith.constant dense<0.000000e+00> : vector<48x1024xf32>
    %12 = tpu.matmul %10, %11, %cst_12 {dimension_numbers = #tpu.dot_dimension_numbers<[1], [0], [0], [1], [0, 0, 1, 1], [], []>} : vector<48x1024xbf16>, vector<1024x1024xbf16>, vector<48x1024xf32> -> vector<48x1024xf32>
    %c0_13 = arith.constant 0 : index
    %c0_14 = arith.constant 0 : index
    %13 = vector.load %arg5[%c0_13, %c0_14] : memref<1x1024xf32, #tpu.memory_space<vmem>>, vector<1x1024xf32>
    %14 = vector.broadcast %13 : vector<1x1024xf32> to vector<48x1024xf32>
    %15 = arith.addf %12, %14 : vector<48x1024xf32>
    %cst_15 = arith.constant 0.000000e+00 : f32
    %16 = vector.broadcast %cst_15 : f32 to vector<48x1024xf32>
    %17 = arith.maximumf %15, %16 : vector<48x1024xf32>
    %18 = arith.truncf %17 : vector<48x1024xf32> to vector<48x1024xbf16>
    %c0_16 = arith.constant 0 : index
    %c0_17 = arith.constant 0 : index
    %19 = vector.load %arg10[%c0_16, %c0_17] : memref<48x1024xbf16, #tpu.memory_space<vmem>>, vector<48x1024xbf16>
    tpu.vector_store %arg10[%c0_16, %c0_17], %18 {strides = array<i32>} : memref<48x1024xbf16, #tpu.memory_space<vmem>>, vector<48x1024xbf16>,
    %c0_18 = arith.constant 0 : index
    %c0_19 = arith.constant 0 : index
    %20 = vector.load %arg10[%c0_18, %c0_19] : memref<48x1024xbf16, #tpu.memory_space<vmem>>, vector<48x1024xbf16>
    %c0_20 = arith.constant 0 : index
    %c0_21 = arith.constant 0 : index
    %21 = vector.load %arg6[%c0_20, %c0_21] : memref<1024x128xbf16, #tpu.memory_space<vmem>>, vector<1024x128xbf16>
    %cst_22 = arith.constant dense<0.000000e+00> : vector<48x128xf32>
    %22 = tpu.matmul %20, %21, %cst_22 {dimension_numbers = #tpu.dot_dimension_numbers<[1], [0], [0], [1], [0, 0, 1, 1], [], []>} : vector<48x1024xbf16>, vector<1024x128xbf16>, vector<48x128xf32> -> vector<48x128xf32>
    %c0_23 = arith.constant 0 : index
    %c0_24 = arith.constant 0 : index
    %23 = vector.load %arg7[%c0_23, %c0_24] : memref<1x128xf32, #tpu.memory_space<vmem>>, vector<1x128xf32>
    %24 = vector.broadcast %23 : vector<1x128xf32> to vector<48x128xf32>
    %25 = arith.addf %22, %24 : vector<48x128xf32>
    %c0_25 = arith.constant 0 : index
    %c0_26 = arith.constant 0 : index
    %26 = vector.load %arg8[%c0_25, %c0_26] : memref<48x128xf32, #tpu.memory_space<vmem>>, vector<48x128xf32>
    tpu.vector_store %arg8[%c0_25, %c0_26], %25 {strides = array<i32>} : memref<48x128xf32, #tpu.memory_space<vmem>>, vector<48x128xf32>,
    return
  }
  func.func @transform_0(%arg0: i32) -> (i32, i32) {
    %c0_i32 = arith.constant 0 : i32
    %c0_i32_0 = arith.constant 0 : i32
    return %arg0, %c0_i32 : i32, i32
  }
  func.func @transform_1(%arg0: i32) -> (i32, i32) {
    %c0_i32 = arith.constant 0 : i32
    %c0_i32_0 = arith.constant 0 : i32
    %c0_i32_1 = arith.constant 0 : i32
    return %c0_i32, %c0_i32_0 : i32, i32
  }
  func.func @transform_2(%arg0: i32) -> (i32, i32) {
    %c0_i32 = arith.constant 0 : i32
    %c0_i32_0 = arith.constant 0 : i32
    %c0_i32_1 = arith.constant 0 : i32
    return %c0_i32, %c0_i32_0 : i32, i32
  }
  func.func @transform_3(%arg0: i32) -> (i32, i32) {
    %c0_i32 = arith.constant 0 : i32
    %c0_i32_0 = arith.constant 0 : i32
    %c0_i32_1 = arith.constant 0 : i32
    return %c0_i32, %c0_i32_0 : i32, i32
  }
  func.func @transform_4(%arg0: i32) -> (i32, i32) {
    %c0_i32 = arith.constant 0 : i32
    %c0_i32_0 = arith.constant 0 : i32
    %c0_i32_1 = arith.constant 0 : i32
    return %c0_i32, %c0_i32_0 : i32, i32
  }
  func.func @transform_5(%arg0: i32) -> (i32, i32) {
    %c0_i32 = arith.constant 0 : i32
    %c0_i32_0 = arith.constant 0 : i32
    %c0_i32_1 = arith.constant 0 : i32
    return %c0_i32, %c0_i32_0 : i32, i32
  }
  func.func @transform_6(%arg0: i32) -> (i32, i32) {
    %c0_i32 = arith.constant 0 : i32
    %c0_i32_0 = arith.constant 0 : i32
    %c0_i32_1 = arith.constant 0 : i32
    return %c0_i32, %c0_i32_0 : i32, i32
  }
  func.func @transform_7(%arg0: i32) -> (i32, i32) {
    %c0_i32 = arith.constant 0 : i32
    %c0_i32_0 = arith.constant 0 : i32
    return %arg0, %c0_i32 : i32, i32
  }
}

</mosaic_0001>

<llo_original>
// kernel: tpu_custom_call.1
$region0: #{tpu_custom_call.1}
  #allocation0 [shape = 'u32[]', space=smem, size = 0x4, offset = 0x4, fixed_abs, tag = 'smem constant byte address 0x4 - core index']
  #allocation1 [shape = 'u32[144,128]{1,0:T(1,128)}', space=vmem, size = 0x12000, scoped, tag = 'internal scratch']
  #allocation2 [shape = 'bf16[48,1024]{1,0:T(16,128)(2,1)}', space=vmem, size = 0x18000, scoped, tag = 'scratch operand']
  #allocation3 [shape = 'bf16[48,1024]{1,0:T(16,128)(2,1)}', space=vmem, size = 0x18000, scoped, tag = 'scratch operand']
  %s0 = inlined_call_operand.hbm [shape: bf16[48,1664], index: 0, kind: input, shape index: {}]
  %s1 = inlined_call_operand.hbm [shape: bf16[1664,1024], index: 1, kind: input, shape index: {}]
  %s2 = inlined_call_operand.hbm [shape: f32[1,1024], index: 2, kind: input, shape index: {}]
  %s3 = inlined_call_operand.hbm [shape: bf16[1024,1024], index: 3, kind: input, shape index: {}]
  %s4 = inlined_call_operand.hbm [shape: f32[1,1024], index: 4, kind: input, shape index: {}]
  %s5 = inlined_call_operand.hbm [shape: bf16[1024,128], index: 5, kind: input, shape index: {}]
  %s6 = inlined_call_operand.hbm [shape: f32[1,128], index: 6, kind: input, shape index: {}]
  %s7 = inlined_call_operand.hbm [shape: f32[48,128], index: 7, kind: output, shape index: {}]
  %s8 = sld [smem:[#allocation0]]
  $region66: #{tpu_custom_call.1} parent=0
    _
  %s10 = ssub.s32 1, %s8
  %s11 = scalar_select 0, %s10, %s8
  $region1: #{tpu_custom_call.1} parent=0
    #allocation4 [shape = 'u8[159744]{0}', space=vmem, size = 0x27000, scoped, tag = 'input window, operand 0, single buffered']
    #allocation5 [shape = 's32[1]{0}', space=sflag, size = 0x4, scoped, tag = 'scoped memory for tpu_custom_call.1']
    #allocation6 [shape = 's32[1]{0}', space=sflag, size = 0x4, scoped, tag = 'scoped memory for tpu_custom_call.1']
    #allocation7 [shape = 'u8[3407872]{0}', space=vmem, size = 0x340000, scoped, tag = 'input window, operand 1, single buffered']
    #allocation8 [shape = 's32[1]{0}', space=sflag, size = 0x4, scoped, tag = 'scoped memory for tpu_custom_call.1']
    #allocation9 [shape = 'u8[4096]{0}', space=vmem, size = 0x1000, scoped, tag = 'input window, operand 2, single buffered']
    #allocation10 [shape = 'u8[2097152]{0}', space=vmem, size = 0x200000, scoped, tag = 'input window, operand 3, single buffered']
    #allocation11 [shape = 's32[1]{0}', space=sflag, size = 0x4, scoped, tag = 'scoped memory for tpu_custom_call.1']
    #allocation12 [shape = 'u8[4096]{0}', space=vmem, size = 0x1000, scoped, tag = 'input window, operand 4, single buffered']
    #allocation13 [shape = 'u8[262144]{0}', space=vmem, size = 0x40000, scoped, tag = 'input window, operand 5, single buffered']
    #allocation14 [shape = 's32[1]{0}', space=sflag, size = 0x4, scoped, tag = 'scoped memory for tpu_custom_call.1']
    #allocation15 [shape = 'u8[512]{0}', space=vmem, size = 0x400, scoped, tag = 'input window, operand 6, single buffered']
    #allocation16 [shape = 'u8[24576]{0}', space=vmem, size = 0x6000, scoped, tag = 'output window, operand 0, single buffered']
    %12 = vsyncpa [#allocation5], 0
    %13 = vsyncpa [#allocation8], 0
    %14 = vsyncpa [#allocation11], 0
    %15 = vsyncpa [#allocation14], 0
    %16 = vsyncpa [#allocation6], 0
    // Predicated region
    $region2: #{tpu_custom_call.1} parent=1 // pred_check
      _
    $region3: #{tpu_custom_call.1} parent=1 // pred_check_branch
      %18 = sbr.rel (0) target = $region5
    $region4: #{tpu_custom_call.1} parent=1 // pred_region
      %s20 = ssub.s32 4992, 4992
      %21 = vsyncadd [#allocation5], %s20
      %s22 = sshll.u32 [#allocation4], 4
      %s23 = int_to_ptr.vmem [resolvable:$true] %s22
      %28 = dma.hbm_to_vmem [thread:$0]  %s0, 4992, %s23, [#allocation5], 832, 832, 52
    $region5: #{tpu_custom_call.1} parent=1 // pred_fallthru
      _
    // Predicated region
    $region6: #{tpu_custom_call.1} parent=1 // pred_check
      _
    $region7: #{tpu_custom_call.1} parent=1 // pred_check_branch
      %30 = sbr.rel (0) target = $region9
    $region8: #{tpu_custom_call.1} parent=1 // pred_region
      %s32 = ssub.s32 106496, 106496
      %33 = vsyncadd [#allocation8], %s32
      %s34 = sshll.u32 [#allocation7], 4
      %s35 = int_to_ptr.vmem [resolvable:$true] %s34
      %40 = dma.hbm_to_vmem [thread:$0]  %s1, 106496, %s35, [#allocation8], 512, 512, 32
    $region9: #{tpu_custom_call.1} parent=1 // pred_fallthru
      _
    // Predicated region
    $region10: #{tpu_custom_call.1} parent=1 // pred_check
      _
    $region11: #{tpu_custom_call.1} parent=1 // pred_check_branch
      %42 = sbr.rel (0) target = $region13
    $region12: #{tpu_custom_call.1} parent=1 // pred_region
      %s44 = ssub.s32 128, 128
      %45 = vsyncadd [#allocation8], %s44
      %s47 = sshll.u32 [#allocation9], 4
      %s48 = int_to_ptr.vmem [resolvable:$true] %s47
      %50 = dma.hbm_to_vmem [thread:$0]  %s2, 128, %s48, [#allocation8]
    $region13: #{tpu_custom_call.1} parent=1 // pred_fallthru
      _
    // Predicated region
    $region14: #{tpu_custom_call.1} parent=1 // pred_check
      _
    $region15: #{tpu_custom_call.1} parent=1 // pred_check_branch
      %52 = sbr.rel (0) target = $region17
    $region16: #{tpu_custom_call.1} parent=1 // pred_region
      %s54 = ssub.s32 65536, 65536
      %55 = vsyncadd [#allocation11], %s54
      %s56 = sshll.u32 [#allocation10], 4
      %s57 = int_to_ptr.vmem [resolvable:$true] %s56
      %62 = dma.hbm_to_vmem [thread:$0]  %s3, 65536, %s57, [#allocation11], 512, 512, 32
    $region17: #{tpu_custom_call.1} parent=1 // pred_fallthru
      _
    // Predicated region
    $region18: #{tpu_custom_call.1} parent=1 // pred_check
      _
    $region19: #{tpu_custom_call.1} parent=1 // pred_check_branch
      %64 = sbr.rel (0) target = $region21
    $region20: #{tpu_custom_call.1} parent=1 // pred_region
      %s66 = ssub.s32 128, 128
      %67 = vsyncadd [#allocation11], %s66
      %s69 = sshll.u32 [#allocation12], 4
      %s70 = int_to_ptr.vmem [resolvable:$true] %s69
      %72 = dma.hbm_to_vmem [thread:$0]  %s4, 128, %s70, [#allocation11]
    $region21: #{tpu_custom_call.1} parent=1 // pred_fallthru
      _
    // Predicated region
    $region22: #{tpu_custom_call.1} parent=1 // pred_check
      _
    $region23: #{tpu_custom_call.1} parent=1 // pred_check_branch
      %74 = sbr.rel (0) target = $region25
    $region24: #{tpu_custom_call.1} parent=1 // pred_region
      %s76 = ssub.s32 8192, 8192
      %77 = vsyncadd [#allocation14], %s76
      %s78 = sshll.u32 [#allocation13], 4
      %s79 = int_to_ptr.vmem [resolvable:$true] %s78
      %84 = dma.hbm_to_vmem [thread:$0]  %s5, 8192, %s79, [#allocation14], 64, 64, 4
    $region25: #{tpu_custom_call.1} parent=1 // pred_fallthru
      _
    // Predicated region
    $region26: #{tpu_custom_call.1} parent=1 // pred_check
      _
    $region27: #{tpu_custom_call.1} parent=1 // pred_check_branch
      %86 = sbr.rel (0) target = $region29
    $region28: #{tpu_custom_call.1} parent=1 // pred_region
      %s88 = ssub.s32 16, 16
      %89 = vsyncadd [#allocation14], %s88
      %s91 = sshll.u32 [#allocation15], 4
      %s92 = int_to_ptr.vmem [resolvable:$true] %s91
      %94 = dma.hbm_to_vmem [thread:$0]  %s6, 16, %s92, [#allocation14]
    $region29: #{tpu_custom_call.1} parent=1 // pred_fallthru
      _
    // Predicated region
    $region30: #{tpu_custom_call.1} parent=1 // pred_check
      _
    $region31: #{tpu_custom_call.1} parent=1 // pred_check_branch
      %96 = sbr.rel (0) target = $region33
    $region32: #{tpu_custom_call.1} parent=1 // pred_region
      %97 = dma.done [#allocation5], 4992
    $region33: #{tpu_custom_call.1} parent=1 // pred_fallthru
      _
    // Predicated region
    $region34: #{tpu_custom_call.1} parent=1 // pred_check
      _
    $region35: #{tpu_custom_call.1} parent=1 // pred_check_branch
      %99 = sbr.rel (0) target = $region37
    $region36: #{tpu_custom_call.1} parent=1 // pred_region
      %100 = dma.done [#allocation8], 106496
    $region37: #{tpu_custom_call.1} parent=1 // pred_fallthru
      _
    // Predicated region
    $region38: #{tpu_custom_call.1} parent=1 // pred_check
      _
    $region39: #{tpu_custom_call.1} parent=1 // pred_check_branch
      %102 = sbr.rel (0) target = $region41
    $region40: #{tpu_custom_call.1} parent=1 // pred_region
      %103 = dma.done [#allocation8], 128
    $region41: #{tpu_custom_call.1} parent=1 // pred_fallthru
      _
    // Predicated region
    $region42: #{tpu_custom_call.1} parent=1 // pred_check
      _
    $region43: #{tpu_custom_call.1} parent=1 // pred_check_branch
      %105 = sbr.rel (0) target = $region45
    $region44: #{tpu_custom_call.1} parent=1 // pred_region
      %106 = dma.done [#allocation11], 65536
    $region45: #{tpu_custom_call.1} parent=1 // pred_fallthru
      _
    // Predicated region
    $region46: #{tpu_custom_call.1} parent=1 // pred_check
      _
    $region47: #{tpu_custom_call.1} parent=1 // pred_check_branch
      %108 = sbr.rel (0) target = $region49
    $region48: #{tpu_custom_call.1} parent=1 // pred_region
      %109 = dma.done [#allocation11], 128
    $region49: #{tpu_custom_call.1} parent=1 // pred_fallthru
      _
    // Predicated region
    $region50: #{tpu_custom_call.1} parent=1 // pred_check
      _
    $region51: #{tpu_custom_call.1} parent=1 // pred_check_branch
      %111 = sbr.rel (0) target = $region53
    $region52: #{tpu_custom_call.1} parent=1 // pred_region
      %112 = dma.done [#allocation14], 8192
    $region53: #{tpu_custom_call.1} parent=1 // pred_fallthru
      _
    // Predicated region
    $region54: #{tpu_custom_call.1} parent=1 // pred_check
      _
    $region55: #{tpu_custom_call.1} parent=1 // pred_check_branch
      %114 = sbr.rel (0) target = $region57
    $region56: #{tpu_custom_call.1} parent=1 // pred_region
      %115 = dma.done [#allocation14], 16
    $region57: #{tpu_custom_call.1} parent=1 // pred_fallthru
      _
    %v117 = vld [vmem:[#allocation4] sm:$0xff]
    %v118 = vld [vmem:[#allocation4 + $0x8] sm:$0xff]
    %v119 = vld [vmem:[#allocation4 + $0x10] sm:$0xff]
    %v120 = vld [vmem:[#allocation4 + $0x18] sm:$0xff]
    %v121 = vld [vmem:[#allocation4 + $0x20] sm:$0xff]
    %v122 = vld [vmem:[#allocation4 + $0x28] sm:$0xff]
    %v123 = vld [vmem:[#allocation4 + $0x30] sm:$0xf]
    %v124 = vld [vmem:[#allocation4 + $0x34] sm:$0xff]
    %v125 = vld [vmem:[#allocation4 + $0x3c] sm:$0xff]
    %v126 = vld [vmem:[#allocation4 + $0x44] sm:$0xff]
    %v127 = vld [vmem:[#allocation4 + $0x4c] sm:$0xff]
    %v128 = vld [vmem:[#allocation4 + $0x54] sm:$0xff]
    %v129 = vld [vmem:[#allocation4 + $0x5c] sm:$0xff]
    %v130 = vld [vmem:[#allocation4 + $0x64] sm:$0xf]
    %v131 = vld [vmem:[#allocation4 + $0x68] sm:$0xff]
    %v132 = vld [vmem:[#allocation4 + $0x70] sm:$0xff]
    %v133 = vld [vmem:[#allocation4 + $0x78] sm:$0xff]
    %v134 = vld [vmem:[#allocation4 + $0x80] sm:$0xff]
    %v135 = vld [vmem:[#allocation4 + $0x88] sm:$0xff]
    %v136 = vld [vmem:[#allocation4 + $0x90] sm:$0xff]
    %v137 = vld [vmem:[#allocation4 + $0x98] sm:$0xf]
    %v138 = vld [vmem:[#allocation4 + $0x9c] sm:$0xff]
    %v139 = vld [vmem:[#allocation4 + $0xa4] sm:$0xff]
    %v140 = vld [vmem:[#allocation4 + $0xac] sm:$0xff]
    %v141 = vld [vmem:[#allocation4 + $0xb4] sm:$0xff]
    %v142 = vld [vmem:[#allocation4 + $0xbc] sm:$0xff]
    %v143 = vld [vmem:[#allocation4 + $0xc4] sm:$0xff]
    %v144 = vld [vmem:[#allocation4 + $0xcc] sm:$0xf]
    %v145 = vld [vmem:[#allocation4 + $0xd0] sm:$0xff]
    %v146 = vld [vmem:[#allocation4 + $0xd8] sm:$0xff]
    %v147 = vld [vmem:[#allocation4 + $0xe0] sm:$0xff]
    %v148 = vld [vmem:[#allocation4 + $0xe8] sm:$0xff]
    %v149 = vld [vmem:[#allocation4 + $0xf0] sm:$0xff]
    %v150 = vld [vmem:[#allocation4 + $0xf8] sm:$0xff]
    %v151 = vld [vmem:[#allocation4 + $0x100] sm:$0xf]
    %v152 = vld [vmem:[#allocation4 + $0x104] sm:$0xff]
    %v153 = vld [vmem:[#allocation4 + $0x10c] sm:$0xff]
    %v154 = vld [vmem:[#allocation4 + $0x114] sm:$0xff]
    %v155 = vld [vmem:[#allocation4 + $0x11c] sm:$0xff]
    %v156 = vld [vmem:[#allocation4 + $0x124] sm:$0xff]
    %v157 = vld [vmem:[#allocation4 + $0x12c] sm:$0xff]
    %v158 = vld [vmem:[#allocation4 + $0x134] sm:$0xf]
    %v159 = vld [vmem:[#allocation7] sm:$0xff]
    %v160 = vld [vmem:[#allocation7 + $0x8] sm:$0xff]
    %v161 = vld [vmem:[#allocation7 + $0x10] sm:$0xff]
    %v162 = vld [vmem:[#allocation7 + $0x18] sm:$0xff]
    %v163 = vld [vmem:[#allocation7 + $0x20] sm:$0xff]
    %v164 = vld [vmem:[#allocation7 + $0x28] sm:$0xff]
    %v165 = vld [vmem:[#allocation7 + $0x30] sm:$0xff]
    %v166 = vld [vmem:[#allocation7 + $0x38] sm:$0xff]
    %v167 = vld [vmem:[#allocation7 + $0x40] sm:$0xff]
    %v168 = vld [vmem:[#allocation7 + $0x48] sm:$0xff]
    %v169 = vld [vmem:[#allocation7 + $0x50] sm:$0xff]
    %v170 = vld [vmem:[#allocation7 + $0x58] sm:$0xff]
    %v171 = vld [vmem:[#allocation7 + $0x60] sm:$0xff]
    %v172 = vld [vmem:[#allocation7 + $0x68] sm:$0xff]
    %v173 = vld [vmem:[#allocation7 + $0x70] sm:$0xff]
    %v174 = vld [vmem:[#allocation7 + $0x78] sm:$0xff]
    %v175 = vld [vmem:[#allocation7 + $0x80] sm:$0xff]
    %v176 = vld [vmem:[#allocation7 + $0x88] sm:$0xff]
    %v177 = vld [vmem:[#allocation7 + $0x90] sm:$0xff]
    %v178 = vld [vmem:[#allocation7 + $0x98] sm:$0xff]
    %v179 = vld [vmem:[#allocation7 + $0xa0] sm:$0xff]
    %v180 = vld [vmem:[#allocation7 + $0xa8] sm:$0xff]
    %v181 = vld [vmem:[#allocation7 + $0xb0] sm:$0xff]
    %v182 = vld [vmem:[#allocation7 + $0xb8] sm:$0xff]
    %v183 = vld [vmem:[#allocation7 + $0xc0] sm:$0xff]
    %v184 = vld [vmem:[#allocation7 + $0xc8] sm:$0xff]
    %v185 = vld [vmem:[#allocation7 + $0xd0] sm:$0xff]
    %v186 = vld [vmem:[#allocation7 + $0xd8] sm:$0xff]
    %v187 = vld [vmem:[#allocation7 + $0xe0] sm:$0xff]
    %v188 = vld [vmem:[#allocation7 + $0xe8] sm:$0xff]
    %v189 = vld [vmem:[#allocation7 + $0xf0] sm:$0xff]
    %v190 = vld [vmem:[#allocation7 + $0xf8] sm:$0xff]
    %v191 = vld [vmem:[#allocation7 + $0x100] sm:$0xff]
    %v192 = vld [vmem:[#allocation7 + $0x108] sm:$0xff]
    %v193 = vld [vmem:[#allocation7 + $0x110] sm:$0xff]
    %v194 = vld [vmem:[#allocation7 + $0x118] sm:$0xff]
    %v195 = vld [vmem:[#allocation7 + $0x120] sm:$0xff]
    %v196 = vld [vmem:[#allocation7 + $0x128] sm:$0xff]
    %v197 = vld [vmem:[#allocation7 + $0x130] sm:$0xff]
    %v198 = vld [vmem:[#allocation7 + $0x138] sm:$0xff]
    %v199 = vld [vmem:[#allocation7 + $0x140] sm:$0xff]
    %v200 = vld [vmem:[#allocation7 + $0x148] sm:$0xff]
    %v201 = vld [vmem:[#allocation7 + $0x150] sm:$0xff]
    %v202 = vld [vmem:[#allocation7 + $0x158] sm:$0xff]
    %v203 = vld [vmem:[#allocation7 + $0x160] sm:$0xff]
    %v204 = vld [vmem:[#allocation7 + $0x168] sm:$0xff]
    %v205 = vld [vmem:[#allocation7 + $0x170] sm:$0xff]
    %v206 = vld [vmem:[#allocation7 + $0x178] sm:$0xff]
    %v207 = vld [vmem:[#allocation7 + $0x180] sm:$0xff]
    %v208 = vld [vmem:[#allocation7 + $0x188] sm:$0xff]
    %v209 = vld [vmem:[#allocation7 + $0x190] sm:$0xff]
    %v210 = vld [vmem:[#allocation7 + $0x198] sm:$0xff]
    %v211 = vld [vmem:[#allocation7 + $0x1a0] sm:$0xff]
    %v212 = vld [vmem:[#allocation7 + $0x1a8] sm:$0xff]
    %v213 = vld [vmem:[#allocation7 + $0x1b0] sm:$0xff]
    %v214 = vld [vmem:[#allocation7 + $0x1b8] sm:$0xff]
    %v215 = vld [vmem:[#allocation7 + $0x1c0] sm:$0xff]
    %v216 = vld [vmem:[#allocation7 + $0x1c8] sm:$0xff]
    %v217 = vld [vmem:[#allocation7 + $0x1d0] sm:$0xff]
    %v218 = vld [vmem:[#allocation7 + $0x1d8] sm:$0xff]
    %v219 = vld [vmem:[#allocation7 + $0x1e0] sm:$0xff]
    %v220 = vld [vmem:[#allocation7 + $0x1e8] sm:$0xff]
    %v221 = vld [vmem:[#allocation7 + $0x1f0] sm:$0xff]
    %v222 = vld [vmem:[#allocation7 + $0x1f8] sm:$0xff]
    %v223 = vld [vmem:[#allocation7 + $0x200] sm:$0xff]
    %v224 = vld [vmem:[#allocation7 + $0x208] sm:$0xff]
    %v225 = vld [vmem:[#allocation7 + $0x210] sm:$0xff]
    %v226 = vld [vmem:[#allocation7 + $0x218] sm:$0xff]
    %v227 = vld [vmem:[#allocation7 + $0x220] sm:$0xff]
    %v228 = vld [vmem:[#allocation7 + $0x228] sm:$0xff]
    %v229 = vld [vmem:[#allocation7 + $0x230] sm:$0xff]
    %v230 = vld [vmem:[#allocation7 + $0x238] sm:$0xff]
    %v231 = vld [vmem:[#allocation7 + $0x240] sm:$0xff]
    %v232 = vld [vmem:[#allocation7 + $0x248] sm:$0xff]
    %v233 = vld [vmem:[#allocation7 + $0x250] sm:$0xff]
    %v234 = vld [vmem:[#allocation7 + $0x258] sm:$0xff]
    %v235 = vld [vmem:[#allocation7 + $0x260] sm:$0xff]
    %v236 = vld [vmem:[#allocation7 + $0x268] sm:$0xff]
    %v237 = vld [vmem:[#allocation7 + $0x270] sm:$0xff]
    %v238 = vld [vmem:[#allocation7 + $0x278] sm:$0xff]
    %v239 = vld [vmem:[#allocation7 + $0x280] sm:$0xff]
    %v240 = vld [vmem:[#allocation7 + $0x288] sm:$0xff]
    %v241 = vld [vmem:[#allocation7 + $0x290] sm:$0xff]
    %v242 = vld [vmem:[#allocation7 + $0x298] sm:$0xff]
    %v243 = vld [vmem:[#allocation7 + $0x2a0] sm:$0xff]
    %v244 = vld [vmem:[#allocation7 + $0x2a8] sm:$0xff]
    %v245 = vld [vmem:[#allocation7 + $0x2b0] sm:$0xff]
    %v246 = vld [vmem:[#allocation7 + $0x2b8] sm:$0xff]
    %v247 = vld [vmem:[#allocation7 + $0x2c0] sm:$0xff]
    %v248 = vld [vmem:[#allocation7 + $0x2c8] sm:$0xff]
    %v249 = vld [vmem:[#allocation7 + $0x2d0] sm:$0xff]
    %v250 = vld [vmem:[#allocation7 + $0x2d8] sm:$0xff]
    %v251 = vld [vmem:[#allocation7 + $0x2e0] sm:$0xff]
    %v252 = vld [vmem:[#allocation7 + $0x2e8] sm:$0xff]
    %v253 = vld [vmem:[#allocation7 + $0x2f0] sm:$0xff]
    %v254 = vld [vmem:[#allocation7 + $0x2f8] sm:$0xff]
    %v255 = vld [vmem:[#allocation7 + $0x300] sm:$0xff]
    %v256 = vld [vmem:[#allocation7 + $0x308] sm:$0xff]
    %v257 = vld [vmem:[#allocation7 + $0x310] sm:$0xff]
    %v258 = vld [vmem:[#allocation7 + $0x318] sm:$0xff]
    %v259 = vld [vmem:[#allocation7 + $0x320] sm:$0xff]
    %v260 = vld [vmem:[#allocation7 + $0x328] sm:$0xff]
    %v261 = vld [vmem:[#allocation7 + $0x330] sm:$0xff]
    %v262 = vld [vmem:[#allocation7 + $0x338] sm:$0xff]
    %v263 = vld [vmem:[#allocation7 + $0x340] sm:$0xff]
    %v264 = vld [vmem:[#allocation7 + $0x348] sm:$0xff]
    %v265 = vld [vmem:[#allocation7 + $0x350] sm:$0xff]
    %v266 = vld [vmem:[#allocation7 + $0x358] sm:$0xff]
    %v267 = vld [vmem:[#allocation7 + $0x360] sm:$0xff]
    %v268 = vld [vmem:[#allocation7 + $0x368] sm:$0xff]
    %v269 = vld [vmem:[#allocation7 + $0x370] sm:$0xff]
    %v270 = vld [vmem:[#allocation7 + $0x378] sm:$0xff]
    %v271 = vld [vmem:[#allocation7 + $0x380] sm:$0xff]
    %v272 = vld [vmem:[#allocation7 + $0x388] sm:$0xff]
    %v273 = vld [vmem:[#allocation7 + $0x390] sm:$0xff]
    %v274 = vld [vmem:[#allocation7 + $0x398] sm:$0xff]
    %v275 = vld [vmem:[#allocation7 + $0x3a0] sm:$0xff]
    %v276 = vld [vmem:[#allocation7 + $0x3a8] sm:$0xff]
    %v277 = vld [vmem:[#allocation7 + $0x3b0] sm:$0xff]
    %v278 = vld [vmem:[#allocation7 + $0x3b8] sm:$0xff]
    %v279 = vld [vmem:[#allocation7 + $0x3c0] sm:$0xff]
    %v280 = vld [vmem:[#allocation7 + $0x3c8] sm:$0xff]
    %v281 = vld [vmem:[#allocation7 + $0x3d0] sm:$0xff]
    %v282 = vld [vmem:[#allocation7 + $0x3d8] sm:$0xff]
    %v283 = vld [vmem:[#allocation7 + $0x3e0] sm:$0xff]
    %v284 = vld [vmem:[#allocation7 + $0x3e8] sm:$0xff]
    %v285 = vld [vmem:[#allocation7 + $0x3f0] sm:$0xff]
    %v286 = vld [vmem:[#allocation7 + $0x3f8] sm:$0xff]
    %v287 = vld [vmem:[#allocation7 + $0x400] sm:$0xff]
    %v288 = vld [vmem:[#allocation7 + $0x408] sm:$0xff]
    %v289 = vld [vmem:[#allocation7 + $0x410] sm:$0xff]
    %v290 = vld [vmem:[#allocation7 + $0x418] sm:$0xff]
    %v291 = vld [vmem:[#allocation7 + $0x420] sm:$0xff]
    %v292 = vld [vmem:[#allocation7 + $0x428] sm:$0xff]
    %v293 = vld [vmem:[#allocation7 + $0x430] sm:$0xff]
    %v294 = vld [vmem:[#allocation7 + $0x438] sm:$0xff]
    %v295 = vld [vmem:[#allocation7 + $0x440] sm:$0xff]
    %v296 = vld [vmem:[#allocation7 + $0x448] sm:$0xff]
    %v297 = vld [vmem:[#allocation7 + $0x450] sm:$0xff]
    %v298 = vld [vmem:[#allocation7 + $0x458] sm:$0xff]
    %v299 = vld [vmem:[#allocation7 + $0x460] sm:$0xff]
    %v300 = vld [vmem:[#allocation7 + $0x468] sm:$0xff]
    %v301 = vld [vmem:[#allocation7 + $0x470] sm:$0xff]
    %v302 = vld [vmem:[#allocation7 + $0x478] sm:$0xff]
    %v303 = vld [vmem:[#allocation7 + $0x480] sm:$0xff]
    %v304 = vld [vmem:[#allocation7 + $0x488] sm:$0xff]
    %v305 = vld [vmem:[#allocation7 + $0x490] sm:$0xff]
    %v306 = vld [vmem:[#allocation7 + $0x498] sm:$0xff]
    %v307 = vld [vmem:[#allocation7 + $0x4a0] sm:$0xff]
    %v308 = vld [vmem:[#allocation7 + $0x4a8] sm:$0xff]
    %v309 = vld [vmem:[#allocation7 + $0x4b0] sm:$0xff]
    %v310 = vld [vmem:[#allocation7 + $0x4b8] sm:$0xff]
    %v311 = vld [vmem:[#allocation7 + $0x4c0] sm:$0xff]
    %v312 = vld [vmem:[#allocation7 + $0x4c8] sm:$0xff]
    %v313 = vld [vmem:[#allocation7 + $0x4d0] sm:$0xff]
    %v314 = vld [vmem:[#allocation7 + $0x4d8] sm:$0xff]
    %v315 = vld [vmem:[#allocation7 + $0x4e0] sm:$0xff]
    %v316 = vld [vmem:[#allocation7 + $0x4e8] sm:$0xff]
    %v317 = vld [vmem:[#allocation7 + $0x4f0] sm:$0xff]
    %v318 = vld [vmem:[#allocation7 + $0x4f8] sm:$0xff]
    %v319 = vld [vmem:[#allocation7 + $0x500] sm:$0xff]
    %v320 = vld [vmem:[#allocation7 + $0x508] sm:$0xff]
    %v321 = vld [vmem:[#allocation7 + $0x510] sm:$0xff]
    %v322 = vld [vmem:[#allocation7 + $0x518] sm:$0xff]
    %v323 = vld [vmem:[#allocation7 + $0x520] sm:$0xff]
    %v324 = vld [vmem:[#allocation7 + $0x528] sm:$0xff]
    %v325 = vld [vmem:[#allocation7 + $0x530] sm:$0xff]
    %v326 = vld [vmem:[#allocation7 + $0x538] sm:$0xff]
    %v327 = vld [vmem:[#allocation7 + $0x540] sm:$0xff]
    %v328 = vld [vmem:[#allocation7 + $0x548] sm:$0xff]
    %v329 = vld [vmem:[#allocation7 + $0x550] sm:$0xff]
    %v330 = vld [vmem:[#allocation7 + $0x558] sm:$0xff]
    %v331 = vld [vmem:[#allocation7 + $0x560] sm:$0xff]
    %v332 = vld [vmem:[#allocation7 + $0x568] sm:$0xff]
    %v333 = vld [vmem:[#allocation7 + $0x570] sm:$0xff]
    %v334 = vld [vmem:[#allocation7 + $0x578] sm:$0xff]
    %v335 = vld [vmem:[#allocation7 + $0x580] sm:$0xff]
    %v336 = vld [vmem:[#allocation7 + $0x588] sm:$0xff]
    %v337 = vld [vmem:[#allocation7 + $0x590] sm:$0xff]
    %v338 = vld [vmem:[#allocation7 + $0x598] sm:$0xff]
    %v339 = vld [vmem:[#allocation7 + $0x5a0] sm:$0xff]
    %v340 = vld [vmem:[#allocation7 + $0x5a8] sm:$0xff]
    %v341 = vld [vmem:[#allocation7 + $0x5b0] sm:$0xff]
    %v342 = vld [vmem:[#allocation7 + $0x5b8] sm:$0xff]
    %v343 = vld [vmem:[#allocation7 + $0x5c0] sm:$0xff]
    %v344 = vld [vmem:[#allocation7 + $0x5c8] sm:$0xff]
    %v345 = vld [vmem:[#allocation7 + $0x5d0] sm:$0xff]
    %v346 = vld [vmem:[#allocation7 + $0x5d8] sm:$0xff]
    %v347 = vld [vmem:[#allocation7 + $0x5e0] sm:$0xff]
    %v348 = vld [vmem:[#allocation7 + $0x5e8] sm:$0xff]
    %v349 = vld [vmem:[#allocation7 + $0x5f0] sm:$0xff]
    %v350 = vld [vmem:[#allocation7 + $0x5f8] sm:$0xff]
    %v351 = vld [vmem:[#allocation7 + $0x600] sm:$0xff]
    %v352 = vld [vmem:[#allocation7 + $0x608] sm:$0xff]
    %v353 = vld [vmem:[#allocation7 + $0x610] sm:$0xff]
    %v354 = vld [vmem:[#allocation7 + $0x618] sm:$0xff]
    %v355 = vld [vmem:[#allocation7 + $0x620] sm:$0xff]
    %v356 = vld [vmem:[#allocation7 + $0x628] sm:$0xff]
    %v357 = vld [vmem:[#allocation7 + $0x630] sm:$0xff]
    %v358 = vld [vmem:[#allocation7 + $0x638] sm:$0xff]
    %v359 = vld [vmem:[#allocation7 + $0x640] sm:$0xff]
    %v360 = vld [vmem:[#allocation7 + $0x648] sm:$0xff]
    %v361 = vld [vmem:[#allocation7 + $0x650] sm:$0xff]
    %v362 = vld [vmem:[#allocation7 + $0x658] sm:$0xff]
    %v363 = vld [vmem:[#allocation7 + $0x660] sm:$0xff]
    %v364 = vld [vmem:[#allocation7 + $0x668] sm:$0xff]
    %v365 = vld [vmem:[#allocation7 + $0x670] sm:$0xff]
    %v366 = vld [vmem:[#allocation7 + $0x678] sm:$0xff]
    %v367 = vld [vmem:[#allocation7 + $0x680] sm:$0xff]
    %v368 = vld [vmem:[#allocation7 + $0x688] sm:$0xff]
    %v369 = vld [vmem:[#allocation7 + $0x690] sm:$0xff]
    %v370 = vld [vmem:[#allocation7 + $0x698] sm:$0xff]
    %v371 = vld [vmem:[#allocation7 + $0x6a0] sm:$0xff]
    %v372 = vld [vmem:[#allocation7 + $0x6a8] sm:$0xff]
    %v373 = vld [vmem:[#allocation7 + $0x6b0] sm:$0xff]
    %v374 = vld [vmem:[#allocation7 + $0x6b8] sm:$0xff]
    %v375 = vld [vmem:[#allocation7 + $0x6c0] sm:$0xff]
    %v376 = vld [vmem:[#allocation7 + $0x6c8] sm:$0xff]
    %v377 = vld [vmem:[#allocation7 + $0x6d0] sm:$0xff]
    %v378 = vld [vmem:[#allocation7 + $0x6d8] sm:$0xff]
    %v379 = vld [vmem:[#allocation7 + $0x6e0] sm:$0xff]
    %v380 = vld [vmem:[#allocation7 + $0x6e8] sm:$0xff]
    %v381 = vld [vmem:[#allocation7 + $0x6f0] sm:$0xff]
    %v382 = vld [vmem:[#allocation7 + $0x6f8] sm:$0xff]
    %v383 = vld [vmem:[#allocation7 + $0x700] sm:$0xff]
    %v384 = vld [vmem:[#allocation7 + $0x708] sm:$0xff]
    %v385 = vld [vmem:[#allocation7 + $0x710] sm:$0xff]
    %v386 = vld [vmem:[#allocation7 + $0x718] sm:$0xff]
    %v387 = vld [vmem:[#allocation7 + $0x720] sm:$0xff]
    %v388 = vld [vmem:[#allocation7 + $0x728] sm:$0xff]
    %v389 = vld [vmem:[#allocation7 + $0x730] sm:$0xff]
    %v390 = vld [vmem:[#allocation7 + $0x738] sm:$0xff]
    %v391 = vld [vmem:[#allocation7 + $0x740] sm:$0xff]
    %v392 = vld [vmem:[#allocation7 + $0x748] sm:$0xff]
    %v393 = vld [vmem:[#allocation7 + $0x750] sm:$0xff]
    %v394 = vld [vmem:[#allocation7 + $0x758] sm:$0xff]
    %v395 = vld [vmem:[#allocation7 + $0x760] sm:$0xff]
    %v396 = vld [vmem:[#allocation7 + $0x768] sm:$0xff]
    %v397 = vld [vmem:[#allocation7 + $0x770] sm:$0xff]
    %v398 = vld [vmem:[#allocation7 + $0x778] sm:$0xff]
    %v399 = vld [vmem:[#allocation7 + $0x780] sm:$0xff]
    %v400 = vld [vmem:[#allocation7 + $0x788] sm:$0xff]
    %v401 = vld [vmem:[#allocation7 + $0x790] sm:$0xff]
    %v402 = vld [vmem:[#allocation7 + $0x798] sm:$0xff]
    %v403 = vld [vmem:[#allocation7 + $0x7a0] sm:$0xff]
    %v404 = vld [vmem:[#allocation7 + $0x7a8] sm:$0xff]
    %v405 = vld [vmem:[#allocation7 + $0x7b0] sm:$0xff]
    %v406 = vld [vmem:[#allocation7 + $0x7b8] sm:$0xff]
    %v407 = vld [vmem:[#allocation7 + $0x7c0] sm:$0xff]
    %v408 = vld [vmem:[#allocation7 + $0x7c8] sm:$0xff]
    %v409 = vld [vmem:[#allocation7 + $0x7d0] sm:$0xff]
    %v410 = vld [vmem:[#allocation7 + $0x7d8] sm:$0xff]
    %v411 = vld [vmem:[#allocation7 + $0x7e0] sm:$0xff]
    %v412 = vld [vmem:[#allocation7 + $0x7e8] sm:$0xff]
    %v413 = vld [vmem:[#allocation7 + $0x7f0] sm:$0xff]
    %v414 = vld [vmem:[#allocation7 + $0x7f8] sm:$0xff]
    %v415 = vld [vmem:[#allocation7 + $0x800] sm:$0xff]
    %v416 = vld [vmem:[#allocation7 + $0x808] sm:$0xff]
    %v417 = vld [vmem:[#allocation7 + $0x810] sm:$0xff]
    %v418 = vld [vmem:[#allocation7 + $0x818] sm:$0xff]
    %v419 = vld [vmem:[#allocation7 + $0x820] sm:$0xff]
    %v420 = vld [vmem:[#allocation7 + $0x828] sm:$0xff]
    %v421 = vld [vmem:[#allocation7 + $0x830] sm:$0xff]
    %v422 = vld [vmem:[#allocation7 + $0x838] sm:$0xff]
    %v423 = vld [vmem:[#allocation7 + $0x840] sm:$0xff]
    %v424 = vld [vmem:[#allocation7 + $0x848] sm:$0xff]
    %v425 = vld [vmem:[#allocation7 + $0x850] sm:$0xff]
    %v426 = vld [vmem:[#allocation7 + $0x858] sm:$0xff]
    %v427 = vld [vmem:[#allocation7 + $0x860] sm:$0xff]
    %v428 = vld [vmem:[#allocation7 + $0x868] sm:$0xff]
    %v429 = vld [vmem:[#allocation7 + $0x870] sm:$0xff]
    %v430 = vld [vmem:[#allocation7 + $0x878] sm:$0xff]
    %v431 = vld [vmem:[#allocation7 + $0x880] sm:$0xff]
    %v432 = vld [vmem:[#allocation7 + $0x888] sm:$0xff]
    %v433 = vld [vmem:[#allocation7 + $0x890] sm:$0xff]
    %v434 = vld [vmem:[#allocation7 + $0x898] sm:$0xff]
    %v435 = vld [vmem:[#allocation7 + $0x8a0] sm:$0xff]
    %v436 = vld [vmem:[#allocation7 + $0x8a8] sm:$0xff]
    %v437 = vld [vmem:[#allocation7 + $0x8b0] sm:$0xff]
    %v438 = vld [vmem:[#allocation7 + $0x8b8] sm:$0xff]
    %v439 = vld [vmem:[#allocation7 + $0x8c0] sm:$0xff]
    %v440 = vld [vmem:[#allocation7 + $0x8c8] sm:$0xff]
    %v441 = vld [vmem:[#allocation7 + $0x8d0] sm:$0xff]
    %v442 = vld [vmem:[#allocation7 + $0x8d8] sm:$0xff]
    %v443 = vld [vmem:[#allocation7 + $0x8e0] sm:$0xff]
    %v444 = vld [vmem:[#allocation7 + $0x8e8] sm:$0xff]
    %v445 = vld [vmem:[#allocation7 + $0x8f0] sm:$0xff]
    %v446 = vld [vmem:[#allocation7 + $0x8f8] sm:$0xff]
    %v447 = vld [vmem:[#allocation7 + $0x900] sm:$0xff]
    %v448 = vld [vmem:[#allocation7 + $0x908] sm:$0xff]
    %v449 = vld [vmem:[#allocation7 + $0x910] sm:$0xff]
    %v450 = vld [vmem:[#allocation7 + $0x918] sm:$0xff]
    %v451 = vld [vmem:[#allocation7 + $0x920] sm:$0xff]
    %v452 = vld [vmem:[#allocation7 + $0x928] sm:$0xff]
    %v453 = vld [vmem:[#allocation7 + $0x930] sm:$0xff]
    %v454 = vld [vmem:[#allocation7 + $0x938] sm:$0xff]
    %v455 = vld [vmem:[#allocation7 + $0x940] sm:$0xff]
    %v456 = vld [vmem:[#allocation7 + $0x948] sm:$0xff]
    %v457 = vld [vmem:[#allocation7 + $0x950] sm:$0xff]
    %v458 = vld [vmem:[#allocation7 + $0x958] sm:$0xff]
    %v459 = vld [vmem:[#allocation7 + $0x960] sm:$0xff]
    %v460 = vld [vmem:[#allocation7 + $0x968] sm:$0xff]
    %v461 = vld [vmem:[#allocation7 + $0x970] sm:$0xff]
    %v462 = vld [vmem:[#allocation7 + $0x978] sm:$0xff]
    %v463 = vld [vmem:[#allocation7 + $0x980] sm:$0xff]
    %v464 = vld [vmem:[#allocation7 + $0x988] sm:$0xff]
    %v465 = vld [vmem:[#allocation7 + $0x990] sm:$0xff]
    %v466 = vld [vmem:[#allocation7 + $0x998] sm:$0xff]
    %v467 = vld [vmem:[#allocation7 + $0x9a0] sm:$0xff]
    %v468 = vld [vmem:[#allocation7 + $0x9a8] sm:$0xff]
    %v469 = vld [vmem:[#allocation7 + $0x9b0] sm:$0xff]
    %v470 = vld [vmem:[#allocation7 + $0x9b8] sm:$0xff]
    %v471 = vld [vmem:[#allocation7 + $0x9c0] sm:$0xff]
    %v472 = vld [vmem:[#allocation7 + $0x9c8] sm:$0xff]
    %v473 = vld [vmem:[#allocation7 + $0x9d0] sm:$0xff]
    %v474 = vld [vmem:[#allocation7 + $0x9d8] sm:$0xff]
    %v475 = vld [vmem:[#allocation7 + $0x9e0] sm:$0xff]
    %v476 = vld [vmem:[#allocation7 + $0x9e8] sm:$0xff]
    %v477 = vld [vmem:[#allocation7 + $0x9f0] sm:$0xff]
    %v478 = vld [vmem:[#allocation7 + $0x9f8] sm:$0xff]
    %v479 = vld [vmem:[#allocation7 + $0xa00] sm:$0xff]
    %v480 = vld [vmem:[#allocation7 + $0xa08] sm:$0xff]
    %v481 = vld [vmem:[#allocation7 + $0xa10] sm:$0xff]
    %v482 = vld [vmem:[#allocation7 + $0xa18] sm:$0xff]
    %v483 = vld [vmem:[#allocation7 + $0xa20] sm:$0xff]
    %v484 = vld [vmem:[#allocation7 + $0xa28] sm:$0xff]
    %v485 = vld [vmem:[#allocation7 + $0xa30] sm:$0xff]
    %v486 = vld [vmem:[#allocation7 + $0xa38] sm:$0xff]
    %v487 = vld [vmem:[#allocation7 + $0xa40] sm:$0xff]
    %v488 = vld [vmem:[#allocation7 + $0xa48] sm:$0xff]
    %v489 = vld [vmem:[#allocation7 + $0xa50] sm:$0xff]
    %v490 = vld [vmem:[#allocation7 + $0xa58] sm:$0xff]
    %v491 = vld [vmem:[#allocation7 + $0xa60] sm:$0xff]
    %v492 = vld [vmem:[#allocation7 + $0xa68] sm:$0xff]
    %v493 = vld [vmem:[#allocation7 + $0xa70] sm:$0xff]
    %v494 = vld [vmem:[#allocation7 + $0xa78] sm:$0xff]
    %v495 = vld [vmem:[#allocation7 + $0xa80] sm:$0xff]
    %v496 = vld [vmem:[#allocation7 + $0xa88] sm:$0xff]
    %v497 = vld [vmem:[#allocation7 + $0xa90] sm:$0xff]
    %v498 = vld [vmem:[#allocation7 + $0xa98] sm:$0xff]
    %v499 = vld [vmem:[#allocation7 + $0xaa0] sm:$0xff]
    %v500 = vld [vmem:[#allocation7 + $0xaa8] sm:$0xff]
    %v501 = vld [vmem:[#allocation7 + $0xab0] sm:$0xff]
    %v502 = vld [vmem:[#allocation7 + $0xab8] sm:$0xff]
    %v503 = vld [vmem:[#allocation7 + $0xac0] sm:$0xff]
    %v504 = vld [vmem:[#allocation7 + $0xac8] sm:$0xff]
    %v505 = vld [vmem:[#allocation7 + $0xad0] sm:$0xff]
    %v506 = vld [vmem:[#allocation7 + $0xad8] sm:$0xff]
    %v507 = vld [vmem:[#allocation7 + $0xae0] sm:$0xff]
    %v508 = vld [vmem:[#allocation7 + $0xae8] sm:$0xff]
    %v509 = vld [vmem:[#allocation7 + $0xaf0] sm:$0xff]
    %v510 = vld [vmem:[#allocation7 + $0xaf8] sm:$0xff]
    %v511 = vld [vmem:[#allocation7 + $0xb00] sm:$0xff]
    %v512 = vld [vmem:[#allocation7 + $0xb08] sm:$0xff]
    %v513 = vld [vmem:[#allocation7 + $0xb10] sm:$0xff]
    %v514 = vld [vmem:[#allocation7 + $0xb18] sm:$0xff]
    %v515 = vld [vmem:[#allocation7 + $0xb20] sm:$0xff]
    %v516 = vld [vmem:[#allocation7 + $0xb28] sm:$0xff]
    %v517 = vld [vmem:[#allocation7 + $0xb30] sm:$0xff]
    %v518 = vld [vmem:[#allocation7 + $0xb38] sm:$0xff]
    %v519 = vld [vmem:[#allocation7 + $0xb40] sm:$0xff]
    %v520 = vld [vmem:[#allocation7 + $0xb48] sm:$0xff]
    %v521 = vld [vmem:[#allocation7 + $0xb50] sm:$0xff]
    %v522 = vld [vmem:[#allocation7 + $0xb58] sm:$0xff]
    %v523 = vld [vmem:[#allocation7 + $0xb60] sm:$0xff]
    %v524 = vld [vmem:[#allocation7 + $0xb68] sm:$0xff]
    %v525 = vld [vmem:[#allocation7 + $0xb70] sm:$0xff]
    %v526 = vld [vmem:[#allocation7 + $0xb78] sm:$0xff]
    %v527 = vld [vmem:[#allocation7 + $0xb80] sm:$0xff]
    %v528 = vld [vmem:[#allocation7 + $0xb88] sm:$0xff]
    %v529 = vld [vmem:[#allocation7 + $0xb90] sm:$0xff]
    %v530 = vld [vmem:[#allocation7 + $0xb98] sm:$0xff]
    %v531 = vld [vmem:[#allocation7 + $0xba0] sm:$0xff]
    %v532 = vld [vmem:[#allocation7 + $0xba8] sm:$0xff]
    %v533 = vld [vmem:[#allocation7 + $0xbb0] sm:$0xff]
    %v534 = vld [vmem:[#allocation7 + $0xbb8] sm:$0xff]
    %v535 = vld [vmem:[#allocation7 + $0xbc0] sm:$0xff]
    %v536 = vld [vmem:[#allocation7 + $0xbc8] sm:$0xff]
    %v537 = vld [vmem:[#allocation7 + $0xbd0] sm:$0xff]
    %v538 = vld [vmem:[#allocation7 + $0xbd8] sm:$0xff]
    %v539 = vld [vmem:[#allocation7 + $0xbe0] sm:$0xff]
    %v540 = vld [vmem:[#allocation7 + $0xbe8] sm:$0xff]
    %v541 = vld [vmem:[#allocation7 + $0xbf0] sm:$0xff]
    %v542 = vld [vmem:[#allocation7 + $0xbf8] sm:$0xff]
    %v543 = vld [vmem:[#allocation7 + $0xc00] sm:$0xff]
    %v544 = vld [vmem:[#allocation7 + $0xc08] sm:$0xff]
    %v545 = vld [vmem:[#allocation7 + $0xc10] sm:$0xff]
    %v546 = vld [vmem:[#allocation7 + $0xc18] sm:$0xff]
    %v547 = vld [vmem:[#allocation7 + $0xc20] sm:$0xff]
    %v548 = vld [vmem:[#allocation7 + $0xc28] sm:$0xff]
    %v549 = vld [vmem:[#allocation7 + $0xc30] sm:$0xff]
    %v550 = vld [vmem:[#allocation7 + $0xc38] sm:$0xff]
    %v551 = vld [vmem:[#allocation7 + $0xc40] sm:$0xff]
    %v552 = vld [vmem:[#allocation7 + $0xc48] sm:$0xff]
    %v553 = vld [vmem:[#allocation7 + $0xc50] sm:$0xff]
    %v554 = vld [vmem:[#allocation7 + $0xc58] sm:$0xff]
    %v555 = vld [vmem:[#allocation7 + $0xc60] sm:$0xff]
    %v556 = vld [vmem:[#allocation7 + $0xc68] sm:$0xff]
    %v557 = vld [vmem:[#allocation7 + $0xc70] sm:$0xff]
    %v558 = vld [vmem:[#allocation7 + $0xc78] sm:$0xff]
    %v559 = vld [vmem:[#allocation7 + $0xc80] sm:$0xff]
    %v560 = vld [vmem:[#allocation7 + $0xc88] sm:$0xff]
    %v561 = vld [vmem:[#allocation7 + $0xc90] sm:$0xff]
    %v562 = vld [vmem:[#allocation7 + $0xc98] sm:$0xff]
    %v563 = vld [vmem:[#allocation7 + $0xca0] sm:$0xff]
    %v564 = vld [vmem:[#allocation7 + $0xca8] sm:$0xff]
    %v565 = vld [vmem:[#allocation7 + $0xcb0] sm:$0xff]
    %v566 = vld [vmem:[#allocation7 + $0xcb8] sm:$0xff]
    %v567 = vld [vmem:[#allocation7 + $0xcc0] sm:$0xff]
    %v568 = vld [vmem:[#allocation7 + $0xcc8] sm:$0xff]
    %v569 = vld [vmem:[#allocation7 + $0xcd0] sm:$0xff]
    %v570 = vld [vmem:[#allocation7 + $0xcd8] sm:$0xff]
    %v571 = vld [vmem:[#allocation7 + $0xce0] sm:$0xff]
    %v572 = vld [vmem:[#allocation7 + $0xce8] sm:$0xff]
    %v573 = vld [vmem:[#allocation7 + $0xcf0] sm:$0xff]
    %v574 = vld [vmem:[#allocation7 + $0xcf8] sm:$0xff]
    %v575 = vld [vmem:[#allocation7 + $0xd00] sm:$0xff]
    %v576 = vld [vmem:[#allocation7 + $0xd08] sm:$0xff]
    %v577 = vld [vmem:[#allocation7 + $0xd10] sm:$0xff]
    %v578 = vld [vmem:[#allocation7 + $0xd18] sm:$0xff]
    %v579 = vld [vmem:[#allocation7 + $0xd20] sm:$0xff]
    %v580 = vld [vmem:[#allocation7 + $0xd28] sm:$0xff]
    %v581 = vld [vmem:[#allocation7 + $0xd30] sm:$0xff]
    %v582 = vld [vmem:[#allocation7 + $0xd38] sm:$0xff]
    %v583 = vld [vmem:[#allocation7 + $0xd40] sm:$0xff]
    %v584 = vld [vmem:[#allocation7 + $0xd48] sm:$0xff]
    %v585 = vld [vmem:[#allocation7 + $0xd50] sm:$0xff]
    %v586 = vld [vmem:[#allocation7 + $0xd58] sm:$0xff]
    %v587 = vld [vmem:[#allocation7 + $0xd60] sm:$0xff]
    %v588 = vld [vmem:[#allocation7 + $0xd68] sm:$0xff]
    %v589 = vld [vmem:[#allocation7 + $0xd70] sm:$0xff]
    %v590 = vld [vmem:[#allocation7 + $0xd78] sm:$0xff]
    %v591 = vld [vmem:[#allocation7 + $0xd80] sm:$0xff]
    %v592 = vld [vmem:[#allocation7 + $0xd88] sm:$0xff]
    %v593 = vld [vmem:[#allocation7 + $0xd90] sm:$0xff]
    %v594 = vld [vmem:[#allocation7 + $0xd98] sm:$0xff]
    %v595 = vld [vmem:[#allocation7 + $0xda0] sm:$0xff]
    %v596 = vld [vmem:[#allocation7 + $0xda8] sm:$0xff]
    %v597 = vld [vmem:[#allocation7 + $0xdb0] sm:$0xff]
    %v598 = vld [vmem:[#allocation7 + $0xdb8] sm:$0xff]
    %v599 = vld [vmem:[#allocation7 + $0xdc0] sm:$0xff]
    %v600 = vld [vmem:[#allocation7 + $0xdc8] sm:$0xff]
    %v601 = vld [vmem:[#allocation7 + $0xdd0] sm:$0xff]
    %v602 = vld [vmem:[#allocation7 + $0xdd8] sm:$0xff]
    %v603 = vld [vmem:[#allocation7 + $0xde0] sm:$0xff]
    %v604 = vld [vmem:[#allocation7 + $0xde8] sm:$0xff]
    %v605 = vld [vmem:[#allocation7 + $0xdf0] sm:$0xff]
    %v606 = vld [vmem:[#allocation7 + $0xdf8] sm:$0xff]
    %v607 = vld [vmem:[#allocation7 + $0xe00] sm:$0xff]
    %v608 = vld [vmem:[#allocation7 + $0xe08] sm:$0xff]
    %v609 = vld [vmem:[#allocation7 + $0xe10] sm:$0xff]
    %v610 = vld [vmem:[#allocation7 + $0xe18] sm:$0xff]
    %v611 = vld [vmem:[#allocation7 + $0xe20] sm:$0xff]
    %v612 = vld [vmem:[#allocation7 + $0xe28] sm:$0xff]
    %v613 = vld [vmem:[#allocation7 + $0xe30] sm:$0xff]
    %v614 = vld [vmem:[#allocation7 + $0xe38] sm:$0xff]
    %v615 = vld [vmem:[#allocation7 + $0xe40] sm:$0xff]
    %v616 = vld [vmem:[#allocation7 + $0xe48] sm:$0xff]
    %v617 = vld [vmem:[#allocation7 + $0xe50] sm:$0xff]
    %v618 = vld [vmem:[#allocation7 + $0xe58] sm:$0xff]
    %v619 = vld [vmem:[#allocation7 + $0xe60] sm:$0xff]
    %v620 = vld [vmem:[#allocation7 + $0xe68] sm:$0xff]
    %v621 = vld [vmem:[#allocation7 + $0xe70] sm:$0xff]
    %v622 = vld [vmem:[#allocation7 + $0xe78] sm:$0xff]
    %v623 = vld [vmem:[#allocation7 + $0xe80] sm:$0xff]
    %v624 = vld [vmem:[#allocation7 + $0xe88] sm:$0xff]
    %v625 = vld [vmem:[#allocation7 + $0xe90] sm:$0xff]
    %v626 = vld [vmem:[#allocation7 + $0xe98] sm:$0xff]
    %v627 = vld [vmem:[#allocation7 + $0xea0] sm:$0xff]
    %v628 = vld [vmem:[#allocation7 + $0xea8] sm:$0xff]
    %v629 = vld [vmem:[#allocation7 + $0xeb0] sm:$0xff]
    %v630 = vld [vmem:[#allocation7 + $0xeb8] sm:$0xff]
    %v631 = vld [vmem:[#allocation7 + $0xec0] sm:$0xff]
    %v632 = vld [vmem:[#allocation7 + $0xec8] sm:$0xff]
    %v633 = vld [vmem:[#allocation7 + $0xed0] sm:$0xff]
    %v634 = vld [vmem:[#allocation7 + $0xed8] sm:$0xff]
    %v635 = vld [vmem:[#allocation7 + $0xee0] sm:$0xff]
    %v636 = vld [vmem:[#allocation7 + $0xee8] sm:$0xff]
    %v637 = vld [vmem:[#allocation7 + $0xef0] sm:$0xff]
    %v638 = vld [vmem:[#allocation7 + $0xef8] sm:$0xff]
    %v639 = vld [vmem:[#allocation7 + $0xf00] sm:$0xff]
    %v640 = vld [vmem:[#allocation7 + $0xf08] sm:$0xff]
    %v641 = vld [vmem:[#allocation7 + $0xf10] sm:$0xff]
    %v642 = vld [vmem:[#allocation7 + $0xf18] sm:$0xff]
    %v643 = vld [vmem:[#allocation7 + $0xf20] sm:$0xff]
    %v644 = vld [vmem:[#allocation7 + $0xf28] sm:$0xff]
    %v645 = vld [vmem:[#allocation7 + $0xf30] sm:$0xff]
    %v646 = vld [vmem:[#allocation7 + $0xf38] sm:$0xff]
    %v647 = vld [vmem:[#allocation7 + $0xf40] sm:$0xff]
    %v648 = vld [vmem:[#allocation7 + $0xf48] sm:$0xff]
    %v649 = vld [vmem:[#allocation7 + $0xf50] sm:$0xff]
    %v650 = vld [vmem:[#allocation7 + $0xf58] sm:$0xff]
    %v651 = vld [vmem:[#allocation7 + $0xf60] sm:$0xff]
    %v652 = vld [vmem:[#allocation7 + $0xf68] sm:$0xff]
    %v653 = vld [vmem:[#allocation7 + $0xf70] sm:$0xff]
    %v654 = vld [vmem:[#allocation7 + $0xf78] sm:$0xff]
    %v655 = vld [vmem:[#allocation7 + $0xf80] sm:$0xff]
    %v656 = vld [vmem:[#allocation7 + $0xf88] sm:$0xff]
    %v657 = vld [vmem:[#allocation7 + $0xf90] sm:$0xff]
    %v658 = vld [vmem:[#allocation7 + $0xf98] sm:$0xff]
    %v659 = vld [vmem:[#allocation7 + $0xfa0] sm:$0xff]
    %v660 = vld [vmem:[#allocation7 + $0xfa8] sm:$0xff]
    %v661 = vld [vmem:[#allocation7 + $0xfb0] sm:$0xff]
    %v662 = vld [vmem:[#allocation7 + $0xfb8] sm:$0xff]
    %v663 = vld [vmem:[#allocation7 + $0xfc0] sm:$0xff]
    %v664 = vld [vmem:[#allocation7 + $0xfc8] sm:$0xff]
    %v665 = vld [vmem:[#allocation7 + $0xfd0] sm:$0xff]
    %v666 = vld [vmem:[#allocation7 + $0xfd8] sm:$0xff]
    %v667 = vld [vmem:[#allocation7 + $0xfe0] sm:$0xff]
    %v668 = vld [vmem:[#allocation7 + $0xfe8] sm:$0xff]
    %v669 = vld [vmem:[#allocation7 + $0xff0] sm:$0xff]
    %v670 = vld [vmem:[#allocation7 + $0xff8] sm:$0xff]
    %v671 = vld [vmem:[#allocation7 + $0x1000] sm:$0xff]
    %v672 = vld [vmem:[#allocation7 + $0x1008] sm:$0xff]
    %v673 = vld [vmem:[#allocation7 + $0x1010] sm:$0xff]
    %v674 = vld [vmem:[#allocation7 + $0x1018] sm:$0xff]
    %v675 = vld [vmem:[#allocation7 + $0x1020] sm:$0xff]
    %v676 = vld [vmem:[#allocation7 + $0x1028] sm:$0xff]
    %v677 = vld [vmem:[#allocation7 + $0x1030] sm:$0xff]
    %v678 = vld [vmem:[#allocation7 + $0x1038] sm:$0xff]
    %v679 = vld [vmem:[#allocation7 + $0x1040] sm:$0xff]
    %v680 = vld [vmem:[#allocation7 + $0x1048] sm:$0xff]
    %v681 = vld [vmem:[#allocation7 + $0x1050] sm:$0xff]
    %v682 = vld [vmem:[#allocation7 + $0x1058] sm:$0xff]
    %v683 = vld [vmem:[#allocation7 + $0x1060] sm:$0xff]
    %v684 = vld [vmem:[#allocation7 + $0x1068] sm:$0xff]
    %v685 = vld [vmem:[#allocation7 + $0x1070] sm:$0xff]
    %v686 = vld [vmem:[#allocation7 + $0x1078] sm:$0xff]
    %v687 = vld [vmem:[#allocation7 + $0x1080] sm:$0xff]
    %v688 = vld [vmem:[#allocation7 + $0x1088] sm:$0xff]
    %v689 = vld [vmem:[#allocation7 + $0x1090] sm:$0xff]
    %v690 = vld [vmem:[#allocation7 + $0x1098] sm:$0xff]
    %v691 = vld [vmem:[#allocation7 + $0x10a0] sm:$0xff]
    %v692 = vld [vmem:[#allocation7 + $0x10a8] sm:$0xff]
    %v693 = vld [vmem:[#allocation7 + $0x10b0] sm:$0xff]
    %v694 = vld [vmem:[#allocation7 + $0x10b8] sm:$0xff]
    %v695 = vld [vmem:[#allocation7 + $0x10c0] sm:$0xff]
    %v696 = vld [vmem:[#allocation7 + $0x10c8] sm:$0xff]
    %v697 = vld [vmem:[#allocation7 + $0x10d0] sm:$0xff]
    %v698 = vld [vmem:[#allocation7 + $0x10d8] sm:$0xff]
    %v699 = vld [vmem:[#allocation7 + $0x10e0] sm:$0xff]
    %v700 = vld [vmem:[#allocation7 + $0x10e8] sm:$0xff]
    %v701 = vld [vmem:[#allocation7 + $0x10f0] sm:$0xff]
    %v702 = vld [vmem:[#allocation7 + $0x10f8] sm:$0xff]
    %v703 = vld [vmem:[#allocation7 + $0x1100] sm:$0xff]
    %v704 = vld [vmem:[#allocation7 + $0x1108] sm:$0xff]
    %v705 = vld [vmem:[#allocation7 + $0x1110] sm:$0xff]
    %v706 = vld [vmem:[#allocation7 + $0x1118] sm:$0xff]
    %v707 = vld [vmem:[#allocation7 + $0x1120] sm:$0xff]
    %v708 = vld [vmem:[#allocation7 + $0x1128] sm:$0xff]
    %v709 = vld [vmem:[#allocation7 + $0x1130] sm:$0xff]
    %v710 = vld [vmem:[#allocation7 + $0x1138] sm:$0xff]
    %v711 = vld [vmem:[#allocation7 + $0x1140] sm:$0xff]
    %v712 = vld [vmem:[#allocation7 + $0x1148] sm:$0xff]
    %v713 = vld [vmem:[#allocation7 + $0x1150] sm:$0xff]
    %v714 = vld [vmem:[#allocation7 + $0x1158] sm:$0xff]
    %v715 = vld [vmem:[#allocation7 + $0x1160] sm:$0xff]
    %v716 = vld [vmem:[#allocation7 + $0x1168] sm:$0xff]
    %v717 = vld [vmem:[#allocation7 + $0x1170] sm:$0xff]
    %v718 = vld [vmem:[#allocation7 + $0x1178] sm:$0xff]
    %v719 = vld [vmem:[#allocation7 + $0x1180] sm:$0xff]
    %v720 = vld [vmem:[#allocation7 + $0x1188] sm:$0xff]
    %v721 = vld [vmem:[#allocation7 + $0x1190] sm:$0xff]
    %v722 = vld [vmem:[#allocation7 + $0x1198] sm:$0xff]
    %v723 = vld [vmem:[#allocation7 + $0x11a0] sm:$0xff]
    %v724 = vld [vmem:[#allocation7 + $0x11a8] sm:$0xff]
    %v725 = vld [vmem:[#allocation7 + $0x11b0] sm:$0xff]
    %v726 = vld [vmem:[#allocation7 + $0x11b8] sm:$0xff]
    %v727 = vld [vmem:[#allocation7 + $0x11c0] sm:$0xff]
    %v728 = vld [vmem:[#allocation7 + $0x11c8] sm:$0xff]
    %v729 = vld [vmem:[#allocation7 + $0x11d0] sm:$0xff]
    %v730 = vld [vmem:[#allocation7 + $0x11d8] sm:$0xff]
    %v731 = vld [vmem:[#allocation7 + $0x11e0] sm:$0xff]
    %v732 = vld [vmem:[#allocation7 + $0x11e8] sm:$0xff]
    %v733 = vld [vmem:[#allocation7 + $0x11f0] sm:$0xff]
    %v734 = vld [vmem:[#allocation7 + $0x11f8] sm:$0xff]
    %v735 = vld [vmem:[#allocation7 + $0x1200] sm:$0xff]
    %v736 = vld [vmem:[#allocation7 + $0x1208] sm:$0xff]
    %v737 = vld [vmem:[#allocation7 + $0x1210] sm:$0xff]
    %v738 = vld [vmem:[#allocation7 + $0x1218] sm:$0xff]
    %v739 = vld [vmem:[#allocation7 + $0x1220] sm:$0xff]
    %v740 = vld [vmem:[#allocation7 + $0x1228] sm:$0xff]
    %v741 = vld [vmem:[#allocation7 + $0x1230] sm:$0xff]
    %v742 = vld [vmem:[#allocation7 + $0x1238] sm:$0xff]
    %v743 = vld [vmem:[#allocation7 + $0x1240] sm:$0xff]
    %v744 = vld [vmem:[#allocation7 + $0x1248] sm:$0xff]
    %v745 = vld [vmem:[#allocation7 + $0x1250] sm:$0xff]
    %v746 = vld [vmem:[#allocation7 + $0x1258] sm:$0xff]
    %v747 = vld [vmem:[#allocation7 + $0x1260] sm:$0xff]
    %v748 = vld [vmem:[#allocation7 + $0x1268] sm:$0xff]
    %v749 = vld [vmem:[#allocation7 + $0x1270] sm:$0xff]
    %v750 = vld [vmem:[#allocation7 + $0x1278] sm:$0xff]
    %v751 = vld [vmem:[#allocation7 + $0x1280] sm:$0xff]
    %v752 = vld [vmem:[#allocation7 + $0x1288] sm:$0xff]
    %v753 = vld [vmem:[#allocation7 + $0x1290] sm:$0xff]
    %v754 = vld [vmem:[#allocation7 + $0x1298] sm:$0xff]
    %v755 = vld [vmem:[#allocation7 + $0x12a0] sm:$0xff]
    %v756 = vld [vmem:[#allocation7 + $0x12a8] sm:$0xff]
    %v757 = vld [vmem:[#allocation7 + $0x12b0] sm:$0xff]
    %v758 = vld [vmem:[#allocation7 + $0x12b8] sm:$0xff]
    %v759 = vld [vmem:[#allocation7 + $0x12c0] sm:$0xff]
    %v760 = vld [vmem:[#allocation7 + $0x12c8] sm:$0xff]
    %v761 = vld [vmem:[#allocation7 + $0x12d0] sm:$0xff]
    %v762 = vld [vmem:[#allocation7 + $0x12d8] sm:$0xff]
    %v763 = vld [vmem:[#allocation7 + $0x12e0] sm:$0xff]
    %v764 = vld [vmem:[#allocation7 + $0x12e8] sm:$0xff]
    %v765 = vld [vmem:[#allocation7 + $0x12f0] sm:$0xff]
    %v766 = vld [vmem:[#allocation7 + $0x12f8] sm:$0xff]
    %v767 = vld [vmem:[#allocation7 + $0x1300] sm:$0xff]
    %v768 = vld [vmem:[#allocation7 + $0x1308] sm:$0xff]
    %v769 = vld [vmem:[#allocation7 + $0x1310] sm:$0xff]
    %v770 = vld [vmem:[#allocation7 + $0x1318] sm:$0xff]
    %v771 = vld [vmem:[#allocation7 + $0x1320] sm:$0xff]
    %v772 = vld [vmem:[#allocation7 + $0x1328] sm:$0xff]
    %v773 = vld [vmem:[#allocation7 + $0x1330] sm:$0xff]
    %v774 = vld [vmem:[#allocation7 + $0x1338] sm:$0xff]
    %v775 = vld [vmem:[#allocation7 + $0x1340] sm:$0xff]
    %v776 = vld [vmem:[#allocation7 + $0x1348] sm:$0xff]
    %v777 = vld [vmem:[#allocation7 + $0x1350] sm:$0xff]
    %v778 = vld [vmem:[#allocation7 + $0x1358] sm:$0xff]
    %v779 = vld [vmem:[#allocation7 + $0x1360] sm:$0xff]
    %v780 = vld [vmem:[#allocation7 + $0x1368] sm:$0xff]
    %v781 = vld [vmem:[#allocation7 + $0x1370] sm:$0xff]
    %v782 = vld [vmem:[#allocation7 + $0x1378] sm:$0xff]
    %v783 = vld [vmem:[#allocation7 + $0x1380] sm:$0xff]
    %v784 = vld [vmem:[#allocation7 + $0x1388] sm:$0xff]
    %v785 = vld [vmem:[#allocation7 + $0x1390] sm:$0xff]
    %v786 = vld [vmem:[#allocation7 + $0x1398] sm:$0xff]
    %v787 = vld [vmem:[#allocation7 + $0x13a0] sm:$0xff]
    %v788 = vld [vmem:[#allocation7 + $0x13a8] sm:$0xff]
    %v789 = vld [vmem:[#allocation7 + $0x13b0] sm:$0xff]
    %v790 = vld [vmem:[#allocation7 + $0x13b8] sm:$0xff]
    %v791 = vld [vmem:[#allocation7 + $0x13c0] sm:$0xff]
    %v792 = vld [vmem:[#allocation7 + $0x13c8] sm:$0xff]
    %v793 = vld [vmem:[#allocation7 + $0x13d0] sm:$0xff]
    %v794 = vld [vmem:[#allocation7 + $0x13d8] sm:$0xff]
    %v795 = vld [vmem:[#allocation7 + $0x13e0] sm:$0xff]
    %v796 = vld [vmem:[#allocation7 + $0x13e8] sm:$0xff]
    %v797 = vld [vmem:[#allocation7 + $0x13f0] sm:$0xff]
    %v798 = vld [vmem:[#allocation7 + $0x13f8] sm:$0xff]
    %v799 = vld [vmem:[#allocation7 + $0x1400] sm:$0xff]
    %v800 = vld [vmem:[#allocation7 + $0x1408] sm:$0xff]
    %v801 = vld [vmem:[#allocation7 + $0x1410] sm:$0xff]
    %v802 = vld [vmem:[#allocation7 + $0x1418] sm:$0xff]
    %v803 = vld [vmem:[#allocation7 + $0x1420] sm:$0xff]
    %v804 = vld [vmem:[#allocation7 + $0x1428] sm:$0xff]
    %v805 = vld [vmem:[#allocation7 + $0x1430] sm:$0xff]
    %v806 = vld [vmem:[#allocation7 + $0x1438] sm:$0xff]
    %v807 = vld [vmem:[#allocation7 + $0x1440] sm:$0xff]
    %v808 = vld [vmem:[#allocation7 + $0x1448] sm:$0xff]
    %v809 = vld [vmem:[#allocation7 + $0x1450] sm:$0xff]
    %v810 = vld [vmem:[#allocation7 + $0x1458] sm:$0xff]
    %v811 = vld [vmem:[#allocation7 + $0x1460] sm:$0xff]
    %v812 = vld [vmem:[#allocation7 + $0x1468] sm:$0xff]
    %v813 = vld [vmem:[#allocation7 + $0x1470] sm:$0xff]
    %v814 = vld [vmem:[#allocation7 + $0x1478] sm:$0xff]
    %v815 = vld [vmem:[#allocation7 + $0x1480] sm:$0xff]
    %v816 = vld [vmem:[#allocation7 + $0x1488] sm:$0xff]
    %v817 = vld [vmem:[#allocation7 + $0x1490] sm:$0xff]
    %v818 = vld [vmem:[#allocation7 + $0x1498] sm:$0xff]
    %v819 = vld [vmem:[#allocation7 + $0x14a0] sm:$0xff]
    %v820 = vld [vmem:[#allocation7 + $0x14a8] sm:$0xff]
    %v821 = vld [vmem:[#allocation7 + $0x14b0] sm:$0xff]
    %v822 = vld [vmem:[#allocation7 + $0x14b8] sm:$0xff]
    %v823 = vld [vmem:[#allocation7 + $0x14c0] sm:$0xff]
    %v824 = vld [vmem:[#allocation7 + $0x14c8] sm:$0xff]
    %v825 = vld [vmem:[#allocation7 + $0x14d0] sm:$0xff]
    %v826 = vld [vmem:[#allocation7 + $0x14d8] sm:$0xff]
    %v827 = vld [vmem:[#allocation7 + $0x14e0] sm:$0xff]
    %v828 = vld [vmem:[#allocation7 + $0x14e8] sm:$0xff]
    %v829 = vld [vmem:[#allocation7 + $0x14f0] sm:$0xff]
    %v830 = vld [vmem:[#allocation7 + $0x14f8] sm:$0xff]
    %v831 = vld [vmem:[#allocation7 + $0x1500] sm:$0xff]
    %v832 = vld [vmem:[#allocation7 + $0x1508] sm:$0xff]
    %v833 = vld [vmem:[#allocation7 + $0x1510] sm:$0xff]
    %v834 = vld [vmem:[#allocation7 + $0x1518] sm:$0xff]
    %v835 = vld [vmem:[#allocation7 + $0x1520] sm:$0xff]
    %v836 = vld [vmem:[#allocation7 + $0x1528] sm:$0xff]
    %v837 = vld [vmem:[#allocation7 + $0x1530] sm:$0xff]
    %v838 = vld [vmem:[#allocation7 + $0x1538] sm:$0xff]
    %v839 = vld [vmem:[#allocation7 + $0x1540] sm:$0xff]
    %v840 = vld [vmem:[#allocation7 + $0x1548] sm:$0xff]
    %v841 = vld [vmem:[#allocation7 + $0x1550] sm:$0xff]
    %v842 = vld [vmem:[#allocation7 + $0x1558] sm:$0xff]
    %v843 = vld [vmem:[#allocation7 + $0x1560] sm:$0xff]
    %v844 = vld [vmem:[#allocation7 + $0x1568] sm:$0xff]
    %v845 = vld [vmem:[#allocation7 + $0x1570] sm:$0xff]
    %v846 = vld [vmem:[#allocation7 + $0x1578] sm:$0xff]
    %v847 = vld [vmem:[#allocation7 + $0x1580] sm:$0xff]
    %v848 = vld [vmem:[#allocation7 + $0x1588] sm:$0xff]
    %v849 = vld [vmem:[#allocation7 + $0x1590] sm:$0xff]
    %v850 = vld [vmem:[#allocation7 + $0x1598] sm:$0xff]
    %v851 = vld [vmem:[#allocation7 + $0x15a0] sm:$0xff]
    %v852 = vld [vmem:[#allocation7 + $0x15a8] sm:$0xff]
    %v853 = vld [vmem:[#allocation7 + $0x15b0] sm:$0xff]
    %v854 = vld [vmem:[#allocation7 + $0x15b8] sm:$0xff]
    %v855 = vld [vmem:[#allocation7 + $0x15c0] sm:$0xff]
    %v856 = vld [vmem:[#allocation7 + $0x15c8] sm:$0xff]
    %v857 = vld [vmem:[#allocation7 + $0x15d0] sm:$0xff]
    %v858 = vld [vmem:[#allocation7 + $0x15d8] sm:$0xff]
    %v859 = vld [vmem:[#allocation7 + $0x15e0] sm:$0xff]
    %v860 = vld [vmem:[#allocation7 + $0x15e8] sm:$0xff]
    %v861 = vld [vmem:[#allocation7 + $0x15f0] sm:$0xff]
    %v862 = vld [vmem:[#allocation7 + $0x15f8] sm:$0xff]
    %v863 = vld [vmem:[#allocation7 + $0x1600] sm:$0xff]
    %v864 = vld [vmem:[#allocation7 + $0x1608] sm:$0xff]
    %v865 = vld [vmem:[#allocation7 + $0x1610] sm:$0xff]
    %v866 = vld [vmem:[#allocation7 + $0x1618] sm:$0xff]
    %v867 = vld [vmem:[#allocation7 + $0x1620] sm:$0xff]
    %v868 = vld [vmem:[#allocation7 + $0x1628] sm:$0xff]
    %v869 = vld [vmem:[#allocation7 + $0x1630] sm:$0xff]
    %v870 = vld [vmem:[#allocation7 + $0x1638] sm:$0xff]
    %v871 = vld [vmem:[#allocation7 + $0x1640] sm:$0xff]
    %v872 = vld [vmem:[#allocation7 + $0x1648] sm:$0xff]
    %v873 = vld [vmem:[#allocation7 + $0x1650] sm:$0xff]
    %v874 = vld [vmem:[#allocation7 + $0x1658] sm:$0xff]
    %v875 = vld [vmem:[#allocation7 + $0x1660] sm:$0xff]
    %v876 = vld [vmem:[#allocation7 + $0x1668] sm:$0xff]
    %v877 = vld [vmem:[#allocation7 + $0x1670] sm:$0xff]
    %v878 = vld [vmem:[#allocation7 + $0x1678] sm:$0xff]
    %v879 = vld [vmem:[#allocation7 + $0x1680] sm:$0xff]
    %v880 = vld [vmem:[#allocation7 + $0x1688] sm:$0xff]
    %v881 = vld [vmem:[#allocation7 + $0x1690] sm:$0xff]
    %v882 = vld [vmem:[#allocation7 + $0x1698] sm:$0xff]
    %v883 = vld [vmem:[#allocation7 + $0x16a0] sm:$0xff]
    %v884 = vld [vmem:[#allocation7 + $0x16a8] sm:$0xff]
    %v885 = vld [vmem:[#allocation7 + $0x16b0] sm:$0xff]
    %v886 = vld [vmem:[#allocation7 + $0x16b8] sm:$0xff]
    %v887 = vld [vmem:[#allocation7 + $0x16c0] sm:$0xff]
    %v888 = vld [vmem:[#allocation7 + $0x16c8] sm:$0xff]
    %v889 = vld [vmem:[#allocation7 + $0x16d0] sm:$0xff]
    %v890 = vld [vmem:[#allocation7 + $0x16d8] sm:$0xff]
    %v891 = vld [vmem:[#allocation7 + $0x16e0] sm:$0xff]
    %v892 = vld [vmem:[#allocation7 + $0x16e8] sm:$0xff]
    %v893 = vld [vmem:[#allocation7 + $0x16f0] sm:$0xff]
    %v894 = vld [vmem:[#allocation7 + $0x16f8] sm:$0xff]
    %v895 = vld [vmem:[#allocation7 + $0x1700] sm:$0xff]
    %v896 = vld [vmem:[#allocation7 + $0x1708] sm:$0xff]
    %v897 = vld [vmem:[#allocation7 + $0x1710] sm:$0xff]
    %v898 = vld [vmem:[#allocation7 + $0x1718] sm:$0xff]
    %v899 = vld [vmem:[#allocation7 + $0x1720] sm:$0xff]
    %v900 = vld [vmem:[#allocation7 + $0x1728] sm:$0xff]
    %v901 = vld [vmem:[#allocation7 + $0x1730] sm:$0xff]
    %v902 = vld [vmem:[#allocation7 + $0x1738] sm:$0xff]
    %v903 = vld [vmem:[#allocation7 + $0x1740] sm:$0xff]
    %v904 = vld [vmem:[#allocation7 + $0x1748] sm:$0xff]
    %v905 = vld [vmem:[#allocation7 + $0x1750] sm:$0xff]
    %v906 = vld [vmem:[#allocation7 + $0x1758] sm:$0xff]
    %v907 = vld [vmem:[#allocation7 + $0x1760] sm:$0xff]
    %v908 = vld [vmem:[#allocation7 + $0x1768] sm:$0xff]
    %v909 = vld [vmem:[#allocation7 + $0x1770] sm:$0xff]
    %v910 = vld [vmem:[#allocation7 + $0x1778] sm:$0xff]
    %v911 = vld [vmem:[#allocation7 + $0x1780] sm:$0xff]
    %v912 = vld [vmem:[#allocation7 + $0x1788] sm:$0xff]
    %v913 = vld [vmem:[#allocation7 + $0x1790] sm:$0xff]
    %v914 = vld [vmem:[#allocation7 + $0x1798] sm:$0xff]
    %v915 = vld [vmem:[#allocation7 + $0x17a0] sm:$0xff]
    %v916 = vld [vmem:[#allocation7 + $0x17a8] sm:$0xff]
    %v917 = vld [vmem:[#allocation7 + $0x17b0] sm:$0xff]
    %v918 = vld [vmem:[#allocation7 + $0x17b8] sm:$0xff]
    %v919 = vld [vmem:[#allocation7 + $0x17c0] sm:$0xff]
    %v920 = vld [vmem:[#allocation7 + $0x17c8] sm:$0xff]
    %v921 = vld [vmem:[#allocation7 + $0x17d0] sm:$0xff]
    %v922 = vld [vmem:[#allocation7 + $0x17d8] sm:$0xff]
    %v923 = vld [vmem:[#allocation7 + $0x17e0] sm:$0xff]
    %v924 = vld [vmem:[#allocation7 + $0x17e8] sm:$0xff]
    %v925 = vld [vmem:[#allocation7 + $0x17f0] sm:$0xff]
    %v926 = vld [vmem:[#allocation7 + $0x17f8] sm:$0xff]
    %v927 = vld [vmem:[#allocation7 + $0x1800] sm:$0xff]
    %v928 = vld [vmem:[#allocation7 + $0x1808] sm:$0xff]
    %v929 = vld [vmem:[#allocation7 + $0x1810] sm:$0xff]
    %v930 = vld [vmem:[#allocation7 + $0x1818] sm:$0xff]
    %v931 = vld [vmem:[#allocation7 + $0x1820] sm:$0xff]
    %v932 = vld [vmem:[#allocation7 + $0x1828] sm:$0xff]
    %v933 = vld [vmem:[#allocation7 + $0x1830] sm:$0xff]
    %v934 = vld [vmem:[#allocation7 + $0x1838] sm:$0xff]
    %v935 = vld [vmem:[#allocation7 + $0x1840] sm:$0xff]
    %v936 = vld [vmem:[#allocation7 + $0x1848] sm:$0xff]
    %v937 = vld [vmem:[#allocation7 + $0x1850] sm:$0xff]
    %v938 = vld [vmem:[#allocation7 + $0x1858] sm:$0xff]
    %v939 = vld [vmem:[#allocation7 + $0x1860] sm:$0xff]
    %v940 = vld [vmem:[#allocation7 + $0x1868] sm:$0xff]
    %v941 = vld [vmem:[#allocation7 + $0x1870] sm:$0xff]
    %v942 = vld [vmem:[#allocation7 + $0x1878] sm:$0xff]
    %v943 = vld [vmem:[#allocation7 + $0x1880] sm:$0xff]
    %v944 = vld [vmem:[#allocation7 + $0x1888] sm:$0xff]
    %v945 = vld [vmem:[#allocation7 + $0x1890] sm:$0xff]
    %v946 = vld [vmem:[#allocation7 + $0x1898] sm:$0xff]
    %v947 = vld [vmem:[#allocation7 + $0x18a0] sm:$0xff]
    %v948 = vld [vmem:[#allocation7 + $0x18a8] sm:$0xff]
    %v949 = vld [vmem:[#allocation7 + $0x18b0] sm:$0xff]
    %v950 = vld [vmem:[#allocation7 + $0x18b8] sm:$0xff]
    %v951 = vld [vmem:[#allocation7 + $0x18c0] sm:$0xff]
    %v952 = vld [vmem:[#allocation7 + $0x18c8] sm:$0xff]
    %v953 = vld [vmem:[#allocation7 + $0x18d0] sm:$0xff]
    %v954 = vld [vmem:[#allocation7 + $0x18d8] sm:$0xff]
    %v955 = vld [vmem:[#allocation7 + $0x18e0] sm:$0xff]
    %v956 = vld [vmem:[#allocation7 + $0x18e8] sm:$0xff]
    %v957 = vld [vmem:[#allocation7 + $0x18f0] sm:$0xff]
    %v958 = vld [vmem:[#allocation7 + $0x18f8] sm:$0xff]
    %v959 = vld [vmem:[#allocation7 + $0x1900] sm:$0xff]
    %v960 = vld [vmem:[#allocation7 + $0x1908] sm:$0xff]
    %v961 = vld [vmem:[#allocation7 + $0x1910] sm:$0xff]
    %v962 = vld [vmem:[#allocation7 + $0x1918] sm:$0xff]
    %v963 = vld [vmem:[#allocation7 + $0x1920] sm:$0xff]
    %v964 = vld [vmem:[#allocation7 + $0x1928] sm:$0xff]
    %v965 = vld [vmem:[#allocation7 + $0x1930] sm:$0xff]
    %v966 = vld [vmem:[#allocation7 + $0x1938] sm:$0xff]
    %v967 = vld [vmem:[#allocation7 + $0x1940] sm:$0xff]
    %v968 = vld [vmem:[#allocation7 + $0x1948] sm:$0xff]
    %v969 = vld [vmem:[#allocation7 + $0x1950] sm:$0xff]
    %v970 = vld [vmem:[#allocation7 + $0x1958] sm:$0xff]
    %v971 = vld [vmem:[#allocation7 + $0x1960] sm:$0xff]
    %v972 = vld [vmem:[#allocation7 + $0x1968] sm:$0xff]
    %v973 = vld [vmem:[#allocation7 + $0x1970] sm:$0xff]
    %v974 = vld [vmem:[#allocation7 + $0x1978] sm:$0xff]
    %v975 = vld [vmem:[#allocation7 + $0x1980] sm:$0xff]
    %v976 = vld [vmem:[#allocation7 + $0x1988] sm:$0xff]
    %v977 = vld [vmem:[#allocation7 + $0x1990] sm:$0xff]
    %v978 = vld [vmem:[#allocation7 + $0x1998] sm:$0xff]
    %v979 = vld [vmem:[#allocation7 + $0x19a0] sm:$0xff]
    %v980 = vld [vmem:[#allocation7 + $0x19a8] sm:$0xff]
    %v981 = vld [vmem:[#allocation7 + $0x19b0] sm:$0xff]
    %v982 = vld [vmem:[#allocation7 + $0x19b8] sm:$0xff]
    %v983 = vld [vmem:[#allocation7 + $0x19c0] sm:$0xff]
    %v984 = vld [vmem:[#allocation7 + $0x19c8] sm:$0xff]
    %v985 = vld [vmem:[#allocation7 + $0x19d0] sm:$0xff]
    %v986 = vld [vmem:[#allocation7 + $0x19d8] sm:$0xff]
    %v987 = vld [vmem:[#allocation7 + $0x19e0] sm:$0xff]
    %v988 = vld [vmem:[#allocation7 + $0x19e8] sm:$0xff]
    %v989 = vld [vmem:[#allocation7 + $0x19f0] sm:$0xff]
    %v990 = vld [vmem:[#allocation7 + $0x19f8] sm:$0xff]
    %v991 = vld [vmem:[#allocation9] sm:$0xff]
    %v993 = vlaneseq
    %v994 = vshrl.u32 %v993, 7
    %v995 = vsub.s32 0, %v994
    %v996 = vrot.slane %v991, %v995
    %v997 = vlaneseq
    %v998 = vshrl.u32 %v997, 7
    %v999 = vsub.s32 1, %v998
    %v1000 = vrot.slane %v991, %v999
    %v1001 = vlaneseq
    %v1002 = vshrl.u32 %v1001, 7
    %v1003 = vsub.s32 2, %v1002
    %v1004 = vrot.slane %v991, %v1003
    %v1005 = vlaneseq
    %v1006 = vshrl.u32 %v1005, 7
    %v1007 = vsub.s32 3, %v1006
    %v1008 = vrot.slane %v991, %v1007
    %v1009 = vlaneseq
    %v1010 = vshrl.u32 %v1009, 7
    %v1011 = vsub.s32 4, %v1010
    %v1012 = vrot.slane %v991, %v1011
    %v1013 = vlaneseq
    %v1014 = vshrl.u32 %v1013, 7
    %v1015 = vsub.s32 5, %v1014
    %v1016 = vrot.slane %v991, %v1015
    %v1017 = vlaneseq
    %v1018 = vshrl.u32 %v1017, 7
    %v1019 = vsub.s32 6, %v1018
    %v1020 = vrot.slane %v991, %v1019
    %v1021 = vlaneseq
    %v1022 = vshrl.u32 %v1021, 7
    %v1023 = vsub.s32 7, %v1022
    %v1024 = vrot.slane %v991, %v1023
    %v1075 = vunpack.c.l.b16 %v117
    %v1076 = vunpack.c.h.b16 %v117
    %v1077 = vunpack.c.l.b16 %v118
    %v1078 = vunpack.c.h.b16 %v118
    %v1079 = vunpack.c.l.b16 %v119
    %v1080 = vunpack.c.h.b16 %v119
    %v1081 = vunpack.c.l.b16 %v120
    %v1082 = vunpack.c.h.b16 %v120
    %v1083 = vunpack.c.l.b16 %v121
    %v1084 = vunpack.c.h.b16 %v121
    %v1085 = vunpack.c.l.b16 %v122
    %v1086 = vunpack.c.h.b16 %v122
    %v1087 = vunpack.c.l.b16 %v123
    %v1088 = vunpack.c.l.b16 %v124
    %v1089 = vunpack.c.h.b16 %v124
    %v1090 = vunpack.c.l.b16 %v125
    %v1091 = vunpack.c.h.b16 %v125
    %v1092 = vunpack.c.l.b16 %v126
    %v1093 = vunpack.c.h.b16 %v126
    %v1094 = vunpack.c.l.b16 %v127
    %v1095 = vunpack.c.h.b16 %v127
    %v1096 = vunpack.c.l.b16 %v128
    %v1097 = vunpack.c.h.b16 %v128
    %v1098 = vunpack.c.l.b16 %v129
    %v1099 = vunpack.c.h.b16 %v129
    %v1100 = vunpack.c.l.b16 %v130
    %v1101 = vunpack.c.l.b16 %v131
    %v1102 = vunpack.c.h.b16 %v131
    %v1103 = vunpack.c.l.b16 %v132
    %v1104 = vunpack.c.h.b16 %v132
    %v1105 = vunpack.c.l.b16 %v133
    %v1106 = vunpack.c.h.b16 %v133
    %v1107 = vunpack.c.l.b16 %v134
    %v1108 = vunpack.c.h.b16 %v134
    %v1109 = vunpack.c.l.b16 %v135
    %v1110 = vunpack.c.h.b16 %v135
    %v1111 = vunpack.c.l.b16 %v136
    %v1112 = vunpack.c.h.b16 %v136
    %v1113 = vunpack.c.l.b16 %v137
    %v1114 = vunpack.c.l.b16 %v138
    %v1115 = vunpack.c.h.b16 %v138
    %v1116 = vunpack.c.l.b16 %v139
    %v1117 = vunpack.c.h.b16 %v139
    %v1118 = vunpack.c.l.b16 %v140
    %v1119 = vunpack.c.h.b16 %v140
    %v1120 = vunpack.c.l.b16 %v141
    %v1121 = vunpack.c.h.b16 %v141
    %v1122 = vunpack.c.l.b16 %v142
    %v1123 = vunpack.c.h.b16 %v142
    %v1124 = vunpack.c.l.b16 %v143
    %v1125 = vunpack.c.h.b16 %v143
    %v1126 = vunpack.c.l.b16 %v144
    %v1127 = vunpack.c.l.b16 %v145
    %v1128 = vunpack.c.h.b16 %v145
    %v1129 = vunpack.c.l.b16 %v146
    %v1130 = vunpack.c.h.b16 %v146
    %v1131 = vunpack.c.l.b16 %v147
    %v1132 = vunpack.c.h.b16 %v147
    %v1133 = vunpack.c.l.b16 %v148
    %v1134 = vunpack.c.h.b16 %v148
    %v1135 = vunpack.c.l.b16 %v149
    %v1136 = vunpack.c.h.b16 %v149
    %v1137 = vunpack.c.l.b16 %v150
    %v1138 = vunpack.c.h.b16 %v150
    %v1139 = vunpack.c.l.b16 %v151
    %v1140 = vunpack.c.l.b16 %v152
    %v1141 = vunpack.c.h.b16 %v152
    %v1142 = vunpack.c.l.b16 %v153
    %v1143 = vunpack.c.h.b16 %v153
    %v1144 = vunpack.c.l.b16 %v154
    %v1145 = vunpack.c.h.b16 %v154
    %v1146 = vunpack.c.l.b16 %v155
    %v1147 = vunpack.c.h.b16 %v155
    %v1148 = vunpack.c.l.b16 %v156
    %v1149 = vunpack.c.h.b16 %v156
    %v1150 = vunpack.c.l.b16 %v157
    %v1151 = vunpack.c.h.b16 %v157
    %v1152 = vunpack.c.l.b16 %v158
    %v1153 = vpack.c.b16 %v1088, %v1075
    %v1154 = vpack.c.b16 %v1089, %v1076
    %v1155 = vpack.c.b16 %v1090, %v1077
    %v1156 = vpack.c.b16 %v1091, %v1078
    %v1157 = vpack.c.b16 %v1092, %v1079
    %v1158 = vpack.c.b16 %v1093, %v1080
    %v1159 = vpack.c.b16 %v1094, %v1081
    %v1160 = vpack.c.b16 %v1095, %v1082
    %v1161 = vpack.c.b16 %v1096, %v1083
    %v1162 = vpack.c.b16 %v1097, %v1084
    %v1163 = vpack.c.b16 %v1098, %v1085
    %v1164 = vpack.c.b16 %v1099, %v1086
    %v1165 = vpack.c.b16 %v1100, %v1087
    %v1166 = vpack.c.b16 %v1114, %v1101
    %v1167 = vpack.c.b16 %v1115, %v1102
    %v1168 = vpack.c.b16 %v1116, %v1103
    %v1169 = vpack.c.b16 %v1117, %v1104
    %v1170 = vpack.c.b16 %v1118, %v1105
    %v1171 = vpack.c.b16 %v1119, %v1106
    %v1172 = vpack.c.b16 %v1120, %v1107
    %v1173 = vpack.c.b16 %v1121, %v1108
    %v1174 = vpack.c.b16 %v1122, %v1109
    %v1175 = vpack.c.b16 %v1123, %v1110
    %v1176 = vpack.c.b16 %v1124, %v1111
    %v1177 = vpack.c.b16 %v1125, %v1112
    %v1178 = vpack.c.b16 %v1126, %v1113
    %v1179 = vpack.c.b16 %v1140, %v1127
    %v1180 = vpack.c.b16 %v1141, %v1128
    %v1181 = vpack.c.b16 %v1142, %v1129
    %v1182 = vpack.c.b16 %v1143, %v1130
    %v1183 = vpack.c.b16 %v1144, %v1131
    %v1184 = vpack.c.b16 %v1145, %v1132
    %v1185 = vpack.c.b16 %v1146, %v1133
    %v1186 = vpack.c.b16 %v1147, %v1134
    %v1187 = vpack.c.b16 %v1148, %v1135
    %v1188 = vpack.c.b16 %v1149, %v1136
    %v1189 = vpack.c.b16 %v1150, %v1137
    %v1190 = vpack.c.b16 %v1151, %v1138
    %v1191 = vpack.c.b16 %v1152, %v1139
    %v2063 = vunpack.c.l.b16 %v159
    %v2064 = vunpack.c.h.b16 %v159
    %v2065 = vunpack.c.l.b16 %v160
    %v2066 = vunpack.c.h.b16 %v160
    %v2067 = vunpack.c.l.b16 %v161
    %v2068 = vunpack.c.h.b16 %v161
    %v2069 = vunpack.c.l.b16 %v162
    %v2070 = vunpack.c.h.b16 %v162
    %v2071 = vunpack.c.l.b16 %v163
    %v2072 = vunpack.c.h.b16 %v163
    %v2073 = vunpack.c.l.b16 %v164
    %v2074 = vunpack.c.h.b16 %v164
    %v2075 = vunpack.c.l.b16 %v165
    %v2076 = vunpack.c.h.b16 %v165
    %v2077 = vunpack.c.l.b16 %v166
    %v2078 = vunpack.c.h.b16 %v166
    %v2079 = vunpack.c.l.b16 %v167
    %v2080 = vunpack.c.h.b16 %v167
    %v2081 = vunpack.c.l.b16 %v168
    %v2082 = vunpack.c.h.b16 %v168
    %v2083 = vunpack.c.l.b16 %v169
    %v2084 = vunpack.c.h.b16 %v169
    %v2085 = vunpack.c.l.b16 %v170
    %v2086 = vunpack.c.h.b16 %v170
    %v2087 = vunpack.c.l.b16 %v171
    %v2088 = vunpack.c.h.b16 %v171
    %v2089 = vunpack.c.l.b16 %v172
    %v2090 = vunpack.c.h.b16 %v172
    %v2091 = vunpack.c.l.b16 %v173
    %v2092 = vunpack.c.h.b16 %v173
    %v2093 = vunpack.c.l.b16 %v174
    %v2094 = vunpack.c.h.b16 %v174
    %v2095 = vunpack.c.l.b16 %v175
    %v2096 = vunpack.c.h.b16 %v175
    %v2097 = vunpack.c.l.b16 %v176
    %v2098 = vunpack.c.h.b16 %v176
    %v2099 = vunpack.c.l.b16 %v177
    %v2100 = vunpack.c.h.b16 %v177
    %v2101 = vunpack.c.l.b16 %v178
    %v2102 = vunpack.c.h.b16 %v178
    %v2103 = vunpack.c.l.b16 %v179
    %v2104 = vunpack.c.h.b16 %v179
    %v2105 = vunpack.c.l.b16 %v180
    %v2106 = vunpack.c.h.b16 %v180
    %v2107 = vunpack.c.l.b16 %v181
    %v2108 = vunpack.c.h.b16 %v181
    %v2109 = vunpack.c.l.b16 %v182
    %v2110 = vunpack.c.h.b16 %v182
    %v2111 = vunpack.c.l.b16 %v183
    %v2112 = vunpack.c.h.b16 %v183
    %v2113 = vunpack.c.l.b16 %v184
    %v2114 = vunpack.c.h.b16 %v184
    %v2115 = vunpack.c.l.b16 %v185
    %v2116 = vunpack.c.h.b16 %v185
    %v2117 = vunpack.c.l.b16 %v186
    %v2118 = vunpack.c.h.b16 %v186
    %v2119 = vunpack.c.l.b16 %v187
    %v2120 = vunpack.c.h.b16 %v187
    %v2121 = vunpack.c.l.b16 %v188
    %v2122 = vunpack.c.h.b16 %v188
    %v2123 = vunpack.c.l.b16 %v189
    %v2124 = vunpack.c.h.b16 %v189
    %v2125 = vunpack.c.l.b16 %v190
    %v2126 = vunpack.c.h.b16 %v190
    %v2127 = vunpack.c.l.b16 %v191
    %v2128 = vunpack.c.h.b16 %v191
    %v2129 = vunpack.c.l.b16 %v192
    %v2130 = vunpack.c.h.b16 %v192
    %v2131 = vunpack.c.l.b16 %v193
    %v2132 = vunpack.c.h.b16 %v193
    %v2133 = vunpack.c.l.b16 %v194
    %v2134 = vunpack.c.h.b16 %v194
    %v2135 = vunpack.c.l.b16 %v195
    %v2136 = vunpack.c.h.b16 %v195
    %v2137 = vunpack.c.l.b16 %v196
    %v2138 = vunpack.c.h.b16 %v196
    %v2139 = vunpack.c.l.b16 %v197
    %v2140 = vunpack.c.h.b16 %v197
    %v2141 = vunpack.c.l.b16 %v198
    %v2142 = vunpack.c.h.b16 %v198
    %v2143 = vunpack.c.l.b16 %v199
    %v2144 = vunpack.c.h.b16 %v199
    %v2145 = vunpack.c.l.b16 %v200
    %v2146 = vunpack.c.h.b16 %v200
    %v2147 = vunpack.c.l.b16 %v201
    %v2148 = vunpack.c.h.b16 %v201
    %v2149 = vunpack.c.l.b16 %v202
    %v2150 = vunpack.c.h.b16 %v202
    %v2151 = vunpack.c.l.b16 %v203
    %v2152 = vunpack.c.h.b16 %v203
    %v2153 = vunpack.c.l.b16 %v204
    %v2154 = vunpack.c.h.b16 %v204
    %v2155 = vunpack.c.l.b16 %v205
    %v2156 = vunpack.c.h.b16 %v205
    %v2157 = vunpack.c.l.b16 %v206
    %v2158 = vunpack.c.h.b16 %v206
    %v2159 = vunpack.c.l.b16 %v207
    %v2160 = vunpack.c.h.b16 %v207
    %v2161 = vunpack.c.l.b16 %v208
    %v2162 = vunpack.c.h.b16 %v208
    %v2163 = vunpack.c.l.b16 %v209
    %v2164 = vunpack.c.h.b16 %v209
    %v2165 = vunpack.c.l.b16 %v210
    %v2166 = vunpack.c.h.b16 %v210
    %v2167 = vunpack.c.l.b16 %v211
    %v2168 = vunpack.c.h.b16 %v211
    %v2169 = vunpack.c.l.b16 %v212
    %v2170 = vunpack.c.h.b16 %v212
    %v2171 = vunpack.c.l.b16 %v213
    %v2172 = vunpack.c.h.b16 %v213
    %v2173 = vunpack.c.l.b16 %v214
    %v2174 = vunpack.c.h.b16 %v214
    %v2175 = vunpack.c.l.b16 %v215
    %v2176 = vunpack.c.h.b16 %v215
    %v2177 = vunpack.c.l.b16 %v216
    %v2178 = vunpack.c.h.b16 %v216
    %v2179 = vunpack.c.l.b16 %v217
    %v2180 = vunpack.c.h.b16 %v217
    %v2181 = vunpack.c.l.b16 %v218
    %v2182 = vunpack.c.h.b16 %v218
    %v2183 = vunpack.c.l.b16 %v219
    %v2184 = vunpack.c.h.b16 %v219
    %v2185 = vunpack.c.l.b16 %v220
    %v2186 = vunpack.c.h.b16 %v220
    %v2187 = vunpack.c.l.b16 %v221
    %v2188 = vunpack.c.h.b16 %v221
    %v2189 = vunpack.c.l.b16 %v222
    %v2190 = vunpack.c.h.b16 %v222
    %v2191 = vunpack.c.l.b16 %v223
    %v2192 = vunpack.c.h.b16 %v223
    %v2193 = vunpack.c.l.b16 %v224
    %v2194 = vunpack.c.h.b16 %v224
    %v2195 = vunpack.c.l.b16 %v225
    %v2196 = vunpack.c.h.b16 %v225
    %v2197 = vunpack.c.l.b16 %v226
    %v2198 = vunpack.c.h.b16 %v226
    %v2199 = vunpack.c.l.b16 %v227
    %v2200 = vunpack.c.h.b16 %v227
    %v2201 = vunpack.c.l.b16 %v228
    %v2202 = vunpack.c.h.b16 %v228
    %v2203 = vunpack.c.l.b16 %v229
    %v2204 = vunpack.c.h.b16 %v229
    %v2205 = vunpack.c.l.b16 %v230
    %v2206 = vunpack.c.h.b16 %v230
    %v2207 = vunpack.c.l.b16 %v231
    %v2208 = vunpack.c.h.b16 %v231
    %v2209 = vunpack.c.l.b16 %v232
    %v2210 = vunpack.c.h.b16 %v232
    %v2211 = vunpack.c.l.b16 %v233
    %v2212 = vunpack.c.h.b16 %v233
    %v2213 = vunpack.c.l.b16 %v234
    %v2214 = vunpack.c.h.b16 %v234
    %v2215 = vunpack.c.l.b16 %v235
    %v2216 = vunpack.c.h.b16 %v235
    %v2217 = vunpack.c.l.b16 %v236
    %v2218 = vunpack.c.h.b16 %v236
    %v2219 = vunpack.c.l.b16 %v237
    %v2220 = vunpack.c.h.b16 %v237
    %v2221 = vunpack.c.l.b16 %v238
    %v2222 = vunpack.c.h.b16 %v238
    %v2223 = vunpack.c.l.b16 %v239
    %v2224 = vunpack.c.h.b16 %v239
    %v2225 = vunpack.c.l.b16 %v240
    %v2226 = vunpack.c.h.b16 %v240
    %v2227 = vunpack.c.l.b16 %v241
    %v2228 = vunpack.c.h.b16 %v241
    %v2229 = vunpack.c.l.b16 %v242
    %v2230 = vunpack.c.h.b16 %v242
    %v2231 = vunpack.c.l.b16 %v243
    %v2232 = vunpack.c.h.b16 %v243
    %v2233 = vunpack.c.l.b16 %v244
    %v2234 = vunpack.c.h.b16 %v244
    %v2235 = vunpack.c.l.b16 %v245
    %v2236 = vunpack.c.h.b16 %v245
    %v2237 = vunpack.c.l.b16 %v246
    %v2238 = vunpack.c.h.b16 %v246
    %v2239 = vunpack.c.l.b16 %v247
    %v2240 = vunpack.c.h.b16 %v247
    %v2241 = vunpack.c.l.b16 %v248
    %v2242 = vunpack.c.h.b16 %v248
    %v2243 = vunpack.c.l.b16 %v249
    %v2244 = vunpack.c.h.b16 %v249
    %v2245 = vunpack.c.l.b16 %v250
    %v2246 = vunpack.c.h.b16 %v250
    %v2247 = vunpack.c.l.b16 %v251
    %v2248 = vunpack.c.h.b16 %v251
    %v2249 = vunpack.c.l.b16 %v252
    %v2250 = vunpack.c.h.b16 %v252
    %v2251 = vunpack.c.l.b16 %v253
    %v2252 = vunpack.c.h.b16 %v253
    %v2253 = vunpack.c.l.b16 %v254
    %v2254 = vunpack.c.h.b16 %v254
    %v2255 = vunpack.c.l.b16 %v255
    %v2256 = vunpack.c.h.b16 %v255
    %v2257 = vunpack.c.l.b16 %v256
    %v2258 = vunpack.c.h.b16 %v256
    %v2259 = vunpack.c.l.b16 %v257
    %v2260 = vunpack.c.h.b16 %v257
    %v2261 = vunpack.c.l.b16 %v258
    %v2262 = vunpack.c.h.b16 %v258
    %v2263 = vunpack.c.l.b16 %v259
    %v2264 = vunpack.c.h.b16 %v259
    %v2265 = vunpack.c.l.b16 %v260
    %v2266 = vunpack.c.h.b16 %v260
    %v2267 = vunpack.c.l.b16 %v261
    %v2268 = vunpack.c.h.b16 %v261
    %v2269 = vunpack.c.l.b16 %v262
    %v2270 = vunpack.c.h.b16 %v262
    %v2271 = vunpack.c.l.b16 %v263
    %v2272 = vunpack.c.h.b16 %v263
    %v2273 = vunpack.c.l.b16 %v264
    %v2274 = vunpack.c.h.b16 %v264
    %v2275 = vunpack.c.l.b16 %v265
    %v2276 = vunpack.c.h.b16 %v265
    %v2277 = vunpack.c.l.b16 %v266
    %v2278 = vunpack.c.h.b16 %v266
    %v2279 = vunpack.c.l.b16 %v267
    %v2280 = vunpack.c.h.b16 %v267
    %v2281 = vunpack.c.l.b16 %v268
    %v2282 = vunpack.c.h.b16 %v268
    %v2283 = vunpack.c.l.b16 %v269
    %v2284 = vunpack.c.h.b16 %v269
    %v2285 = vunpack.c.l.b16 %v270
    %v2286 = vunpack.c.h.b16 %v270
    %v2287 = vunpack.c.l.b16 %v271
    %v2288 = vunpack.c.h.b16 %v271
    %v2289 = vunpack.c.l.b16 %v272
    %v2290 = vunpack.c.h.b16 %v272
    %v2291 = vunpack.c.l.b16 %v273
    %v2292 = vunpack.c.h.b16 %v273
    %v2293 = vunpack.c.l.b16 %v274
    %v2294 = vunpack.c.h.b16 %v274
    %v2295 = vunpack.c.l.b16 %v275
    %v2296 = vunpack.c.h.b16 %v275
    %v2297 = vunpack.c.l.b16 %v276
    %v2298 = vunpack.c.h.b16 %v276
    %v2299 = vunpack.c.l.b16 %v277
    %v2300 = vunpack.c.h.b16 %v277
    %v2301 = vunpack.c.l.b16 %v278
    %v2302 = vunpack.c.h.b16 %v278
    %v2303 = vunpack.c.l.b16 %v279
    %v2304 = vunpack.c.h.b16 %v279
    %v2305 = vunpack.c.l.b16 %v280
    %v2306 = vunpack.c.h.b16 %v280
    %v2307 = vunpack.c.l.b16 %v281
    %v2308 = vunpack.c.h.b16 %v281
    %v2309 = vunpack.c.l.b16 %v282
    %v2310 = vunpack.c.h.b16 %v282
    %v2311 = vunpack.c.l.b16 %v283
    %v2312 = vunpack.c.h.b16 %v283
    %v2313 = vunpack.c.l.b16 %v284
    %v2314 = vunpack.c.h.b16 %v284
    %v2315 = vunpack.c.l.b16 %v285
    %v2316 = vunpack.c.h.b16 %v285
    %v2317 = vunpack.c.l.b16 %v286
    %v2318 = vunpack.c.h.b16 %v286
    %v2319 = vunpack.c.l.b16 %v287
    %v2320 = vunpack.c.h.b16 %v287
    %v2321 = vunpack.c.l.b16 %v288
    %v2322 = vunpack.c.h.b16 %v288
    %v2323 = vunpack.c.l.b16 %v289
    %v2324 = vunpack.c.h.b16 %v289
    %v2325 = vunpack.c.l.b16 %v290
    %v2326 = vunpack.c.h.b16 %v290
    %v2327 = vunpack.c.l.b16 %v291
    %v2328 = vunpack.c.h.b16 %v291
    %v2329 = vunpack.c.l.b16 %v292
    %v2330 = vunpack.c.h.b16 %v292
    %v2331 = vunpack.c.l.b16 %v293
    %v2332 = vunpack.c.h.b16 %v293
    %v2333 = vunpack.c.l.b16 %v294
    %v2334 = vunpack.c.h.b16 %v294
    %v2335 = vunpack.c.l.b16 %v295
    %v2336 = vunpack.c.h.b16 %v295
    %v2337 = vunpack.c.l.b16 %v296
    %v2338 = vunpack.c.h.b16 %v296
    %v2339 = vunpack.c.l.b16 %v297
    %v2340 = vunpack.c.h.b16 %v297
    %v2341 = vunpack.c.l.b16 %v298
    %v2342 = vunpack.c.h.b16 %v298
    %v2343 = vunpack.c.l.b16 %v299
    %v2344 = vunpack.c.h.b16 %v299
    %v2345 = vunpack.c.l.b16 %v300
    %v2346 = vunpack.c.h.b16 %v300
    %v2347 = vunpack.c.l.b16 %v301
    %v2348 = vunpack.c.h.b16 %v301
    %v2349 = vunpack.c.l.b16 %v302
    %v2350 = vunpack.c.h.b16 %v302
    %v2351 = vunpack.c.l.b16 %v303
    %v2352 = vunpack.c.h.b16 %v303
    %v2353 = vunpack.c.l.b16 %v304
    %v2354 = vunpack.c.h.b16 %v304
    %v2355 = vunpack.c.l.b16 %v305
    %v2356 = vunpack.c.h.b16 %v305
    %v2357 = vunpack.c.l.b16 %v306
    %v2358 = vunpack.c.h.b16 %v306
    %v2359 = vunpack.c.l.b16 %v307
    %v2360 = vunpack.c.h.b16 %v307
    %v2361 = vunpack.c.l.b16 %v308
    %v2362 = vunpack.c.h.b16 %v308
    %v2363 = vunpack.c.l.b16 %v309
    %v2364 = vunpack.c.h.b16 %v309
    %v2365 = vunpack.c.l.b16 %v310
    %v2366 = vunpack.c.h.b16 %v310
    %v2367 = vunpack.c.l.b16 %v311
    %v2368 = vunpack.c.h.b16 %v311
    %v2369 = vunpack.c.l.b16 %v312
    %v2370 = vunpack.c.h.b16 %v312
    %v2371 = vunpack.c.l.b16 %v313
    %v2372 = vunpack.c.h.b16 %v313
    %v2373 = vunpack.c.l.b16 %v314
    %v2374 = vunpack.c.h.b16 %v314
    %v2375 = vunpack.c.l.b16 %v315
    %v2376 = vunpack.c.h.b16 %v315
    %v2377 = vunpack.c.l.b16 %v316
    %v2378 = vunpack.c.h.b16 %v316
    %v2379 = vunpack.c.l.b16 %v317
    %v2380 = vunpack.c.h.b16 %v317
    %v2381 = vunpack.c.l.b16 %v318
    %v2382 = vunpack.c.h.b16 %v318
    %v2383 = vunpack.c.l.b16 %v319
    %v2384 = vunpack.c.h.b16 %v319
    %v2385 = vunpack.c.l.b16 %v320
    %v2386 = vunpack.c.h.b16 %v320
    %v2387 = vunpack.c.l.b16 %v321
    %v2388 = vunpack.c.h.b16 %v321
    %v2389 = vunpack.c.l.b16 %v322
    %v2390 = vunpack.c.h.b16 %v322
    %v2391 = vunpack.c.l.b16 %v323
    %v2392 = vunpack.c.h.b16 %v323
    %v2393 = vunpack.c.l.b16 %v324
    %v2394 = vunpack.c.h.b16 %v324
    %v2395 = vunpack.c.l.b16 %v325
    %v2396 = vunpack.c.h.b16 %v325
    %v2397 = vunpack.c.l.b16 %v326
    %v2398 = vunpack.c.h.b16 %v326
    %v2399 = vunpack.c.l.b16 %v327
    %v2400 = vunpack.c.h.b16 %v327
    %v2401 = vunpack.c.l.b16 %v328
    %v2402 = vunpack.c.h.b16 %v328
    %v2403 = vunpack.c.l.b16 %v329
    %v2404 = vunpack.c.h.b16 %v329
    %v2405 = vunpack.c.l.b16 %v330
    %v2406 = vunpack.c.h.b16 %v330
    %v2407 = vunpack.c.l.b16 %v331
    %v2408 = vunpack.c.h.b16 %v331
    %v2409 = vunpack.c.l.b16 %v332
    %v2410 = vunpack.c.h.b16 %v332
    %v2411 = vunpack.c.l.b16 %v333
    %v2412 = vunpack.c.h.b16 %v333
    %v2413 = vunpack.c.l.b16 %v334
    %v2414 = vunpack.c.h.b16 %v334
    %v2415 = vunpack.c.l.b16 %v335
    %v2416 = vunpack.c.h.b16 %v335
    %v2417 = vunpack.c.l.b16 %v336
    %v2418 = vunpack.c.h.b16 %v336
    %v2419 = vunpack.c.l.b16 %v337
    %v2420 = vunpack.c.h.b16 %v337
    %v2421 = vunpack.c.l.b16 %v338
    %v2422 = vunpack.c.h.b16 %v338
    %v2423 = vunpack.c.l.b16 %v339
    %v2424 = vunpack.c.h.b16 %v339
    %v2425 = vunpack.c.l.b16 %v340
    %v2426 = vunpack.c.h.b16 %v340
    %v2427 = vunpack.c.l.b16 %v341
    %v2428 = vunpack.c.h.b16 %v341
    %v2429 = vunpack.c.l.b16 %v342
    %v2430 = vunpack.c.h.b16 %v342
    %v2431 = vunpack.c.l.b16 %v343
    %v2432 = vunpack.c.h.b16 %v343
    %v2433 = vunpack.c.l.b16 %v344
    %v2434 = vunpack.c.h.b16 %v344
    %v2435 = vunpack.c.l.b16 %v345
    %v2436 = vunpack.c.h.b16 %v345
    %v2437 = vunpack.c.l.b16 %v346
    %v2438 = vunpack.c.h.b16 %v346
    %v2439 = vunpack.c.l.b16 %v347
    %v2440 = vunpack.c.h.b16 %v347
    %v2441 = vunpack.c.l.b16 %v348
    %v2442 = vunpack.c.h.b16 %v348
    %v2443 = vunpack.c.l.b16 %v349
    %v2444 = vunpack.c.h.b16 %v349
    %v2445 = vunpack.c.l.b16 %v350
    %v2446 = vunpack.c.h.b16 %v350
    %v2447 = vunpack.c.l.b16 %v351
    %v2448 = vunpack.c.h.b16 %v351
    %v2449 = vunpack.c.l.b16 %v352
    %v2450 = vunpack.c.h.b16 %v352
    %v2451 = vunpack.c.l.b16 %v353
    %v2452 = vunpack.c.h.b16 %v353
    %v2453 = vunpack.c.l.b16 %v354
    %v2454 = vunpack.c.h.b16 %v354
    %v2455 = vunpack.c.l.b16 %v355
    %v2456 = vunpack.c.h.b16 %v355
    %v2457 = vunpack.c.l.b16 %v356
    %v2458 = vunpack.c.h.b16 %v356
    %v2459 = vunpack.c.l.b16 %v357
    %v2460 = vunpack.c.h.b16 %v357
    %v2461 = vunpack.c.l.b16 %v358
    %v2462 = vunpack.c.h.b16 %v358
    %v2463 = vunpack.c.l.b16 %v359
    %v2464 = vunpack.c.h.b16 %v359
    %v2465 = vunpack.c.l.b16 %v360
    %v2466 = vunpack.c.h.b16 %v360
    %v2467 = vunpack.c.l.b16 %v361
    %v2468 = vunpack.c.h.b16 %v361
    %v2469 = vunpack.c.l.b16 %v362
    %v2470 = vunpack.c.h.b16 %v362
    %v2471 = vunpack.c.l.b16 %v363
    %v2472 = vunpack.c.h.b16 %v363
    %v2473 = vunpack.c.l.b16 %v364
    %v2474 = vunpack.c.h.b16 %v364
    %v2475 = vunpack.c.l.b16 %v365
    %v2476 = vunpack.c.h.b16 %v365
    %v2477 = vunpack.c.l.b16 %v366
    %v2478 = vunpack.c.h.b16 %v366
    %v2479 = vunpack.c.l.b16 %v367
    %v2480 = vunpack.c.h.b16 %v367
    %v2481 = vunpack.c.l.b16 %v368
    %v2482 = vunpack.c.h.b16 %v368
    %v2483 = vunpack.c.l.b16 %v369
    %v2484 = vunpack.c.h.b16 %v369
    %v2485 = vunpack.c.l.b16 %v370
    %v2486 = vunpack.c.h.b16 %v370
    %v2487 = vunpack.c.l.b16 %v371
    %v2488 = vunpack.c.h.b16 %v371
    %v2489 = vunpack.c.l.b16 %v372
    %v2490 = vunpack.c.h.b16 %v372
    %v2491 = vunpack.c.l.b16 %v373
    %v2492 = vunpack.c.h.b16 %v373
    %v2493 = vunpack.c.l.b16 %v374
    %v2494 = vunpack.c.h.b16 %v374
    %v2495 = vunpack.c.l.b16 %v375
    %v2496 = vunpack.c.h.b16 %v375
    %v2497 = vunpack.c.l.b16 %v376
    %v2498 = vunpack.c.h.b16 %v376
    %v2499 = vunpack.c.l.b16 %v377
    %v2500 = vunpack.c.h.b16 %v377
    %v2501 = vunpack.c.l.b16 %v378
    %v2502 = vunpack.c.h.b16 %v378
    %v2503 = vunpack.c.l.b16 %v379
    %v2504 = vunpack.c.h.b16 %v379
    %v2505 = vunpack.c.l.b16 %v380
    %v2506 = vunpack.c.h.b16 %v380
    %v2507 = vunpack.c.l.b16 %v381
    %v2508 = vunpack.c.h.b16 %v381
    %v2509 = vunpack.c.l.b16 %v382
    %v2510 = vunpack.c.h.b16 %v382
    %v2511 = vunpack.c.l.b16 %v383
    %v2512 = vunpack.c.h.b16 %v383
    %v2513 = vunpack.c.l.b16 %v384
    %v2514 = vunpack.c.h.b16 %v384
    %v2515 = vunpack.c.l.b16 %v385
    %v2516 = vunpack.c.h.b16 %v385
    %v2517 = vunpack.c.l.b16 %v386
    %v2518 = vunpack.c.h.b16 %v386
    %v2519 = vunpack.c.l.b16 %v387
    %v2520 = vunpack.c.h.b16 %v387
    %v2521 = vunpack.c.l.b16 %v388
    %v2522 = vunpack.c.h.b16 %v388
    %v2523 = vunpack.c.l.b16 %v389
    %v2524 = vunpack.c.h.b16 %v389
    %v2525 = vunpack.c.l.b16 %v390
    %v2526 = vunpack.c.h.b16 %v390
    %v2527 = vunpack.c.l.b16 %v391
    %v2528 = vunpack.c.h.b16 %v391
    %v2529 = vunpack.c.l.b16 %v392
    %v2530 = vunpack.c.h.b16 %v392
    %v2531 = vunpack.c.l.b16 %v393
    %v2532 = vunpack.c.h.b16 %v393
    %v2533 = vunpack.c.l.b16 %v394
    %v2534 = vunpack.c.h.b16 %v394
    %v2535 = vunpack.c.l.b16 %v395
    %v2536 = vunpack.c.h.b16 %v395
    %v2537 = vunpack.c.l.b16 %v396
    %v2538 = vunpack.c.h.b16 %v396
    %v2539 = vunpack.c.l.b16 %v397
    %v2540 = vunpack.c.h.b16 %v397
    %v2541 = vunpack.c.l.b16 %v398
    %v2542 = vunpack.c.h.b16 %v398
    %v2543 = vunpack.c.l.b16 %v399
    %v2544 = vunpack.c.h.b16 %v399
    %v2545 = vunpack.c.l.b16 %v400
    %v2546 = vunpack.c.h.b16 %v400
    %v2547 = vunpack.c.l.b16 %v401
    %v2548 = vunpack.c.h.b16 %v401
    %v2549 = vunpack.c.l.b16 %v402
    %v2550 = vunpack.c.h.b16 %v402
    %v2551 = vunpack.c.l.b16 %v403
    %v2552 = vunpack.c.h.b16 %v403
    %v2553 = vunpack.c.l.b16 %v404
    %v2554 = vunpack.c.h.b16 %v404
    %v2555 = vunpack.c.l.b16 %v405
    %v2556 = vunpack.c.h.b16 %v405
    %v2557 = vunpack.c.l.b16 %v406
    %v2558 = vunpack.c.h.b16 %v406
    %v2559 = vunpack.c.l.b16 %v407
    %v2560 = vunpack.c.h.b16 %v407
    %v2561 = vunpack.c.l.b16 %v408
    %v2562 = vunpack.c.h.b16 %v408
    %v2563 = vunpack.c.l.b16 %v409
    %v2564 = vunpack.c.h.b16 %v409
    %v2565 = vunpack.c.l.b16 %v410
    %v2566 = vunpack.c.h.b16 %v410
    %v2567 = vunpack.c.l.b16 %v411
    %v2568 = vunpack.c.h.b16 %v411
    %v2569 = vunpack.c.l.b16 %v412
    %v2570 = vunpack.c.h.b16 %v412
    %v2571 = vunpack.c.l.b16 %v413
    %v2572 = vunpack.c.h.b16 %v413
    %v2573 = vunpack.c.l.b16 %v414
    %v2574 = vunpack.c.h.b16 %v414
    %v2575 = vunpack.c.l.b16 %v415
    %v2576 = vunpack.c.h.b16 %v415
    %v2577 = vunpack.c.l.b16 %v416
    %v2578 = vunpack.c.h.b16 %v416
    %v2579 = vunpack.c.l.b16 %v417
    %v2580 = vunpack.c.h.b16 %v417
    %v2581 = vunpack.c.l.b16 %v418
    %v2582 = vunpack.c.h.b16 %v418
    %v2583 = vunpack.c.l.b16 %v419
    %v2584 = vunpack.c.h.b16 %v419
    %v2585 = vunpack.c.l.b16 %v420
    %v2586 = vunpack.c.h.b16 %v420
    %v2587 = vunpack.c.l.b16 %v421
    %v2588 = vunpack.c.h.b16 %v421
    %v2589 = vunpack.c.l.b16 %v422
    %v2590 = vunpack.c.h.b16 %v422
    %v2591 = vunpack.c.l.b16 %v423
    %v2592 = vunpack.c.h.b16 %v423
    %v2593 = vunpack.c.l.b16 %v424
    %v2594 = vunpack.c.h.b16 %v424
    %v2595 = vunpack.c.l.b16 %v425
    %v2596 = vunpack.c.h.b16 %v425
    %v2597 = vunpack.c.l.b16 %v426
    %v2598 = vunpack.c.h.b16 %v426
    %v2599 = vunpack.c.l.b16 %v427
    %v2600 = vunpack.c.h.b16 %v427
    %v2601 = vunpack.c.l.b16 %v428
    %v2602 = vunpack.c.h.b16 %v428
    %v2603 = vunpack.c.l.b16 %v429
    %v2604 = vunpack.c.h.b16 %v429
    %v2605 = vunpack.c.l.b16 %v430
    %v2606 = vunpack.c.h.b16 %v430
    %v2607 = vunpack.c.l.b16 %v431
    %v2608 = vunpack.c.h.b16 %v431
    %v2609 = vunpack.c.l.b16 %v432
    %v2610 = vunpack.c.h.b16 %v432
    %v2611 = vunpack.c.l.b16 %v433
    %v2612 = vunpack.c.h.b16 %v433
    %v2613 = vunpack.c.l.b16 %v434
    %v2614 = vunpack.c.h.b16 %v434
    %v2615 = vunpack.c.l.b16 %v435
    %v2616 = vunpack.c.h.b16 %v435
    %v2617 = vunpack.c.l.b16 %v436
    %v2618 = vunpack.c.h.b16 %v436
    %v2619 = vunpack.c.l.b16 %v437
    %v2620 = vunpack.c.h.b16 %v437
    %v2621 = vunpack.c.l.b16 %v438
    %v2622 = vunpack.c.h.b16 %v438
    %v2623 = vunpack.c.l.b16 %v439
    %v2624 = vunpack.c.h.b16 %v439
    %v2625 = vunpack.c.l.b16 %v440
    %v2626 = vunpack.c.h.b16 %v440
    %v2627 = vunpack.c.l.b16 %v441
    %v2628 = vunpack.c.h.b16 %v441
    %v2629 = vunpack.c.l.b16 %v442
    %v2630 = vunpack.c.h.b16 %v442
    %v2631 = vunpack.c.l.b16 %v443
    %v2632 = vunpack.c.h.b16 %v443
    %v2633 = vunpack.c.l.b16 %v444
    %v2634 = vunpack.c.h.b16 %v444
    %v2635 = vunpack.c.l.b16 %v445
    %v2636 = vunpack.c.h.b16 %v445
    %v2637 = vunpack.c.l.b16 %v446
    %v2638 = vunpack.c.h.b16 %v446
    %v2639 = vunpack.c.l.b16 %v447
    %v2640 = vunpack.c.h.b16 %v447
    %v2641 = vunpack.c.l.b16 %v448
    %v2642 = vunpack.c.h.b16 %v448
    %v2643 = vunpack.c.l.b16 %v449
    %v2644 = vunpack.c.h.b16 %v449
    %v2645 = vunpack.c.l.b16 %v450
    %v2646 = vunpack.c.h.b16 %v450
    %v2647 = vunpack.c.l.b16 %v451
    %v2648 = vunpack.c.h.b16 %v451
    %v2649 = vunpack.c.l.b16 %v452
    %v2650 = vunpack.c.h.b16 %v452
    %v2651 = vunpack.c.l.b16 %v453
    %v2652 = vunpack.c.h.b16 %v453
    %v2653 = vunpack.c.l.b16 %v454
    %v2654 = vunpack.c.h.b16 %v454
    %v2655 = vunpack.c.l.b16 %v455
    %v2656 = vunpack.c.h.b16 %v455
    %v2657 = vunpack.c.l.b16 %v456
    %v2658 = vunpack.c.h.b16 %v456
    %v2659 = vunpack.c.l.b16 %v457
    %v2660 = vunpack.c.h.b16 %v457
    %v2661 = vunpack.c.l.b16 %v458
    %v2662 = vunpack.c.h.b16 %v458
    %v2663 = vunpack.c.l.b16 %v459
    %v2664 = vunpack.c.h.b16 %v459
    %v2665 = vunpack.c.l.b16 %v460
    %v2666 = vunpack.c.h.b16 %v460
    %v2667 = vunpack.c.l.b16 %v461
    %v2668 = vunpack.c.h.b16 %v461
    %v2669 = vunpack.c.l.b16 %v462
    %v2670 = vunpack.c.h.b16 %v462
    %v2671 = vunpack.c.l.b16 %v463
    %v2672 = vunpack.c.h.b16 %v463
    %v2673 = vunpack.c.l.b16 %v464
    %v2674 = vunpack.c.h.b16 %v464
    %v2675 = vunpack.c.l.b16 %v465
    %v2676 = vunpack.c.h.b16 %v465
    %v2677 = vunpack.c.l.b16 %v466
    %v2678 = vunpack.c.h.b16 %v466
    %v2679 = vunpack.c.l.b16 %v467
    %v2680 = vunpack.c.h.b16 %v467
    %v2681 = vunpack.c.l.b16 %v468
    %v2682 = vunpack.c.h.b16 %v468
    %v2683 = vunpack.c.l.b16 %v469
    %v2684 = vunpack.c.h.b16 %v469
    %v2685 = vunpack.c.l.b16 %v470
    %v2686 = vunpack.c.h.b16 %v470
    %v2687 = vunpack.c.l.b16 %v471
    %v2688 = vunpack.c.h.b16 %v471
    %v2689 = vunpack.c.l.b16 %v472
    %v2690 = vunpack.c.h.b16 %v472
    %v2691 = vunpack.c.l.b16 %v473
    %v2692 = vunpack.c.h.b16 %v473
    %v2693 = vunpack.c.l.b16 %v474
    %v2694 = vunpack.c.h.b16 %v474
    %v2695 = vunpack.c.l.b16 %v475
    %v2696 = vunpack.c.h.b16 %v475
    %v2697 = vunpack.c.l.b16 %v476
    %v2698 = vunpack.c.h.b16 %v476
    %v2699 = vunpack.c.l.b16 %v477
    %v2700 = vunpack.c.h.b16 %v477
    %v2701 = vunpack.c.l.b16 %v478
    %v2702 = vunpack.c.h.b16 %v478
    %v2703 = vunpack.c.l.b16 %v479
    %v2704 = vunpack.c.h.b16 %v479
    %v2705 = vunpack.c.l.b16 %v480
    %v2706 = vunpack.c.h.b16 %v480
    %v2707 = vunpack.c.l.b16 %v481
    %v2708 = vunpack.c.h.b16 %v481
    %v2709 = vunpack.c.l.b16 %v482
    %v2710 = vunpack.c.h.b16 %v482
    %v2711 = vunpack.c.l.b16 %v483
    %v2712 = vunpack.c.h.b16 %v483
    %v2713 = vunpack.c.l.b16 %v484
    %v2714 = vunpack.c.h.b16 %v484
    %v2715 = vunpack.c.l.b16 %v485
    %v2716 = vunpack.c.h.b16 %v485
    %v2717 = vunpack.c.l.b16 %v486
    %v2718 = vunpack.c.h.b16 %v486
    %v2719 = vunpack.c.l.b16 %v487
    %v2720 = vunpack.c.h.b16 %v487
    %v2721 = vunpack.c.l.b16 %v488
    %v2722 = vunpack.c.h.b16 %v488
    %v2723 = vunpack.c.l.b16 %v489
    %v2724 = vunpack.c.h.b16 %v489
    %v2725 = vunpack.c.l.b16 %v490
    %v2726 = vunpack.c.h.b16 %v490
    %v2727 = vunpack.c.l.b16 %v491
    %v2728 = vunpack.c.h.b16 %v491
    %v2729 = vunpack.c.l.b16 %v492
    %v2730 = vunpack.c.h.b16 %v492
    %v2731 = vunpack.c.l.b16 %v493
    %v2732 = vunpack.c.h.b16 %v493
    %v2733 = vunpack.c.l.b16 %v494
    %v2734 = vunpack.c.h.b16 %v494
    %v2735 = vunpack.c.l.b16 %v495
    %v2736 = vunpack.c.h.b16 %v495
    %v2737 = vunpack.c.l.b16 %v496
    %v2738 = vunpack.c.h.b16 %v496
    %v2739 = vunpack.c.l.b16 %v497
    %v2740 = vunpack.c.h.b16 %v497
    %v2741 = vunpack.c.l.b16 %v498
    %v2742 = vunpack.c.h.b16 %v498
    %v2743 = vunpack.c.l.b16 %v499
    %v2744 = vunpack.c.h.b16 %v499
    %v2745 = vunpack.c.l.b16 %v500
    %v2746 = vunpack.c.h.b16 %v500
    %v2747 = vunpack.c.l.b16 %v501
    %v2748 = vunpack.c.h.b16 %v501
    %v2749 = vunpack.c.l.b16 %v502
    %v2750 = vunpack.c.h.b16 %v502
    %v2751 = vunpack.c.l.b16 %v503
    %v2752 = vunpack.c.h.b16 %v503
    %v2753 = vunpack.c.l.b16 %v504
    %v2754 = vunpack.c.h.b16 %v504
    %v2755 = vunpack.c.l.b16 %v505
    %v2756 = vunpack.c.h.b16 %v505
    %v2757 = vunpack.c.l.b16 %v506
    %v2758 = vunpack.c.h.b16 %v506
    %v2759 = vunpack.c.l.b16 %v507
    %v2760 = vunpack.c.h.b16 %v507
    %v2761 = vunpack.c.l.b16 %v508
    %v2762 = vunpack.c.h.b16 %v508
    %v2763 = vunpack.c.l.b16 %v509
    %v2764 = vunpack.c.h.b16 %v509
    %v2765 = vunpack.c.l.b16 %v510
    %v2766 = vunpack.c.h.b16 %v510
    %v2767 = vunpack.c.l.b16 %v511
    %v2768 = vunpack.c.h.b16 %v511
    %v2769 = vunpack.c.l.b16 %v512
    %v2770 = vunpack.c.h.b16 %v512
    %v2771 = vunpack.c.l.b16 %v513
    %v2772 = vunpack.c.h.b16 %v513
    %v2773 = vunpack.c.l.b16 %v514
    %v2774 = vunpack.c.h.b16 %v514
    %v2775 = vunpack.c.l.b16 %v515
    %v2776 = vunpack.c.h.b16 %v515
    %v2777 = vunpack.c.l.b16 %v516
    %v2778 = vunpack.c.h.b16 %v516
    %v2779 = vunpack.c.l.b16 %v517
    %v2780 = vunpack.c.h.b16 %v517
    %v2781 = vunpack.c.l.b16 %v518
    %v2782 = vunpack.c.h.b16 %v518
    %v2783 = vunpack.c.l.b16 %v519
    %v2784 = vunpack.c.h.b16 %v519
    %v2785 = vunpack.c.l.b16 %v520
    %v2786 = vunpack.c.h.b16 %v520
    %v2787 = vunpack.c.l.b16 %v521
    %v2788 = vunpack.c.h.b16 %v521
    %v2789 = vunpack.c.l.b16 %v522
    %v2790 = vunpack.c.h.b16 %v522
    %v2791 = vunpack.c.l.b16 %v523
    %v2792 = vunpack.c.h.b16 %v523
    %v2793 = vunpack.c.l.b16 %v524
    %v2794 = vunpack.c.h.b16 %v524
    %v2795 = vunpack.c.l.b16 %v525
    %v2796 = vunpack.c.h.b16 %v525
    %v2797 = vunpack.c.l.b16 %v526
    %v2798 = vunpack.c.h.b16 %v526
    %v2799 = vunpack.c.l.b16 %v527
    %v2800 = vunpack.c.h.b16 %v527
    %v2801 = vunpack.c.l.b16 %v528
    %v2802 = vunpack.c.h.b16 %v528
    %v2803 = vunpack.c.l.b16 %v529
    %v2804 = vunpack.c.h.b16 %v529
    %v2805 = vunpack.c.l.b16 %v530
    %v2806 = vunpack.c.h.b16 %v530
    %v2807 = vunpack.c.l.b16 %v531
    %v2808 = vunpack.c.h.b16 %v531
    %v2809 = vunpack.c.l.b16 %v532
    %v2810 = vunpack.c.h.b16 %v532
    %v2811 = vunpack.c.l.b16 %v533
    %v2812 = vunpack.c.h.b16 %v533
    %v2813 = vunpack.c.l.b16 %v534
    %v2814 = vunpack.c.h.b16 %v534
    %v2815 = vunpack.c.l.b16 %v535
    %v2816 = vunpack.c.h.b16 %v535
    %v2817 = vunpack.c.l.b16 %v536
    %v2818 = vunpack.c.h.b16 %v536
    %v2819 = vunpack.c.l.b16 %v537
    %v2820 = vunpack.c.h.b16 %v537
    %v2821 = vunpack.c.l.b16 %v538
    %v2822 = vunpack.c.h.b16 %v538
    %v2823 = vunpack.c.l.b16 %v539
    %v2824 = vunpack.c.h.b16 %v539
    %v2825 = vunpack.c.l.b16 %v540
    %v2826 = vunpack.c.h.b16 %v540
    %v2827 = vunpack.c.l.b16 %v541
    %v2828 = vunpack.c.h.b16 %v541
    %v2829 = vunpack.c.l.b16 %v542
    %v2830 = vunpack.c.h.b16 %v542
    %v2831 = vunpack.c.l.b16 %v543
    %v2832 = vunpack.c.h.b16 %v543
    %v2833 = vunpack.c.l.b16 %v544
    %v2834 = vunpack.c.h.b16 %v544
    %v2835 = vunpack.c.l.b16 %v545
    %v2836 = vunpack.c.h.b16 %v545
    %v2837 = vunpack.c.l.b16 %v546
    %v2838 = vunpack.c.h.b16 %v546
    %v2839 = vunpack.c.l.b16 %v547
    %v2840 = vunpack.c.h.b16 %v547
    %v2841 = vunpack.c.l.b16 %v548
    %v2842 = vunpack.c.h.b16 %v548
    %v2843 = vunpack.c.l.b16 %v549
    %v2844 = vunpack.c.h.b16 %v549
    %v2845 = vunpack.c.l.b16 %v550
    %v2846 = vunpack.c.h.b16 %v550
    %v2847 = vunpack.c.l.b16 %v551
    %v2848 = vunpack.c.h.b16 %v551
    %v2849 = vunpack.c.l.b16 %v552
    %v2850 = vunpack.c.h.b16 %v552
    %v2851 = vunpack.c.l.b16 %v553
    %v2852 = vunpack.c.h.b16 %v553
    %v2853 = vunpack.c.l.b16 %v554
    %v2854 = vunpack.c.h.b16 %v554
    %v2855 = vunpack.c.l.b16 %v555
    %v2856 = vunpack.c.h.b16 %v555
    %v2857 = vunpack.c.l.b16 %v556
    %v2858 = vunpack.c.h.b16 %v556
    %v2859 = vunpack.c.l.b16 %v557
    %v2860 = vunpack.c.h.b16 %v557
    %v2861 = vunpack.c.l.b16 %v558
    %v2862 = vunpack.c.h.b16 %v558
    %v2863 = vunpack.c.l.b16 %v559
    %v2864 = vunpack.c.h.b16 %v559
    %v2865 = vunpack.c.l.b16 %v560
    %v2866 = vunpack.c.h.b16 %v560
    %v2867 = vunpack.c.l.b16 %v561
    %v2868 = vunpack.c.h.b16 %v561
    %v2869 = vunpack.c.l.b16 %v562
    %v2870 = vunpack.c.h.b16 %v562
    %v2871 = vunpack.c.l.b16 %v563
    %v2872 = vunpack.c.h.b16 %v563
    %v2873 = vunpack.c.l.b16 %v564
    %v2874 = vunpack.c.h.b16 %v564
    %v2875 = vunpack.c.l.b16 %v565
    %v2876 = vunpack.c.h.b16 %v565
    %v2877 = vunpack.c.l.b16 %v566
    %v2878 = vunpack.c.h.b16 %v566
    %v2879 = vunpack.c.l.b16 %v567
    %v2880 = vunpack.c.h.b16 %v567
    %v2881 = vunpack.c.l.b16 %v568
    %v2882 = vunpack.c.h.b16 %v568
    %v2883 = vunpack.c.l.b16 %v569
    %v2884 = vunpack.c.h.b16 %v569
    %v2885 = vunpack.c.l.b16 %v570
    %v2886 = vunpack.c.h.b16 %v570
    %v2887 = vunpack.c.l.b16 %v571
    %v2888 = vunpack.c.h.b16 %v571
    %v2889 = vunpack.c.l.b16 %v572
    %v2890 = vunpack.c.h.b16 %v572
    %v2891 = vunpack.c.l.b16 %v573
    %v2892 = vunpack.c.h.b16 %v573
    %v2893 = vunpack.c.l.b16 %v574
    %v2894 = vunpack.c.h.b16 %v574
    %v2895 = vunpack.c.l.b16 %v575
    %v2896 = vunpack.c.h.b16 %v575
    %v2897 = vunpack.c.l.b16 %v576
    %v2898 = vunpack.c.h.b16 %v576
    %v2899 = vunpack.c.l.b16 %v577
    %v2900 = vunpack.c.h.b16 %v577
    %v2901 = vunpack.c.l.b16 %v578
    %v2902 = vunpack.c.h.b16 %v578
    %v2903 = vunpack.c.l.b16 %v579
    %v2904 = vunpack.c.h.b16 %v579
    %v2905 = vunpack.c.l.b16 %v580
    %v2906 = vunpack.c.h.b16 %v580
    %v2907 = vunpack.c.l.b16 %v581
    %v2908 = vunpack.c.h.b16 %v581
    %v2909 = vunpack.c.l.b16 %v582
    %v2910 = vunpack.c.h.b16 %v582
    %v2911 = vunpack.c.l.b16 %v583
    %v2912 = vunpack.c.h.b16 %v583
    %v2913 = vunpack.c.l.b16 %v584
    %v2914 = vunpack.c.h.b16 %v584
    %v2915 = vunpack.c.l.b16 %v585
    %v2916 = vunpack.c.h.b16 %v585
    %v2917 = vunpack.c.l.b16 %v586
    %v2918 = vunpack.c.h.b16 %v586
    %v2919 = vunpack.c.l.b16 %v587
    %v2920 = vunpack.c.h.b16 %v587
    %v2921 = vunpack.c.l.b16 %v588
    %v2922 = vunpack.c.h.b16 %v588
    %v2923 = vunpack.c.l.b16 %v589
    %v2924 = vunpack.c.h.b16 %v589
    %v2925 = vunpack.c.l.b16 %v590
    %v2926 = vunpack.c.h.b16 %v590
    %v2927 = vunpack.c.l.b16 %v591
    %v2928 = vunpack.c.h.b16 %v591
    %v2929 = vunpack.c.l.b16 %v592
    %v2930 = vunpack.c.h.b16 %v592
    %v2931 = vunpack.c.l.b16 %v593
    %v2932 = vunpack.c.h.b16 %v593
    %v2933 = vunpack.c.l.b16 %v594
    %v2934 = vunpack.c.h.b16 %v594
    %v2935 = vunpack.c.l.b16 %v595
    %v2936 = vunpack.c.h.b16 %v595
    %v2937 = vunpack.c.l.b16 %v596
    %v2938 = vunpack.c.h.b16 %v596
    %v2939 = vunpack.c.l.b16 %v597
    %v2940 = vunpack.c.h.b16 %v597
    %v2941 = vunpack.c.l.b16 %v598
    %v2942 = vunpack.c.h.b16 %v598
    %v2943 = vunpack.c.l.b16 %v599
    %v2944 = vunpack.c.h.b16 %v599
    %v2945 = vunpack.c.l.b16 %v600
    %v2946 = vunpack.c.h.b16 %v600
    %v2947 = vunpack.c.l.b16 %v601
    %v2948 = vunpack.c.h.b16 %v601
    %v2949 = vunpack.c.l.b16 %v602
    %v2950 = vunpack.c.h.b16 %v602
    %v2951 = vunpack.c.l.b16 %v603
    %v2952 = vunpack.c.h.b16 %v603
    %v2953 = vunpack.c.l.b16 %v604
    %v2954 = vunpack.c.h.b16 %v604
    %v2955 = vunpack.c.l.b16 %v605
    %v2956 = vunpack.c.h.b16 %v605
    %v2957 = vunpack.c.l.b16 %v606
    %v2958 = vunpack.c.h.b16 %v606
    %v2959 = vunpack.c.l.b16 %v607
    %v2960 = vunpack.c.h.b16 %v607
    %v2961 = vunpack.c.l.b16 %v608
    %v2962 = vunpack.c.h.b16 %v608
    %v2963 = vunpack.c.l.b16 %v609
    %v2964 = vunpack.c.h.b16 %v609
    %v2965 = vunpack.c.l.b16 %v610
    %v2966 = vunpack.c.h.b16 %v610
    %v2967 = vunpack.c.l.b16 %v611
    %v2968 = vunpack.c.h.b16 %v611
    %v2969 = vunpack.c.l.b16 %v612
    %v2970 = vunpack.c.h.b16 %v612
    %v2971 = vunpack.c.l.b16 %v613
    %v2972 = vunpack.c.h.b16 %v613
    %v2973 = vunpack.c.l.b16 %v614
    %v2974 = vunpack.c.h.b16 %v614
    %v2975 = vunpack.c.l.b16 %v615
    %v2976 = vunpack.c.h.b16 %v615
    %v2977 = vunpack.c.l.b16 %v616
    %v2978 = vunpack.c.h.b16 %v616
    %v2979 = vunpack.c.l.b16 %v617
    %v2980 = vunpack.c.h.b16 %v617
    %v2981 = vunpack.c.l.b16 %v618
    %v2982 = vunpack.c.h.b16 %v618
    %v2983 = vunpack.c.l.b16 %v619
    %v2984 = vunpack.c.h.b16 %v619
    %v2985 = vunpack.c.l.b16 %v620
    %v2986 = vunpack.c.h.b16 %v620
    %v2987 = vunpack.c.l.b16 %v621
    %v2988 = vunpack.c.h.b16 %v621
    %v2989 = vunpack.c.l.b16 %v622
    %v2990 = vunpack.c.h.b16 %v622
    %v2991 = vunpack.c.l.b16 %v623
    %v2992 = vunpack.c.h.b16 %v623
    %v2993 = vunpack.c.l.b16 %v624
    %v2994 = vunpack.c.h.b16 %v624
    %v2995 = vunpack.c.l.b16 %v625
    %v2996 = vunpack.c.h.b16 %v625
    %v2997 = vunpack.c.l.b16 %v626
    %v2998 = vunpack.c.h.b16 %v626
    %v2999 = vunpack.c.l.b16 %v627
    %v3000 = vunpack.c.h.b16 %v627
    %v3001 = vunpack.c.l.b16 %v628
    %v3002 = vunpack.c.h.b16 %v628
    %v3003 = vunpack.c.l.b16 %v629
    %v3004 = vunpack.c.h.b16 %v629
    %v3005 = vunpack.c.l.b16 %v630
    %v3006 = vunpack.c.h.b16 %v630
    %v3007 = vunpack.c.l.b16 %v631
    %v3008 = vunpack.c.h.b16 %v631
    %v3009 = vunpack.c.l.b16 %v632
    %v3010 = vunpack.c.h.b16 %v632
    %v3011 = vunpack.c.l.b16 %v633
    %v3012 = vunpack.c.h.b16 %v633
    %v3013 = vunpack.c.l.b16 %v634
    %v3014 = vunpack.c.h.b16 %v634
    %v3015 = vunpack.c.l.b16 %v635
    %v3016 = vunpack.c.h.b16 %v635
    %v3017 = vunpack.c.l.b16 %v636
    %v3018 = vunpack.c.h.b16 %v636
    %v3019 = vunpack.c.l.b16 %v637
    %v3020 = vunpack.c.h.b16 %v637
    %v3021 = vunpack.c.l.b16 %v638
    %v3022 = vunpack.c.h.b16 %v638
    %v3023 = vunpack.c.l.b16 %v639
    %v3024 = vunpack.c.h.b16 %v639
    %v3025 = vunpack.c.l.b16 %v640
    %v3026 = vunpack.c.h.b16 %v640
    %v3027 = vunpack.c.l.b16 %v641
    %v3028 = vunpack.c.h.b16 %v641
    %v3029 = vunpack.c.l.b16 %v642
    %v3030 = vunpack.c.h.b16 %v642
    %v3031 = vunpack.c.l.b16 %v643
    %v3032 = vunpack.c.h.b16 %v643
    %v3033 = vunpack.c.l.b16 %v644
    %v3034 = vunpack.c.h.b16 %v644
    %v3035 = vunpack.c.l.b16 %v645
    %v3036 = vunpack.c.h.b16 %v645
    %v3037 = vunpack.c.l.b16 %v646
    %v3038 = vunpack.c.h.b16 %v646
    %v3039 = vunpack.c.l.b16 %v647
    %v3040 = vunpack.c.h.b16 %v647
    %v3041 = vunpack.c.l.b16 %v648
    %v3042 = vunpack.c.h.b16 %v648
    %v3043 = vunpack.c.l.b16 %v649
    %v3044 = vunpack.c.h.b16 %v649
    %v3045 = vunpack.c.l.b16 %v650
    %v3046 = vunpack.c.h.b16 %v650
    %v3047 = vunpack.c.l.b16 %v651
    %v3048 = vunpack.c.h.b16 %v651
    %v3049 = vunpack.c.l.b16 %v652
    %v3050 = vunpack.c.h.b16 %v652
    %v3051 = vunpack.c.l.b16 %v653
    %v3052 = vunpack.c.h.b16 %v653
    %v3053 = vunpack.c.l.b16 %v654
    %v3054 = vunpack.c.h.b16 %v654
    %v3055 = vunpack.c.l.b16 %v655
    %v3056 = vunpack.c.h.b16 %v655
    %v3057 = vunpack.c.l.b16 %v656
    %v3058 = vunpack.c.h.b16 %v656
    %v3059 = vunpack.c.l.b16 %v657
    %v3060 = vunpack.c.h.b16 %v657
    %v3061 = vunpack.c.l.b16 %v658
    %v3062 = vunpack.c.h.b16 %v658
    %v3063 = vunpack.c.l.b16 %v659
    %v3064 = vunpack.c.h.b16 %v659
    %v3065 = vunpack.c.l.b16 %v660
    %v3066 = vunpack.c.h.b16 %v660
    %v3067 = vunpack.c.l.b16 %v661
    %v3068 = vunpack.c.h.b16 %v661
    %v3069 = vunpack.c.l.b16 %v662
    %v3070 = vunpack.c.h.b16 %v662
    %v3071 = vunpack.c.l.b16 %v663
    %v3072 = vunpack.c.h.b16 %v663
    %v3073 = vunpack.c.l.b16 %v664
    %v3074 = vunpack.c.h.b16 %v664
    %v3075 = vunpack.c.l.b16 %v665
    %v3076 = vunpack.c.h.b16 %v665
    %v3077 = vunpack.c.l.b16 %v666
    %v3078 = vunpack.c.h.b16 %v666
    %v3079 = vunpack.c.l.b16 %v667
    %v3080 = vunpack.c.h.b16 %v667
    %v3081 = vunpack.c.l.b16 %v668
    %v3082 = vunpack.c.h.b16 %v668
    %v3083 = vunpack.c.l.b16 %v669
    %v3084 = vunpack.c.h.b16 %v669
    %v3085 = vunpack.c.l.b16 %v670
    %v3086 = vunpack.c.h.b16 %v670
    %v3087 = vunpack.c.l.b16 %v671
    %v3088 = vunpack.c.h.b16 %v671
    %v3089 = vunpack.c.l.b16 %v672
    %v3090 = vunpack.c.h.b16 %v672
    %v3091 = vunpack.c.l.b16 %v673
    %v3092 = vunpack.c.h.b16 %v673
    %v3093 = vunpack.c.l.b16 %v674
    %v3094 = vunpack.c.h.b16 %v674
    %v3095 = vunpack.c.l.b16 %v675
    %v3096 = vunpack.c.h.b16 %v675
    %v3097 = vunpack.c.l.b16 %v676
    %v3098 = vunpack.c.h.b16 %v676
    %v3099 = vunpack.c.l.b16 %v677
    %v3100 = vunpack.c.h.b16 %v677
    %v3101 = vunpack.c.l.b16 %v678
    %v3102 = vunpack.c.h.b16 %v678
    %v3103 = vunpack.c.l.b16 %v679
    %v3104 = vunpack.c.h.b16 %v679
    %v3105 = vunpack.c.l.b16 %v680
    %v3106 = vunpack.c.h.b16 %v680
    %v3107 = vunpack.c.l.b16 %v681
    %v3108 = vunpack.c.h.b16 %v681
    %v3109 = vunpack.c.l.b16 %v682
    %v3110 = vunpack.c.h.b16 %v682
    %v3111 = vunpack.c.l.b16 %v683
    %v3112 = vunpack.c.h.b16 %v683
    %v3113 = vunpack.c.l.b16 %v684
    %v3114 = vunpack.c.h.b16 %v684
    %v3115 = vunpack.c.l.b16 %v685
    %v3116 = vunpack.c.h.b16 %v685
    %v3117 = vunpack.c.l.b16 %v686
    %v3118 = vunpack.c.h.b16 %v686
    %v3119 = vunpack.c.l.b16 %v687
    %v3120 = vunpack.c.h.b16 %v687
    %v3121 = vunpack.c.l.b16 %v688
    %v3122 = vunpack.c.h.b16 %v688
    %v3123 = vunpack.c.l.b16 %v689
    %v3124 = vunpack.c.h.b16 %v689
    %v3125 = vunpack.c.l.b16 %v690
    %v3126 = vunpack.c.h.b16 %v690
    %v3127 = vunpack.c.l.b16 %v691
    %v3128 = vunpack.c.h.b16 %v691
    %v3129 = vunpack.c.l.b16 %v692
    %v3130 = vunpack.c.h.b16 %v692
    %v3131 = vunpack.c.l.b16 %v693
    %v3132 = vunpack.c.h.b16 %v693
    %v3133 = vunpack.c.l.b16 %v694
    %v3134 = vunpack.c.h.b16 %v694
    %v3135 = vunpack.c.l.b16 %v695
    %v3136 = vunpack.c.h.b16 %v695
    %v3137 = vunpack.c.l.b16 %v696
    %v3138 = vunpack.c.h.b16 %v696
    %v3139 = vunpack.c.l.b16 %v697
    %v3140 = vunpack.c.h.b16 %v697
    %v3141 = vunpack.c.l.b16 %v698
    %v3142 = vunpack.c.h.b16 %v698
    %v3143 = vunpack.c.l.b16 %v699
    %v3144 = vunpack.c.h.b16 %v699
    %v3145 = vunpack.c.l.b16 %v700
    %v3146 = vunpack.c.h.b16 %v700
    %v3147 = vunpack.c.l.b16 %v701
    %v3148 = vunpack.c.h.b16 %v701
    %v3149 = vunpack.c.l.b16 %v702
    %v3150 = vunpack.c.h.b16 %v702
    %v3151 = vunpack.c.l.b16 %v703
    %v3152 = vunpack.c.h.b16 %v703
    %v3153 = vunpack.c.l.b16 %v704
    %v3154 = vunpack.c.h.b16 %v704
    %v3155 = vunpack.c.l.b16 %v705
    %v3156 = vunpack.c.h.b16 %v705
    %v3157 = vunpack.c.l.b16 %v706
    %v3158 = vunpack.c.h.b16 %v706
    %v3159 = vunpack.c.l.b16 %v707
    %v3160 = vunpack.c.h.b16 %v707
    %v3161 = vunpack.c.l.b16 %v708
    %v3162 = vunpack.c.h.b16 %v708
    %v3163 = vunpack.c.l.b16 %v709
    %v3164 = vunpack.c.h.b16 %v709
    %v3165 = vunpack.c.l.b16 %v710
    %v3166 = vunpack.c.h.b16 %v710
    %v3167 = vunpack.c.l.b16 %v711
    %v3168 = vunpack.c.h.b16 %v711
    %v3169 = vunpack.c.l.b16 %v712
    %v3170 = vunpack.c.h.b16 %v712
    %v3171 = vunpack.c.l.b16 %v713
    %v3172 = vunpack.c.h.b16 %v713
    %v3173 = vunpack.c.l.b16 %v714
    %v3174 = vunpack.c.h.b16 %v714
    %v3175 = vunpack.c.l.b16 %v715
    %v3176 = vunpack.c.h.b16 %v715
    %v3177 = vunpack.c.l.b16 %v716
    %v3178 = vunpack.c.h.b16 %v716
    %v3179 = vunpack.c.l.b16 %v717
    %v3180 = vunpack.c.h.b16 %v717
    %v3181 = vunpack.c.l.b16 %v718
    %v3182 = vunpack.c.h.b16 %v718
    %v3183 = vunpack.c.l.b16 %v719
    %v3184 = vunpack.c.h.b16 %v719
    %v3185 = vunpack.c.l.b16 %v720
    %v3186 = vunpack.c.h.b16 %v720
    %v3187 = vunpack.c.l.b16 %v721
    %v3188 = vunpack.c.h.b16 %v721
    %v3189 = vunpack.c.l.b16 %v722
    %v3190 = vunpack.c.h.b16 %v722
    %v3191 = vunpack.c.l.b16 %v723
    %v3192 = vunpack.c.h.b16 %v723
    %v3193 = vunpack.c.l.b16 %v724
    %v3194 = vunpack.c.h.b16 %v724
    %v3195 = vunpack.c.l.b16 %v725
    %v3196 = vunpack.c.h.b16 %v725
    %v3197 = vunpack.c.l.b16 %v726
    %v3198 = vunpack.c.h.b16 %v726
    %v3199 = vunpack.c.l.b16 %v727
    %v3200 = vunpack.c.h.b16 %v727
    %v3201 = vunpack.c.l.b16 %v728
    %v3202 = vunpack.c.h.b16 %v728
    %v3203 = vunpack.c.l.b16 %v729
    %v3204 = vunpack.c.h.b16 %v729
    %v3205 = vunpack.c.l.b16 %v730
    %v3206 = vunpack.c.h.b16 %v730
    %v3207 = vunpack.c.l.b16 %v731
    %v3208 = vunpack.c.h.b16 %v731
    %v3209 = vunpack.c.l.b16 %v732
    %v3210 = vunpack.c.h.b16 %v732
    %v3211 = vunpack.c.l.b16 %v733
    %v3212 = vunpack.c.h.b16 %v733
    %v3213 = vunpack.c.l.b16 %v734
    %v3214 = vunpack.c.h.b16 %v734
    %v3215 = vunpack.c.l.b16 %v735
    %v3216 = vunpack.c.h.b16 %v735
    %v3217 = vunpack.c.l.b16 %v736
    %v3218 = vunpack.c.h.b16 %v736
    %v3219 = vunpack.c.l.b16 %v737
    %v3220 = vunpack.c.h.b16 %v737
    %v3221 = vunpack.c.l.b16 %v738
    %v3222 = vunpack.c.h.b16 %v738
    %v3223 = vunpack.c.l.b16 %v739
    %v3224 = vunpack.c.h.b16 %v739
    %v3225 = vunpack.c.l.b16 %v740
    %v3226 = vunpack.c.h.b16 %v740
    %v3227 = vunpack.c.l.b16 %v741
    %v3228 = vunpack.c.h.b16 %v741
    %v3229 = vunpack.c.l.b16 %v742
    %v3230 = vunpack.c.h.b16 %v742
    %v3231 = vunpack.c.l.b16 %v743
    %v3232 = vunpack.c.h.b16 %v743
    %v3233 = vunpack.c.l.b16 %v744
    %v3234 = vunpack.c.h.b16 %v744
    %v3235 = vunpack.c.l.b16 %v745
    %v3236 = vunpack.c.h.b16 %v745
    %v3237 = vunpack.c.l.b16 %v746
    %v3238 = vunpack.c.h.b16 %v746
    %v3239 = vunpack.c.l.b16 %v747
    %v3240 = vunpack.c.h.b16 %v747
    %v3241 = vunpack.c.l.b16 %v748
    %v3242 = vunpack.c.h.b16 %v748
    %v3243 = vunpack.c.l.b16 %v749
    %v3244 = vunpack.c.h.b16 %v749
    %v3245 = vunpack.c.l.b16 %v750
    %v3246 = vunpack.c.h.b16 %v750
    %v3247 = vunpack.c.l.b16 %v751
    %v3248 = vunpack.c.h.b16 %v751
    %v3249 = vunpack.c.l.b16 %v752
    %v3250 = vunpack.c.h.b16 %v752
    %v3251 = vunpack.c.l.b16 %v753
    %v3252 = vunpack.c.h.b16 %v753
    %v3253 = vunpack.c.l.b16 %v754
    %v3254 = vunpack.c.h.b16 %v754
    %v3255 = vunpack.c.l.b16 %v755
    %v3256 = vunpack.c.h.b16 %v755
    %v3257 = vunpack.c.l.b16 %v756
    %v3258 = vunpack.c.h.b16 %v756
    %v3259 = vunpack.c.l.b16 %v757
    %v3260 = vunpack.c.h.b16 %v757
    %v3261 = vunpack.c.l.b16 %v758
    %v3262 = vunpack.c.h.b16 %v758
    %v3263 = vunpack.c.l.b16 %v759
    %v3264 = vunpack.c.h.b16 %v759
    %v3265 = vunpack.c.l.b16 %v760
    %v3266 = vunpack.c.h.b16 %v760
    %v3267 = vunpack.c.l.b16 %v761
    %v3268 = vunpack.c.h.b16 %v761
    %v3269 = vunpack.c.l.b16 %v762
    %v3270 = vunpack.c.h.b16 %v762
    %v3271 = vunpack.c.l.b16 %v763
    %v3272 = vunpack.c.h.b16 %v763
    %v3273 = vunpack.c.l.b16 %v764
    %v3274 = vunpack.c.h.b16 %v764
    %v3275 = vunpack.c.l.b16 %v765
    %v3276 = vunpack.c.h.b16 %v765
    %v3277 = vunpack.c.l.b16 %v766
    %v3278 = vunpack.c.h.b16 %v766
    %v3279 = vunpack.c.l.b16 %v767
    %v3280 = vunpack.c.h.b16 %v767
    %v3281 = vunpack.c.l.b16 %v768
    %v3282 = vunpack.c.h.b16 %v768
    %v3283 = vunpack.c.l.b16 %v769
    %v3284 = vunpack.c.h.b16 %v769
    %v3285 = vunpack.c.l.b16 %v770
    %v3286 = vunpack.c.h.b16 %v770
    %v3287 = vunpack.c.l.b16 %v771
    %v3288 = vunpack.c.h.b16 %v771
    %v3289 = vunpack.c.l.b16 %v772
    %v3290 = vunpack.c.h.b16 %v772
    %v3291 = vunpack.c.l.b16 %v773
    %v3292 = vunpack.c.h.b16 %v773
    %v3293 = vunpack.c.l.b16 %v774
    %v3294 = vunpack.c.h.b16 %v774
    %v3295 = vunpack.c.l.b16 %v775
    %v3296 = vunpack.c.h.b16 %v775
    %v3297 = vunpack.c.l.b16 %v776
    %v3298 = vunpack.c.h.b16 %v776
    %v3299 = vunpack.c.l.b16 %v777
    %v3300 = vunpack.c.h.b16 %v777
    %v3301 = vunpack.c.l.b16 %v778
    %v3302 = vunpack.c.h.b16 %v778
    %v3303 = vunpack.c.l.b16 %v779
    %v3304 = vunpack.c.h.b16 %v779
    %v3305 = vunpack.c.l.b16 %v780
    %v3306 = vunpack.c.h.b16 %v780
    %v3307 = vunpack.c.l.b16 %v781
    %v3308 = vunpack.c.h.b16 %v781
    %v3309 = vunpack.c.l.b16 %v782
    %v3310 = vunpack.c.h.b16 %v782
    %v3311 = vunpack.c.l.b16 %v783
    %v3312 = vunpack.c.h.b16 %v783
    %v3313 = vunpack.c.l.b16 %v784
    %v3314 = vunpack.c.h.b16 %v784
    %v3315 = vunpack.c.l.b16 %v785
    %v3316 = vunpack.c.h.b16 %v785
    %v3317 = vunpack.c.l.b16 %v786
    %v3318 = vunpack.c.h.b16 %v786
    %v3319 = vunpack.c.l.b16 %v787
    %v3320 = vunpack.c.h.b16 %v787
    %v3321 = vunpack.c.l.b16 %v788
    %v3322 = vunpack.c.h.b16 %v788
    %v3323 = vunpack.c.l.b16 %v789
    %v3324 = vunpack.c.h.b16 %v789
    %v3325 = vunpack.c.l.b16 %v790
    %v3326 = vunpack.c.h.b16 %v790
    %v3327 = vunpack.c.l.b16 %v791
    %v3328 = vunpack.c.h.b16 %v791
    %v3329 = vunpack.c.l.b16 %v792
    %v3330 = vunpack.c.h.b16 %v792
    %v3331 = vunpack.c.l.b16 %v793
    %v3332 = vunpack.c.h.b16 %v793
    %v3333 = vunpack.c.l.b16 %v794
    %v3334 = vunpack.c.h.b16 %v794
    %v3335 = vunpack.c.l.b16 %v795
    %v3336 = vunpack.c.h.b16 %v795
    %v3337 = vunpack.c.l.b16 %v796
    %v3338 = vunpack.c.h.b16 %v796
    %v3339 = vunpack.c.l.b16 %v797
    %v3340 = vunpack.c.h.b16 %v797
    %v3341 = vunpack.c.l.b16 %v798
    %v3342 = vunpack.c.h.b16 %v798
    %v3343 = vunpack.c.l.b16 %v799
    %v3344 = vunpack.c.h.b16 %v799
    %v3345 = vunpack.c.l.b16 %v800
    %v3346 = vunpack.c.h.b16 %v800
    %v3347 = vunpack.c.l.b16 %v801
    %v3348 = vunpack.c.h.b16 %v801
    %v3349 = vunpack.c.l.b16 %v802
    %v3350 = vunpack.c.h.b16 %v802
    %v3351 = vunpack.c.l.b16 %v803
    %v3352 = vunpack.c.h.b16 %v803
    %v3353 = vunpack.c.l.b16 %v804
    %v3354 = vunpack.c.h.b16 %v804
    %v3355 = vunpack.c.l.b16 %v805
    %v3356 = vunpack.c.h.b16 %v805
    %v3357 = vunpack.c.l.b16 %v806
    %v3358 = vunpack.c.h.b16 %v806
    %v3359 = vunpack.c.l.b16 %v807
    %v3360 = vunpack.c.h.b16 %v807
    %v3361 = vunpack.c.l.b16 %v808
    %v3362 = vunpack.c.h.b16 %v808
    %v3363 = vunpack.c.l.b16 %v809
    %v3364 = vunpack.c.h.b16 %v809
    %v3365 = vunpack.c.l.b16 %v810
    %v3366 = vunpack.c.h.b16 %v810
    %v3367 = vunpack.c.l.b16 %v811
    %v3368 = vunpack.c.h.b16 %v811
    %v3369 = vunpack.c.l.b16 %v812
    %v3370 = vunpack.c.h.b16 %v812
    %v3371 = vunpack.c.l.b16 %v813
    %v3372 = vunpack.c.h.b16 %v813
    %v3373 = vunpack.c.l.b16 %v814
    %v3374 = vunpack.c.h.b16 %v814
    %v3375 = vunpack.c.l.b16 %v815
    %v3376 = vunpack.c.h.b16 %v815
    %v3377 = vunpack.c.l.b16 %v816
    %v3378 = vunpack.c.h.b16 %v816
    %v3379 = vunpack.c.l.b16 %v817
    %v3380 = vunpack.c.h.b16 %v817
    %v3381 = vunpack.c.l.b16 %v818
    %v3382 = vunpack.c.h.b16 %v818
    %v3383 = vunpack.c.l.b16 %v819
    %v3384 = vunpack.c.h.b16 %v819
    %v3385 = vunpack.c.l.b16 %v820
    %v3386 = vunpack.c.h.b16 %v820
    %v3387 = vunpack.c.l.b16 %v821
    %v3388 = vunpack.c.h.b16 %v821
    %v3389 = vunpack.c.l.b16 %v822
    %v3390 = vunpack.c.h.b16 %v822
    %v3391 = vunpack.c.l.b16 %v823
    %v3392 = vunpack.c.h.b16 %v823
    %v3393 = vunpack.c.l.b16 %v824
    %v3394 = vunpack.c.h.b16 %v824
    %v3395 = vunpack.c.l.b16 %v825
    %v3396 = vunpack.c.h.b16 %v825
    %v3397 = vunpack.c.l.b16 %v826
    %v3398 = vunpack.c.h.b16 %v826
    %v3399 = vunpack.c.l.b16 %v827
    %v3400 = vunpack.c.h.b16 %v827
    %v3401 = vunpack.c.l.b16 %v828
    %v3402 = vunpack.c.h.b16 %v828
    %v3403 = vunpack.c.l.b16 %v829
    %v3404 = vunpack.c.h.b16 %v829
    %v3405 = vunpack.c.l.b16 %v830
    %v3406 = vunpack.c.h.b16 %v830
    %v3407 = vunpack.c.l.b16 %v831
    %v3408 = vunpack.c.h.b16 %v831
    %v3409 = vunpack.c.l.b16 %v832
    %v3410 = vunpack.c.h.b16 %v832
    %v3411 = vunpack.c.l.b16 %v833
    %v3412 = vunpack.c.h.b16 %v833
    %v3413 = vunpack.c.l.b16 %v834
    %v3414 = vunpack.c.h.b16 %v834
    %v3415 = vunpack.c.l.b16 %v835
    %v3416 = vunpack.c.h.b16 %v835
    %v3417 = vunpack.c.l.b16 %v836
    %v3418 = vunpack.c.h.b16 %v836
    %v3419 = vunpack.c.l.b16 %v837
    %v3420 = vunpack.c.h.b16 %v837
    %v3421 = vunpack.c.l.b16 %v838
    %v3422 = vunpack.c.h.b16 %v838
    %v3423 = vunpack.c.l.b16 %v839
    %v3424 = vunpack.c.h.b16 %v839
    %v3425 = vunpack.c.l.b16 %v840
    %v3426 = vunpack.c.h.b16 %v840
    %v3427 = vunpack.c.l.b16 %v841
    %v3428 = vunpack.c.h.b16 %v841
    %v3429 = vunpack.c.l.b16 %v842
    %v3430 = vunpack.c.h.b16 %v842
    %v3431 = vunpack.c.l.b16 %v843
    %v3432 = vunpack.c.h.b16 %v843
    %v3433 = vunpack.c.l.b16 %v844
    %v3434 = vunpack.c.h.b16 %v844
    %v3435 = vunpack.c.l.b16 %v845
    %v3436 = vunpack.c.h.b16 %v845
    %v3437 = vunpack.c.l.b16 %v846
    %v3438 = vunpack.c.h.b16 %v846
    %v3439 = vunpack.c.l.b16 %v847
    %v3440 = vunpack.c.h.b16 %v847
    %v3441 = vunpack.c.l.b16 %v848
    %v3442 = vunpack.c.h.b16 %v848
    %v3443 = vunpack.c.l.b16 %v849
    %v3444 = vunpack.c.h.b16 %v849
    %v3445 = vunpack.c.l.b16 %v850
    %v3446 = vunpack.c.h.b16 %v850
    %v3447 = vunpack.c.l.b16 %v851
    %v3448 = vunpack.c.h.b16 %v851
    %v3449 = vunpack.c.l.b16 %v852
    %v3450 = vunpack.c.h.b16 %v852
    %v3451 = vunpack.c.l.b16 %v853
    %v3452 = vunpack.c.h.b16 %v853
    %v3453 = vunpack.c.l.b16 %v854
    %v3454 = vunpack.c.h.b16 %v854
    %v3455 = vunpack.c.l.b16 %v855
    %v3456 = vunpack.c.h.b16 %v855
    %v3457 = vunpack.c.l.b16 %v856
    %v3458 = vunpack.c.h.b16 %v856
    %v3459 = vunpack.c.l.b16 %v857
    %v3460 = vunpack.c.h.b16 %v857
    %v3461 = vunpack.c.l.b16 %v858
    %v3462 = vunpack.c.h.b16 %v858
    %v3463 = vunpack.c.l.b16 %v859
    %v3464 = vunpack.c.h.b16 %v859
    %v3465 = vunpack.c.l.b16 %v860
    %v3466 = vunpack.c.h.b16 %v860
    %v3467 = vunpack.c.l.b16 %v861
    %v3468 = vunpack.c.h.b16 %v861
    %v3469 = vunpack.c.l.b16 %v862
    %v3470 = vunpack.c.h.b16 %v862
    %v3471 = vunpack.c.l.b16 %v863
    %v3472 = vunpack.c.h.b16 %v863
    %v3473 = vunpack.c.l.b16 %v864
    %v3474 = vunpack.c.h.b16 %v864
    %v3475 = vunpack.c.l.b16 %v865
    %v3476 = vunpack.c.h.b16 %v865
    %v3477 = vunpack.c.l.b16 %v866
    %v3478 = vunpack.c.h.b16 %v866
    %v3479 = vunpack.c.l.b16 %v867
    %v3480 = vunpack.c.h.b16 %v867
    %v3481 = vunpack.c.l.b16 %v868
    %v3482 = vunpack.c.h.b16 %v868
    %v3483 = vunpack.c.l.b16 %v869
    %v3484 = vunpack.c.h.b16 %v869
    %v3485 = vunpack.c.l.b16 %v870
    %v3486 = vunpack.c.h.b16 %v870
    %v3487 = vunpack.c.l.b16 %v871
    %v3488 = vunpack.c.h.b16 %v871
    %v3489 = vunpack.c.l.b16 %v872
    %v3490 = vunpack.c.h.b16 %v872
    %v3491 = vunpack.c.l.b16 %v873
    %v3492 = vunpack.c.h.b16 %v873
    %v3493 = vunpack.c.l.b16 %v874
    %v3494 = vunpack.c.h.b16 %v874
    %v3495 = vunpack.c.l.b16 %v875
    %v3496 = vunpack.c.h.b16 %v875
    %v3497 = vunpack.c.l.b16 %v876
    %v3498 = vunpack.c.h.b16 %v876
    %v3499 = vunpack.c.l.b16 %v877
    %v3500 = vunpack.c.h.b16 %v877
    %v3501 = vunpack.c.l.b16 %v878
    %v3502 = vunpack.c.h.b16 %v878
    %v3503 = vunpack.c.l.b16 %v879
    %v3504 = vunpack.c.h.b16 %v879
    %v3505 = vunpack.c.l.b16 %v880
    %v3506 = vunpack.c.h.b16 %v880
    %v3507 = vunpack.c.l.b16 %v881
    %v3508 = vunpack.c.h.b16 %v881
    %v3509 = vunpack.c.l.b16 %v882
    %v3510 = vunpack.c.h.b16 %v882
    %v3511 = vunpack.c.l.b16 %v883
    %v3512 = vunpack.c.h.b16 %v883
    %v3513 = vunpack.c.l.b16 %v884
    %v3514 = vunpack.c.h.b16 %v884
    %v3515 = vunpack.c.l.b16 %v885
    %v3516 = vunpack.c.h.b16 %v885
    %v3517 = vunpack.c.l.b16 %v886
    %v3518 = vunpack.c.h.b16 %v886
    %v3519 = vunpack.c.l.b16 %v887
    %v3520 = vunpack.c.h.b16 %v887
    %v3521 = vunpack.c.l.b16 %v888
    %v3522 = vunpack.c.h.b16 %v888
    %v3523 = vunpack.c.l.b16 %v889
    %v3524 = vunpack.c.h.b16 %v889
    %v3525 = vunpack.c.l.b16 %v890
    %v3526 = vunpack.c.h.b16 %v890
    %v3527 = vunpack.c.l.b16 %v891
    %v3528 = vunpack.c.h.b16 %v891
    %v3529 = vunpack.c.l.b16 %v892
    %v3530 = vunpack.c.h.b16 %v892
    %v3531 = vunpack.c.l.b16 %v893
    %v3532 = vunpack.c.h.b16 %v893
    %v3533 = vunpack.c.l.b16 %v894
    %v3534 = vunpack.c.h.b16 %v894
    %v3535 = vunpack.c.l.b16 %v895
    %v3536 = vunpack.c.h.b16 %v895
    %v3537 = vunpack.c.l.b16 %v896
    %v3538 = vunpack.c.h.b16 %v896
    %v3539 = vunpack.c.l.b16 %v897
    %v3540 = vunpack.c.h.b16 %v897
    %v3541 = vunpack.c.l.b16 %v898
    %v3542 = vunpack.c.h.b16 %v898
    %v3543 = vunpack.c.l.b16 %v899
    %v3544 = vunpack.c.h.b16 %v899
    %v3545 = vunpack.c.l.b16 %v900
    %v3546 = vunpack.c.h.b16 %v900
    %v3547 = vunpack.c.l.b16 %v901
    %v3548 = vunpack.c.h.b16 %v901
    %v3549 = vunpack.c.l.b16 %v902
    %v3550 = vunpack.c.h.b16 %v902
    %v3551 = vunpack.c.l.b16 %v903
    %v3552 = vunpack.c.h.b16 %v903
    %v3553 = vunpack.c.l.b16 %v904
    %v3554 = vunpack.c.h.b16 %v904
    %v3555 = vunpack.c.l.b16 %v905
    %v3556 = vunpack.c.h.b16 %v905
    %v3557 = vunpack.c.l.b16 %v906
    %v3558 = vunpack.c.h.b16 %v906
    %v3559 = vunpack.c.l.b16 %v907
    %v3560 = vunpack.c.h.b16 %v907
    %v3561 = vunpack.c.l.b16 %v908
    %v3562 = vunpack.c.h.b16 %v908
    %v3563 = vunpack.c.l.b16 %v909
    %v3564 = vunpack.c.h.b16 %v909
    %v3565 = vunpack.c.l.b16 %v910
    %v3566 = vunpack.c.h.b16 %v910
    %v3567 = vunpack.c.l.b16 %v911
    %v3568 = vunpack.c.h.b16 %v911
    %v3569 = vunpack.c.l.b16 %v912
    %v3570 = vunpack.c.h.b16 %v912
    %v3571 = vunpack.c.l.b16 %v913
    %v3572 = vunpack.c.h.b16 %v913
    %v3573 = vunpack.c.l.b16 %v914
    %v3574 = vunpack.c.h.b16 %v914
    %v3575 = vunpack.c.l.b16 %v915
    %v3576 = vunpack.c.h.b16 %v915
    %v3577 = vunpack.c.l.b16 %v916
    %v3578 = vunpack.c.h.b16 %v916
    %v3579 = vunpack.c.l.b16 %v917
    %v3580 = vunpack.c.h.b16 %v917
    %v3581 = vunpack.c.l.b16 %v918
    %v3582 = vunpack.c.h.b16 %v918
    %v3583 = vunpack.c.l.b16 %v919
    %v3584 = vunpack.c.h.b16 %v919
    %v3585 = vunpack.c.l.b16 %v920
    %v3586 = vunpack.c.h.b16 %v920
    %v3587 = vunpack.c.l.b16 %v921
    %v3588 = vunpack.c.h.b16 %v921
    %v3589 = vunpack.c.l.b16 %v922
    %v3590 = vunpack.c.h.b16 %v922
    %v3591 = vunpack.c.l.b16 %v923
    %v3592 = vunpack.c.h.b16 %v923
    %v3593 = vunpack.c.l.b16 %v924
    %v3594 = vunpack.c.h.b16 %v924
    %v3595 = vunpack.c.l.b16 %v925
    %v3596 = vunpack.c.h.b16 %v925
    %v3597 = vunpack.c.l.b16 %v926
    %v3598 = vunpack.c.h.b16 %v926
    %v3599 = vunpack.c.l.b16 %v927
    %v3600 = vunpack.c.h.b16 %v927
    %v3601 = vunpack.c.l.b16 %v928
    %v3602 = vunpack.c.h.b16 %v928
    %v3603 = vunpack.c.l.b16 %v929
    %v3604 = vunpack.c.h.b16 %v929
    %v3605 = vunpack.c.l.b16 %v930
    %v3606 = vunpack.c.h.b16 %v930
    %v3607 = vunpack.c.l.b16 %v931
    %v3608 = vunpack.c.h.b16 %v931
    %v3609 = vunpack.c.l.b16 %v932
    %v3610 = vunpack.c.h.b16 %v932
    %v3611 = vunpack.c.l.b16 %v933
    %v3612 = vunpack.c.h.b16 %v933
    %v3613 = vunpack.c.l.b16 %v934
    %v3614 = vunpack.c.h.b16 %v934
    %v3615 = vunpack.c.l.b16 %v935
    %v3616 = vunpack.c.h.b16 %v935
    %v3617 = vunpack.c.l.b16 %v936
    %v3618 = vunpack.c.h.b16 %v936
    %v3619 = vunpack.c.l.b16 %v937
    %v3620 = vunpack.c.h.b16 %v937
    %v3621 = vunpack.c.l.b16 %v938
    %v3622 = vunpack.c.h.b16 %v938
    %v3623 = vunpack.c.l.b16 %v939
    %v3624 = vunpack.c.h.b16 %v939
    %v3625 = vunpack.c.l.b16 %v940
    %v3626 = vunpack.c.h.b16 %v940
    %v3627 = vunpack.c.l.b16 %v941
    %v3628 = vunpack.c.h.b16 %v941
    %v3629 = vunpack.c.l.b16 %v942
    %v3630 = vunpack.c.h.b16 %v942
    %v3631 = vunpack.c.l.b16 %v943
    %v3632 = vunpack.c.h.b16 %v943
    %v3633 = vunpack.c.l.b16 %v944
    %v3634 = vunpack.c.h.b16 %v944
    %v3635 = vunpack.c.l.b16 %v945
    %v3636 = vunpack.c.h.b16 %v945
    %v3637 = vunpack.c.l.b16 %v946
    %v3638 = vunpack.c.h.b16 %v946
    %v3639 = vunpack.c.l.b16 %v947
    %v3640 = vunpack.c.h.b16 %v947
    %v3641 = vunpack.c.l.b16 %v948
    %v3642 = vunpack.c.h.b16 %v948
    %v3643 = vunpack.c.l.b16 %v949
    %v3644 = vunpack.c.h.b16 %v949
    %v3645 = vunpack.c.l.b16 %v950
    %v3646 = vunpack.c.h.b16 %v950
    %v3647 = vunpack.c.l.b16 %v951
    %v3648 = vunpack.c.h.b16 %v951
    %v3649 = vunpack.c.l.b16 %v952
    %v3650 = vunpack.c.h.b16 %v952
    %v3651 = vunpack.c.l.b16 %v953
    %v3652 = vunpack.c.h.b16 %v953
    %v3653 = vunpack.c.l.b16 %v954
    %v3654 = vunpack.c.h.b16 %v954
    %v3655 = vunpack.c.l.b16 %v955
    %v3656 = vunpack.c.h.b16 %v955
    %v3657 = vunpack.c.l.b16 %v956
    %v3658 = vunpack.c.h.b16 %v956
    %v3659 = vunpack.c.l.b16 %v957
    %v3660 = vunpack.c.h.b16 %v957
    %v3661 = vunpack.c.l.b16 %v958
    %v3662 = vunpack.c.h.b16 %v958
    %v3663 = vunpack.c.l.b16 %v959
    %v3664 = vunpack.c.h.b16 %v959
    %v3665 = vunpack.c.l.b16 %v960
    %v3666 = vunpack.c.h.b16 %v960
    %v3667 = vunpack.c.l.b16 %v961
    %v3668 = vunpack.c.h.b16 %v961
    %v3669 = vunpack.c.l.b16 %v962
    %v3670 = vunpack.c.h.b16 %v962
    %v3671 = vunpack.c.l.b16 %v963
    %v3672 = vunpack.c.h.b16 %v963
    %v3673 = vunpack.c.l.b16 %v964
    %v3674 = vunpack.c.h.b16 %v964
    %v3675 = vunpack.c.l.b16 %v965
    %v3676 = vunpack.c.h.b16 %v965
    %v3677 = vunpack.c.l.b16 %v966
    %v3678 = vunpack.c.h.b16 %v966
    %v3679 = vunpack.c.l.b16 %v967
    %v3680 = vunpack.c.h.b16 %v967
    %v3681 = vunpack.c.l.b16 %v968
    %v3682 = vunpack.c.h.b16 %v968
    %v3683 = vunpack.c.l.b16 %v969
    %v3684 = vunpack.c.h.b16 %v969
    %v3685 = vunpack.c.l.b16 %v970
    %v3686 = vunpack.c.h.b16 %v970
    %v3687 = vunpack.c.l.b16 %v971
    %v3688 = vunpack.c.h.b16 %v971
    %v3689 = vunpack.c.l.b16 %v972
    %v3690 = vunpack.c.h.b16 %v972
    %v3691 = vunpack.c.l.b16 %v973
    %v3692 = vunpack.c.h.b16 %v973
    %v3693 = vunpack.c.l.b16 %v974
    %v3694 = vunpack.c.h.b16 %v974
    %v3695 = vunpack.c.l.b16 %v975
    %v3696 = vunpack.c.h.b16 %v975
    %v3697 = vunpack.c.l.b16 %v976
    %v3698 = vunpack.c.h.b16 %v976
    %v3699 = vunpack.c.l.b16 %v977
    %v3700 = vunpack.c.h.b16 %v977
    %v3701 = vunpack.c.l.b16 %v978
    %v3702 = vunpack.c.h.b16 %v978
    %v3703 = vunpack.c.l.b16 %v979
    %v3704 = vunpack.c.h.b16 %v979
    %v3705 = vunpack.c.l.b16 %v980
    %v3706 = vunpack.c.h.b16 %v980
    %v3707 = vunpack.c.l.b16 %v981
    %v3708 = vunpack.c.h.b16 %v981
    %v3709 = vunpack.c.l.b16 %v982
    %v3710 = vunpack.c.h.b16 %v982
    %v3711 = vunpack.c.l.b16 %v983
    %v3712 = vunpack.c.h.b16 %v983
    %v3713 = vunpack.c.l.b16 %v984
    %v3714 = vunpack.c.h.b16 %v984
    %v3715 = vunpack.c.l.b16 %v985
    %v3716 = vunpack.c.h.b16 %v985
    %v3717 = vunpack.c.l.b16 %v986
    %v3718 = vunpack.c.h.b16 %v986
    %v3719 = vunpack.c.l.b16 %v987
    %v3720 = vunpack.c.h.b16 %v987
    %v3721 = vunpack.c.l.b16 %v988
    %v3722 = vunpack.c.h.b16 %v988
    %v3723 = vunpack.c.l.b16 %v989
    %v3724 = vunpack.c.h.b16 %v989
    %v3725 = vunpack.c.l.b16 %v990
    %v3726 = vunpack.c.h.b16 %v990
    %v3727 = vpack.c.b16 %v2071, %v2063
    %v3728 = vpack.c.b16 %v2072, %v2064
    %v3729 = vpack.c.b16 %v2073, %v2065
    %v3730 = vpack.c.b16 %v2074, %v2066
    %v3731 = vpack.c.b16 %v2075, %v2067
    %v3732 = vpack.c.b16 %v2076, %v2068
    %v3733 = vpack.c.b16 %v2077, %v2069
    %v3734 = vpack.c.b16 %v2078, %v2070
    %v3735 = vpack.c.b16 %v2087, %v2079
    %v3736 = vpack.c.b16 %v2088, %v2080
    %v3737 = vpack.c.b16 %v2089, %v2081
    %v3738 = vpack.c.b16 %v2090, %v2082
    %v3739 = vpack.c.b16 %v2091, %v2083
    %v3740 = vpack.c.b16 %v2092, %v2084
    %v3741 = vpack.c.b16 %v2093, %v2085
    %v3742 = vpack.c.b16 %v2094, %v2086
    %v3743 = vpack.c.b16 %v2103, %v2095
    %v3744 = vpack.c.b16 %v2104, %v2096
    %v3745 = vpack.c.b16 %v2105, %v2097
    %v3746 = vpack.c.b16 %v2106, %v2098
    %v3747 = vpack.c.b16 %v2107, %v2099
    %v3748 = vpack.c.b16 %v2108, %v2100
    %v3749 = vpack.c.b16 %v2109, %v2101
    %v3750 = vpack.c.b16 %v2110, %v2102
    %v3751 = vpack.c.b16 %v2119, %v2111
    %v3752 = vpack.c.b16 %v2120, %v2112
    %v3753 = vpack.c.b16 %v2121, %v2113
    %v3754 = vpack.c.b16 %v2122, %v2114
    %v3755 = vpack.c.b16 %v2123, %v2115
    %v3756 = vpack.c.b16 %v2124, %v2116
    %v3757 = vpack.c.b16 %v2125, %v2117
    %v3758 = vpack.c.b16 %v2126, %v2118
    %v3759 = vpack.c.b16 %v2135, %v2127
    %v3760 = vpack.c.b16 %v2136, %v2128
    %v3761 = vpack.c.b16 %v2137, %v2129
    %v3762 = vpack.c.b16 %v2138, %v2130
    %v3763 = vpack.c.b16 %v2139, %v2131
    %v3764 = vpack.c.b16 %v2140, %v2132
    %v3765 = vpack.c.b16 %v2141, %v2133
    %v3766 = vpack.c.b16 %v2142, %v2134
    %v3767 = vpack.c.b16 %v2151, %v2143
    %v3768 = vpack.c.b16 %v2152, %v2144
    %v3769 = vpack.c.b16 %v2153, %v2145
    %v3770 = vpack.c.b16 %v2154, %v2146
    %v3771 = vpack.c.b16 %v2155, %v2147
    %v3772 = vpack.c.b16 %v2156, %v2148
    %v3773 = vpack.c.b16 %v2157, %v2149
    %v3774 = vpack.c.b16 %v2158, %v2150
    %v3775 = vpack.c.b16 %v2167, %v2159
    %v3776 = vpack.c.b16 %v2168, %v2160
    %v3777 = vpack.c.b16 %v2169, %v2161
    %v3778 = vpack.c.b16 %v2170, %v2162
    %v3779 = vpack.c.b16 %v2171, %v2163
    %v3780 = vpack.c.b16 %v2172, %v2164
    %v3781 = vpack.c.b16 %v2173, %v2165
    %v3782 = vpack.c.b16 %v2174, %v2166
    %v3783 = vpack.c.b16 %v2183, %v2175
    %v3784 = vpack.c.b16 %v2184, %v2176
    %v3785 = vpack.c.b16 %v2185, %v2177
    %v3786 = vpack.c.b16 %v2186, %v2178
    %v3787 = vpack.c.b16 %v2187, %v2179
    %v3788 = vpack.c.b16 %v2188, %v2180
    %v3789 = vpack.c.b16 %v2189, %v2181
    %v3790 = vpack.c.b16 %v2190, %v2182
    %v3791 = vpack.c.b16 %v2199, %v2191
    %v3792 = vpack.c.b16 %v2200, %v2192
    %v3793 = vpack.c.b16 %v2201, %v2193
    %v3794 = vpack.c.b16 %v2202, %v2194
    %v3795 = vpack.c.b16 %v2203, %v2195
    %v3796 = vpack.c.b16 %v2204, %v2196
    %v3797 = vpack.c.b16 %v2205, %v2197
    %v3798 = vpack.c.b16 %v2206, %v2198
    %v3799 = vpack.c.b16 %v2215, %v2207
    %v3800 = vpack.c.b16 %v2216, %v2208
    %v3801 = vpack.c.b16 %v2217, %v2209
    %v3802 = vpack.c.b16 %v2218, %v2210
    %v3803 = vpack.c.b16 %v2219, %v2211
    %v3804 = vpack.c.b16 %v2220, %v2212
    %v3805 = vpack.c.b16 %v2221, %v2213
    %v3806 = vpack.c.b16 %v2222, %v2214
    %v3807 = vpack.c.b16 %v2231, %v2223
    %v3808 = vpack.c.b16 %v2232, %v2224
    %v3809 = vpack.c.b16 %v2233, %v2225
    %v3810 = vpack.c.b16 %v2234, %v2226
    %v3811 = vpack.c.b16 %v2235, %v2227
    %v3812 = vpack.c.b16 %v2236, %v2228
    %v3813 = vpack.c.b16 %v2237, %v2229
    %v3814 = vpack.c.b16 %v2238, %v2230
    %v3815 = vpack.c.b16 %v2247, %v2239
    %v3816 = vpack.c.b16 %v2248, %v2240
    %v3817 = vpack.c.b16 %v2249, %v2241
    %v3818 = vpack.c.b16 %v2250, %v2242
    %v3819 = vpack.c.b16 %v2251, %v2243
    %v3820 = vpack.c.b16 %v2252, %v2244
    %v3821 = vpack.c.b16 %v2253, %v2245
    %v3822 = vpack.c.b16 %v2254, %v2246
    %v3823 = vpack.c.b16 %v2263, %v2255
    %v3824 = vpack.c.b16 %v2264, %v2256
    %v3825 = vpack.c.b16 %v2265, %v2257
    %v3826 = vpack.c.b16 %v2266, %v2258
    %v3827 = vpack.c.b16 %v2267, %v2259
    %v3828 = vpack.c.b16 %v2268, %v2260
    %v3829 = vpack.c.b16 %v2269, %v2261
    %v3830 = vpack.c.b16 %v2270, %v2262
    %v3831 = vpack.c.b16 %v2279, %v2271
    %v3832 = vpack.c.b16 %v2280, %v2272
    %v3833 = vpack.c.b16 %v2281, %v2273
    %v3834 = vpack.c.b16 %v2282, %v2274
    %v3835 = vpack.c.b16 %v2283, %v2275
    %v3836 = vpack.c.b16 %v2284, %v2276
    %v3837 = vpack.c.b16 %v2285, %v2277
    %v3838 = vpack.c.b16 %v2286, %v2278
    %v3839 = vpack.c.b16 %v2295, %v2287
    %v3840 = vpack.c.b16 %v2296, %v2288
    %v3841 = vpack.c.b16 %v2297, %v2289
    %v3842 = vpack.c.b16 %v2298, %v2290
    %v3843 = vpack.c.b16 %v2299, %v2291
    %v3844 = vpack.c.b16 %v2300, %v2292
    %v3845 = vpack.c.b16 %v2301, %v2293
    %v3846 = vpack.c.b16 %v2302, %v2294
    %v3847 = vpack.c.b16 %v2311, %v2303
    %v3848 = vpack.c.b16 %v2312, %v2304
    %v3849 = vpack.c.b16 %v2313, %v2305
    %v3850 = vpack.c.b16 %v2314, %v2306
    %v3851 = vpack.c.b16 %v2315, %v2307
    %v3852 = vpack.c.b16 %v2316, %v2308
    %v3853 = vpack.c.b16 %v2317, %v2309
    %v3854 = vpack.c.b16 %v2318, %v2310
    %v3855 = vpack.c.b16 %v2327, %v2319
    %v3856 = vpack.c.b16 %v2328, %v2320
    %v3857 = vpack.c.b16 %v2329, %v2321
    %v3858 = vpack.c.b16 %v2330, %v2322
    %v3859 = vpack.c.b16 %v2331, %v2323
    %v3860 = vpack.c.b16 %v2332, %v2324
    %v3861 = vpack.c.b16 %v2333, %v2325
    %v3862 = vpack.c.b16 %v2334, %v2326
    %v3863 = vpack.c.b16 %v2343, %v2335
    %v3864 = vpack.c.b16 %v2344, %v2336
    %v3865 = vpack.c.b16 %v2345, %v2337
    %v3866 = vpack.c.b16 %v2346, %v2338
    %v3867 = vpack.c.b16 %v2347, %v2339
    %v3868 = vpack.c.b16 %v2348, %v2340
    %v3869 = vpack.c.b16 %v2349, %v2341
    %v3870 = vpack.c.b16 %v2350, %v2342
    %v3871 = vpack.c.b16 %v2359, %v2351
    %v3872 = vpack.c.b16 %v2360, %v2352
    %v3873 = vpack.c.b16 %v2361, %v2353
    %v3874 = vpack.c.b16 %v2362, %v2354
    %v3875 = vpack.c.b16 %v2363, %v2355
    %v3876 = vpack.c.b16 %v2364, %v2356
    %v3877 = vpack.c.b16 %v2365, %v2357
    %v3878 = vpack.c.b16 %v2366, %v2358
    %v3879 = vpack.c.b16 %v2375, %v2367
    %v3880 = vpack.c.b16 %v2376, %v2368
    %v3881 = vpack.c.b16 %v2377, %v2369
    %v3882 = vpack.c.b16 %v2378, %v2370
    %v3883 = vpack.c.b16 %v2379, %v2371
    %v3884 = vpack.c.b16 %v2380, %v2372
    %v3885 = vpack.c.b16 %v2381, %v2373
    %v3886 = vpack.c.b16 %v2382, %v2374
    %v3887 = vpack.c.b16 %v2391, %v2383
    %v3888 = vpack.c.b16 %v2392, %v2384
    %v3889 = vpack.c.b16 %v2393, %v2385
    %v3890 = vpack.c.b16 %v2394, %v2386
    %v3891 = vpack.c.b16 %v2395, %v2387
    %v3892 = vpack.c.b16 %v2396, %v2388
    %v3893 = vpack.c.b16 %v2397, %v2389
    %v3894 = vpack.c.b16 %v2398, %v2390
    %v3895 = vpack.c.b16 %v2407, %v2399
    %v3896 = vpack.c.b16 %v2408, %v2400
    %v3897 = vpack.c.b16 %v2409, %v2401
    %v3898 = vpack.c.b16 %v2410, %v2402
    %v3899 = vpack.c.b16 %v2411, %v2403
    %v3900 = vpack.c.b16 %v2412, %v2404
    %v3901 = vpack.c.b16 %v2413, %v2405
    %v3902 = vpack.c.b16 %v2414, %v2406
    %v3903 = vpack.c.b16 %v2423, %v2415
    %v3904 = vpack.c.b16 %v2424, %v2416
    %v3905 = vpack.c.b16 %v2425, %v2417
    %v3906 = vpack.c.b16 %v2426, %v2418
    %v3907 = vpack.c.b16 %v2427, %v2419
    %v3908 = vpack.c.b16 %v2428, %v2420
    %v3909 = vpack.c.b16 %v2429, %v2421
    %v3910 = vpack.c.b16 %v2430, %v2422
    %v3911 = vpack.c.b16 %v2439, %v2431
    %v3912 = vpack.c.b16 %v2440, %v2432
    %v3913 = vpack.c.b16 %v2441, %v2433
    %v3914 = vpack.c.b16 %v2442, %v2434
    %v3915 = vpack.c.b16 %v2443, %v2435
    %v3916 = vpack.c.b16 %v2444, %v2436
    %v3917 = vpack.c.b16 %v2445, %v2437
    %v3918 = vpack.c.b16 %v2446, %v2438
    %v3919 = vpack.c.b16 %v2455, %v2447
    %v3920 = vpack.c.b16 %v2456, %v2448
    %v3921 = vpack.c.b16 %v2457, %v2449
    %v3922 = vpack.c.b16 %v2458, %v2450
    %v3923 = vpack.c.b16 %v2459, %v2451
    %v3924 = vpack.c.b16 %v2460, %v2452
    %v3925 = vpack.c.b16 %v2461, %v2453
    %v3926 = vpack.c.b16 %v2462, %v2454
    %v3927 = vpack.c.b16 %v2471, %v2463
    %v3928 = vpack.c.b16 %v2472, %v2464
    %v3929 = vpack.c.b16 %v2473, %v2465
    %v3930 = vpack.c.b16 %v2474, %v2466
    %v3931 = vpack.c.b16 %v2475, %v2467
    %v3932 = vpack.c.b16 %v2476, %v2468
    %v3933 = vpack.c.b16 %v2477, %v2469
    %v3934 = vpack.c.b16 %v2478, %v2470
    %v3935 = vpack.c.b16 %v2487, %v2479
    %v3936 = vpack.c.b16 %v2488, %v2480
    %v3937 = vpack.c.b16 %v2489, %v2481
    %v3938 = vpack.c.b16 %v2490, %v2482
    %v3939 = vpack.c.b16 %v2491, %v2483
    %v3940 = vpack.c.b16 %v2492, %v2484
    %v3941 = vpack.c.b16 %v2493, %v2485
    %v3942 = vpack.c.b16 %v2494, %v2486
    %v3943 = vpack.c.b16 %v2503, %v2495
    %v3944 = vpack.c.b16 %v2504, %v2496
    %v3945 = vpack.c.b16 %v2505, %v2497
    %v3946 = vpack.c.b16 %v2506, %v2498
    %v3947 = vpack.c.b16 %v2507, %v2499
    %v3948 = vpack.c.b16 %v2508, %v2500
    %v3949 = vpack.c.b16 %v2509, %v2501
    %v3950 = vpack.c.b16 %v2510, %v2502
    %v3951 = vpack.c.b16 %v2519, %v2511
    %v3952 = vpack.c.b16 %v2520, %v2512
    %v3953 = vpack.c.b16 %v2521, %v2513
    %v3954 = vpack.c.b16 %v2522, %v2514
    %v3955 = vpack.c.b16 %v2523, %v2515
    %v3956 = vpack.c.b16 %v2524, %v2516
    %v3957 = vpack.c.b16 %v2525, %v2517
    %v3958 = vpack.c.b16 %v2526, %v2518
    %v3959 = vpack.c.b16 %v2535, %v2527
    %v3960 = vpack.c.b16 %v2536, %v2528
    %v3961 = vpack.c.b16 %v2537, %v2529
    %v3962 = vpack.c.b16 %v2538, %v2530
    %v3963 = vpack.c.b16 %v2539, %v2531
    %v3964 = vpack.c.b16 %v2540, %v2532
    %v3965 = vpack.c.b16 %v2541, %v2533
    %v3966 = vpack.c.b16 %v2542, %v2534
    %v3967 = vpack.c.b16 %v2551, %v2543
    %v3968 = vpack.c.b16 %v2552, %v2544
    %v3969 = vpack.c.b16 %v2553, %v2545
    %v3970 = vpack.c.b16 %v2554, %v2546
    %v3971 = vpack.c.b16 %v2555, %v2547
    %v3972 = vpack.c.b16 %v2556, %v2548
    %v3973 = vpack.c.b16 %v2557, %v2549
    %v3974 = vpack.c.b16 %v2558, %v2550
    %v3975 = vpack.c.b16 %v2567, %v2559
    %v3976 = vpack.c.b16 %v2568, %v2560
    %v3977 = vpack.c.b16 %v2569, %v2561
    %v3978 = vpack.c.b16 %v2570, %v2562
    %v3979 = vpack.c.b16 %v2571, %v2563
    %v3980 = vpack.c.b16 %v2572, %v2564
    %v3981 = vpack.c.b16 %v2573, %v2565
    %v3982 = vpack.c.b16 %v2574, %v2566
    %v3983 = vpack.c.b16 %v2583, %v2575
    %v3984 = vpack.c.b16 %v2584, %v2576
    %v3985 = vpack.c.b16 %v2585, %v2577
    %v3986 = vpack.c.b16 %v2586, %v2578
    %v3987 = vpack.c.b16 %v2587, %v2579
    %v3988 = vpack.c.b16 %v2588, %v2580
    %v3989 = vpack.c.b16 %v2589, %v2581
    %v3990 = vpack.c.b16 %v2590, %v2582
    %v3991 = vpack.c.b16 %v2599, %v2591
    %v3992 = vpack.c.b16 %v2600, %v2592
    %v3993 = vpack.c.b16 %v2601, %v2593
    %v3994 = vpack.c.b16 %v2602, %v2594
    %v3995 = vpack.c.b16 %v2603, %v2595
    %v3996 = vpack.c.b16 %v2604, %v2596
    %v3997 = vpack.c.b16 %v2605, %v2597
    %v3998 = vpack.c.b16 %v2606, %v2598
    %v3999 = vpack.c.b16 %v2615, %v2607
    %v4000 = vpack.c.b16 %v2616, %v2608
    %v4001 = vpack.c.b16 %v2617, %v2609
    %v4002 = vpack.c.b16 %v2618, %v2610
    %v4003 = vpack.c.b16 %v2619, %v2611
    %v4004 = vpack.c.b16 %v2620, %v2612
    %v4005 = vpack.c.b16 %v2621, %v2613
    %v4006 = vpack.c.b16 %v2622, %v2614
    %v4007 = vpack.c.b16 %v2631, %v2623
    %v4008 = vpack.c.b16 %v2632, %v2624
    %v4009 = vpack.c.b16 %v2633, %v2625
    %v4010 = vpack.c.b16 %v2634, %v2626
    %v4011 = vpack.c.b16 %v2635, %v2627
    %v4012 = vpack.c.b16 %v2636, %v2628
    %v4013 = vpack.c.b16 %v2637, %v2629
    %v4014 = vpack.c.b16 %v2638, %v2630
    %v4015 = vpack.c.b16 %v2647, %v2639
    %v4016 = vpack.c.b16 %v2648, %v2640
    %v4017 = vpack.c.b16 %v2649, %v2641
    %v4018 = vpack.c.b16 %v2650, %v2642
    %v4019 = vpack.c.b16 %v2651, %v2643
    %v4020 = vpack.c.b16 %v2652, %v2644
    %v4021 = vpack.c.b16 %v2653, %v2645
    %v4022 = vpack.c.b16 %v2654, %v2646
    %v4023 = vpack.c.b16 %v2663, %v2655
    %v4024 = vpack.c.b16 %v2664, %v2656
    %v4025 = vpack.c.b16 %v2665, %v2657
    %v4026 = vpack.c.b16 %v2666, %v2658
    %v4027 = vpack.c.b16 %v2667, %v2659
    %v4028 = vpack.c.b16 %v2668, %v2660
    %v4029 = vpack.c.b16 %v2669, %v2661
    %v4030 = vpack.c.b16 %v2670, %v2662
    %v4031 = vpack.c.b16 %v2679, %v2671
    %v4032 = vpack.c.b16 %v2680, %v2672
    %v4033 = vpack.c.b16 %v2681, %v2673
    %v4034 = vpack.c.b16 %v2682, %v2674
    %v4035 = vpack.c.b16 %v2683, %v2675
    %v4036 = vpack.c.b16 %v2684, %v2676
    %v4037 = vpack.c.b16 %v2685, %v2677
    %v4038 = vpack.c.b16 %v2686, %v2678
    %v4039 = vpack.c.b16 %v2695, %v2687
    %v4040 = vpack.c.b16 %v2696, %v2688
    %v4041 = vpack.c.b16 %v2697, %v2689
    %v4042 = vpack.c.b16 %v2698, %v2690
    %v4043 = vpack.c.b16 %v2699, %v2691
    %v4044 = vpack.c.b16 %v2700, %v2692
    %v4045 = vpack.c.b16 %v2701, %v2693
    %v4046 = vpack.c.b16 %v2702, %v2694
    %v4047 = vpack.c.b16 %v2711, %v2703
    %v4048 = vpack.c.b16 %v2712, %v2704
    %v4049 = vpack.c.b16 %v2713, %v2705
    %v4050 = vpack.c.b16 %v2714, %v2706
    %v4051 = vpack.c.b16 %v2715, %v2707
    %v4052 = vpack.c.b16 %v2716, %v2708
    %v4053 = vpack.c.b16 %v2717, %v2709
    %v4054 = vpack.c.b16 %v2718, %v2710
    %v4055 = vpack.c.b16 %v2727, %v2719
    %v4056 = vpack.c.b16 %v2728, %v2720
    %v4057 = vpack.c.b16 %v2729, %v2721
    %v4058 = vpack.c.b16 %v2730, %v2722
    %v4059 = vpack.c.b16 %v2731, %v2723
    %v4060 = vpack.c.b16 %v2732, %v2724
    %v4061 = vpack.c.b16 %v2733, %v2725
    %v4062 = vpack.c.b16 %v2734, %v2726
    %v4063 = vpack.c.b16 %v2743, %v2735
    %v4064 = vpack.c.b16 %v2744, %v2736
    %v4065 = vpack.c.b16 %v2745, %v2737
    %v4066 = vpack.c.b16 %v2746, %v2738
    %v4067 = vpack.c.b16 %v2747, %v2739
    %v4068 = vpack.c.b16 %v2748, %v2740
    %v4069 = vpack.c.b16 %v2749, %v2741
    %v4070 = vpack.c.b16 %v2750, %v2742
    %v4071 = vpack.c.b16 %v2759, %v2751
    %v4072 = vpack.c.b16 %v2760, %v2752
    %v4073 = vpack.c.b16 %v2761, %v2753
    %v4074 = vpack.c.b16 %v2762, %v2754
    %v4075 = vpack.c.b16 %v2763, %v2755
    %v4076 = vpack.c.b16 %v2764, %v2756
    %v4077 = vpack.c.b16 %v2765, %v2757
    %v4078 = vpack.c.b16 %v2766, %v2758
    %v4079 = vpack.c.b16 %v2775, %v2767
    %v4080 = vpack.c.b16 %v2776, %v2768
    %v4081 = vpack.c.b16 %v2777, %v2769
    %v4082 = vpack.c.b16 %v2778, %v2770
    %v4083 = vpack.c.b16 %v2779, %v2771
    %v4084 = vpack.c.b16 %v2780, %v2772
    %v4085 = vpack.c.b16 %v2781, %v2773
    %v4086 = vpack.c.b16 %v2782, %v2774
    %v4087 = vpack.c.b16 %v2791, %v2783
    %v4088 = vpack.c.b16 %v2792, %v2784
    %v4089 = vpack.c.b16 %v2793, %v2785
    %v4090 = vpack.c.b16 %v2794, %v2786
    %v4091 = vpack.c.b16 %v2795, %v2787
    %v4092 = vpack.c.b16 %v2796, %v2788
    %v4093 = vpack.c.b16 %v2797, %v2789
    %v4094 = vpack.c.b16 %v2798, %v2790
    %v4095 = vpack.c.b16 %v2807, %v2799
    %v4096 = vpack.c.b16 %v2808, %v2800
    %v4097 = vpack.c.b16 %v2809, %v2801
    %v4098 = vpack.c.b16 %v2810, %v2802
    %v4099 = vpack.c.b16 %v2811, %v2803
    %v4100 = vpack.c.b16 %v2812, %v2804
    %v4101 = vpack.c.b16 %v2813, %v2805
    %v4102 = vpack.c.b16 %v2814, %v2806
    %v4103 = vpack.c.b16 %v2823, %v2815
    %v4104 = vpack.c.b16 %v2824, %v2816
    %v4105 = vpack.c.b16 %v2825, %v2817
    %v4106 = vpack.c.b16 %v2826, %v2818
    %v4107 = vpack.c.b16 %v2827, %v2819
    %v4108 = vpack.c.b16 %v2828, %v2820
    %v4109 = vpack.c.b16 %v2829, %v2821
    %v4110 = vpack.c.b16 %v2830, %v2822
    %v4111 = vpack.c.b16 %v2839, %v2831
    %v4112 = vpack.c.b16 %v2840, %v2832
    %v4113 = vpack.c.b16 %v2841, %v2833
    %v4114 = vpack.c.b16 %v2842, %v2834
    %v4115 = vpack.c.b16 %v2843, %v2835
    %v4116 = vpack.c.b16 %v2844, %v2836
    %v4117 = vpack.c.b16 %v2845, %v2837
    %v4118 = vpack.c.b16 %v2846, %v2838
    %v4119 = vpack.c.b16 %v2855, %v2847
    %v4120 = vpack.c.b16 %v2856, %v2848
    %v4121 = vpack.c.b16 %v2857, %v2849
    %v4122 = vpack.c.b16 %v2858, %v2850
    %v4123 = vpack.c.b16 %v2859, %v2851
    %v4124 = vpack.c.b16 %v2860, %v2852
    %v4125 = vpack.c.b16 %v2861, %v2853
    %v4126 = vpack.c.b16 %v2862, %v2854
    %v4127 = vpack.c.b16 %v2871, %v2863
    %v4128 = vpack.c.b16 %v2872, %v2864
    %v4129 = vpack.c.b16 %v2873, %v2865
    %v4130 = vpack.c.b16 %v2874, %v2866
    %v4131 = vpack.c.b16 %v2875, %v2867
    %v4132 = vpack.c.b16 %v2876, %v2868
    %v4133 = vpack.c.b16 %v2877, %v2869
    %v4134 = vpack.c.b16 %v2878, %v2870
    %v4135 = vpack.c.b16 %v2887, %v2879
    %v4136 = vpack.c.b16 %v2888, %v2880
    %v4137 = vpack.c.b16 %v2889, %v2881
    %v4138 = vpack.c.b16 %v2890, %v2882
    %v4139 = vpack.c.b16 %v2891, %v2883
    %v4140 = vpack.c.b16 %v2892, %v2884
    %v4141 = vpack.c.b16 %v2893, %v2885
    %v4142 = vpack.c.b16 %v2894, %v2886
    %v4143 = vpack.c.b16 %v2903, %v2895
    %v4144 = vpack.c.b16 %v2904, %v2896
    %v4145 = vpack.c.b16 %v2905, %v2897
    %v4146 = vpack.c.b16 %v2906, %v2898
    %v4147 = vpack.c.b16 %v2907, %v2899
    %v4148 = vpack.c.b16 %v2908, %v2900
    %v4149 = vpack.c.b16 %v2909, %v2901
    %v4150 = vpack.c.b16 %v2910, %v2902
    %v4151 = vpack.c.b16 %v2919, %v2911
    %v4152 = vpack.c.b16 %v2920, %v2912
    %v4153 = vpack.c.b16 %v2921, %v2913
    %v4154 = vpack.c.b16 %v2922, %v2914
    %v4155 = vpack.c.b16 %v2923, %v2915
    %v4156 = vpack.c.b16 %v2924, %v2916
    %v4157 = vpack.c.b16 %v2925, %v2917
    %v4158 = vpack.c.b16 %v2926, %v2918
    %v4159 = vpack.c.b16 %v2935, %v2927
    %v4160 = vpack.c.b16 %v2936, %v2928
    %v4161 = vpack.c.b16 %v2937, %v2929
    %v4162 = vpack.c.b16 %v2938, %v2930
    %v4163 = vpack.c.b16 %v2939, %v2931
    %v4164 = vpack.c.b16 %v2940, %v2932
    %v4165 = vpack.c.b16 %v2941, %v2933
    %v4166 = vpack.c.b16 %v2942, %v2934
    %v4167 = vpack.c.b16 %v2951, %v2943
    %v4168 = vpack.c.b16 %v2952, %v2944
    %v4169 = vpack.c.b16 %v2953, %v2945
    %v4170 = vpack.c.b16 %v2954, %v2946
    %v4171 = vpack.c.b16 %v2955, %v2947
    %v4172 = vpack.c.b16 %v2956, %v2948
    %v4173 = vpack.c.b16 %v2957, %v2949
    %v4174 = vpack.c.b16 %v2958, %v2950
    %v4175 = vpack.c.b16 %v2967, %v2959
    %v4176 = vpack.c.b16 %v2968, %v2960
    %v4177 = vpack.c.b16 %v2969, %v2961
    %v4178 = vpack.c.b16 %v2970, %v2962
    %v4179 = vpack.c.b16 %v2971, %v2963
    %v4180 = vpack.c.b16 %v2972, %v2964
    %v4181 = vpack.c.b16 %v2973, %v2965
    %v4182 = vpack.c.b16 %v2974, %v2966
    %v4183 = vpack.c.b16 %v2983, %v2975
    %v4184 = vpack.c.b16 %v2984, %v2976
    %v4185 = vpack.c.b16 %v2985, %v2977
    %v4186 = vpack.c.b16 %v2986, %v2978
    %v4187 = vpack.c.b16 %v2987, %v2979
    %v4188 = vpack.c.b16 %v2988, %v2980
    %v4189 = vpack.c.b16 %v2989, %v2981
    %v4190 = vpack.c.b16 %v2990, %v2982
    %v4191 = vpack.c.b16 %v2999, %v2991
    %v4192 = vpack.c.b16 %v3000, %v2992
    %v4193 = vpack.c.b16 %v3001, %v2993
    %v4194 = vpack.c.b16 %v3002, %v2994
    %v4195 = vpack.c.b16 %v3003, %v2995
    %v4196 = vpack.c.b16 %v3004, %v2996
    %v4197 = vpack.c.b16 %v3005, %v2997
    %v4198 = vpack.c.b16 %v3006, %v2998
    %v4199 = vpack.c.b16 %v3015, %v3007
    %v4200 = vpack.c.b16 %v3016, %v3008
    %v4201 = vpack.c.b16 %v3017, %v3009
    %v4202 = vpack.c.b16 %v3018, %v3010
    %v4203 = vpack.c.b16 %v3019, %v3011
    %v4204 = vpack.c.b16 %v3020, %v3012
    %v4205 = vpack.c.b16 %v3021, %v3013
    %v4206 = vpack.c.b16 %v3022, %v3014
    %v4207 = vpack.c.b16 %v3031, %v3023
    %v4208 = vpack.c.b16 %v3032, %v3024
    %v4209 = vpack.c.b16 %v3033, %v3025
    %v4210 = vpack.c.b16 %v3034, %v3026
    %v4211 = vpack.c.b16 %v3035, %v3027
    %v4212 = vpack.c.b16 %v3036, %v3028
    %v4213 = vpack.c.b16 %v3037, %v3029
    %v4214 = vpack.c.b16 %v3038, %v3030
    %v4215 = vpack.c.b16 %v3047, %v3039
    %v4216 = vpack.c.b16 %v3048, %v3040
    %v4217 = vpack.c.b16 %v3049, %v3041
    %v4218 = vpack.c.b16 %v3050, %v3042
    %v4219 = vpack.c.b16 %v3051, %v3043
    %v4220 = vpack.c.b16 %v3052, %v3044
    %v4221 = vpack.c.b16 %v3053, %v3045
    %v4222 = vpack.c.b16 %v3054, %v3046
    %v4223 = vpack.c.b16 %v3063, %v3055
    %v4224 = vpack.c.b16 %v3064, %v3056
    %v4225 = vpack.c.b16 %v3065, %v3057
    %v4226 = vpack.c.b16 %v3066, %v3058
    %v4227 = vpack.c.b16 %v3067, %v3059
    %v4228 = vpack.c.b16 %v3068, %v3060
    %v4229 = vpack.c.b16 %v3069, %v3061
    %v4230 = vpack.c.b16 %v3070, %v3062
    %v4231 = vpack.c.b16 %v3079, %v3071
    %v4232 = vpack.c.b16 %v3080, %v3072
    %v4233 = vpack.c.b16 %v3081, %v3073
    %v4234 = vpack.c.b16 %v3082, %v3074
    %v4235 = vpack.c.b16 %v3083, %v3075
    %v4236 = vpack.c.b16 %v3084, %v3076
    %v4237 = vpack.c.b16 %v3085, %v3077
    %v4238 = vpack.c.b16 %v3086, %v3078
    %v4239 = vpack.c.b16 %v3095, %v3087
    %v4240 = vpack.c.b16 %v3096, %v3088
    %v4241 = vpack.c.b16 %v3097, %v3089
    %v4242 = vpack.c.b16 %v3098, %v3090
    %v4243 = vpack.c.b16 %v3099, %v3091
    %v4244 = vpack.c.b16 %v3100, %v3092
    %v4245 = vpack.c.b16 %v3101, %v3093
    %v4246 = vpack.c.b16 %v3102, %v3094
    %v4247 = vpack.c.b16 %v3111, %v3103
    %v4248 = vpack.c.b16 %v3112, %v3104
    %v4249 = vpack.c.b16 %v3113, %v3105
    %v4250 = vpack.c.b16 %v3114, %v3106
    %v4251 = vpack.c.b16 %v3115, %v3107
    %v4252 = vpack.c.b16 %v3116, %v3108
    %v4253 = vpack.c.b16 %v3117, %v3109
    %v4254 = vpack.c.b16 %v3118, %v3110
    %v4255 = vpack.c.b16 %v3127, %v3119
    %v4256 = vpack.c.b16 %v3128, %v3120
    %v4257 = vpack.c.b16 %v3129, %v3121
    %v4258 = vpack.c.b16 %v3130, %v3122
    %v4259 = vpack.c.b16 %v3131, %v3123
    %v4260 = vpack.c.b16 %v3132, %v3124
    %v4261 = vpack.c.b16 %v3133, %v3125
    %v4262 = vpack.c.b16 %v3134, %v3126
    %v4263 = vpack.c.b16 %v3143, %v3135
    %v4264 = vpack.c.b16 %v3144, %v3136
    %v4265 = vpack.c.b16 %v3145, %v3137
    %v4266 = vpack.c.b16 %v3146, %v3138
    %v4267 = vpack.c.b16 %v3147, %v3139
    %v4268 = vpack.c.b16 %v3148, %v3140
    %v4269 = vpack.c.b16 %v3149, %v3141
    %v4270 = vpack.c.b16 %v3150, %v3142
    %v4271 = vpack.c.b16 %v3159, %v3151
    %v4272 = vpack.c.b16 %v3160, %v3152
    %v4273 = vpack.c.b16 %v3161, %v3153
    %v4274 = vpack.c.b16 %v3162, %v3154
    %v4275 = vpack.c.b16 %v3163, %v3155
    %v4276 = vpack.c.b16 %v3164, %v3156
    %v4277 = vpack.c.b16 %v3165, %v3157
    %v4278 = vpack.c.b16 %v3166, %v3158
    %v4279 = vpack.c.b16 %v3175, %v3167
    %v4280 = vpack.c.b16 %v3176, %v3168
    %v4281 = vpack.c.b16 %v3177, %v3169
    %v4282 = vpack.c.b16 %v3178, %v3170
    %v4283 = vpack.c.b16 %v3179, %v3171
    %v4284 = vpack.c.b16 %v3180, %v3172
    %v4285 = vpack.c.b16 %v3181, %v3173
    %v4286 = vpack.c.b16 %v3182, %v3174
    %v4287 = vpack.c.b16 %v3191, %v3183
    %v4288 = vpack.c.b16 %v3192, %v3184
    %v4289 = vpack.c.b16 %v3193, %v3185
    %v4290 = vpack.c.b16 %v3194, %v3186
    %v4291 = vpack.c.b16 %v3195, %v3187
    %v4292 = vpack.c.b16 %v3196, %v3188
    %v4293 = vpack.c.b16 %v3197, %v3189
    %v4294 = vpack.c.b16 %v3198, %v3190
    %v4295 = vpack.c.b16 %v3207, %v3199
    %v4296 = vpack.c.b16 %v3208, %v3200
    %v4297 = vpack.c.b16 %v3209, %v3201
    %v4298 = vpack.c.b16 %v3210, %v3202
    %v4299 = vpack.c.b16 %v3211, %v3203
    %v4300 = vpack.c.b16 %v3212, %v3204
    %v4301 = vpack.c.b16 %v3213, %v3205
    %v4302 = vpack.c.b16 %v3214, %v3206
    %v4303 = vpack.c.b16 %v3223, %v3215
    %v4304 = vpack.c.b16 %v3224, %v3216
    %v4305 = vpack.c.b16 %v3225, %v3217
    %v4306 = vpack.c.b16 %v3226, %v3218
    %v4307 = vpack.c.b16 %v3227, %v3219
    %v4308 = vpack.c.b16 %v3228, %v3220
    %v4309 = vpack.c.b16 %v3229, %v3221
    %v4310 = vpack.c.b16 %v3230, %v3222
    %v4311 = vpack.c.b16 %v3239, %v3231
    %v4312 = vpack.c.b16 %v3240, %v3232
    %v4313 = vpack.c.b16 %v3241, %v3233
    %v4314 = vpack.c.b16 %v3242, %v3234
    %v4315 = vpack.c.b16 %v3243, %v3235
    %v4316 = vpack.c.b16 %v3244, %v3236
    %v4317 = vpack.c.b16 %v3245, %v3237
    %v4318 = vpack.c.b16 %v3246, %v3238
    %v4319 = vpack.c.b16 %v3255, %v3247
    %v4320 = vpack.c.b16 %v3256, %v3248
    %v4321 = vpack.c.b16 %v3257, %v3249
    %v4322 = vpack.c.b16 %v3258, %v3250
    %v4323 = vpack.c.b16 %v3259, %v3251
    %v4324 = vpack.c.b16 %v3260, %v3252
    %v4325 = vpack.c.b16 %v3261, %v3253
    %v4326 = vpack.c.b16 %v3262, %v3254
    %v4327 = vpack.c.b16 %v3271, %v3263
    %v4328 = vpack.c.b16 %v3272, %v3264
    %v4329 = vpack.c.b16 %v3273, %v3265
    %v4330 = vpack.c.b16 %v3274, %v3266
    %v4331 = vpack.c.b16 %v3275, %v3267
    %v4332 = vpack.c.b16 %v3276, %v3268
    %v4333 = vpack.c.b16 %v3277, %v3269
    %v4334 = vpack.c.b16 %v3278, %v3270
    %v4335 = vpack.c.b16 %v3287, %v3279
    %v4336 = vpack.c.b16 %v3288, %v3280
    %v4337 = vpack.c.b16 %v3289, %v3281
    %v4338 = vpack.c.b16 %v3290, %v3282
    %v4339 = vpack.c.b16 %v3291, %v3283
    %v4340 = vpack.c.b16 %v3292, %v3284
    %v4341 = vpack.c.b16 %v3293, %v3285
    %v4342 = vpack.c.b16 %v3294, %v3286
    %v4343 = vpack.c.b16 %v3303, %v3295
    %v4344 = vpack.c.b16 %v3304, %v3296
    %v4345 = vpack.c.b16 %v3305, %v3297
    %v4346 = vpack.c.b16 %v3306, %v3298
    %v4347 = vpack.c.b16 %v3307, %v3299
    %v4348 = vpack.c.b16 %v3308, %v3300
    %v4349 = vpack.c.b16 %v3309, %v3301
    %v4350 = vpack.c.b16 %v3310, %v3302
    %v4351 = vpack.c.b16 %v3319, %v3311
    %v4352 = vpack.c.b16 %v3320, %v3312
    %v4353 = vpack.c.b16 %v3321, %v3313
    %v4354 = vpack.c.b16 %v3322, %v3314
    %v4355 = vpack.c.b16 %v3323, %v3315
    %v4356 = vpack.c.b16 %v3324, %v3316
    %v4357 = vpack.c.b16 %v3325, %v3317
    %v4358 = vpack.c.b16 %v3326, %v3318
    %v4359 = vpack.c.b16 %v3335, %v3327
    %v4360 = vpack.c.b16 %v3336, %v3328
    %v4361 = vpack.c.b16 %v3337, %v3329
    %v4362 = vpack.c.b16 %v3338, %v3330
    %v4363 = vpack.c.b16 %v3339, %v3331
    %v4364 = vpack.c.b16 %v3340, %v3332
    %v4365 = vpack.c.b16 %v3341, %v3333
    %v4366 = vpack.c.b16 %v3342, %v3334
    %v4367 = vpack.c.b16 %v3351, %v3343
    %v4368 = vpack.c.b16 %v3352, %v3344
    %v4369 = vpack.c.b16 %v3353, %v3345
    %v4370 = vpack.c.b16 %v3354, %v3346
    %v4371 = vpack.c.b16 %v3355, %v3347
    %v4372 = vpack.c.b16 %v3356, %v3348
    %v4373 = vpack.c.b16 %v3357, %v3349
    %v4374 = vpack.c.b16 %v3358, %v3350
    %v4375 = vpack.c.b16 %v3367, %v3359
    %v4376 = vpack.c.b16 %v3368, %v3360
    %v4377 = vpack.c.b16 %v3369, %v3361
    %v4378 = vpack.c.b16 %v3370, %v3362
    %v4379 = vpack.c.b16 %v3371, %v3363
    %v4380 = vpack.c.b16 %v3372, %v3364
    %v4381 = vpack.c.b16 %v3373, %v3365
    %v4382 = vpack.c.b16 %v3374, %v3366
    %v4383 = vpack.c.b16 %v3383, %v3375
    %v4384 = vpack.c.b16 %v3384, %v3376
    %v4385 = vpack.c.b16 %v3385, %v3377
    %v4386 = vpack.c.b16 %v3386, %v3378
    %v4387 = vpack.c.b16 %v3387, %v3379
    %v4388 = vpack.c.b16 %v3388, %v3380
    %v4389 = vpack.c.b16 %v3389, %v3381
    %v4390 = vpack.c.b16 %v3390, %v3382
    %v4391 = vpack.c.b16 %v3399, %v3391
    %v4392 = vpack.c.b16 %v3400, %v3392
    %v4393 = vpack.c.b16 %v3401, %v3393
    %v4394 = vpack.c.b16 %v3402, %v3394
    %v4395 = vpack.c.b16 %v3403, %v3395
    %v4396 = vpack.c.b16 %v3404, %v3396
    %v4397 = vpack.c.b16 %v3405, %v3397
    %v4398 = vpack.c.b16 %v3406, %v3398
    %v4399 = vpack.c.b16 %v3415, %v3407
    %v4400 = vpack.c.b16 %v3416, %v3408
    %v4401 = vpack.c.b16 %v3417, %v3409
    %v4402 = vpack.c.b16 %v3418, %v3410
    %v4403 = vpack.c.b16 %v3419, %v3411
    %v4404 = vpack.c.b16 %v3420, %v3412
    %v4405 = vpack.c.b16 %v3421, %v3413
    %v4406 = vpack.c.b16 %v3422, %v3414
    %v4407 = vpack.c.b16 %v3431, %v3423
    %v4408 = vpack.c.b16 %v3432, %v3424
    %v4409 = vpack.c.b16 %v3433, %v3425
    %v4410 = vpack.c.b16 %v3434, %v3426
    %v4411 = vpack.c.b16 %v3435, %v3427
    %v4412 = vpack.c.b16 %v3436, %v3428
    %v4413 = vpack.c.b16 %v3437, %v3429
    %v4414 = vpack.c.b16 %v3438, %v3430
    %v4415 = vpack.c.b16 %v3447, %v3439
    %v4416 = vpack.c.b16 %v3448, %v3440
    %v4417 = vpack.c.b16 %v3449, %v3441
    %v4418 = vpack.c.b16 %v3450, %v3442
    %v4419 = vpack.c.b16 %v3451, %v3443
    %v4420 = vpack.c.b16 %v3452, %v3444
    %v4421 = vpack.c.b16 %v3453, %v3445
    %v4422 = vpack.c.b16 %v3454, %v3446
    %v4423 = vpack.c.b16 %v3463, %v3455
    %v4424 = vpack.c.b16 %v3464, %v3456
    %v4425 = vpack.c.b16 %v3465, %v3457
    %v4426 = vpack.c.b16 %v3466, %v3458
    %v4427 = vpack.c.b16 %v3467, %v3459
    %v4428 = vpack.c.b16 %v3468, %v3460
    %v4429 = vpack.c.b16 %v3469, %v3461
    %v4430 = vpack.c.b16 %v3470, %v3462
    %v4431 = vpack.c.b16 %v3479, %v3471
    %v4432 = vpack.c.b16 %v3480, %v3472
    %v4433 = vpack.c.b16 %v3481, %v3473
    %v4434 = vpack.c.b16 %v3482, %v3474
    %v4435 = vpack.c.b16 %v3483, %v3475
    %v4436 = vpack.c.b16 %v3484, %v3476
    %v4437 = vpack.c.b16 %v3485, %v3477
    %v4438 = vpack.c.b16 %v3486, %v3478
    %v4439 = vpack.c.b16 %v3495, %v3487
    %v4440 = vpack.c.b16 %v3496, %v3488
    %v4441 = vpack.c.b16 %v3497, %v3489
    %v4442 = vpack.c.b16 %v3498, %v3490
    %v4443 = vpack.c.b16 %v3499, %v3491
    %v4444 = vpack.c.b16 %v3500, %v3492
    %v4445 = vpack.c.b16 %v3501, %v3493
    %v4446 = vpack.c.b16 %v3502, %v3494
    %v4447 = vpack.c.b16 %v3511, %v3503
    %v4448 = vpack.c.b16 %v3512, %v3504
    %v4449 = vpack.c.b16 %v3513, %v3505
    %v4450 = vpack.c.b16 %v3514, %v3506
    %v4451 = vpack.c.b16 %v3515, %v3507
    %v4452 = vpack.c.b16 %v3516, %v3508
    %v4453 = vpack.c.b16 %v3517, %v3509
    %v4454 = vpack.c.b16 %v3518, %v3510
    %v4455 = vpack.c.b16 %v3527, %v3519
    %v4456 = vpack.c.b16 %v3528, %v3520
    %v4457 = vpack.c.b16 %v3529, %v3521
    %v4458 = vpack.c.b16 %v3530, %v3522
    %v4459 = vpack.c.b16 %v3531, %v3523
    %v4460 = vpack.c.b16 %v3532, %v3524
    %v4461 = vpack.c.b16 %v3533, %v3525
    %v4462 = vpack.c.b16 %v3534, %v3526
    %v4463 = vpack.c.b16 %v3543, %v3535
    %v4464 = vpack.c.b16 %v3544, %v3536
    %v4465 = vpack.c.b16 %v3545, %v3537
    %v4466 = vpack.c.b16 %v3546, %v3538
    %v4467 = vpack.c.b16 %v3547, %v3539
    %v4468 = vpack.c.b16 %v3548, %v3540
    %v4469 = vpack.c.b16 %v3549, %v3541
    %v4470 = vpack.c.b16 %v3550, %v3542
    %v4471 = vpack.c.b16 %v3559, %v3551
    %v4472 = vpack.c.b16 %v3560, %v3552
    %v4473 = vpack.c.b16 %v3561, %v3553
    %v4474 = vpack.c.b16 %v3562, %v3554
    %v4475 = vpack.c.b16 %v3563, %v3555
    %v4476 = vpack.c.b16 %v3564, %v3556
    %v4477 = vpack.c.b16 %v3565, %v3557
    %v4478 = vpack.c.b16 %v3566, %v3558
    %v4479 = vpack.c.b16 %v3575, %v3567
    %v4480 = vpack.c.b16 %v3576, %v3568
    %v4481 = vpack.c.b16 %v3577, %v3569
    %v4482 = vpack.c.b16 %v3578, %v3570
    %v4483 = vpack.c.b16 %v3579, %v3571
    %v4484 = vpack.c.b16 %v3580, %v3572
    %v4485 = vpack.c.b16 %v3581, %v3573
    %v4486 = vpack.c.b16 %v3582, %v3574
    %v4487 = vpack.c.b16 %v3591, %v3583
    %v4488 = vpack.c.b16 %v3592, %v3584
    %v4489 = vpack.c.b16 %v3593, %v3585
    %v4490 = vpack.c.b16 %v3594, %v3586
    %v4491 = vpack.c.b16 %v3595, %v3587
    %v4492 = vpack.c.b16 %v3596, %v3588
    %v4493 = vpack.c.b16 %v3597, %v3589
    %v4494 = vpack.c.b16 %v3598, %v3590
    %v4495 = vpack.c.b16 %v3607, %v3599
    %v4496 = vpack.c.b16 %v3608, %v3600
    %v4497 = vpack.c.b16 %v3609, %v3601
    %v4498 = vpack.c.b16 %v3610, %v3602
    %v4499 = vpack.c.b16 %v3611, %v3603
    %v4500 = vpack.c.b16 %v3612, %v3604
    %v4501 = vpack.c.b16 %v3613, %v3605
    %v4502 = vpack.c.b16 %v3614, %v3606
    %v4503 = vpack.c.b16 %v3623, %v3615
    %v4504 = vpack.c.b16 %v3624, %v3616
    %v4505 = vpack.c.b16 %v3625, %v3617
    %v4506 = vpack.c.b16 %v3626, %v3618
    %v4507 = vpack.c.b16 %v3627, %v3619
    %v4508 = vpack.c.b16 %v3628, %v3620
    %v4509 = vpack.c.b16 %v3629, %v3621
    %v4510 = vpack.c.b16 %v3630, %v3622
    %v4511 = vpack.c.b16 %v3639, %v3631
    %v4512 = vpack.c.b16 %v3640, %v3632
    %v4513 = vpack.c.b16 %v3641, %v3633
    %v4514 = vpack.c.b16 %v3642, %v3634
    %v4515 = vpack.c.b16 %v3643, %v3635
    %v4516 = vpack.c.b16 %v3644, %v3636
    %v4517 = vpack.c.b16 %v3645, %v3637
    %v4518 = vpack.c.b16 %v3646, %v3638
    %v4519 = vpack.c.b16 %v3655, %v3647
    %v4520 = vpack.c.b16 %v3656, %v3648
    %v4521 = vpack.c.b16 %v3657, %v3649
    %v4522 = vpack.c.b16 %v3658, %v3650
    %v4523 = vpack.c.b16 %v3659, %v3651
    %v4524 = vpack.c.b16 %v3660, %v3652
    %v4525 = vpack.c.b16 %v3661, %v3653
    %v4526 = vpack.c.b16 %v3662, %v3654
    %v4527 = vpack.c.b16 %v3671, %v3663
    %v4528 = vpack.c.b16 %v3672, %v3664
    %v4529 = vpack.c.b16 %v3673, %v3665
    %v4530 = vpack.c.b16 %v3674, %v3666
    %v4531 = vpack.c.b16 %v3675, %v3667
    %v4532 = vpack.c.b16 %v3676, %v3668
    %v4533 = vpack.c.b16 %v3677, %v3669
    %v4534 = vpack.c.b16 %v3678, %v3670
    %v4535 = vpack.c.b16 %v3687, %v3679
    %v4536 = vpack.c.b16 %v3688, %v3680
    %v4537 = vpack.c.b16 %v3689, %v3681
    %v4538 = vpack.c.b16 %v3690, %v3682
    %v4539 = vpack.c.b16 %v3691, %v3683
    %v4540 = vpack.c.b16 %v3692, %v3684
    %v4541 = vpack.c.b16 %v3693, %v3685
    %v4542 = vpack.c.b16 %v3694, %v3686
    %v4543 = vpack.c.b16 %v3703, %v3695
    %v4544 = vpack.c.b16 %v3704, %v3696
    %v4545 = vpack.c.b16 %v3705, %v3697
    %v4546 = vpack.c.b16 %v3706, %v3698
    %v4547 = vpack.c.b16 %v3707, %v3699
    %v4548 = vpack.c.b16 %v3708, %v3700
    %v4549 = vpack.c.b16 %v3709, %v3701
    %v4550 = vpack.c.b16 %v3710, %v3702
    %v4551 = vpack.c.b16 %v3719, %v3711
    %v4552 = vpack.c.b16 %v3720, %v3712
    %v4553 = vpack.c.b16 %v3721, %v3713
    %v4554 = vpack.c.b16 %v3722, %v3714
    %v4555 = vpack.c.b16 %v3723, %v3715
    %v4556 = vpack.c.b16 %v3724, %v3716
    %v4557 = vpack.c.b16 %v3725, %v3717
    %v4558 = vpack.c.b16 %v3726, %v3718
    %5391 = vmatprep.subr.bf16.mxu0 %v3728
    %5392 = vmatpush1.bf16.msra.mxu0 %v3727
    %5393 = vmatprep.subr.bf16.mxu0 %v3736
    %5394 = vmatpush1.bf16.msra.mxu0 %v3735
    %5395 = vmatprep.subr.bf16.mxu0 %v3744
    %5396 = vmatpush1.bf16.msra.mxu0 %v3743
    %5397 = vmatprep.subr.bf16.mxu0 %v3752
    %5398 = vmatpush1.bf16.msra.mxu0 %v3751
    %5399 = vmatprep.subr.bf16.mxu0 %v3760
    %5400 = vmatpush1.bf16.msra.mxu0 %v3759
    %5401 = vmatprep.subr.bf16.mxu0 %v3768
    %5402 = vmatpush1.bf16.msra.mxu0 %v3767
    %5403 = vmatprep.subr.bf16.mxu0 %v3776
    %5404 = vmatpush1.bf16.msra.mxu0 %v3775
    %5405 = vmatprep.subr.bf16.mxu0 %v3784
    %5406 = vmatpush1.bf16.msra.mxu0 %v3783
    %5407 = vmatprep.subr.bf16.mxu0 %v3792
    %5408 = vmatpush1.bf16.msra.mxu0 %v3791
    %5409 = vmatprep.subr.bf16.mxu0 %v3800
    %5410 = vmatpush1.bf16.msra.mxu0 %v3799
    %5411 = vmatprep.subr.bf16.mxu0 %v3808
    %5412 = vmatpush1.bf16.msra.mxu0 %v3807
    %5413 = vmatprep.subr.bf16.mxu0 %v3816
    %5414 = vmatpush1.bf16.msra.mxu0 %v3815
    %5415 = vmatprep.subr.bf16.mxu0 %v3824
    %5416 = vmatpush1.bf16.msra.mxu0 %v3823
    %5417 = vmatprep.subr.bf16.mxu0 %v3832
    %5418 = vmatpush1.bf16.msra.mxu0 %v3831
    %5419 = vmatprep.subr.bf16.mxu0 %v3840
    %5420 = vmatpush1.bf16.msra.mxu0 %v3839
    %5421 = vmatprep.subr.bf16.mxu0 %v3848
    %5422 = vmatpush1.bf16.msra.mxu0 %v3847
    %5423 = vmatprep.mubr.bf16.mxu0 %v1154
    %5424 = vmatmul.mubr.bf16.gmra.mrb[0].mxu0 %v1153
    %v5425 = vpop.f32.mrb[0].mxu0
    %v5426 = vadd.f32 %v996, %v5425
    %v5427 = vpop.f32.mrb[0].mxu0
    %v5428 = vadd.f32 %v1000, %v5427
    %v5429 = vpop.f32.mrb[0].mxu0
    %v5430 = vadd.f32 %v996, %v5429
    %v5431 = vpop.f32.mrb[0].mxu0
    %v5432 = vadd.f32 %v1000, %v5431
    %5433 = vmatprep.mubr.bf16.mxu0 %v1167
    %5434 = vmatmul.mubr.bf16.gmra.mrb[0].mxu0 %v1166
    %v5435 = vpop.f32.mrb[0].mxu0
    %v5436 = vadd.f32 %v996, %v5435
    %v5437 = vpop.f32.mrb[0].mxu0
    %v5438 = vadd.f32 %v1000, %v5437
    %v5439 = vpop.f32.mrb[0].mxu0
    %v5440 = vadd.f32 %v996, %v5439
    %v5441 = vpop.f32.mrb[0].mxu0
    %v5442 = vadd.f32 %v1000, %v5441
    %5443 = vmatprep.mubr.bf16.mxu0 %v1180
    %5444 = vmatmul.mubr.bf16.gmra.mrb[0].mxu0 %v1179
    %v5445 = vpop.f32.mrb[0].mxu0
    %v5446 = vadd.f32 %v996, %v5445
    %v5447 = vpop.f32.mrb[0].mxu0
    %v5448 = vadd.f32 %v1000, %v5447
    %v5449 = vpop.f32.mrb[0].mxu0
    %v5450 = vadd.f32 %v996, %v5449
    %v5451 = vpop.f32.mrb[0].mxu0
    %v5452 = vadd.f32 %v1000, %v5451
    %5453 = vdwg.mxu0
    %5454 = vmatprep.subr.bf16.mxu0 %v3856
    %5455 = vmatpush1.bf16.msra.mxu0 %v3855
    %5456 = vmatprep.subr.bf16.mxu0 %v3864
    %5457 = vmatpush1.bf16.msra.mxu0 %v3863
    %5458 = vmatprep.subr.bf16.mxu0 %v3872
    %5459 = vmatpush1.bf16.msra.mxu0 %v3871
    %5460 = vmatprep.subr.bf16.mxu0 %v3880
    %5461 = vmatpush1.bf16.msra.mxu0 %v3879
    %5462 = vmatprep.subr.bf16.mxu0 %v3888
    %5463 = vmatpush1.bf16.msra.mxu0 %v3887
    %5464 = vmatprep.subr.bf16.mxu0 %v3896
    %5465 = vmatpush1.bf16.msra.mxu0 %v3895
    %5466 = vmatprep.subr.bf16.mxu0 %v3904
    %5467 = vmatpush1.bf16.msra.mxu0 %v3903
    %5468 = vmatprep.subr.bf16.mxu0 %v3912
    %5469 = vmatpush1.bf16.msra.mxu0 %v3911
    %5470 = vmatprep.subr.bf16.mxu0 %v3920
    %5471 = vmatpush1.bf16.msra.mxu0 %v3919
    %5472 = vmatprep.subr.bf16.mxu0 %v3928
    %5473 = vmatpush1.bf16.msra.mxu0 %v3927
    %5474 = vmatprep.subr.bf16.mxu0 %v3936
    %5475 = vmatpush1.bf16.msra.mxu0 %v3935
    %5476 = vmatprep.subr.bf16.mxu0 %v3944
    %5477 = vmatpush1.bf16.msra.mxu0 %v3943
    %5478 = vmatprep.subr.bf16.mxu0 %v3952
    %5479 = vmatpush1.bf16.msra.mxu0 %v3951
    %5480 = vmatprep.subr.bf16.mxu0 %v3960
    %5481 = vmatpush1.bf16.msra.mxu0 %v3959
    %5482 = vmatprep.subr.bf16.mxu0 %v3968
    %5483 = vmatpush1.bf16.msra.mxu0 %v3967
    %5484 = vmatprep.subr.bf16.mxu0 %v3976
    %5485 = vmatpush1.bf16.msra.mxu0 %v3975
    %5486 = vmatprep.mubr.bf16.mxu0 %v1156
    %5487 = vmatmul.mubr.bf16.gmra.mrb[0].mxu0 %v1155
    %v5488 = vpop.f32.mrb[0].mxu0
    %v5489 = vadd.f32 %v5426, %v5488
    %v5490 = vpop.f32.mrb[0].mxu0
    %v5491 = vadd.f32 %v5428, %v5490
    %v5492 = vpop.f32.mrb[0].mxu0
    %v5493 = vadd.f32 %v5430, %v5492
    %v5494 = vpop.f32.mrb[0].mxu0
    %v5495 = vadd.f32 %v5432, %v5494
    %5496 = vmatprep.mubr.bf16.mxu0 %v1169
    %5497 = vmatmul.mubr.bf16.gmra.mrb[0].mxu0 %v1168
    %v5498 = vpop.f32.mrb[0].mxu0
    %v5499 = vadd.f32 %v5436, %v5498
    %v5500 = vpop.f32.mrb[0].mxu0
    %v5501 = vadd.f32 %v5438, %v5500
    %v5502 = vpop.f32.mrb[0].mxu0
    %v5503 = vadd.f32 %v5440, %v5502
    %v5504 = vpop.f32.mrb[0].mxu0
    %v5505 = vadd.f32 %v5442, %v5504
    %5506 = vmatprep.mubr.bf16.mxu0 %v1182
    %5507 = vmatmul.mubr.bf16.gmra.mrb[0].mxu0 %v1181
    %v5508 = vpop.f32.mrb[0].mxu0
    %v5509 = vadd.f32 %v5446, %v5508
    %v5510 = vpop.f32.mrb[0].mxu0
    %v5511 = vadd.f32 %v5448, %v5510
    %v5512 = vpop.f32.mrb[0].mxu0
    %v5513 = vadd.f32 %v5450, %v5512
    %v5514 = vpop.f32.mrb[0].mxu0
    %v5515 = vadd.f32 %v5452, %v5514
    %5516 = vdwg.mxu0
    %5517 = vmatprep.subr.bf16.mxu0 %v3984
    %5518 = vmatpush1.bf16.msra.mxu0 %v3983
    %5519 = vmatprep.subr.bf16.mxu0 %v3992
    %5520 = vmatpush1.bf16.msra.mxu0 %v3991
    %5521 = vmatprep.subr.bf16.mxu0 %v4000
    %5522 = vmatpush1.bf16.msra.mxu0 %v3999
    %5523 = vmatprep.subr.bf16.mxu0 %v4008
    %5524 = vmatpush1.bf16.msra.mxu0 %v4007
    %5525 = vmatprep.subr.bf16.mxu0 %v4016
    %5526 = vmatpush1.bf16.msra.mxu0 %v4015
    %5527 = vmatprep.subr.bf16.mxu0 %v4024
    %5528 = vmatpush1.bf16.msra.mxu0 %v4023
    %5529 = vmatprep.subr.bf16.mxu0 %v4032
    %5530 = vmatpush1.bf16.msra.mxu0 %v4031
    %5531 = vmatprep.subr.bf16.mxu0 %v4040
    %5532 = vmatpush1.bf16.msra.mxu0 %v4039
    %5533 = vmatprep.subr.bf16.mxu0 %v4048
    %5534 = vmatpush1.bf16.msra.mxu0 %v4047
    %5535 = vmatprep.subr.bf16.mxu0 %v4056
    %5536 = vmatpush1.bf16.msra.mxu0 %v4055
    %5537 = vmatprep.subr.bf16.mxu0 %v4064
    %5538 = vmatpush1.bf16.msra.mxu0 %v4063
    %5539 = vmatprep.subr.bf16.mxu0 %v4072
    %5540 = vmatpush1.bf16.msra.mxu0 %v4071
    %5541 = vmatprep.subr.bf16.mxu0 %v4080
    %5542 = vmatpush1.bf16.msra.mxu0 %v4079
    %5543 = vmatprep.subr.bf16.mxu0 %v4088
    %5544 = vmatpush1.bf16.msra.mxu0 %v4087
    %5545 = vmatprep.subr.bf16.mxu0 %v4096
    %5546 = vmatpush1.bf16.msra.mxu0 %v4095
    %5547 = vmatprep.subr.bf16.mxu0 %v4104
    %5548 = vmatpush1.bf16.msra.mxu0 %v4103
    %5549 = vmatprep.mubr.bf16.mxu0 %v1158
    %5550 = vmatmul.mubr.bf16.gmra.mrb[0].mxu0 %v1157
    %v5551 = vpop.f32.mrb[0].mxu0
    %v5552 = vadd.f32 %v5489, %v5551
    %v5553 = vpop.f32.mrb[0].mxu0
    %v5554 = vadd.f32 %v5491, %v5553
    %v5555 = vpop.f32.mrb[0].mxu0
    %v5556 = vadd.f32 %v5493, %v5555
    %v5557 = vpop.f32.mrb[0].mxu0
    %v5558 = vadd.f32 %v5495, %v5557
    %5559 = vmatprep.mubr.bf16.mxu0 %v1171
    %5560 = vmatmul.mubr.bf16.gmra.mrb[0].mxu0 %v1170
    %v5561 = vpop.f32.mrb[0].mxu0
    %v5562 = vadd.f32 %v5499, %v5561
    %v5563 = vpop.f32.mrb[0].mxu0
    %v5564 = vadd.f32 %v5501, %v5563
    %v5565 = vpop.f32.mrb[0].mxu0
    %v5566 = vadd.f32 %v5503, %v5565
    %v5567 = vpop.f32.mrb[0].mxu0
    %v5568 = vadd.f32 %v5505, %v5567
    %5569 = vmatprep.mubr.bf16.mxu0 %v1184
    %5570 = vmatmul.mubr.bf16.gmra.mrb[0].mxu0 %v1183
    %v5571 = vpop.f32.mrb[0].mxu0
    %v5572 = vadd.f32 %v5509, %v5571
    %v5573 = vpop.f32.mrb[0].mxu0
    %v5574 = vadd.f32 %v5511, %v5573
    %v5575 = vpop.f32.mrb[0].mxu0
    %v5576 = vadd.f32 %v5513, %v5575
    %v5577 = vpop.f32.mrb[0].mxu0
    %v5578 = vadd.f32 %v5515, %v5577
    %5579 = vdwg.mxu0
    %5580 = vmatprep.subr.bf16.mxu0 %v4112
    %5581 = vmatpush1.bf16.msra.mxu0 %v4111
    %5582 = vmatprep.subr.bf16.mxu0 %v4120
    %5583 = vmatpush1.bf16.msra.mxu0 %v4119
    %5584 = vmatprep.subr.bf16.mxu0 %v4128
    %5585 = vmatpush1.bf16.msra.mxu0 %v4127
    %5586 = vmatprep.subr.bf16.mxu0 %v4136
    %5587 = vmatpush1.bf16.msra.mxu0 %v4135
    %5588 = vmatprep.subr.bf16.mxu0 %v4144
    %5589 = vmatpush1.bf16.msra.mxu0 %v4143
    %5590 = vmatprep.subr.bf16.mxu0 %v4152
    %5591 = vmatpush1.bf16.msra.mxu0 %v4151
    %5592 = vmatprep.subr.bf16.mxu0 %v4160
    %5593 = vmatpush1.bf16.msra.mxu0 %v4159
    %5594 = vmatprep.subr.bf16.mxu0 %v4168
    %5595 = vmatpush1.bf16.msra.mxu0 %v4167
    %5596 = vmatprep.subr.bf16.mxu0 %v4176
    %5597 = vmatpush1.bf16.msra.mxu0 %v4175
    %5598 = vmatprep.subr.bf16.mxu0 %v4184
    %5599 = vmatpush1.bf16.msra.mxu0 %v4183
    %5600 = vmatprep.subr.bf16.mxu0 %v4192
    %5601 = vmatpush1.bf16.msra.mxu0 %v4191
    %5602 = vmatprep.subr.bf16.mxu0 %v4200
    %5603 = vmatpush1.bf16.msra.mxu0 %v4199
    %5604 = vmatprep.subr.bf16.mxu0 %v4208
    %5605 = vmatpush1.bf16.msra.mxu0 %v4207
    %5606 = vmatprep.subr.bf16.mxu0 %v4216
    %5607 = vmatpush1.bf16.msra.mxu0 %v4215
    %5608 = vmatprep.subr.bf16.mxu0 %v4224
    %5609 = vmatpush1.bf16.msra.mxu0 %v4223
    %5610 = vmatprep.subr.bf16.mxu0 %v4232
    %5611 = vmatpush1.bf16.msra.mxu0 %v4231
    %5612 = vmatprep.mubr.bf16.mxu0 %v1160
    %5613 = vmatmul.mubr.bf16.gmra.mrb[0].mxu0 %v1159
    %v5614 = vpop.f32.mrb[0].mxu0
    %v5615 = vadd.f32 %v5552, %v5614
    %v5616 = vpop.f32.mrb[0].mxu0
    %v5617 = vadd.f32 %v5554, %v5616
    %v5618 = vpop.f32.mrb[0].mxu0
    %v5619 = vadd.f32 %v5556, %v5618
    %v5620 = vpop.f32.mrb[0].mxu0
    %v5621 = vadd.f32 %v5558, %v5620
    %5622 = vmatprep.mubr.bf16.mxu0 %v1173
    %5623 = vmatmul.mubr.bf16.gmra.mrb[0].mxu0 %v1172
    %v5624 = vpop.f32.mrb[0].mxu0
    %v5625 = vadd.f32 %v5562, %v5624
    %v5626 = vpop.f32.mrb[0].mxu0
    %v5627 = vadd.f32 %v5564, %v5626
    %v5628 = vpop.f32.mrb[0].mxu0
    %v5629 = vadd.f32 %v5566, %v5628
    %v5630 = vpop.f32.mrb[0].mxu0
    %v5631 = vadd.f32 %v5568, %v5630
    %5632 = vmatprep.mubr.bf16.mxu0 %v1186
    %5633 = vmatmul.mubr.bf16.gmra.mrb[0].mxu0 %v1185
    %v5634 = vpop.f32.mrb[0].mxu0
    %v5635 = vadd.f32 %v5572, %v5634
    %v5636 = vpop.f32.mrb[0].mxu0
    %v5637 = vadd.f32 %v5574, %v5636
    %v5638 = vpop.f32.mrb[0].mxu0
    %v5639 = vadd.f32 %v5576, %v5638
    %v5640 = vpop.f32.mrb[0].mxu0
    %v5641 = vadd.f32 %v5578, %v5640
    %5642 = vdwg.mxu0
    %5643 = vmatprep.subr.bf16.mxu0 %v4240
    %5644 = vmatpush1.bf16.msra.mxu0 %v4239
    %5645 = vmatprep.subr.bf16.mxu0 %v4248
    %5646 = vmatpush1.bf16.msra.mxu0 %v4247
    %5647 = vmatprep.subr.bf16.mxu0 %v4256
    %5648 = vmatpush1.bf16.msra.mxu0 %v4255
    %5649 = vmatprep.subr.bf16.mxu0 %v4264
    %5650 = vmatpush1.bf16.msra.mxu0 %v4263
    %5651 = vmatprep.subr.bf16.mxu0 %v4272
    %5652 = vmatpush1.bf16.msra.mxu0 %v4271
    %5653 = vmatprep.subr.bf16.mxu0 %v4280
    %5654 = vmatpush1.bf16.msra.mxu0 %v4279
    %5655 = vmatprep.subr.bf16.mxu0 %v4288
    %5656 = vmatpush1.bf16.msra.mxu0 %v4287
    %5657 = vmatprep.subr.bf16.mxu0 %v4296
    %5658 = vmatpush1.bf16.msra.mxu0 %v4295
    %5659 = vmatprep.subr.bf16.mxu0 %v4304
    %5660 = vmatpush1.bf16.msra.mxu0 %v4303
    %5661 = vmatprep.subr.bf16.mxu0 %v4312
    %5662 = vmatpush1.bf16.msra.mxu0 %v4311
    %5663 = vmatprep.subr.bf16.mxu0 %v4320
    %5664 = vmatpush1.bf16.msra.mxu0 %v4319
    %5665 = vmatprep.subr.bf16.mxu0 %v4328
    %5666 = vmatpush1.bf16.msra.mxu0 %v4327
    %5667 = vmatprep.subr.bf16.mxu0 %v4336
    %5668 = vmatpush1.bf16.msra.mxu0 %v4335
    %5669 = vmatprep.subr.bf16.mxu0 %v4344
    %5670 = vmatpush1.bf16.msra.mxu0 %v4343
    %5671 = vmatprep.subr.bf16.mxu0 %v4352
    %5672 = vmatpush1.bf16.msra.mxu0 %v4351
    %5673 = vmatprep.subr.bf16.mxu0 %v4360
    %5674 = vmatpush1.bf16.msra.mxu0 %v4359
    %5675 = vmatprep.mubr.bf16.mxu0 %v1162
    %5676 = vmatmul.mubr.bf16.gmra.mrb[0].mxu0 %v1161
    %v5677 = vpop.f32.mrb[0].mxu0
    %v5678 = vadd.f32 %v5615, %v5677
    %v5679 = vpop.f32.mrb[0].mxu0
    %v5680 = vadd.f32 %v5617, %v5679
    %v5681 = vpop.f32.mrb[0].mxu0
    %v5682 = vadd.f32 %v5619, %v5681
    %v5683 = vpop.f32.mrb[0].mxu0
    %v5684 = vadd.f32 %v5621, %v5683
    %5685 = vmatprep.mubr.bf16.mxu0 %v1175
    %5686 = vmatmul.mubr.bf16.gmra.mrb[0].mxu0 %v1174
    %v5687 = vpop.f32.mrb[0].mxu0
    %v5688 = vadd.f32 %v5625, %v5687
    %v5689 = vpop.f32.mrb[0].mxu0
    %v5690 = vadd.f32 %v5627, %v5689
    %v5691 = vpop.f32.mrb[0].mxu0
    %v5692 = vadd.f32 %v5629, %v5691
    %v5693 = vpop.f32.mrb[0].mxu0
    %v5694 = vadd.f32 %v5631, %v5693
    %5695 = vmatprep.mubr.bf16.mxu0 %v1188
    %5696 = vmatmul.mubr.bf16.gmra.mrb[0].mxu0 %v1187
    %v5697 = vpop.f32.mrb[0].mxu0
    %v5698 = vadd.f32 %v5635, %v5697
    %v5699 = vpop.f32.mrb[0].mxu0
    %v5700 = vadd.f32 %v5637, %v5699
    %v5701 = vpop.f32.mrb[0].mxu0
    %v5702 = vadd.f32 %v5639, %v5701
    %v5703 = vpop.f32.mrb[0].mxu0
    %v5704 = vadd.f32 %v5641, %v5703
    %5705 = vdwg.mxu0
    %5706 = vmatprep.subr.bf16.mxu0 %v4368
    %5707 = vmatpush1.bf16.msra.mxu0 %v4367
    %5708 = vmatprep.subr.bf16.mxu0 %v4376
    %5709 = vmatpush1.bf16.msra.mxu0 %v4375
    %5710 = vmatprep.subr.bf16.mxu0 %v4384
    %5711 = vmatpush1.bf16.msra.mxu0 %v4383
    %5712 = vmatprep.subr.bf16.mxu0 %v4392
    %5713 = vmatpush1.bf16.msra.mxu0 %v4391
    %5714 = vmatprep.subr.bf16.mxu0 %v4400
    %5715 = vmatpush1.bf16.msra.mxu0 %v4399
    %5716 = vmatprep.subr.bf16.mxu0 %v4408
    %5717 = vmatpush1.bf16.msra.mxu0 %v4407
    %5718 = vmatprep.subr.bf16.mxu0 %v4416
    %5719 = vmatpush1.bf16.msra.mxu0 %v4415
    %5720 = vmatprep.subr.bf16.mxu0 %v4424
    %5721 = vmatpush1.bf16.msra.mxu0 %v4423
    %5722 = vmatprep.subr.bf16.mxu0 %v4432
    %5723 = vmatpush1.bf16.msra.mxu0 %v4431
    %5724 = vmatprep.subr.bf16.mxu0 %v4440
    %5725 = vmatpush1.bf16.msra.mxu0 %v4439
    %5726 = vmatprep.subr.bf16.mxu0 %v4448
    %5727 = vmatpush1.bf16.msra.mxu0 %v4447
    %5728 = vmatprep.subr.bf16.mxu0 %v4456
    %5729 = vmatpush1.bf16.msra.mxu0 %v4455
    %5730 = vmatprep.subr.bf16.mxu0 %v4464
    %5731 = vmatpush1.bf16.msra.mxu0 %v4463
    %5732 = vmatprep.subr.bf16.mxu0 %v4472
    %5733 = vmatpush1.bf16.msra.mxu0 %v4471
    %5734 = vmatprep.subr.bf16.mxu0 %v4480
    %5735 = vmatpush1.bf16.msra.mxu0 %v4479
    %5736 = vmatprep.subr.bf16.mxu0 %v4488
    %5737 = vmatpush1.bf16.msra.mxu0 %v4487
    %5738 = vmatprep.mubr.bf16.mxu0 %v1164
    %5739 = vmatmul.mubr.bf16.gmra.mrb[0].mxu0 %v1163
    %v5740 = vpop.f32.mrb[0].mxu0
    %v5741 = vadd.f32 %v5678, %v5740
    %v5742 = vpop.f32.mrb[0].mxu0
    %v5743 = vadd.f32 %v5680, %v5742
    %v5744 = vpop.f32.mrb[0].mxu0
    %v5745 = vadd.f32 %v5682, %v5744
    %v5746 = vpop.f32.mrb[0].mxu0
    %v5747 = vadd.f32 %v5684, %v5746
    %5748 = vmatprep.mubr.bf16.mxu0 %v1177
    %5749 = vmatmul.mubr.bf16.gmra.mrb[0].mxu0 %v1176
    %v5750 = vpop.f32.mrb[0].mxu0
    %v5751 = vadd.f32 %v5688, %v5750
    %v5752 = vpop.f32.mrb[0].mxu0
    %v5753 = vadd.f32 %v5690, %v5752
    %v5754 = vpop.f32.mrb[0].mxu0
    %v5755 = vadd.f32 %v5692, %v5754
    %v5756 = vpop.f32.mrb[0].mxu0
    %v5757 = vadd.f32 %v5694, %v5756
    %5758 = vmatprep.mubr.bf16.mxu0 %v1190
    %5759 = vmatmul.mubr.bf16.gmra.mrb[0].mxu0 %v1189
    %v5760 = vpop.f32.mrb[0].mxu0
    %v5761 = vadd.f32 %v5698, %v5760
    %v5762 = vpop.f32.mrb[0].mxu0
    %v5763 = vadd.f32 %v5700, %v5762
    %v5764 = vpop.f32.mrb[0].mxu0
    %v5765 = vadd.f32 %v5702, %v5764
    %v5766 = vpop.f32.mrb[0].mxu0
    %v5767 = vadd.f32 %v5704, %v5766
    %5768 = vdwg.mxu0
    %5769 = vmatprep.subr.bf16.mxu0 %v4496
    %5770 = vmatpush1.bf16.msra.mxu0 %v4495
    %5771 = vmatprep.subr.bf16.mxu0 %v4504
    %5772 = vmatpush1.bf16.msra.mxu0 %v4503
    %5773 = vmatprep.subr.bf16.mxu0 %v4512
    %5774 = vmatpush1.bf16.msra.mxu0 %v4511
    %5775 = vmatprep.subr.bf16.mxu0 %v4520
    %5776 = vmatpush1.bf16.msra.mxu0 %v4519
    %5777 = vmatprep.subr.bf16.mxu0 %v4528
    %5778 = vmatpush1.bf16.msra.mxu0 %v4527
    %5779 = vmatprep.subr.bf16.mxu0 %v4536
    %5780 = vmatpush1.bf16.msra.mxu0 %v4535
    %5781 = vmatprep.subr.bf16.mxu0 %v4544
    %5782 = vmatpush1.bf16.msra.mxu0 %v4543
    %5783 = vmatprep.subr.bf16.mxu0 %v4552
    %5784 = vmatpush1.bf16.msra.mxu0 %v4551
    %5785 = vmatprep.subr.bf16.mxu0 0
    %5786 = vmatpush1.bf16.msra.mxu0 0
    %5787 = vmatprep.subr.bf16.mxu0 0
    %5788 = vmatpush1.bf16.msra.mxu0 0
    %5789 = vmatprep.subr.bf16.mxu0 0
    %5790 = vmatpush1.bf16.msra.mxu0 0
    %5791 = vmatprep.subr.bf16.mxu0 0
    %5792 = vmatpush1.bf16.msra.mxu0 0
    %5793 = vmatprep.subr.bf16.mxu0 0
    %5794 = vmatpush1.bf16.msra.mxu0 0
    %5795 = vmatprep.subr.bf16.mxu0 0
    %5796 = vmatpush1.bf16.msra.mxu0 0
    %5797 = vmatprep.subr.bf16.mxu0 0
    %5798 = vmatpush1.bf16.msra.mxu0 0
    %5799 = vmatprep.subr.bf16.mxu0 0
    %5800 = vmatpush1.bf16.msra.mxu0 0
    %5801 = vmatprep.mubr.bf16.mxu0 0
    %5802 = vmatmul.mubr.bf16.gmra.mrb[0].mxu0 %v1165
    %v5803 = vpop.f32.mrb[0].mxu0
    %v5804 = vadd.f32 %v5741, %v5803
    %v5805 = vpop.f32.mrb[0].mxu0
    %v5806 = vadd.f32 %v5743, %v5805
    %v5807 = vpop.f32.mrb[0].mxu0
    %v5808 = vadd.f32 %v5745, %v5807
    %v5809 = vpop.f32.mrb[0].mxu0
    %v5810 = vadd.f32 %v5747, %v5809
    %5811 = vmatprep.mubr.bf16.mxu0 0
    %5812 = vmatmul.mubr.bf16.gmra.mrb[0].mxu0 %v1178
    %v5813 = vpop.f32.mrb[0].mxu0
    %v5814 = vadd.f32 %v5751, %v5813
    %v5815 = vpop.f32.mrb[0].mxu0
    %v5816 = vadd.f32 %v5753, %v5815
    %v5817 = vpop.f32.mrb[0].mxu0
    %v5818 = vadd.f32 %v5755, %v5817
    %v5819 = vpop.f32.mrb[0].mxu0
    %v5820 = vadd.f32 %v5757, %v5819
    %5821 = vmatprep.mubr.bf16.mxu0 0
    %5822 = vmatmul.mubr.bf16.gmra.mrb[0].mxu0 %v1191
    %v5823 = vpop.f32.mrb[0].mxu0
    %v5824 = vadd.f32 %v5761, %v5823
    %v5825 = vpop.f32.mrb[0].mxu0
    %v5826 = vadd.f32 %v5763, %v5825
    %v5827 = vpop.f32.mrb[0].mxu0
    %v5828 = vadd.f32 %v5765, %v5827
    %v5829 = vpop.f32.mrb[0].mxu0
    %v5830 = vadd.f32 %v5767, %v5829
    %5831 = vdwg.mxu0
    %5832 = vmatprep.subr.bf16.mxu0 %v3730
    %5833 = vmatpush1.bf16.msra.mxu0 %v3729
    %5834 = vmatprep.subr.bf16.mxu0 %v3738
    %5835 = vmatpush1.bf16.msra.mxu0 %v3737
    %5836 = vmatprep.subr.bf16.mxu0 %v3746
    %5837 = vmatpush1.bf16.msra.mxu0 %v3745
    %5838 = vmatprep.subr.bf16.mxu0 %v3754
    %5839 = vmatpush1.bf16.msra.mxu0 %v3753
    %5840 = vmatprep.subr.bf16.mxu0 %v3762
    %5841 = vmatpush1.bf16.msra.mxu0 %v3761
    %5842 = vmatprep.subr.bf16.mxu0 %v3770
    %5843 = vmatpush1.bf16.msra.mxu0 %v3769
    %5844 = vmatprep.subr.bf16.mxu0 %v3778
    %5845 = vmatpush1.bf16.msra.mxu0 %v3777
    %5846 = vmatprep.subr.bf16.mxu0 %v3786
    %5847 = vmatpush1.bf16.msra.mxu0 %v3785
    %5848 = vmatprep.subr.bf16.mxu0 %v3794
    %5849 = vmatpush1.bf16.msra.mxu0 %v3793
    %5850 = vmatprep.subr.bf16.mxu0 %v3802
    %5851 = vmatpush1.bf16.msra.mxu0 %v3801
    %5852 = vmatprep.subr.bf16.mxu0 %v3810
    %5853 = vmatpush1.bf16.msra.mxu0 %v3809
    %5854 = vmatprep.subr.bf16.mxu0 %v3818
    %5855 = vmatpush1.bf16.msra.mxu0 %v3817
    %5856 = vmatprep.subr.bf16.mxu0 %v3826
    %5857 = vmatpush1.bf16.msra.mxu0 %v3825
    %5858 = vmatprep.subr.bf16.mxu0 %v3834
    %5859 = vmatpush1.bf16.msra.mxu0 %v3833
    %5860 = vmatprep.subr.bf16.mxu0 %v3842
    %5861 = vmatpush1.bf16.msra.mxu0 %v3841
    %5862 = vmatprep.subr.bf16.mxu0 %v3850
    %5863 = vmatpush1.bf16.msra.mxu0 %v3849
    %5864 = vmatprep.mubr.bf16.mxu0 %v1154
    %5865 = vmatmul.mubr.bf16.gmra.mrb[0].mxu0 %v1153
    %v5866 = vpop.f32.mrb[0].mxu0
    %v5867 = vadd.f32 %v1004, %v5866
    %v5868 = vpop.f32.mrb[0].mxu0
    %v5869 = vadd.f32 %v1008, %v5868
    %v5870 = vpop.f32.mrb[0].mxu0
    %v5871 = vadd.f32 %v1004, %v5870
    %v5872 = vpop.f32.mrb[0].mxu0
    %v5873 = vadd.f32 %v1008, %v5872
    %5874 = vmatprep.mubr.bf16.mxu0 %v1167
    %5875 = vmatmul.mubr.bf16.gmra.mrb[0].mxu0 %v1166
    %v5876 = vpop.f32.mrb[0].mxu0
    %v5877 = vadd.f32 %v1004, %v5876
    %v5878 = vpop.f32.mrb[0].mxu0
    %v5879 = vadd.f32 %v1008, %v5878
    %v5880 = vpop.f32.mrb[0].mxu0
    %v5881 = vadd.f32 %v1004, %v5880
    %v5882 = vpop.f32.mrb[0].mxu0
    %v5883 = vadd.f32 %v1008, %v5882
    %5884 = vmatprep.mubr.bf16.mxu0 %v1180
    %5885 = vmatmul.mubr.bf16.gmra.mrb[0].mxu0 %v1179
    %v5886 = vpop.f32.mrb[0].mxu0
    %v5887 = vadd.f32 %v1004, %v5886
    %v5888 = vpop.f32.mrb[0].mxu0
    %v5889 = vadd.f32 %v1008, %v5888
    %v5890 = vpop.f32.mrb[0].mxu0
    %v5891 = vadd.f32 %v1004, %v5890
    %v5892 = vpop.f32.mrb[0].mxu0
    %v5893 = vadd.f32 %v1008, %v5892
    %5894 = vdwg.mxu0
    %5895 = vmatprep.subr.bf16.mxu0 %v3858
    %5896 = vmatpush1.bf16.msra.mxu0 %v3857
    %5897 = vmatprep.subr.bf16.mxu0 %v3866
    %5898 = vmatpush1.bf16.msra.mxu0 %v3865
    %5899 = vmatprep.subr.bf16.mxu0 %v3874
    %5900 = vmatpush1.bf16.msra.mxu0 %v3873
    %5901 = vmatprep.subr.bf16.mxu0 %v3882
    %5902 = vmatpush1.bf16.msra.mxu0 %v3881
    %5903 = vmatprep.subr.bf16.mxu0 %v3890
    %5904 = vmatpush1.bf16.msra.mxu0 %v3889
    %5905 = vmatprep.subr.bf16.mxu0 %v3898
    %5906 = vmatpush1.bf16.msra.mxu0 %v3897
    %5907 = vmatprep.subr.bf16.mxu0 %v3906
    %5908 = vmatpush1.bf16.msra.mxu0 %v3905
    %5909 = vmatprep.subr.bf16.mxu0 %v3914
    %5910 = vmatpush1.bf16.msra.mxu0 %v3913
    %5911 = vmatprep.subr.bf16.mxu0 %v3922
    %5912 = vmatpush1.bf16.msra.mxu0 %v3921
    %5913 = vmatprep.subr.bf16.mxu0 %v3930
    %5914 = vmatpush1.bf16.msra.mxu0 %v3929
    %5915 = vmatprep.subr.bf16.mxu0 %v3938
    %5916 = vmatpush1.bf16.msra.mxu0 %v3937
    %5917 = vmatprep.subr.bf16.mxu0 %v3946
    %5918 = vmatpush1.bf16.msra.mxu0 %v3945
    %5919 = vmatprep.subr.bf16.mxu0 %v3954
    %5920 = vmatpush1.bf16.msra.mxu0 %v3953
    %5921 = vmatprep.subr.bf16.mxu0 %v3962
    %5922 = vmatpush1.bf16.msra.mxu0 %v3961
    %5923 = vmatprep.subr.bf16.mxu0 %v3970
    %5924 = vmatpush1.bf16.msra.mxu0 %v3969
    %5925 = vmatprep.subr.bf16.mxu0 %v3978
    %5926 = vmatpush1.bf16.msra.mxu0 %v3977
    %5927 = vmatprep.mubr.bf16.mxu0 %v1156
    %5928 = vmatmul.mubr.bf16.gmra.mrb[0].mxu0 %v1155
    %v5929 = vpop.f32.mrb[0].mxu0
    %v5930 = vadd.f32 %v5867, %v5929
    %v5931 = vpop.f32.mrb[0].mxu0
    %v5932 = vadd.f32 %v5869, %v5931
    %v5933 = vpop.f32.mrb[0].mxu0
    %v5934 = vadd.f32 %v5871, %v5933
    %v5935 = vpop.f32.mrb[0].mxu0
    %v5936 = vadd.f32 %v5873, %v5935
    %5937 = vmatprep.mubr.bf16.mxu0 %v1169
    %5938 = vmatmul.mubr.bf16.gmra.mrb[0].mxu0 %v1168
    %v5939 = vpop.f32.mrb[0].mxu0
    %v5940 = vadd.f32 %v5877, %v5939
    %v5941 = vpop.f32.mrb[0].mxu0
    %v5942 = vadd.f32 %v5879, %v5941
    %v5943 = vpop.f32.mrb[0].mxu0
    %v5944 = vadd.f32 %v5881, %v5943
    %v5945 = vpop.f32.mrb[0].mxu0
    %v5946 = vadd.f32 %v5883, %v5945
    %5947 = vmatprep.mubr.bf16.mxu0 %v1182
    %5948 = vmatmul.mubr.bf16.gmra.mrb[0].mxu0 %v1181
    %v5949 = vpop.f32.mrb[0].mxu0
    %v5950 = vadd.f32 %v5887, %v5949
    %v5951 = vpop.f32.mrb[0].mxu0
    %v5952 = vadd.f32 %v5889, %v5951
    %v5953 = vpop.f32.mrb[0].mxu0
    %v5954 = vadd.f32 %v5891, %v5953
    %v5955 = vpop.f32.mrb[0].mxu0
    %v5956 = vadd.f32 %v5893, %v5955
    %5957 = vdwg.mxu0
    %5958 = vmatprep.subr.bf16.mxu0 %v3986
    %5959 = vmatpush1.bf16.msra.mxu0 %v3985
    %5960 = vmatprep.subr.bf16.mxu0 %v3994
    %5961 = vmatpush1.bf16.msra.mxu0 %v3993
    %5962 = vmatprep.subr.bf16.mxu0 %v4002
    %5963 = vmatpush1.bf16.msra.mxu0 %v4001
    %5964 = vmatprep.subr.bf16.mxu0 %v4010
    %5965 = vmatpush1.bf16.msra.mxu0 %v4009
    %5966 = vmatprep.subr.bf16.mxu0 %v4018
    %5967 = vmatpush1.bf16.msra.mxu0 %v4017
    %5968 = vmatprep.subr.bf16.mxu0 %v4026
    %5969 = vmatpush1.bf16.msra.mxu0 %v4025
    %5970 = vmatprep.subr.bf16.mxu0 %v4034
    %5971 = vmatpush1.bf16.msra.mxu0 %v4033
    %5972 = vmatprep.subr.bf16.mxu0 %v4042
    %5973 = vmatpush1.bf16.msra.mxu0 %v4041
    %5974 = vmatprep.subr.bf16.mxu0 %v4050
    %5975 = vmatpush1.bf16.msra.mxu0 %v4049
    %5976 = vmatprep.subr.bf16.mxu0 %v4058
    %5977 = vmatpush1.bf16.msra.mxu0 %v4057
    %5978 = vmatprep.subr.bf16.mxu0 %v4066
    %5979 = vmatpush1.bf16.msra.mxu0 %v4065
    %5980 = vmatprep.subr.bf16.mxu0 %v4074
    %5981 = vmatpush1.bf16.msra.mxu0 %v4073
    %5982 = vmatprep.subr.bf16.mxu0 %v4082
    %5983 = vmatpush1.bf16.msra.mxu0 %v4081
    %5984 = vmatprep.subr.bf16.mxu0 %v4090
    %5985 = vmatpush1.bf16.msra.mxu0 %v4089
    %5986 = vmatprep.subr.bf16.mxu0 %v4098
    %5987 = vmatpush1.bf16.msra.mxu0 %v4097
    %5988 = vmatprep.subr.bf16.mxu0 %v4106
    %5989 = vmatpush1.bf16.msra.mxu0 %v4105
    %5990 = vmatprep.mubr.bf16.mxu0 %v1158
    %5991 = vmatmul.mubr.bf16.gmra.mrb[0].mxu0 %v1157
    %v5992 = vpop.f32.mrb[0].mxu0
    %v5993 = vadd.f32 %v5930, %v5992
    %v5994 = vpop.f32.mrb[0].mxu0
    %v5995 = vadd.f32 %v5932, %v5994
    %v5996 = vpop.f32.mrb[0].mxu0
    %v5997 = vadd.f32 %v5934, %v5996
    %v5998 = vpop.f32.mrb[0].mxu0
    %v5999 = vadd.f32 %v5936, %v5998
    %6000 = vmatprep.mubr.bf16.mxu0 %v1171
    %6001 = vmatmul.mubr.bf16.gmra.mrb[0].mxu0 %v1170
    %v6002 = vpop.f32.mrb[0].mxu0
    %v6003 = vadd.f32 %v5940, %v6002
    %v6004 = vpop.f32.mrb[0].mxu0
    %v6005 = vadd.f32 %v5942, %v6004
    %v6006 = vpop.f32.mrb[0].mxu0
    %v6007 = vadd.f32 %v5944, %v6006
    %v6008 = vpop.f32.mrb[0].mxu0
    %v6009 = vadd.f32 %v5946, %v6008
    %6010 = vmatprep.mubr.bf16.mxu0 %v1184
    %6011 = vmatmul.mubr.bf16.gmra.mrb[0].mxu0 %v1183
    %v6012 = vpop.f32.mrb[0].mxu0
    %v6013 = vadd.f32 %v5950, %v6012
    %v6014 = vpop.f32.mrb[0].mxu0
    %v6015 = vadd.f32 %v5952, %v6014
    %v6016 = vpop.f32.mrb[0].mxu0
    %v6017 = vadd.f32 %v5954, %v6016
    %v6018 = vpop.f32.mrb[0].mxu0
    %v6019 = vadd.f32 %v5956, %v6018
    %6020 = vdwg.mxu0
    %6021 = vmatprep.subr.bf16.mxu0 %v4114
    %6022 = vmatpush1.bf16.msra.mxu0 %v4113
    %6023 = vmatprep.subr.bf16.mxu0 %v4122
    %6024 = vmatpush1.bf16.msra.mxu0 %v4121
    %6025 = vmatprep.subr.bf16.mxu0 %v4130
    %6026 = vmatpush1.bf16.msra.mxu0 %v4129
    %6027 = vmatprep.subr.bf16.mxu0 %v4138
    %6028 = vmatpush1.bf16.msra.mxu0 %v4137
    %6029 = vmatprep.subr.bf16.mxu0 %v4146
    %6030 = vmatpush1.bf16.msra.mxu0 %v4145
    %6031 = vmatprep.subr.bf16.mxu0 %v4154
    %6032 = vmatpush1.bf16.msra.mxu0 %v4153
    %6033 = vmatprep.subr.bf16.mxu0 %v4162
    %6034 = vmatpush1.bf16.msra.mxu0 %v4161
    %6035 = vmatprep.subr.bf16.mxu0 %v4170
    %6036 = vmatpush1.bf16.msra.mxu0 %v4169
    %6037 = vmatprep.subr.bf16.mxu0 %v4178
    %6038 = vmatpush1.bf16.msra.mxu0 %v4177
    %6039 = vmatprep.subr.bf16.mxu0 %v4186
    %6040 = vmatpush1.bf16.msra.mxu0 %v4185
    %6041 = vmatprep.subr.bf16.mxu0 %v4194
    %6042 = vmatpush1.bf16.msra.mxu0 %v4193
    %6043 = vmatprep.subr.bf16.mxu0 %v4202
    %6044 = vmatpush1.bf16.msra.mxu0 %v4201
    %6045 = vmatprep.subr.bf16.mxu0 %v4210
    %6046 = vmatpush1.bf16.msra.mxu0 %v4209
    %6047 = vmatprep.subr.bf16.mxu0 %v4218
    %6048 = vmatpush1.bf16.msra.mxu0 %v4217
    %6049 = vmatprep.subr.bf16.mxu0 %v4226
    %6050 = vmatpush1.bf16.msra.mxu0 %v4225
    %6051 = vmatprep.subr.bf16.mxu0 %v4234
    %6052 = vmatpush1.bf16.msra.mxu0 %v4233
    %6053 = vmatprep.mubr.bf16.mxu0 %v1160
    %6054 = vmatmul.mubr.bf16.gmra.mrb[0].mxu0 %v1159
    %v6055 = vpop.f32.mrb[0].mxu0
    %v6056 = vadd.f32 %v5993, %v6055
    %v6057 = vpop.f32.mrb[0].mxu0
    %v6058 = vadd.f32 %v5995, %v6057
    %v6059 = vpop.f32.mrb[0].mxu0
    %v6060 = vadd.f32 %v5997, %v6059
    %v6061 = vpop.f32.mrb[0].mxu0
    %v6062 = vadd.f32 %v5999, %v6061
    %6063 = vmatprep.mubr.bf16.mxu0 %v1173
    %6064 = vmatmul.mubr.bf16.gmra.mrb[0].mxu0 %v1172
    %v6065 = vpop.f32.mrb[0].mxu0
    %v6066 = vadd.f32 %v6003, %v6065
    %v6067 = vpop.f32.mrb[0].mxu0
    %v6068 = vadd.f32 %v6005, %v6067
    %v6069 = vpop.f32.mrb[0].mxu0
    %v6070 = vadd.f32 %v6007, %v6069
    %v6071 = vpop.f32.mrb[0].mxu0
    %v6072 = vadd.f32 %v6009, %v6071
    %6073 = vmatprep.mubr.bf16.mxu0 %v1186
    %6074 = vmatmul.mubr.bf16.gmra.mrb[0].mxu0 %v1185
    %v6075 = vpop.f32.mrb[0].mxu0
    %v6076 = vadd.f32 %v6013, %v6075
    %v6077 = vpop.f32.mrb[0].mxu0
    %v6078 = vadd.f32 %v6015, %v6077
    %v6079 = vpop.f32.mrb[0].mxu0
    %v6080 = vadd.f32 %v6017, %v6079
    %v6081 = vpop.f32.mrb[0].mxu0
    %v6082 = vadd.f32 %v6019, %v6081
    %6083 = vdwg.mxu0
    %6084 = vmatprep.subr.bf16.mxu0 %v4242
    %6085 = vmatpush1.bf16.msra.mxu0 %v4241
    %6086 = vmatprep.subr.bf16.mxu0 %v4250
    %6087 = vmatpush1.bf16.msra.mxu0 %v4249
    %6088 = vmatprep.subr.bf16.mxu0 %v4258
    %6089 = vmatpush1.bf16.msra.mxu0 %v4257
    %6090 = vmatprep.subr.bf16.mxu0 %v4266
    %6091 = vmatpush1.bf16.msra.mxu0 %v4265
    %6092 = vmatprep.subr.bf16.mxu0 %v4274
    %6093 = vmatpush1.bf16.msra.mxu0 %v4273
    %6094 = vmatprep.subr.bf16.mxu0 %v4282
    %6095 = vmatpush1.bf16.msra.mxu0 %v4281
    %6096 = vmatprep.subr.bf16.mxu0 %v4290
    %6097 = vmatpush1.bf16.msra.mxu0 %v4289
    %6098 = vmatprep.subr.bf16.mxu0 %v4298
    %6099 = vmatpush1.bf16.msra.mxu0 %v4297
    %6100 = vmatprep.subr.bf16.mxu0 %v4306
    %6101 = vmatpush1.bf16.msra.mxu0 %v4305
    %6102 = vmatprep.subr.bf16.mxu0 %v4314
    %6103 = vmatpush1.bf16.msra.mxu0 %v4313
    %6104 = vmatprep.subr.bf16.mxu0 %v4322
    %6105 = vmatpush1.bf16.msra.mxu0 %v4321
    %6106 = vmatprep.subr.bf16.mxu0 %v4330
    %6107 = vmatpush1.bf16.msra.mxu0 %v4329
    %6108 = vmatprep.subr.bf16.mxu0 %v4338
    %6109 = vmatpush1.bf16.msra.mxu0 %v4337
    %6110 = vmatprep.subr.bf16.mxu0 %v4346
    %6111 = vmatpush1.bf16.msra.mxu0 %v4345
    %6112 = vmatprep.subr.bf16.mxu0 %v4354
    %6113 = vmatpush1.bf16.msra.mxu0 %v4353
    %6114 = vmatprep.subr.bf16.mxu0 %v4362
    %6115 = vmatpush1.bf16.msra.mxu0 %v4361
    %6116 = vmatprep.mubr.bf16.mxu0 %v1162
    %6117 = vmatmul.mubr.bf16.gmra.mrb[0].mxu0 %v1161
    %v6118 = vpop.f32.mrb[0].mxu0
    %v6119 = vadd.f32 %v6056, %v6118
    %v6120 = vpop.f32.mrb[0].mxu0
    %v6121 = vadd.f32 %v6058, %v6120
    %v6122 = vpop.f32.mrb[0].mxu0
    %v6123 = vadd.f32 %v6060, %v6122
    %v6124 = vpop.f32.mrb[0].mxu0
    %v6125 = vadd.f32 %v6062, %v6124
    %6126 = vmatprep.mubr.bf16.mxu0 %v1175
    %6127 = vmatmul.mubr.bf16.gmra.mrb[0].mxu0 %v1174
    %v6128 = vpop.f32.mrb[0].mxu0
    %v6129 = vadd.f32 %v6066, %v6128
    %v6130 = vpop.f32.mrb[0].mxu0
    %v6131 = vadd.f32 %v6068, %v6130
    %v6132 = vpop.f32.mrb[0].mxu0
    %v6133 = vadd.f32 %v6070, %v6132
    %v6134 = vpop.f32.mrb[0].mxu0
    %v6135 = vadd.f32 %v6072, %v6134
    %6136 = vmatprep.mubr.bf16.mxu0 %v1188
    %6137 = vmatmul.mubr.bf16.gmra.mrb[0].mxu0 %v1187
    %v6138 = vpop.f32.mrb[0].mxu0
    %v6139 = vadd.f32 %v6076, %v6138
    %v6140 = vpop.f32.mrb[0].mxu0
    %v6141 = vadd.f32 %v6078, %v6140
    %v6142 = vpop.f32.mrb[0].mxu0
    %v6143 = vadd.f32 %v6080, %v6142
    %v6144 = vpop.f32.mrb[0].mxu0
    %v6145 = vadd.f32 %v6082, %v6144
    %6146 = vdwg.mxu0
    %6147 = vmatprep.subr.bf16.mxu0 %v4370
    %6148 = vmatpush1.bf16.msra.mxu0 %v4369
    %6149 = vmatprep.subr.bf16.mxu0 %v4378
    %6150 = vmatpush1.bf16.msra.mxu0 %v4377
    %6151 = vmatprep.subr.bf16.mxu0 %v4386
    %6152 = vmatpush1.bf16.msra.mxu0 %v4385
    %6153 = vmatprep.subr.bf16.mxu0 %v4394
    %6154 = vmatpush1.bf16.msra.mxu0 %v4393
    %6155 = vmatprep.subr.bf16.mxu0 %v4402
    %6156 = vmatpush1.bf16.msra.mxu0 %v4401
    %6157 = vmatprep.subr.bf16.mxu0 %v4410
    %6158 = vmatpush1.bf16.msra.mxu0 %v4409
    %6159 = vmatprep.subr.bf16.mxu0 %v4418
    %6160 = vmatpush1.bf16.msra.mxu0 %v4417
    %6161 = vmatprep.subr.bf16.mxu0 %v4426
    %6162 = vmatpush1.bf16.msra.mxu0 %v4425
    %6163 = vmatprep.subr.bf16.mxu0 %v4434
    %6164 = vmatpush1.bf16.msra.mxu0 %v4433
    %6165 = vmatprep.subr.bf16.mxu0 %v4442
    %6166 = vmatpush1.bf16.msra.mxu0 %v4441
    %6167 = vmatprep.subr.bf16.mxu0 %v4450
    %6168 = vmatpush1.bf16.msra.mxu0 %v4449
    %6169 = vmatprep.subr.bf16.mxu0 %v4458
    %6170 = vmatpush1.bf16.msra.mxu0 %v4457
    %6171 = vmatprep.subr.bf16.mxu0 %v4466
    %6172 = vmatpush1.bf16.msra.mxu0 %v4465
    %6173 = vmatprep.subr.bf16.mxu0 %v4474
    %6174 = vmatpush1.bf16.msra.mxu0 %v4473
    %6175 = vmatprep.subr.bf16.mxu0 %v4482
    %6176 = vmatpush1.bf16.msra.mxu0 %v4481
    %6177 = vmatprep.subr.bf16.mxu0 %v4490
    %6178 = vmatpush1.bf16.msra.mxu0 %v4489
    %6179 = vmatprep.mubr.bf16.mxu0 %v1164
    %6180 = vmatmul.mubr.bf16.gmra.mrb[0].mxu0 %v1163
    %v6181 = vpop.f32.mrb[0].mxu0
    %v6182 = vadd.f32 %v6119, %v6181
    %v6183 = vpop.f32.mrb[0].mxu0
    %v6184 = vadd.f32 %v6121, %v6183
    %v6185 = vpop.f32.mrb[0].mxu0
    %v6186 = vadd.f32 %v6123, %v6185
    %v6187 = vpop.f32.mrb[0].mxu0
    %v6188 = vadd.f32 %v6125, %v6187
    %6189 = vmatprep.mubr.bf16.mxu0 %v1177
    %6190 = vmatmul.mubr.bf16.gmra.mrb[0].mxu0 %v1176
    %v6191 = vpop.f32.mrb[0].mxu0
    %v6192 = vadd.f32 %v6129, %v6191
    %v6193 = vpop.f32.mrb[0].mxu0
    %v6194 = vadd.f32 %v6131, %v6193
    %v6195 = vpop.f32.mrb[0].mxu0
    %v6196 = vadd.f32 %v6133, %v6195
    %v6197 = vpop.f32.mrb[0].mxu0
    %v6198 = vadd.f32 %v6135, %v6197
    %6199 = vmatprep.mubr.bf16.mxu0 %v1190
    %6200 = vmatmul.mubr.bf16.gmra.mrb[0].mxu0 %v1189
    %v6201 = vpop.f32.mrb[0].mxu0
    %v6202 = vadd.f32 %v6139, %v6201
    %v6203 = vpop.f32.mrb[0].mxu0
    %v6204 = vadd.f32 %v6141, %v6203
    %v6205 = vpop.f32.mrb[0].mxu0
    %v6206 = vadd.f32 %v6143, %v6205
    %v6207 = vpop.f32.mrb[0].mxu0
    %v6208 = vadd.f32 %v6145, %v6207
    %6209 = vdwg.mxu0
    %6210 = vmatprep.subr.bf16.mxu0 %v4498
    %6211 = vmatpush1.bf16.msra.mxu0 %v4497
    %6212 = vmatprep.subr.bf16.mxu0 %v4506
    %6213 = vmatpush1.bf16.msra.mxu0 %v4505
    %6214 = vmatprep.subr.bf16.mxu0 %v4514
    %6215 = vmatpush1.bf16.msra.mxu0 %v4513
    %6216 = vmatprep.subr.bf16.mxu0 %v4522
    %6217 = vmatpush1.bf16.msra.mxu0 %v4521
    %6218 = vmatprep.subr.bf16.mxu0 %v4530
    %6219 = vmatpush1.bf16.msra.mxu0 %v4529
    %6220 = vmatprep.subr.bf16.mxu0 %v4538
    %6221 = vmatpush1.bf16.msra.mxu0 %v4537
    %6222 = vmatprep.subr.bf16.mxu0 %v4546
    %6223 = vmatpush1.bf16.msra.mxu0 %v4545
    %6224 = vmatprep.subr.bf16.mxu0 %v4554
    %6225 = vmatpush1.bf16.msra.mxu0 %v4553
    %6226 = vmatprep.subr.bf16.mxu0 0
    %6227 = vmatpush1.bf16.msra.mxu0 0
    %6228 = vmatprep.subr.bf16.mxu0 0
    %6229 = vmatpush1.bf16.msra.mxu0 0
    %6230 = vmatprep.subr.bf16.mxu0 0
    %6231 = vmatpush1.bf16.msra.mxu0 0
    %6232 = vmatprep.subr.bf16.mxu0 0
    %6233 = vmatpush1.bf16.msra.mxu0 0
    %6234 = vmatprep.subr.bf16.mxu0 0
    %6235 = vmatpush1.bf16.msra.mxu0 0
    %6236 = vmatprep.subr.bf16.mxu0 0
    %6237 = vmatpush1.bf16.msra.mxu0 0
    %6238 = vmatprep.subr.bf16.mxu0 0
    %6239 = vmatpush1.bf16.msra.mxu0 0
    %6240 = vmatprep.subr.bf16.mxu0 0
    %6241 = vmatpush1.bf16.msra.mxu0 0
    %6242 = vmatprep.mubr.bf16.mxu0 0
    %6243 = vmatmul.mubr.bf16.gmra.mrb[0].mxu0 %v1165
    %v6244 = vpop.f32.mrb[0].mxu0
    %v6245 = vadd.f32 %v6182, %v6244
    %v6246 = vpop.f32.mrb[0].mxu0
    %v6247 = vadd.f32 %v6184, %v6246
    %v6248 = vpop.f32.mrb[0].mxu0
    %v6249 = vadd.f32 %v6186, %v6248
    %v6250 = vpop.f32.mrb[0].mxu0
    %v6251 = vadd.f32 %v6188, %v6250
    %6252 = vmatprep.mubr.bf16.mxu0 0
    %6253 = vmatmul.mubr.bf16.gmra.mrb[0].mxu0 %v1178
    %v6254 = vpop.f32.mrb[0].mxu0
    %v6255 = vadd.f32 %v6192, %v6254
    %v6256 = vpop.f32.mrb[0].mxu0
    %v6257 = vadd.f32 %v6194, %v6256
    %v6258 = vpop.f32.mrb[0].mxu0
    %v6259 = vadd.f32 %v6196, %v6258
    %v6260 = vpop.f32.mrb[0].mxu0
    %v6261 = vadd.f32 %v6198, %v6260
    %6262 = vmatprep.mubr.bf16.mxu0 0
    %6263 = vmatmul.mubr.bf16.gmra.mrb[0].mxu0 %v1191
    %v6264 = vpop.f32.mrb[0].mxu0
    %v6265 = vadd.f32 %v6202, %v6264
    %v6266 = vpop.f32.mrb[0].mxu0
    %v6267 = vadd.f32 %v6204, %v6266
    %v6268 = vpop.f32.mrb[0].mxu0
    %v6269 = vadd.f32 %v6206, %v6268
    %v6270 = vpop.f32.mrb[0].mxu0
    %v6271 = vadd.f32 %v6208, %v6270
    %6272 = vdwg.mxu0
    %6273 = vmatprep.subr.bf16.mxu0 %v3732
    %6274 = vmatpush1.bf16.msra.mxu0 %v3731
    %6275 = vmatprep.subr.bf16.mxu0 %v3740
    %6276 = vmatpush1.bf16.msra.mxu0 %v3739
    %6277 = vmatprep.subr.bf16.mxu0 %v3748
    %6278 = vmatpush1.bf16.msra.mxu0 %v3747
    %6279 = vmatprep.subr.bf16.mxu0 %v3756
    %6280 = vmatpush1.bf16.msra.mxu0 %v3755
    %6281 = vmatprep.subr.bf16.mxu0 %v3764
    %6282 = vmatpush1.bf16.msra.mxu0 %v3763
    %6283 = vmatprep.subr.bf16.mxu0 %v3772
    %6284 = vmatpush1.bf16.msra.mxu0 %v3771
    %6285 = vmatprep.subr.bf16.mxu0 %v3780
    %6286 = vmatpush1.bf16.msra.mxu0 %v3779
    %6287 = vmatprep.subr.bf16.mxu0 %v3788
    %6288 = vmatpush1.bf16.msra.mxu0 %v3787
    %6289 = vmatprep.subr.bf16.mxu0 %v3796
    %6290 = vmatpush1.bf16.msra.mxu0 %v3795
    %6291 = vmatprep.subr.bf16.mxu0 %v3804
    %6292 = vmatpush1.bf16.msra.mxu0 %v3803
    %6293 = vmatprep.subr.bf16.mxu0 %v3812
    %6294 = vmatpush1.bf16.msra.mxu0 %v3811
    %6295 = vmatprep.subr.bf16.mxu0 %v3820
    %6296 = vmatpush1.bf16.msra.mxu0 %v3819
    %6297 = vmatprep.subr.bf16.mxu0 %v3828
    %6298 = vmatpush1.bf16.msra.mxu0 %v3827
    %6299 = vmatprep.subr.bf16.mxu0 %v3836
    %6300 = vmatpush1.bf16.msra.mxu0 %v3835
    %6301 = vmatprep.subr.bf16.mxu0 %v3844
    %6302 = vmatpush1.bf16.msra.mxu0 %v3843
    %6303 = vmatprep.subr.bf16.mxu0 %v3852
    %6304 = vmatpush1.bf16.msra.mxu0 %v3851
    %6305 = vmatprep.mubr.bf16.mxu0 %v1154
    %6306 = vmatmul.mubr.bf16.gmra.mrb[0].mxu0 %v1153
    %v6307 = vpop.f32.mrb[0].mxu0
    %v6308 = vadd.f32 %v1012, %v6307
    %v6309 = vpop.f32.mrb[0].mxu0
    %v6310 = vadd.f32 %v1016, %v6309
    %v6311 = vpop.f32.mrb[0].mxu0
    %v6312 = vadd.f32 %v1012, %v6311
    %v6313 = vpop.f32.mrb[0].mxu0
    %v6314 = vadd.f32 %v1016, %v6313
    %6315 = vmatprep.mubr.bf16.mxu0 %v1167
    %6316 = vmatmul.mubr.bf16.gmra.mrb[0].mxu0 %v1166
    %v6317 = vpop.f32.mrb[0].mxu0
    %v6318 = vadd.f32 %v1012, %v6317
    %v6319 = vpop.f32.mrb[0].mxu0
    %v6320 = vadd.f32 %v1016, %v6319
    %v6321 = vpop.f32.mrb[0].mxu0
    %v6322 = vadd.f32 %v1012, %v6321
    %v6323 = vpop.f32.mrb[0].mxu0
    %v6324 = vadd.f32 %v1016, %v6323
    %6325 = vmatprep.mubr.bf16.mxu0 %v1180
    %6326 = vmatmul.mubr.bf16.gmra.mrb[0].mxu0 %v1179
    %v6327 = vpop.f32.mrb[0].mxu0
    %v6328 = vadd.f32 %v1012, %v6327
    %v6329 = vpop.f32.mrb[0].mxu0
    %v6330 = vadd.f32 %v1016, %v6329
    %v6331 = vpop.f32.mrb[0].mxu0
    %v6332 = vadd.f32 %v1012, %v6331
    %v6333 = vpop.f32.mrb[0].mxu0
    %v6334 = vadd.f32 %v1016, %v6333
    %6335 = vdwg.mxu0
    %6336 = vmatprep.subr.bf16.mxu0 %v3860
    %6337 = vmatpush1.bf16.msra.mxu0 %v3859
    %6338 = vmatprep.subr.bf16.mxu0 %v3868
    %6339 = vmatpush1.bf16.msra.mxu0 %v3867
    %6340 = vmatprep.subr.bf16.mxu0 %v3876
    %6341 = vmatpush1.bf16.msra.mxu0 %v3875
    %6342 = vmatprep.subr.bf16.mxu0 %v3884
    %6343 = vmatpush1.bf16.msra.mxu0 %v3883
    %6344 = vmatprep.subr.bf16.mxu0 %v3892
    %6345 = vmatpush1.bf16.msra.mxu0 %v3891
    %6346 = vmatprep.subr.bf16.mxu0 %v3900
    %6347 = vmatpush1.bf16.msra.mxu0 %v3899
    %6348 = vmatprep.subr.bf16.mxu0 %v3908
    %6349 = vmatpush1.bf16.msra.mxu0 %v3907
    %6350 = vmatprep.subr.bf16.mxu0 %v3916
    %6351 = vmatpush1.bf16.msra.mxu0 %v3915
    %6352 = vmatprep.subr.bf16.mxu0 %v3924
    %6353 = vmatpush1.bf16.msra.mxu0 %v3923
    %6354 = vmatprep.subr.bf16.mxu0 %v3932
    %6355 = vmatpush1.bf16.msra.mxu0 %v3931
    %6356 = vmatprep.subr.bf16.mxu0 %v3940
    %6357 = vmatpush1.bf16.msra.mxu0 %v3939
    %6358 = vmatprep.subr.bf16.mxu0 %v3948
    %6359 = vmatpush1.bf16.msra.mxu0 %v3947
    %6360 = vmatprep.subr.bf16.mxu0 %v3956
    %6361 = vmatpush1.bf16.msra.mxu0 %v3955
    %6362 = vmatprep.subr.bf16.mxu0 %v3964
    %6363 = vmatpush1.bf16.msra.mxu0 %v3963
    %6364 = vmatprep.subr.bf16.mxu0 %v3972
    %6365 = vmatpush1.bf16.msra.mxu0 %v3971
    %6366 = vmatprep.subr.bf16.mxu0 %v3980
    %6367 = vmatpush1.bf16.msra.mxu0 %v3979
    %6368 = vmatprep.mubr.bf16.mxu0 %v1156
    %6369 = vmatmul.mubr.bf16.gmra.mrb[0].mxu0 %v1155
    %v6370 = vpop.f32.mrb[0].mxu0
    %v6371 = vadd.f32 %v6308, %v6370
    %v6372 = vpop.f32.mrb[0].mxu0
    %v6373 = vadd.f32 %v6310, %v6372
    %v6374 = vpop.f32.mrb[0].mxu0
    %v6375 = vadd.f32 %v6312, %v6374
    %v6376 = vpop.f32.mrb[0].mxu0
    %v6377 = vadd.f32 %v6314, %v6376
    %6378 = vmatprep.mubr.bf16.mxu0 %v1169
    %6379 = vmatmul.mubr.bf16.gmra.mrb[0].mxu0 %v1168
    %v6380 = vpop.f32.mrb[0].mxu0
    %v6381 = vadd.f32 %v6318, %v6380
    %v6382 = vpop.f32.mrb[0].mxu0
    %v6383 = vadd.f32 %v6320, %v6382
    %v6384 = vpop.f32.mrb[0].mxu0
    %v6385 = vadd.f32 %v6322, %v6384
    %v6386 = vpop.f32.mrb[0].mxu0
    %v6387 = vadd.f32 %v6324, %v6386
    %6388 = vmatprep.mubr.bf16.mxu0 %v1182
    %6389 = vmatmul.mubr.bf16.gmra.mrb[0].mxu0 %v1181
    %v6390 = vpop.f32.mrb[0].mxu0
    %v6391 = vadd.f32 %v6328, %v6390
    %v6392 = vpop.f32.mrb[0].mxu0
    %v6393 = vadd.f32 %v6330, %v6392
    %v6394 = vpop.f32.mrb[0].mxu0
    %v6395 = vadd.f32 %v6332, %v6394
    %v6396 = vpop.f32.mrb[0].mxu0
    %v6397 = vadd.f32 %v6334, %v6396
    %6398 = vdwg.mxu0
    %6399 = vmatprep.subr.bf16.mxu0 %v3988
    %6400 = vmatpush1.bf16.msra.mxu0 %v3987
    %6401 = vmatprep.subr.bf16.mxu0 %v3996
    %6402 = vmatpush1.bf16.msra.mxu0 %v3995
    %6403 = vmatprep.subr.bf16.mxu0 %v4004
    %6404 = vmatpush1.bf16.msra.mxu0 %v4003
    %6405 = vmatprep.subr.bf16.mxu0 %v4012
    %6406 = vmatpush1.bf16.msra.mxu0 %v4011
    %6407 = vmatprep.subr.bf16.mxu0 %v4020
    %6408 = vmatpush1.bf16.msra.mxu0 %v4019
    %6409 = vmatprep.subr.bf16.mxu0 %v4028
    %6410 = vmatpush1.bf16.msra.mxu0 %v4027
    %6411 = vmatprep.subr.bf16.mxu0 %v4036
    %6412 = vmatpush1.bf16.msra.mxu0 %v4035
    %6413 = vmatprep.subr.bf16.mxu0 %v4044
    %6414 = vmatpush1.bf16.msra.mxu0 %v4043
    %6415 = vmatprep.subr.bf16.mxu0 %v4052
    %6416 = vmatpush1.bf16.msra.mxu0 %v4051
    %6417 = vmatprep.subr.bf16.mxu0 %v4060
    %6418 = vmatpush1.bf16.msra.mxu0 %v4059
    %6419 = vmatprep.subr.bf16.mxu0 %v4068
    %6420 = vmatpush1.bf16.msra.mxu0 %v4067
    %6421 = vmatprep.subr.bf16.mxu0 %v4076
    %6422 = vmatpush1.bf16.msra.mxu0 %v4075
    %6423 = vmatprep.subr.bf16.mxu0 %v4084
    %6424 = vmatpush1.bf16.msra.mxu0 %v4083
    %6425 = vmatprep.subr.bf16.mxu0 %v4092
    %6426 = vmatpush1.bf16.msra.mxu0 %v4091
    %6427 = vmatprep.subr.bf16.mxu0 %v4100
    %6428 = vmatpush1.bf16.msra.mxu0 %v4099
    %6429 = vmatprep.subr.bf16.mxu0 %v4108
    %6430 = vmatpush1.bf16.msra.mxu0 %v4107
    %6431 = vmatprep.mubr.bf16.mxu0 %v1158
    %6432 = vmatmul.mubr.bf16.gmra.mrb[0].mxu0 %v1157
    %v6433 = vpop.f32.mrb[0].mxu0
    %v6434 = vadd.f32 %v6371, %v6433
    %v6435 = vpop.f32.mrb[0].mxu0
    %v6436 = vadd.f32 %v6373, %v6435
    %v6437 = vpop.f32.mrb[0].mxu0
    %v6438 = vadd.f32 %v6375, %v6437
    %v6439 = vpop.f32.mrb[0].mxu0
    %v6440 = vadd.f32 %v6377, %v6439
    %6441 = vmatprep.mubr.bf16.mxu0 %v1171
    %6442 = vmatmul.mubr.bf16.gmra.mrb[0].mxu0 %v1170
    %v6443 = vpop.f32.mrb[0].mxu0
    %v6444 = vadd.f32 %v6381, %v6443
    %v6445 = vpop.f32.mrb[0].mxu0
    %v6446 = vadd.f32 %v6383, %v6445
    %v6447 = vpop.f32.mrb[0].mxu0
    %v6448 = vadd.f32 %v6385, %v6447
    %v6449 = vpop.f32.mrb[0].mxu0
    %v6450 = vadd.f32 %v6387, %v6449
    %6451 = vmatprep.mubr.bf16.mxu0 %v1184
    %6452 = vmatmul.mubr.bf16.gmra.mrb[0].mxu0 %v1183
    %v6453 = vpop.f32.mrb[0].mxu0
    %v6454 = vadd.f32 %v6391, %v6453
    %v6455 = vpop.f32.mrb[0].mxu0
    %v6456 = vadd.f32 %v6393, %v6455
    %v6457 = vpop.f32.mrb[0].mxu0
    %v6458 = vadd.f32 %v6395, %v6457
    %v6459 = vpop.f32.mrb[0].mxu0
    %v6460 = vadd.f32 %v6397, %v6459
    %6461 = vdwg.mxu0
    %6462 = vmatprep.subr.bf16.mxu0 %v4116
    %6463 = vmatpush1.bf16.msra.mxu0 %v4115
    %6464 = vmatprep.subr.bf16.mxu0 %v4124
    %6465 = vmatpush1.bf16.msra.mxu0 %v4123
    %6466 = vmatprep.subr.bf16.mxu0 %v4132
    %6467 = vmatpush1.bf16.msra.mxu0 %v4131
    %6468 = vmatprep.subr.bf16.mxu0 %v4140
    %6469 = vmatpush1.bf16.msra.mxu0 %v4139
    %6470 = vmatprep.subr.bf16.mxu0 %v4148
    %6471 = vmatpush1.bf16.msra.mxu0 %v4147
    %6472 = vmatprep.subr.bf16.mxu0 %v4156
    %6473 = vmatpush1.bf16.msra.mxu0 %v4155
    %6474 = vmatprep.subr.bf16.mxu0 %v4164
    %6475 = vmatpush1.bf16.msra.mxu0 %v4163
    %6476 = vmatprep.subr.bf16.mxu0 %v4172
    %6477 = vmatpush1.bf16.msra.mxu0 %v4171
    %6478 = vmatprep.subr.bf16.mxu0 %v4180
    %6479 = vmatpush1.bf16.msra.mxu0 %v4179
    %6480 = vmatprep.subr.bf16.mxu0 %v4188
    %6481 = vmatpush1.bf16.msra.mxu0 %v4187
    %6482 = vmatprep.subr.bf16.mxu0 %v4196
    %6483 = vmatpush1.bf16.msra.mxu0 %v4195
    %6484 = vmatprep.subr.bf16.mxu0 %v4204
    %6485 = vmatpush1.bf16.msra.mxu0 %v4203
    %6486 = vmatprep.subr.bf16.mxu0 %v4212
    %6487 = vmatpush1.bf16.msra.mxu0 %v4211
    %6488 = vmatprep.subr.bf16.mxu0 %v4220
    %6489 = vmatpush1.bf16.msra.mxu0 %v4219
    %6490 = vmatprep.subr.bf16.mxu0 %v4228
    %6491 = vmatpush1.bf16.msra.mxu0 %v4227
    %6492 = vmatprep.subr.bf16.mxu0 %v4236
    %6493 = vmatpush1.bf16.msra.mxu0 %v4235
    %6494 = vmatprep.mubr.bf16.mxu0 %v1160
    %6495 = vmatmul.mubr.bf16.gmra.mrb[0].mxu0 %v1159
    %v6496 = vpop.f32.mrb[0].mxu0
    %v6497 = vadd.f32 %v6434, %v6496
    %v6498 = vpop.f32.mrb[0].mxu0
    %v6499 = vadd.f32 %v6436, %v6498
    %v6500 = vpop.f32.mrb[0].mxu0
    %v6501 = vadd.f32 %v6438, %v6500
    %v6502 = vpop.f32.mrb[0].mxu0
    %v6503 = vadd.f32 %v6440, %v6502
    %6504 = vmatprep.mubr.bf16.mxu0 %v1173
    %6505 = vmatmul.mubr.bf16.gmra.mrb[0].mxu0 %v1172
    %v6506 = vpop.f32.mrb[0].mxu0
    %v6507 = vadd.f32 %v6444, %v6506
    %v6508 = vpop.f32.mrb[0].mxu0
    %v6509 = vadd.f32 %v6446, %v6508
    %v6510 = vpop.f32.mrb[0].mxu0
    %v6511 = vadd.f32 %v6448, %v6510
    %v6512 = vpop.f32.mrb[0].mxu0
    %v6513 = vadd.f32 %v6450, %v6512
    %6514 = vmatprep.mubr.bf16.mxu0 %v1186
    %6515 = vmatmul.mubr.bf16.gmra.mrb[0].mxu0 %v1185
    %v6516 = vpop.f32.mrb[0].mxu0
    %v6517 = vadd.f32 %v6454, %v6516
    %v6518 = vpop.f32.mrb[0].mxu0
    %v6519 = vadd.f32 %v6456, %v6518
    %v6520 = vpop.f32.mrb[0].mxu0
    %v6521 = vadd.f32 %v6458, %v6520
    %v6522 = vpop.f32.mrb[0].mxu0
    %v6523 = vadd.f32 %v6460, %v6522
    %6524 = vdwg.mxu0
    %6525 = vmatprep.subr.bf16.mxu0 %v4244
    %6526 = vmatpush1.bf16.msra.mxu0 %v4243
    %6527 = vmatprep.subr.bf16.mxu0 %v4252
    %6528 = vmatpush1.bf16.msra.mxu0 %v4251
    %6529 = vmatprep.subr.bf16.mxu0 %v4260
    %6530 = vmatpush1.bf16.msra.mxu0 %v4259
    %6531 = vmatprep.subr.bf16.mxu0 %v4268
    %6532 = vmatpush1.bf16.msra.mxu0 %v4267
    %6533 = vmatprep.subr.bf16.mxu0 %v4276
    %6534 = vmatpush1.bf16.msra.mxu0 %v4275
    %6535 = vmatprep.subr.bf16.mxu0 %v4284
    %6536 = vmatpush1.bf16.msra.mxu0 %v4283
    %6537 = vmatprep.subr.bf16.mxu0 %v4292
    %6538 = vmatpush1.bf16.msra.mxu0 %v4291
    %6539 = vmatprep.subr.bf16.mxu0 %v4300
    %6540 = vmatpush1.bf16.msra.mxu0 %v4299
    %6541 = vmatprep.subr.bf16.mxu0 %v4308
    %6542 = vmatpush1.bf16.msra.mxu0 %v4307
    %6543 = vmatprep.subr.bf16.mxu0 %v4316
    %6544 = vmatpush1.bf16.msra.mxu0 %v4315
    %6545 = vmatprep.subr.bf16.mxu0 %v4324
    %6546 = vmatpush1.bf16.msra.mxu0 %v4323
    %6547 = vmatprep.subr.bf16.mxu0 %v4332
    %6548 = vmatpush1.bf16.msra.mxu0 %v4331
    %6549 = vmatprep.subr.bf16.mxu0 %v4340
    %6550 = vmatpush1.bf16.msra.mxu0 %v4339
    %6551 = vmatprep.subr.bf16.mxu0 %v4348
    %6552 = vmatpush1.bf16.msra.mxu0 %v4347
    %6553 = vmatprep.subr.bf16.mxu0 %v4356
    %6554 = vmatpush1.bf16.msra.mxu0 %v4355
    %6555 = vmatprep.subr.bf16.mxu0 %v4364
    %6556 = vmatpush1.bf16.msra.mxu0 %v4363
    %6557 = vmatprep.mubr.bf16.mxu0 %v1162
    %6558 = vmatmul.mubr.bf16.gmra.mrb[0].mxu0 %v1161
    %v6559 = vpop.f32.mrb[0].mxu0
    %v6560 = vadd.f32 %v6497, %v6559
    %v6561 = vpop.f32.mrb[0].mxu0
    %v6562 = vadd.f32 %v6499, %v6561
    %v6563 = vpop.f32.mrb[0].mxu0
    %v6564 = vadd.f32 %v6501, %v6563
    %v6565 = vpop.f32.mrb[0].mxu0
    %v6566 = vadd.f32 %v6503, %v6565
    %6567 = vmatprep.mubr.bf16.mxu0 %v1175
    %6568 = vmatmul.mubr.bf16.gmra.mrb[0].mxu0 %v1174
    %v6569 = vpop.f32.mrb[0].mxu0
    %v6570 = vadd.f32 %v6507, %v6569
    %v6571 = vpop.f32.mrb[0].mxu0
    %v6572 = vadd.f32 %v6509, %v6571
    %v6573 = vpop.f32.mrb[0].mxu0
    %v6574 = vadd.f32 %v6511, %v6573
    %v6575 = vpop.f32.mrb[0].mxu0
    %v6576 = vadd.f32 %v6513, %v6575
    %6577 = vmatprep.mubr.bf16.mxu0 %v1188
    %6578 = vmatmul.mubr.bf16.gmra.mrb[0].mxu0 %v1187
    %v6579 = vpop.f32.mrb[0].mxu0
    %v6580 = vadd.f32 %v6517, %v6579
    %v6581 = vpop.f32.mrb[0].mxu0
    %v6582 = vadd.f32 %v6519, %v6581
    %v6583 = vpop.f32.mrb[0].mxu0
    %v6584 = vadd.f32 %v6521, %v6583
    %v6585 = vpop.f32.mrb[0].mxu0
    %v6586 = vadd.f32 %v6523, %v6585
    %6587 = vdwg.mxu0
    %6588 = vmatprep.subr.bf16.mxu0 %v4372
    %6589 = vmatpush1.bf16.msra.mxu0 %v4371
    %6590 = vmatprep.subr.bf16.mxu0 %v4380
    %6591 = vmatpush1.bf16.msra.mxu0 %v4379
    %6592 = vmatprep.subr.bf16.mxu0 %v4388
    %6593 = vmatpush1.bf16.msra.mxu0 %v4387
    %6594 = vmatprep.subr.bf16.mxu0 %v4396
    %6595 = vmatpush1.bf16.msra.mxu0 %v4395
    %6596 = vmatprep.subr.bf16.mxu0 %v4404
    %6597 = vmatpush1.bf16.msra.mxu0 %v4403
    %6598 = vmatprep.subr.bf16.mxu0 %v4412
    %6599 = vmatpush1.bf16.msra.mxu0 %v4411
    %6600 = vmatprep.subr.bf16.mxu0 %v4420
    %6601 = vmatpush1.bf16.msra.mxu0 %v4419
    %6602 = vmatprep.subr.bf16.mxu0 %v4428
    %6603 = vmatpush1.bf16.msra.mxu0 %v4427
    %6604 = vmatprep.subr.bf16.mxu0 %v4436
    %6605 = vmatpush1.bf16.msra.mxu0 %v4435
    %6606 = vmatprep.subr.bf16.mxu0 %v4444
    %6607 = vmatpush1.bf16.msra.mxu0 %v4443
    %6608 = vmatprep.subr.bf16.mxu0 %v4452
    %6609 = vmatpush1.bf16.msra.mxu0 %v4451
    %6610 = vmatprep.subr.bf16.mxu0 %v4460
    %6611 = vmatpush1.bf16.msra.mxu0 %v4459
    %6612 = vmatprep.subr.bf16.mxu0 %v4468
    %6613 = vmatpush1.bf16.msra.mxu0 %v4467
    %6614 = vmatprep.subr.bf16.mxu0 %v4476
    %6615 = vmatpush1.bf16.msra.mxu0 %v4475
    %6616 = vmatprep.subr.bf16.mxu0 %v4484
    %6617 = vmatpush1.bf16.msra.mxu0 %v4483
    %6618 = vmatprep.subr.bf16.mxu0 %v4492
    %6619 = vmatpush1.bf16.msra.mxu0 %v4491
    %6620 = vmatprep.mubr.bf16.mxu0 %v1164
    %6621 = vmatmul.mubr.bf16.gmra.mrb[0].mxu0 %v1163
    %v6622 = vpop.f32.mrb[0].mxu0
    %v6623 = vadd.f32 %v6560, %v6622
    %v6624 = vpop.f32.mrb[0].mxu0
    %v6625 = vadd.f32 %v6562, %v6624
    %v6626 = vpop.f32.mrb[0].mxu0
    %v6627 = vadd.f32 %v6564, %v6626
    %v6628 = vpop.f32.mrb[0].mxu0
    %v6629 = vadd.f32 %v6566, %v6628
    %6630 = vmatprep.mubr.bf16.mxu0 %v1177
    %6631 = vmatmul.mubr.bf16.gmra.mrb[0].mxu0 %v1176
    %v6632 = vpop.f32.mrb[0].mxu0
    %v6633 = vadd.f32 %v6570, %v6632
    %v6634 = vpop.f32.mrb[0].mxu0
    %v6635 = vadd.f32 %v6572, %v6634
    %v6636 = vpop.f32.mrb[0].mxu0
    %v6637 = vadd.f32 %v6574, %v6636
    %v6638 = vpop.f32.mrb[0].mxu0
    %v6639 = vadd.f32 %v6576, %v6638
    %6640 = vmatprep.mubr.bf16.mxu0 %v1190
    %6641 = vmatmul.mubr.bf16.gmra.mrb[0].mxu0 %v1189
    %v6642 = vpop.f32.mrb[0].mxu0
    %v6643 = vadd.f32 %v6580, %v6642
    %v6644 = vpop.f32.mrb[0].mxu0
    %v6645 = vadd.f32 %v6582, %v6644
    %v6646 = vpop.f32.mrb[0].mxu0
    %v6647 = vadd.f32 %v6584, %v6646
    %v6648 = vpop.f32.mrb[0].mxu0
    %v6649 = vadd.f32 %v6586, %v6648
    %6650 = vdwg.mxu0
    %6651 = vmatprep.subr.bf16.mxu0 %v4500
    %6652 = vmatpush1.bf16.msra.mxu0 %v4499
    %6653 = vmatprep.subr.bf16.mxu0 %v4508
    %6654 = vmatpush1.bf16.msra.mxu0 %v4507
    %6655 = vmatprep.subr.bf16.mxu0 %v4516
    %6656 = vmatpush1.bf16.msra.mxu0 %v4515
    %6657 = vmatprep.subr.bf16.mxu0 %v4524
    %6658 = vmatpush1.bf16.msra.mxu0 %v4523
    %6659 = vmatprep.subr.bf16.mxu0 %v4532
    %6660 = vmatpush1.bf16.msra.mxu0 %v4531
    %6661 = vmatprep.subr.bf16.mxu0 %v4540
    %6662 = vmatpush1.bf16.msra.mxu0 %v4539
    %6663 = vmatprep.subr.bf16.mxu0 %v4548
    %6664 = vmatpush1.bf16.msra.mxu0 %v4547
    %6665 = vmatprep.subr.bf16.mxu0 %v4556
    %6666 = vmatpush1.bf16.msra.mxu0 %v4555
    %6667 = vmatprep.subr.bf16.mxu0 0
    %6668 = vmatpush1.bf16.msra.mxu0 0
    %6669 = vmatprep.subr.bf16.mxu0 0
    %6670 = vmatpush1.bf16.msra.mxu0 0
    %6671 = vmatprep.subr.bf16.mxu0 0
    %6672 = vmatpush1.bf16.msra.mxu0 0
    %6673 = vmatprep.subr.bf16.mxu0 0
    %6674 = vmatpush1.bf16.msra.mxu0 0
    %6675 = vmatprep.subr.bf16.mxu0 0
    %6676 = vmatpush1.bf16.msra.mxu0 0
    %6677 = vmatprep.subr.bf16.mxu0 0
    %6678 = vmatpush1.bf16.msra.mxu0 0
    %6679 = vmatprep.subr.bf16.mxu0 0
    %6680 = vmatpush1.bf16.msra.mxu0 0
    %6681 = vmatprep.subr.bf16.mxu0 0
    %6682 = vmatpush1.bf16.msra.mxu0 0
    %6683 = vmatprep.mubr.bf16.mxu0 0
    %6684 = vmatmul.mubr.bf16.gmra.mrb[0].mxu0 %v1165
    %v6685 = vpop.f32.mrb[0].mxu0
    %v6686 = vadd.f32 %v6623, %v6685
    %v6687 = vpop.f32.mrb[0].mxu0
    %v6688 = vadd.f32 %v6625, %v6687
    %v6689 = vpop.f32.mrb[0].mxu0
    %v6690 = vadd.f32 %v6627, %v6689
    %v6691 = vpop.f32.mrb[0].mxu0
    %v6692 = vadd.f32 %v6629, %v6691
    %6693 = vmatprep.mubr.bf16.mxu0 0
    %6694 = vmatmul.mubr.bf16.gmra.mrb[0].mxu0 %v1178
    %v6695 = vpop.f32.mrb[0].mxu0
    %v6696 = vadd.f32 %v6633, %v6695
    %v6697 = vpop.f32.mrb[0].mxu0
    %v6698 = vadd.f32 %v6635, %v6697
    %v6699 = vpop.f32.mrb[0].mxu0
    %v6700 = vadd.f32 %v6637, %v6699
    %v6701 = vpop.f32.mrb[0].mxu0
    %v6702 = vadd.f32 %v6639, %v6701
    %6703 = vmatprep.mubr.bf16.mxu0 0
    %6704 = vmatmul.mubr.bf16.gmra.mrb[0].mxu0 %v1191
    %v6705 = vpop.f32.mrb[0].mxu0
    %v6706 = vadd.f32 %v6643, %v6705
    %v6707 = vpop.f32.mrb[0].mxu0
    %v6708 = vadd.f32 %v6645, %v6707
    %v6709 = vpop.f32.mrb[0].mxu0
    %v6710 = vadd.f32 %v6647, %v6709
    %v6711 = vpop.f32.mrb[0].mxu0
    %v6712 = vadd.f32 %v6649, %v6711
    %6713 = vdwg.mxu0
    %6714 = vmatprep.subr.bf16.mxu0 %v3734
    %6715 = vmatpush1.bf16.msra.mxu0 %v3733
    %6716 = vmatprep.subr.bf16.mxu0 %v3742
    %6717 = vmatpush1.bf16.msra.mxu0 %v3741
    %6718 = vmatprep.subr.bf16.mxu0 %v3750
    %6719 = vmatpush1.bf16.msra.mxu0 %v3749
    %6720 = vmatprep.subr.bf16.mxu0 %v3758
    %6721 = vmatpush1.bf16.msra.mxu0 %v3757
    %6722 = vmatprep.subr.bf16.mxu0 %v3766
    %6723 = vmatpush1.bf16.msra.mxu0 %v3765
    %6724 = vmatprep.subr.bf16.mxu0 %v3774
    %6725 = vmatpush1.bf16.msra.mxu0 %v3773
    %6726 = vmatprep.subr.bf16.mxu0 %v3782
    %6727 = vmatpush1.bf16.msra.mxu0 %v3781
    %6728 = vmatprep.subr.bf16.mxu0 %v3790
    %6729 = vmatpush1.bf16.msra.mxu0 %v3789
    %6730 = vmatprep.subr.bf16.mxu0 %v3798
    %6731 = vmatpush1.bf16.msra.mxu0 %v3797
    %6732 = vmatprep.subr.bf16.mxu0 %v3806
    %6733 = vmatpush1.bf16.msra.mxu0 %v3805
    %6734 = vmatprep.subr.bf16.mxu0 %v3814
    %6735 = vmatpush1.bf16.msra.mxu0 %v3813
    %6736 = vmatprep.subr.bf16.mxu0 %v3822
    %6737 = vmatpush1.bf16.msra.mxu0 %v3821
    %6738 = vmatprep.subr.bf16.mxu0 %v3830
    %6739 = vmatpush1.bf16.msra.mxu0 %v3829
    %6740 = vmatprep.subr.bf16.mxu0 %v3838
    %6741 = vmatpush1.bf16.msra.mxu0 %v3837
    %6742 = vmatprep.subr.bf16.mxu0 %v3846
    %6743 = vmatpush1.bf16.msra.mxu0 %v3845
    %6744 = vmatprep.subr.bf16.mxu0 %v3854
    %6745 = vmatpush1.bf16.msra.mxu0 %v3853
    %6746 = vmatprep.mubr.bf16.mxu0 %v1154
    %6747 = vmatmul.mubr.bf16.gmra.mrb[0].mxu0 %v1153
    %v6748 = vpop.f32.mrb[0].mxu0
    %v6749 = vadd.f32 %v1020, %v6748
    %v6750 = vpop.f32.mrb[0].mxu0
    %v6751 = vadd.f32 %v1024, %v6750
    %v6752 = vpop.f32.mrb[0].mxu0
    %v6753 = vadd.f32 %v1020, %v6752
    %v6754 = vpop.f32.mrb[0].mxu0
    %v6755 = vadd.f32 %v1024, %v6754
    %6756 = vmatprep.mubr.bf16.mxu0 %v1167
    %6757 = vmatmul.mubr.bf16.gmra.mrb[0].mxu0 %v1166
    %v6758 = vpop.f32.mrb[0].mxu0
    %v6759 = vadd.f32 %v1020, %v6758
    %v6760 = vpop.f32.mrb[0].mxu0
    %v6761 = vadd.f32 %v1024, %v6760
    %v6762 = vpop.f32.mrb[0].mxu0
    %v6763 = vadd.f32 %v1020, %v6762
    %v6764 = vpop.f32.mrb[0].mxu0
    %v6765 = vadd.f32 %v1024, %v6764
    %6766 = vmatprep.mubr.bf16.mxu0 %v1180
    %6767 = vmatmul.mubr.bf16.gmra.mrb[0].mxu0 %v1179
    %v6768 = vpop.f32.mrb[0].mxu0
    %v6769 = vadd.f32 %v1020, %v6768
    %v6770 = vpop.f32.mrb[0].mxu0
    %v6771 = vadd.f32 %v1024, %v6770
    %v6772 = vpop.f32.mrb[0].mxu0
    %v6773 = vadd.f32 %v1020, %v6772
    %v6774 = vpop.f32.mrb[0].mxu0
    %v6775 = vadd.f32 %v1024, %v6774
    %6776 = vdwg.mxu0
    %6777 = vmatprep.subr.bf16.mxu0 %v3862
    %6778 = vmatpush1.bf16.msra.mxu0 %v3861
    %6779 = vmatprep.subr.bf16.mxu0 %v3870
    %6780 = vmatpush1.bf16.msra.mxu0 %v3869
    %6781 = vmatprep.subr.bf16.mxu0 %v3878
    %6782 = vmatpush1.bf16.msra.mxu0 %v3877
    %6783 = vmatprep.subr.bf16.mxu0 %v3886
    %6784 = vmatpush1.bf16.msra.mxu0 %v3885
    %6785 = vmatprep.subr.bf16.mxu0 %v3894
    %6786 = vmatpush1.bf16.msra.mxu0 %v3893
    %6787 = vmatprep.subr.bf16.mxu0 %v3902
    %6788 = vmatpush1.bf16.msra.mxu0 %v3901
    %6789 = vmatprep.subr.bf16.mxu0 %v3910
    %6790 = vmatpush1.bf16.msra.mxu0 %v3909
    %6791 = vmatprep.subr.bf16.mxu0 %v3918
    %6792 = vmatpush1.bf16.msra.mxu0 %v3917
    %6793 = vmatprep.subr.bf16.mxu0 %v3926
    %6794 = vmatpush1.bf16.msra.mxu0 %v3925
    %6795 = vmatprep.subr.bf16.mxu0 %v3934
    %6796 = vmatpush1.bf16.msra.mxu0 %v3933
    %6797 = vmatprep.subr.bf16.mxu0 %v3942
    %6798 = vmatpush1.bf16.msra.mxu0 %v3941
    %6799 = vmatprep.subr.bf16.mxu0 %v3950
    %6800 = vmatpush1.bf16.msra.mxu0 %v3949
    %6801 = vmatprep.subr.bf16.mxu0 %v3958
    %6802 = vmatpush1.bf16.msra.mxu0 %v3957
    %6803 = vmatprep.subr.bf16.mxu0 %v3966
    %6804 = vmatpush1.bf16.msra.mxu0 %v3965
    %6805 = vmatprep.subr.bf16.mxu0 %v3974
    %6806 = vmatpush1.bf16.msra.mxu0 %v3973
    %6807 = vmatprep.subr.bf16.mxu0 %v3982
    %6808 = vmatpush1.bf16.msra.mxu0 %v3981
    %6809 = vmatprep.mubr.bf16.mxu0 %v1156
    %6810 = vmatmul.mubr.bf16.gmra.mrb[0].mxu0 %v1155
    %v6811 = vpop.f32.mrb[0].mxu0
    %v6812 = vadd.f32 %v6749, %v6811
    %v6813 = vpop.f32.mrb[0].mxu0
    %v6814 = vadd.f32 %v6751, %v6813
    %v6815 = vpop.f32.mrb[0].mxu0
    %v6816 = vadd.f32 %v6753, %v6815
    %v6817 = vpop.f32.mrb[0].mxu0
    %v6818 = vadd.f32 %v6755, %v6817
    %6819 = vmatprep.mubr.bf16.mxu0 %v1169
    %6820 = vmatmul.mubr.bf16.gmra.mrb[0].mxu0 %v1168
    %v6821 = vpop.f32.mrb[0].mxu0
    %v6822 = vadd.f32 %v6759, %v6821
    %v6823 = vpop.f32.mrb[0].mxu0
    %v6824 = vadd.f32 %v6761, %v6823
    %v6825 = vpop.f32.mrb[0].mxu0
    %v6826 = vadd.f32 %v6763, %v6825
    %v6827 = vpop.f32.mrb[0].mxu0
    %v6828 = vadd.f32 %v6765, %v6827
    %6829 = vmatprep.mubr.bf16.mxu0 %v1182
    %6830 = vmatmul.mubr.bf16.gmra.mrb[0].mxu0 %v1181
    %v6831 = vpop.f32.mrb[0].mxu0
    %v6832 = vadd.f32 %v6769, %v6831
    %v6833 = vpop.f32.mrb[0].mxu0
    %v6834 = vadd.f32 %v6771, %v6833
    %v6835 = vpop.f32.mrb[0].mxu0
    %v6836 = vadd.f32 %v6773, %v6835
    %v6837 = vpop.f32.mrb[0].mxu0
    %v6838 = vadd.f32 %v6775, %v6837
    %6839 = vdwg.mxu0
    %6840 = vmatprep.subr.bf16.mxu0 %v3990
    %6841 = vmatpush1.bf16.msra.mxu0 %v3989
    %6842 = vmatprep.subr.bf16.mxu0 %v3998
    %6843 = vmatpush1.bf16.msra.mxu0 %v3997
    %6844 = vmatprep.subr.bf16.mxu0 %v4006
    %6845 = vmatpush1.bf16.msra.mxu0 %v4005
    %6846 = vmatprep.subr.bf16.mxu0 %v4014
    %6847 = vmatpush1.bf16.msra.mxu0 %v4013
    %6848 = vmatprep.subr.bf16.mxu0 %v4022
    %6849 = vmatpush1.bf16.msra.mxu0 %v4021
    %6850 = vmatprep.subr.bf16.mxu0 %v4030
    %6851 = vmatpush1.bf16.msra.mxu0 %v4029
    %6852 = vmatprep.subr.bf16.mxu0 %v4038
    %6853 = vmatpush1.bf16.msra.mxu0 %v4037
    %6854 = vmatprep.subr.bf16.mxu0 %v4046
    %6855 = vmatpush1.bf16.msra.mxu0 %v4045
    %6856 = vmatprep.subr.bf16.mxu0 %v4054
    %6857 = vmatpush1.bf16.msra.mxu0 %v4053
    %6858 = vmatprep.subr.bf16.mxu0 %v4062
    %6859 = vmatpush1.bf16.msra.mxu0 %v4061
    %6860 = vmatprep.subr.bf16.mxu0 %v4070
    %6861 = vmatpush1.bf16.msra.mxu0 %v4069
    %6862 = vmatprep.subr.bf16.mxu0 %v4078
    %6863 = vmatpush1.bf16.msra.mxu0 %v4077
    %6864 = vmatprep.subr.bf16.mxu0 %v4086
    %6865 = vmatpush1.bf16.msra.mxu0 %v4085
    %6866 = vmatprep.subr.bf16.mxu0 %v4094
    %6867 = vmatpush1.bf16.msra.mxu0 %v4093
    %6868 = vmatprep.subr.bf16.mxu0 %v4102
    %6869 = vmatpush1.bf16.msra.mxu0 %v4101
    %6870 = vmatprep.subr.bf16.mxu0 %v4110
    %6871 = vmatpush1.bf16.msra.mxu0 %v4109
    %6872 = vmatprep.mubr.bf16.mxu0 %v1158
    %6873 = vmatmul.mubr.bf16.gmra.mrb[0].mxu0 %v1157
    %v6874 = vpop.f32.mrb[0].mxu0
    %v6875 = vadd.f32 %v6812, %v6874
    %v6876 = vpop.f32.mrb[0].mxu0
    %v6877 = vadd.f32 %v6814, %v6876
    %v6878 = vpop.f32.mrb[0].mxu0
    %v6879 = vadd.f32 %v6816, %v6878
    %v6880 = vpop.f32.mrb[0].mxu0
    %v6881 = vadd.f32 %v6818, %v6880
    %6882 = vmatprep.mubr.bf16.mxu0 %v1171
    %6883 = vmatmul.mubr.bf16.gmra.mrb[0].mxu0 %v1170
    %v6884 = vpop.f32.mrb[0].mxu0
    %v6885 = vadd.f32 %v6822, %v6884
    %v6886 = vpop.f32.mrb[0].mxu0
    %v6887 = vadd.f32 %v6824, %v6886
    %v6888 = vpop.f32.mrb[0].mxu0
    %v6889 = vadd.f32 %v6826, %v6888
    %v6890 = vpop.f32.mrb[0].mxu0
    %v6891 = vadd.f32 %v6828, %v6890
    %6892 = vmatprep.mubr.bf16.mxu0 %v1184
    %6893 = vmatmul.mubr.bf16.gmra.mrb[0].mxu0 %v1183
    %v6894 = vpop.f32.mrb[0].mxu0
    %v6895 = vadd.f32 %v6832, %v6894
    %v6896 = vpop.f32.mrb[0].mxu0
    %v6897 = vadd.f32 %v6834, %v6896
    %v6898 = vpop.f32.mrb[0].mxu0
    %v6899 = vadd.f32 %v6836, %v6898
    %v6900 = vpop.f32.mrb[0].mxu0
    %v6901 = vadd.f32 %v6838, %v6900
    %6902 = vdwg.mxu0
    %6903 = vmatprep.subr.bf16.mxu0 %v4118
    %6904 = vmatpush1.bf16.msra.mxu0 %v4117
    %6905 = vmatprep.subr.bf16.mxu0 %v4126
    %6906 = vmatpush1.bf16.msra.mxu0 %v4125
    %6907 = vmatprep.subr.bf16.mxu0 %v4134
    %6908 = vmatpush1.bf16.msra.mxu0 %v4133
    %6909 = vmatprep.subr.bf16.mxu0 %v4142
    %6910 = vmatpush1.bf16.msra.mxu0 %v4141
    %6911 = vmatprep.subr.bf16.mxu0 %v4150
    %6912 = vmatpush1.bf16.msra.mxu0 %v4149
    %6913 = vmatprep.subr.bf16.mxu0 %v4158
    %6914 = vmatpush1.bf16.msra.mxu0 %v4157
    %6915 = vmatprep.subr.bf16.mxu0 %v4166
    %6916 = vmatpush1.bf16.msra.mxu0 %v4165
    %6917 = vmatprep.subr.bf16.mxu0 %v4174
    %6918 = vmatpush1.bf16.msra.mxu0 %v4173
    %6919 = vmatprep.subr.bf16.mxu0 %v4182
    %6920 = vmatpush1.bf16.msra.mxu0 %v4181
    %6921 = vmatprep.subr.bf16.mxu0 %v4190
    %6922 = vmatpush1.bf16.msra.mxu0 %v4189
    %6923 = vmatprep.subr.bf16.mxu0 %v4198
    %6924 = vmatpush1.bf16.msra.mxu0 %v4197
    %6925 = vmatprep.subr.bf16.mxu0 %v4206
    %6926 = vmatpush1.bf16.msra.mxu0 %v4205
    %6927 = vmatprep.subr.bf16.mxu0 %v4214
    %6928 = vmatpush1.bf16.msra.mxu0 %v4213
    %6929 = vmatprep.subr.bf16.mxu0 %v4222
    %6930 = vmatpush1.bf16.msra.mxu0 %v4221
    %6931 = vmatprep.subr.bf16.mxu0 %v4230
    %6932 = vmatpush1.bf16.msra.mxu0 %v4229
    %6933 = vmatprep.subr.bf16.mxu0 %v4238
    %6934 = vmatpush1.bf16.msra.mxu0 %v4237
    %6935 = vmatprep.mubr.bf16.mxu0 %v1160
    %6936 = vmatmul.mubr.bf16.gmra.mrb[0].mxu0 %v1159
    %v6937 = vpop.f32.mrb[0].mxu0
    %v6938 = vadd.f32 %v6875, %v6937
    %v6939 = vpop.f32.mrb[0].mxu0
    %v6940 = vadd.f32 %v6877, %v6939
    %v6941 = vpop.f32.mrb[0].mxu0
    %v6942 = vadd.f32 %v6879, %v6941
    %v6943 = vpop.f32.mrb[0].mxu0
    %v6944 = vadd.f32 %v6881, %v6943
    %6945 = vmatprep.mubr.bf16.mxu0 %v1173
    %6946 = vmatmul.mubr.bf16.gmra.mrb[0].mxu0 %v1172
    %v6947 = vpop.f32.mrb[0].mxu0
    %v6948 = vadd.f32 %v6885, %v6947
    %v6949 = vpop.f32.mrb[0].mxu0
    %v6950 = vadd.f32 %v6887, %v6949
    %v6951 = vpop.f32.mrb[0].mxu0
    %v6952 = vadd.f32 %v6889, %v6951
    %v6953 = vpop.f32.mrb[0].mxu0
    %v6954 = vadd.f32 %v6891, %v6953
    %6955 = vmatprep.mubr.bf16.mxu0 %v1186
    %6956 = vmatmul.mubr.bf16.gmra.mrb[0].mxu0 %v1185
    %v6957 = vpop.f32.mrb[0].mxu0
    %v6958 = vadd.f32 %v6895, %v6957
    %v6959 = vpop.f32.mrb[0].mxu0
    %v6960 = vadd.f32 %v6897, %v6959
    %v6961 = vpop.f32.mrb[0].mxu0
    %v6962 = vadd.f32 %v6899, %v6961
    %v6963 = vpop.f32.mrb[0].mxu0
    %v6964 = vadd.f32 %v6901, %v6963
    %6965 = vdwg.mxu0
    %6966 = vmatprep.subr.bf16.mxu0 %v4246
    %6967 = vmatpush1.bf16.msra.mxu0 %v4245
    %6968 = vmatprep.subr.bf16.mxu0 %v4254
    %6969 = vmatpush1.bf16.msra.mxu0 %v4253
    %6970 = vmatprep.subr.bf16.mxu0 %v4262
    %6971 = vmatpush1.bf16.msra.mxu0 %v4261
    %6972 = vmatprep.subr.bf16.mxu0 %v4270
    %6973 = vmatpush1.bf16.msra.mxu0 %v4269
    %6974 = vmatprep.subr.bf16.mxu0 %v4278
    %6975 = vmatpush1.bf16.msra.mxu0 %v4277
    %6976 = vmatprep.subr.bf16.mxu0 %v4286
    %6977 = vmatpush1.bf16.msra.mxu0 %v4285
    %6978 = vmatprep.subr.bf16.mxu0 %v4294
    %6979 = vmatpush1.bf16.msra.mxu0 %v4293
    %6980 = vmatprep.subr.bf16.mxu0 %v4302
    %6981 = vmatpush1.bf16.msra.mxu0 %v4301
    %6982 = vmatprep.subr.bf16.mxu0 %v4310
    %6983 = vmatpush1.bf16.msra.mxu0 %v4309
    %6984 = vmatprep.subr.bf16.mxu0 %v4318
    %6985 = vmatpush1.bf16.msra.mxu0 %v4317
    %6986 = vmatprep.subr.bf16.mxu0 %v4326
    %6987 = vmatpush1.bf16.msra.mxu0 %v4325
    %6988 = vmatprep.subr.bf16.mxu0 %v4334
    %6989 = vmatpush1.bf16.msra.mxu0 %v4333
    %6990 = vmatprep.subr.bf16.mxu0 %v4342
    %6991 = vmatpush1.bf16.msra.mxu0 %v4341
    %6992 = vmatprep.subr.bf16.mxu0 %v4350
    %6993 = vmatpush1.bf16.msra.mxu0 %v4349
    %6994 = vmatprep.subr.bf16.mxu0 %v4358
    %6995 = vmatpush1.bf16.msra.mxu0 %v4357
    %6996 = vmatprep.subr.bf16.mxu0 %v4366
    %6997 = vmatpush1.bf16.msra.mxu0 %v4365
    %6998 = vmatprep.mubr.bf16.mxu0 %v1162
    %6999 = vmatmul.mubr.bf16.gmra.mrb[0].mxu0 %v1161
    %v7000 = vpop.f32.mrb[0].mxu0
    %v7001 = vadd.f32 %v6938, %v7000
    %v7002 = vpop.f32.mrb[0].mxu0
    %v7003 = vadd.f32 %v6940, %v7002
    %v7004 = vpop.f32.mrb[0].mxu0
    %v7005 = vadd.f32 %v6942, %v7004
    %v7006 = vpop.f32.mrb[0].mxu0
    %v7007 = vadd.f32 %v6944, %v7006
    %7008 = vmatprep.mubr.bf16.mxu0 %v1175
    %7009 = vmatmul.mubr.bf16.gmra.mrb[0].mxu0 %v1174
    %v7010 = vpop.f32.mrb[0].mxu0
    %v7011 = vadd.f32 %v6948, %v7010
    %v7012 = vpop.f32.mrb[0].mxu0
    %v7013 = vadd.f32 %v6950, %v7012
    %v7014 = vpop.f32.mrb[0].mxu0
    %v7015 = vadd.f32 %v6952, %v7014
    %v7016 = vpop.f32.mrb[0].mxu0
    %v7017 = vadd.f32 %v6954, %v7016
    %7018 = vmatprep.mubr.bf16.mxu0 %v1188
    %7019 = vmatmul.mubr.bf16.gmra.mrb[0].mxu0 %v1187
    %v7020 = vpop.f32.mrb[0].mxu0
    %v7021 = vadd.f32 %v6958, %v7020
    %v7022 = vpop.f32.mrb[0].mxu0
    %v7023 = vadd.f32 %v6960, %v7022
    %v7024 = vpop.f32.mrb[0].mxu0
    %v7025 = vadd.f32 %v6962, %v7024
    %v7026 = vpop.f32.mrb[0].mxu0
    %v7027 = vadd.f32 %v6964, %v7026
    %7028 = vdwg.mxu0
    %7029 = vmatprep.subr.bf16.mxu0 %v4374
    %7030 = vmatpush1.bf16.msra.mxu0 %v4373
    %7031 = vmatprep.subr.bf16.mxu0 %v4382
    %7032 = vmatpush1.bf16.msra.mxu0 %v4381
    %7033 = vmatprep.subr.bf16.mxu0 %v4390
    %7034 = vmatpush1.bf16.msra.mxu0 %v4389
    %7035 = vmatprep.subr.bf16.mxu0 %v4398
    %7036 = vmatpush1.bf16.msra.mxu0 %v4397
    %7037 = vmatprep.subr.bf16.mxu0 %v4406
    %7038 = vmatpush1.bf16.msra.mxu0 %v4405
    %7039 = vmatprep.subr.bf16.mxu0 %v4414
    %7040 = vmatpush1.bf16.msra.mxu0 %v4413
    %7041 = vmatprep.subr.bf16.mxu0 %v4422
    %7042 = vmatpush1.bf16.msra.mxu0 %v4421
    %7043 = vmatprep.subr.bf16.mxu0 %v4430
    %7044 = vmatpush1.bf16.msra.mxu0 %v4429
    %7045 = vmatprep.subr.bf16.mxu0 %v4438
    %7046 = vmatpush1.bf16.msra.mxu0 %v4437
    %7047 = vmatprep.subr.bf16.mxu0 %v4446
    %7048 = vmatpush1.bf16.msra.mxu0 %v4445
    %7049 = vmatprep.subr.bf16.mxu0 %v4454
    %7050 = vmatpush1.bf16.msra.mxu0 %v4453
    %7051 = vmatprep.subr.bf16.mxu0 %v4462
    %7052 = vmatpush1.bf16.msra.mxu0 %v4461
    %7053 = vmatprep.subr.bf16.mxu0 %v4470
    %7054 = vmatpush1.bf16.msra.mxu0 %v4469
    %7055 = vmatprep.subr.bf16.mxu0 %v4478
    %7056 = vmatpush1.bf16.msra.mxu0 %v4477
    %7057 = vmatprep.subr.bf16.mxu0 %v4486
    %7058 = vmatpush1.bf16.msra.mxu0 %v4485
    %7059 = vmatprep.subr.bf16.mxu0 %v4494
    %7060 = vmatpush1.bf16.msra.mxu0 %v4493
    %7061 = vmatprep.mubr.bf16.mxu0 %v1164
    %7062 = vmatmul.mubr.bf16.gmra.mrb[0].mxu0 %v1163
    %v7063 = vpop.f32.mrb[0].mxu0
    %v7064 = vadd.f32 %v7001, %v7063
    %v7065 = vpop.f32.mrb[0].mxu0
    %v7066 = vadd.f32 %v7003, %v7065
    %v7067 = vpop.f32.mrb[0].mxu0
    %v7068 = vadd.f32 %v7005, %v7067
    %v7069 = vpop.f32.mrb[0].mxu0
    %v7070 = vadd.f32 %v7007, %v7069
    %7071 = vmatprep.mubr.bf16.mxu0 %v1177
    %7072 = vmatmul.mubr.bf16.gmra.mrb[0].mxu0 %v1176
    %v7073 = vpop.f32.mrb[0].mxu0
    %v7074 = vadd.f32 %v7011, %v7073
    %v7075 = vpop.f32.mrb[0].mxu0
    %v7076 = vadd.f32 %v7013, %v7075
    %v7077 = vpop.f32.mrb[0].mxu0
    %v7078 = vadd.f32 %v7015, %v7077
    %v7079 = vpop.f32.mrb[0].mxu0
    %v7080 = vadd.f32 %v7017, %v7079
    %7081 = vmatprep.mubr.bf16.mxu0 %v1190
    %7082 = vmatmul.mubr.bf16.gmra.mrb[0].mxu0 %v1189
    %v7083 = vpop.f32.mrb[0].mxu0
    %v7084 = vadd.f32 %v7021, %v7083
    %v7085 = vpop.f32.mrb[0].mxu0
    %v7086 = vadd.f32 %v7023, %v7085
    %v7087 = vpop.f32.mrb[0].mxu0
    %v7088 = vadd.f32 %v7025, %v7087
    %v7089 = vpop.f32.mrb[0].mxu0
    %v7090 = vadd.f32 %v7027, %v7089
    %7091 = vdwg.mxu0
    %7092 = vmatprep.subr.bf16.mxu0 %v4502
    %7093 = vmatpush1.bf16.msra.mxu0 %v4501
    %7094 = vmatprep.subr.bf16.mxu0 %v4510
    %7095 = vmatpush1.bf16.msra.mxu0 %v4509
    %7096 = vmatprep.subr.bf16.mxu0 %v4518
    %7097 = vmatpush1.bf16.msra.mxu0 %v4517
    %7098 = vmatprep.subr.bf16.mxu0 %v4526
    %7099 = vmatpush1.bf16.msra.mxu0 %v4525
    %7100 = vmatprep.subr.bf16.mxu0 %v4534
    %7101 = vmatpush1.bf16.msra.mxu0 %v4533
    %7102 = vmatprep.subr.bf16.mxu0 %v4542
    %7103 = vmatpush1.bf16.msra.mxu0 %v4541
    %7104 = vmatprep.subr.bf16.mxu0 %v4550
    %7105 = vmatpush1.bf16.msra.mxu0 %v4549
    %7106 = vmatprep.subr.bf16.mxu0 %v4558
    %7107 = vmatpush1.bf16.msra.mxu0 %v4557
    %7108 = vmatprep.subr.bf16.mxu0 0
    %7109 = vmatpush1.bf16.msra.mxu0 0
    %7110 = vmatprep.subr.bf16.mxu0 0
    %7111 = vmatpush1.bf16.msra.mxu0 0
    %7112 = vmatprep.subr.bf16.mxu0 0
    %7113 = vmatpush1.bf16.msra.mxu0 0
    %7114 = vmatprep.subr.bf16.mxu0 0
    %7115 = vmatpush1.bf16.msra.mxu0 0
    %7116 = vmatprep.subr.bf16.mxu0 0
    %7117 = vmatpush1.bf16.msra.mxu0 0
    %7118 = vmatprep.subr.bf16.mxu0 0
    %7119 = vmatpush1.bf16.msra.mxu0 0
    %7120 = vmatprep.subr.bf16.mxu0 0
    %7121 = vmatpush1.bf16.msra.mxu0 0
    %7122 = vmatprep.subr.bf16.mxu0 0
    %7123 = vmatpush1.bf16.msra.mxu0 0
    %7124 = vmatprep.mubr.bf16.mxu0 0
    %7125 = vmatmul.mubr.bf16.gmra.mrb[0].mxu0 %v1165
    %v7126 = vpop.f32.mrb[0].mxu0
    %v7127 = vadd.f32 %v7064, %v7126
    %v7128 = vpop.f32.mrb[0].mxu0
    %v7129 = vadd.f32 %v7066, %v7128
    %v7130 = vpop.f32.mrb[0].mxu0
    %v7131 = vadd.f32 %v7068, %v7130
    %v7132 = vpop.f32.mrb[0].mxu0
    %v7133 = vadd.f32 %v7070, %v7132
    %7134 = vmatprep.mubr.bf16.mxu0 0
    %7135 = vmatmul.mubr.bf16.gmra.mrb[0].mxu0 %v1178
    %v7136 = vpop.f32.mrb[0].mxu0
    %v7137 = vadd.f32 %v7074, %v7136
    %v7138 = vpop.f32.mrb[0].mxu0
    %v7139 = vadd.f32 %v7076, %v7138
    %v7140 = vpop.f32.mrb[0].mxu0
    %v7141 = vadd.f32 %v7078, %v7140
    %v7142 = vpop.f32.mrb[0].mxu0
    %v7143 = vadd.f32 %v7080, %v7142
    %7144 = vmatprep.mubr.bf16.mxu0 0
    %7145 = vmatmul.mubr.bf16.gmra.mrb[0].mxu0 %v1191
    %v7146 = vpop.f32.mrb[0].mxu0
    %v7147 = vadd.f32 %v7084, %v7146
    %v7148 = vpop.f32.mrb[0].mxu0
    %v7149 = vadd.f32 %v7086, %v7148
    %v7150 = vpop.f32.mrb[0].mxu0
    %v7151 = vadd.f32 %v7088, %v7150
    %v7152 = vpop.f32.mrb[0].mxu0
    %v7153 = vadd.f32 %v7090, %v7152
    %7154 = vdwg.mxu0
    %v7155 = vmax.f32 %v5804, 0.0
    %v7156 = vmax.f32 %v5806, 0.0
    %v7157 = vmax.f32 %v6245, 0.0
    %v7158 = vmax.f32 %v6247, 0.0
    %v7159 = vmax.f32 %v6686, 0.0
    %v7160 = vmax.f32 %v6688, 0.0
    %v7161 = vmax.f32 %v7127, 0.0
    %v7162 = vmax.f32 %v7129, 0.0
    %v7163 = vmax.f32 %v5808, 0.0
    %v7164 = vmax.f32 %v5810, 0.0
    %v7165 = vmax.f32 %v6249, 0.0
    %v7166 = vmax.f32 %v6251, 0.0
    %v7167 = vmax.f32 %v6690, 0.0
    %v7168 = vmax.f32 %v6692, 0.0
    %v7169 = vmax.f32 %v7131, 0.0
    %v7170 = vmax.f32 %v7133, 0.0
    %v7171 = vmax.f32 %v5814, 0.0
    %v7172 = vmax.f32 %v5816, 0.0
    %v7173 = vmax.f32 %v6255, 0.0
    %v7174 = vmax.f32 %v6257, 0.0
    %v7175 = vmax.f32 %v6696, 0.0
    %v7176 = vmax.f32 %v6698, 0.0
    %v7177 = vmax.f32 %v7137, 0.0
    %v7178 = vmax.f32 %v7139, 0.0
    %v7179 = vmax.f32 %v5818, 0.0
    %v7180 = vmax.f32 %v5820, 0.0
    %v7181 = vmax.f32 %v6259, 0.0
    %v7182 = vmax.f32 %v6261, 0.0
    %v7183 = vmax.f32 %v6700, 0.0
    %v7184 = vmax.f32 %v6702, 0.0
    %v7185 = vmax.f32 %v7141, 0.0
    %v7186 = vmax.f32 %v7143, 0.0
    %v7187 = vmax.f32 %v5824, 0.0
    %v7188 = vmax.f32 %v5826, 0.0
    %v7189 = vmax.f32 %v6265, 0.0
    %v7190 = vmax.f32 %v6267, 0.0
    %v7191 = vmax.f32 %v6706, 0.0
    %v7192 = vmax.f32 %v6708, 0.0
    %v7193 = vmax.f32 %v7147, 0.0
    %v7194 = vmax.f32 %v7149, 0.0
    %v7195 = vmax.f32 %v5828, 0.0
    %v7196 = vmax.f32 %v5830, 0.0
    %v7197 = vmax.f32 %v6269, 0.0
    %v7198 = vmax.f32 %v6271, 0.0
    %v7199 = vmax.f32 %v6710, 0.0
    %v7200 = vmax.f32 %v6712, 0.0
    %v7201 = vmax.f32 %v7151, 0.0
    %v7202 = vmax.f32 %v7153, 0.0
    %v7203 = vpack.c.bf16 %v7163, %v7155
    %v7204 = vpack.c.bf16 %v7164, %v7156
    %v7205 = vpack.c.bf16 %v7165, %v7157
    %v7206 = vpack.c.bf16 %v7166, %v7158
    %v7207 = vpack.c.bf16 %v7167, %v7159
    %v7208 = vpack.c.bf16 %v7168, %v7160
    %v7209 = vpack.c.bf16 %v7169, %v7161
    %v7210 = vpack.c.bf16 %v7170, %v7162
    %v7211 = vpack.c.bf16 %v7179, %v7171
    %v7212 = vpack.c.bf16 %v7180, %v7172
    %v7213 = vpack.c.bf16 %v7181, %v7173
    %v7214 = vpack.c.bf16 %v7182, %v7174
    %v7215 = vpack.c.bf16 %v7183, %v7175
    %v7216 = vpack.c.bf16 %v7184, %v7176
    %v7217 = vpack.c.bf16 %v7185, %v7177
    %v7218 = vpack.c.bf16 %v7186, %v7178
    %v7219 = vpack.c.bf16 %v7195, %v7187
    %v7220 = vpack.c.bf16 %v7196, %v7188
    %v7221 = vpack.c.bf16 %v7197, %v7189
    %v7222 = vpack.c.bf16 %v7198, %v7190
    %v7223 = vpack.c.bf16 %v7199, %v7191
    %v7224 = vpack.c.bf16 %v7200, %v7192
    %v7225 = vpack.c.bf16 %v7201, %v7193
    %v7226 = vpack.c.bf16 %v7202, %v7194
    %7227 = vst [vmem:[#allocation2] sm:$0xff] %v7203
    %7228 = vst [vmem:[#allocation2 + $0x8] sm:$0xff] %v7204
    %7229 = vst [vmem:[#allocation2 + $0x10] sm:$0xff] %v7205
    %7230 = vst [vmem:[#allocation2 + $0x18] sm:$0xff] %v7206
    %7231 = vst [vmem:[#allocation2 + $0x20] sm:$0xff] %v7207
    %7232 = vst [vmem:[#allocation2 + $0x28] sm:$0xff] %v7208
    %7233 = vst [vmem:[#allocation2 + $0x30] sm:$0xff] %v7209
    %7234 = vst [vmem:[#allocation2 + $0x38] sm:$0xff] %v7210
    %7235 = vst [vmem:[#allocation2 + $0x40] sm:$0xff] %v7211
    %7236 = vst [vmem:[#allocation2 + $0x48] sm:$0xff] %v7212
    %7237 = vst [vmem:[#allocation2 + $0x50] sm:$0xff] %v7213
    %7238 = vst [vmem:[#allocation2 + $0x58] sm:$0xff] %v7214
    %7239 = vst [vmem:[#allocation2 + $0x60] sm:$0xff] %v7215
    %7240 = vst [vmem:[#allocation2 + $0x68] sm:$0xff] %v7216
    %7241 = vst [vmem:[#allocation2 + $0x70] sm:$0xff] %v7217
    %7242 = vst [vmem:[#allocation2 + $0x78] sm:$0xff] %v7218
    %7243 = vst [vmem:[#allocation2 + $0x80] sm:$0xff] %v7219
    %7244 = vst [vmem:[#allocation2 + $0x88] sm:$0xff] %v7220
    %7245 = vst [vmem:[#allocation2 + $0x90] sm:$0xff] %v7221
    %7246 = vst [vmem:[#allocation2 + $0x98] sm:$0xff] %v7222
    %7247 = vst [vmem:[#allocation2 + $0xa0] sm:$0xff] %v7223
    %7248 = vst [vmem:[#allocation2 + $0xa8] sm:$0xff] %v7224
    %7249 = vst [vmem:[#allocation2 + $0xb0] sm:$0xff] %v7225
    %7250 = vst [vmem:[#allocation2 + $0xb8] sm:$0xff] %v7226
    %v7251 = vld [vmem:[#allocation2] sm:$0xff]
    %v7252 = vld [vmem:[#allocation2 + $0x8] sm:$0xff]
    %v7253 = vld [vmem:[#allocation2 + $0x10] sm:$0xff]
    %v7254 = vld [vmem:[#allocation2 + $0x18] sm:$0xff]
    %v7255 = vld [vmem:[#allocation2 + $0x20] sm:$0xff]
    %v7256 = vld [vmem:[#allocation2 + $0x28] sm:$0xff]
    %v7257 = vld [vmem:[#allocation2 + $0x30] sm:$0xff]
    %v7258 = vld [vmem:[#allocation2 + $0x38] sm:$0xff]
    %v7259 = vld [vmem:[#allocation2 + $0x40] sm:$0xff]
    %v7260 = vld [vmem:[#allocation2 + $0x48] sm:$0xff]
    %v7261 = vld [vmem:[#allocation2 + $0x50] sm:$0xff]
    %v7262 = vld [vmem:[#allocation2 + $0x58] sm:$0xff]
    %v7263 = vld [vmem:[#allocation2 + $0x60] sm:$0xff]
    %v7264 = vld [vmem:[#allocation2 + $0x68] sm:$0xff]
    %v7265 = vld [vmem:[#allocation2 + $0x70] sm:$0xff]
    %v7266 = vld [vmem:[#allocation2 + $0x78] sm:$0xff]
    %v7267 = vld [vmem:[#allocation2 + $0x80] sm:$0xff]
    %v7268 = vld [vmem:[#allocation2 + $0x88] sm:$0xff]
    %v7269 = vld [vmem:[#allocation2 + $0x90] sm:$0xff]
    %v7270 = vld [vmem:[#allocation2 + $0x98] sm:$0xff]
    %v7271 = vld [vmem:[#allocation2 + $0xa0] sm:$0xff]
    %v7272 = vld [vmem:[#allocation2 + $0xa8] sm:$0xff]
    %v7273 = vld [vmem:[#allocation2 + $0xb0] sm:$0xff]
    %v7274 = vld [vmem:[#allocation2 + $0xb8] sm:$0xff]
    %v7275 = vld [vmem:[#allocation10] sm:$0xff]
    %v7276 = vld [vmem:[#allocation10 + $0x8] sm:$0xff]
    %v7277 = vld [vmem:[#allocation10 + $0x10] sm:$0xff]
    %v7278 = vld [vmem:[#allocation10 + $0x18] sm:$0xff]
    %v7279 = vld [vmem:[#allocation10 + $0x20] sm:$0xff]
    %v7280 = vld [vmem:[#allocation10 + $0x28] sm:$0xff]
    %v7281 = vld [vmem:[#allocation10 + $0x30] sm:$0xff]
    %v7282 = vld [vmem:[#allocation10 + $0x38] sm:$0xff]
    %v7283 = vld [vmem:[#allocation10 + $0x40] sm:$0xff]
    %v7284 = vld [vmem:[#allocation10 + $0x48] sm:$0xff]
    %v7285 = vld [vmem:[#allocation10 + $0x50] sm:$0xff]
    %v7286 = vld [vmem:[#allocation10 + $0x58] sm:$0xff]
    %v7287 = vld [vmem:[#allocation10 + $0x60] sm:$0xff]
    %v7288 = vld [vmem:[#allocation10 + $0x68] sm:$0xff]
    %v7289 = vld [vmem:[#allocation10 + $0x70] sm:$0xff]
    %v7290 = vld [vmem:[#allocation10 + $0x78] sm:$0xff]
    %v7291 = vld [vmem:[#allocation10 + $0x80] sm:$0xff]
    %v7292 = vld [vmem:[#allocation10 + $0x88] sm:$0xff]
    %v7293 = vld [vmem:[#allocation10 + $0x90] sm:$0xff]
    %v7294 = vld [vmem:[#allocation10 + $0x98] sm:$0xff]
    %v7295 = vld [vmem:[#allocation10 + $0xa0] sm:$0xff]
    %v7296 = vld [vmem:[#allocation10 + $0xa8] sm:$0xff]
    %v7297 = vld [vmem:[#allocation10 + $0xb0] sm:$0xff]
    %v7298 = vld [vmem:[#allocation10 + $0xb8] sm:$0xff]
    %v7299 = vld [vmem:[#allocation10 + $0xc0] sm:$0xff]
    %v7300 = vld [vmem:[#allocation10 + $0xc8] sm:$0xff]
    %v7301 = vld [vmem:[#allocation10 + $0xd0] sm:$0xff]
    %v7302 = vld [vmem:[#allocation10 + $0xd8] sm:$0xff]
    %v7303 = vld [vmem:[#allocation10 + $0xe0] sm:$0xff]
    %v7304 = vld [vmem:[#allocation10 + $0xe8] sm:$0xff]
    %v7305 = vld [vmem:[#allocation10 + $0xf0] sm:$0xff]
    %v7306 = vld [vmem:[#allocation10 + $0xf8] sm:$0xff]
    %v7307 = vld [vmem:[#allocation10 + $0x100] sm:$0xff]
    %v7308 = vld [vmem:[#allocation10 + $0x108] sm:$0xff]
    %v7309 = vld [vmem:[#allocation10 + $0x110] sm:$0xff]
    %v7310 = vld [vmem:[#allocation10 + $0x118] sm:$0xff]
    %v7311 = vld [vmem:[#allocation10 + $0x120] sm:$0xff]
    %v7312 = vld [vmem:[#allocation10 + $0x128] sm:$0xff]
    %v7313 = vld [vmem:[#allocation10 + $0x130] sm:$0xff]
    %v7314 = vld [vmem:[#allocation10 + $0x138] sm:$0xff]
    %v7315 = vld [vmem:[#allocation10 + $0x140] sm:$0xff]
    %v7316 = vld [vmem:[#allocation10 + $0x148] sm:$0xff]
    %v7317 = vld [vmem:[#allocation10 + $0x150] sm:$0xff]
    %v7318 = vld [vmem:[#allocation10 + $0x158] sm:$0xff]
    %v7319 = vld [vmem:[#allocation10 + $0x160] sm:$0xff]
    %v7320 = vld [vmem:[#allocation10 + $0x168] sm:$0xff]
    %v7321 = vld [vmem:[#allocation10 + $0x170] sm:$0xff]
    %v7322 = vld [vmem:[#allocation10 + $0x178] sm:$0xff]
    %v7323 = vld [vmem:[#allocation10 + $0x180] sm:$0xff]
    %v7324 = vld [vmem:[#allocation10 + $0x188] sm:$0xff]
    %v7325 = vld [vmem:[#allocation10 + $0x190] sm:$0xff]
    %v7326 = vld [vmem:[#allocation10 + $0x198] sm:$0xff]
    %v7327 = vld [vmem:[#allocation10 + $0x1a0] sm:$0xff]
    %v7328 = vld [vmem:[#allocation10 + $0x1a8] sm:$0xff]
    %v7329 = vld [vmem:[#allocation10 + $0x1b0] sm:$0xff]
    %v7330 = vld [vmem:[#allocation10 + $0x1b8] sm:$0xff]
    %v7331 = vld [vmem:[#allocation10 + $0x1c0] sm:$0xff]
    %v7332 = vld [vmem:[#allocation10 + $0x1c8] sm:$0xff]
    %v7333 = vld [vmem:[#allocation10 + $0x1d0] sm:$0xff]
    %v7334 = vld [vmem:[#allocation10 + $0x1d8] sm:$0xff]
    %v7335 = vld [vmem:[#allocation10 + $0x1e0] sm:$0xff]
    %v7336 = vld [vmem:[#allocation10 + $0x1e8] sm:$0xff]
    %v7337 = vld [vmem:[#allocation10 + $0x1f0] sm:$0xff]
    %v7338 = vld [vmem:[#allocation10 + $0x1f8] sm:$0xff]
    %v7339 = vld [vmem:[#allocation10 + $0x200] sm:$0xff]
    %v7340 = vld [vmem:[#allocation10 + $0x208] sm:$0xff]
    %v7341 = vld [vmem:[#allocation10 + $0x210] sm:$0xff]
    %v7342 = vld [vmem:[#allocation10 + $0x218] sm:$0xff]
    %v7343 = vld [vmem:[#allocation10 + $0x220] sm:$0xff]
    %v7344 = vld [vmem:[#allocation10 + $0x228] sm:$0xff]
    %v7345 = vld [vmem:[#allocation10 + $0x230] sm:$0xff]
    %v7346 = vld [vmem:[#allocation10 + $0x238] sm:$0xff]
    %v7347 = vld [vmem:[#allocation10 + $0x240] sm:$0xff]
    %v7348 = vld [vmem:[#allocation10 + $0x248] sm:$0xff]
    %v7349 = vld [vmem:[#allocation10 + $0x250] sm:$0xff]
    %v7350 = vld [vmem:[#allocation10 + $0x258] sm:$0xff]
    %v7351 = vld [vmem:[#allocation10 + $0x260] sm:$0xff]
    %v7352 = vld [vmem:[#allocation10 + $0x268] sm:$0xff]
    %v7353 = vld [vmem:[#allocation10 + $0x270] sm:$0xff]
    %v7354 = vld [vmem:[#allocation10 + $0x278] sm:$0xff]
    %v7355 = vld [vmem:[#allocation10 + $0x280] sm:$0xff]
    %v7356 = vld [vmem:[#allocation10 + $0x288] sm:$0xff]
    %v7357 = vld [vmem:[#allocation10 + $0x290] sm:$0xff]
    %v7358 = vld [vmem:[#allocation10 + $0x298] sm:$0xff]
    %v7359 = vld [vmem:[#allocation10 + $0x2a0] sm:$0xff]
    %v7360 = vld [vmem:[#allocation10 + $0x2a8] sm:$0xff]
    %v7361 = vld [vmem:[#allocation10 + $0x2b0] sm:$0xff]
    %v7362 = vld [vmem:[#allocation10 + $0x2b8] sm:$0xff]
    %v7363 = vld [vmem:[#allocation10 + $0x2c0] sm:$0xff]
    %v7364 = vld [vmem:[#allocation10 + $0x2c8] sm:$0xff]
    %v7365 = vld [vmem:[#allocation10 + $0x2d0] sm:$0xff]
    %v7366 = vld [vmem:[#allocation10 + $0x2d8] sm:$0xff]
    %v7367 = vld [vmem:[#allocation10 + $0x2e0] sm:$0xff]
    %v7368 = vld [vmem:[#allocation10 + $0x2e8] sm:$0xff]
    %v7369 = vld [vmem:[#allocation10 + $0x2f0] sm:$0xff]
    %v7370 = vld [vmem:[#allocation10 + $0x2f8] sm:$0xff]
    %v7371 = vld [vmem:[#allocation10 + $0x300] sm:$0xff]
    %v7372 = vld [vmem:[#allocation10 + $0x308] sm:$0xff]
    %v7373 = vld [vmem:[#allocation10 + $0x310] sm:$0xff]
    %v7374 = vld [vmem:[#allocation10 + $0x318] sm:$0xff]
    %v7375 = vld [vmem:[#allocation10 + $0x320] sm:$0xff]
    %v7376 = vld [vmem:[#allocation10 + $0x328] sm:$0xff]
    %v7377 = vld [vmem:[#allocation10 + $0x330] sm:$0xff]
    %v7378 = vld [vmem:[#allocation10 + $0x338] sm:$0xff]
    %v7379 = vld [vmem:[#allocation10 + $0x340] sm:$0xff]
    %v7380 = vld [vmem:[#allocation10 + $0x348] sm:$0xff]
    %v7381 = vld [vmem:[#allocation10 + $0x350] sm:$0xff]
    %v7382 = vld [vmem:[#allocation10 + $0x358] sm:$0xff]
    %v7383 = vld [vmem:[#allocation10 + $0x360] sm:$0xff]
    %v7384 = vld [vmem:[#allocation10 + $0x368] sm:$0xff]
    %v7385 = vld [vmem:[#allocation10 + $0x370] sm:$0xff]
    %v7386 = vld [vmem:[#allocation10 + $0x378] sm:$0xff]
    %v7387 = vld [vmem:[#allocation10 + $0x380] sm:$0xff]
    %v7388 = vld [vmem:[#allocation10 + $0x388] sm:$0xff]
    %v7389 = vld [vmem:[#allocation10 + $0x390] sm:$0xff]
    %v7390 = vld [vmem:[#allocation10 + $0x398] sm:$0xff]
    %v7391 = vld [vmem:[#allocation10 + $0x3a0] sm:$0xff]
    %v7392 = vld [vmem:[#allocation10 + $0x3a8] sm:$0xff]
    %v7393 = vld [vmem:[#allocation10 + $0x3b0] sm:$0xff]
    %v7394 = vld [vmem:[#allocation10 + $0x3b8] sm:$0xff]
    %v7395 = vld [vmem:[#allocation10 + $0x3c0] sm:$0xff]
    %v7396 = vld [vmem:[#allocation10 + $0x3c8] sm:$0xff]
    %v7397 = vld [vmem:[#allocation10 + $0x3d0] sm:$0xff]
    %v7398 = vld [vmem:[#allocation10 + $0x3d8] sm:$0xff]
    %v7399 = vld [vmem:[#allocation10 + $0x3e0] sm:$0xff]
    %v7400 = vld [vmem:[#allocation10 + $0x3e8] sm:$0xff]
    %v7401 = vld [vmem:[#allocation10 + $0x3f0] sm:$0xff]
    %v7402 = vld [vmem:[#allocation10 + $0x3f8] sm:$0xff]
    %v7403 = vld [vmem:[#allocation10 + $0x400] sm:$0xff]
    %v7404 = vld [vmem:[#allocation10 + $0x408] sm:$0xff]
    %v7405 = vld [vmem:[#allocation10 + $0x410] sm:$0xff]
    %v7406 = vld [vmem:[#allocation10 + $0x418] sm:$0xff]
    %v7407 = vld [vmem:[#allocation10 + $0x420] sm:$0xff]
    %v7408 = vld [vmem:[#allocation10 + $0x428] sm:$0xff]
    %v7409 = vld [vmem:[#allocation10 + $0x430] sm:$0xff]
    %v7410 = vld [vmem:[#allocation10 + $0x438] sm:$0xff]
    %v7411 = vld [vmem:[#allocation10 + $0x440] sm:$0xff]
    %v7412 = vld [vmem:[#allocation10 + $0x448] sm:$0xff]
    %v7413 = vld [vmem:[#allocation10 + $0x450] sm:$0xff]
    %v7414 = vld [vmem:[#allocation10 + $0x458] sm:$0xff]
    %v7415 = vld [vmem:[#allocation10 + $0x460] sm:$0xff]
    %v7416 = vld [vmem:[#allocation10 + $0x468] sm:$0xff]
    %v7417 = vld [vmem:[#allocation10 + $0x470] sm:$0xff]
    %v7418 = vld [vmem:[#allocation10 + $0x478] sm:$0xff]
    %v7419 = vld [vmem:[#allocation10 + $0x480] sm:$0xff]
    %v7420 = vld [vmem:[#allocation10 + $0x488] sm:$0xff]
    %v7421 = vld [vmem:[#allocation10 + $0x490] sm:$0xff]
    %v7422 = vld [vmem:[#allocation10 + $0x498] sm:$0xff]
    %v7423 = vld [vmem:[#allocation10 + $0x4a0] sm:$0xff]
    %v7424 = vld [vmem:[#allocation10 + $0x4a8] sm:$0xff]
    %v7425 = vld [vmem:[#allocation10 + $0x4b0] sm:$0xff]
    %v7426 = vld [vmem:[#allocation10 + $0x4b8] sm:$0xff]
    %v7427 = vld [vmem:[#allocation10 + $0x4c0] sm:$0xff]
    %v7428 = vld [vmem:[#allocation10 + $0x4c8] sm:$0xff]
    %v7429 = vld [vmem:[#allocation10 + $0x4d0] sm:$0xff]
    %v7430 = vld [vmem:[#allocation10 + $0x4d8] sm:$0xff]
    %v7431 = vld [vmem:[#allocation10 + $0x4e0] sm:$0xff]
    %v7432 = vld [vmem:[#allocation10 + $0x4e8] sm:$0xff]
    %v7433 = vld [vmem:[#allocation10 + $0x4f0] sm:$0xff]
    %v7434 = vld [vmem:[#allocation10 + $0x4f8] sm:$0xff]
    %v7435 = vld [vmem:[#allocation10 + $0x500] sm:$0xff]
    %v7436 = vld [vmem:[#allocation10 + $0x508] sm:$0xff]
    %v7437 = vld [vmem:[#allocation10 + $0x510] sm:$0xff]
    %v7438 = vld [vmem:[#allocation10 + $0x518] sm:$0xff]
    %v7439 = vld [vmem:[#allocation10 + $0x520] sm:$0xff]
    %v7440 = vld [vmem:[#allocation10 + $0x528] sm:$0xff]
    %v7441 = vld [vmem:[#allocation10 + $0x530] sm:$0xff]
    %v7442 = vld [vmem:[#allocation10 + $0x538] sm:$0xff]
    %v7443 = vld [vmem:[#allocation10 + $0x540] sm:$0xff]
    %v7444 = vld [vmem:[#allocation10 + $0x548] sm:$0xff]
    %v7445 = vld [vmem:[#allocation10 + $0x550] sm:$0xff]
    %v7446 = vld [vmem:[#allocation10 + $0x558] sm:$0xff]
    %v7447 = vld [vmem:[#allocation10 + $0x560] sm:$0xff]
    %v7448 = vld [vmem:[#allocation10 + $0x568] sm:$0xff]
    %v7449 = vld [vmem:[#allocation10 + $0x570] sm:$0xff]
    %v7450 = vld [vmem:[#allocation10 + $0x578] sm:$0xff]
    %v7451 = vld [vmem:[#allocation10 + $0x580] sm:$0xff]
    %v7452 = vld [vmem:[#allocation10 + $0x588] sm:$0xff]
    %v7453 = vld [vmem:[#allocation10 + $0x590] sm:$0xff]
    %v7454 = vld [vmem:[#allocation10 + $0x598] sm:$0xff]
    %v7455 = vld [vmem:[#allocation10 + $0x5a0] sm:$0xff]
    %v7456 = vld [vmem:[#allocation10 + $0x5a8] sm:$0xff]
    %v7457 = vld [vmem:[#allocation10 + $0x5b0] sm:$0xff]
    %v7458 = vld [vmem:[#allocation10 + $0x5b8] sm:$0xff]
    %v7459 = vld [vmem:[#allocation10 + $0x5c0] sm:$0xff]
    %v7460 = vld [vmem:[#allocation10 + $0x5c8] sm:$0xff]
    %v7461 = vld [vmem:[#allocation10 + $0x5d0] sm:$0xff]
    %v7462 = vld [vmem:[#allocation10 + $0x5d8] sm:$0xff]
    %v7463 = vld [vmem:[#allocation10 + $0x5e0] sm:$0xff]
    %v7464 = vld [vmem:[#allocation10 + $0x5e8] sm:$0xff]
    %v7465 = vld [vmem:[#allocation10 + $0x5f0] sm:$0xff]
    %v7466 = vld [vmem:[#allocation10 + $0x5f8] sm:$0xff]
    %v7467 = vld [vmem:[#allocation10 + $0x600] sm:$0xff]
    %v7468 = vld [vmem:[#allocation10 + $0x608] sm:$0xff]
    %v7469 = vld [vmem:[#allocation10 + $0x610] sm:$0xff]
    %v7470 = vld [vmem:[#allocation10 + $0x618] sm:$0xff]
    %v7471 = vld [vmem:[#allocation10 + $0x620] sm:$0xff]
    %v7472 = vld [vmem:[#allocation10 + $0x628] sm:$0xff]
    %v7473 = vld [vmem:[#allocation10 + $0x630] sm:$0xff]
    %v7474 = vld [vmem:[#allocation10 + $0x638] sm:$0xff]
    %v7475 = vld [vmem:[#allocation10 + $0x640] sm:$0xff]
    %v7476 = vld [vmem:[#allocation10 + $0x648] sm:$0xff]
    %v7477 = vld [vmem:[#allocation10 + $0x650] sm:$0xff]
    %v7478 = vld [vmem:[#allocation10 + $0x658] sm:$0xff]
    %v7479 = vld [vmem:[#allocation10 + $0x660] sm:$0xff]
    %v7480 = vld [vmem:[#allocation10 + $0x668] sm:$0xff]
    %v7481 = vld [vmem:[#allocation10 + $0x670] sm:$0xff]
    %v7482 = vld [vmem:[#allocation10 + $0x678] sm:$0xff]
    %v7483 = vld [vmem:[#allocation10 + $0x680] sm:$0xff]
    %v7484 = vld [vmem:[#allocation10 + $0x688] sm:$0xff]
    %v7485 = vld [vmem:[#allocation10 + $0x690] sm:$0xff]
    %v7486 = vld [vmem:[#allocation10 + $0x698] sm:$0xff]
    %v7487 = vld [vmem:[#allocation10 + $0x6a0] sm:$0xff]
    %v7488 = vld [vmem:[#allocation10 + $0x6a8] sm:$0xff]
    %v7489 = vld [vmem:[#allocation10 + $0x6b0] sm:$0xff]
    %v7490 = vld [vmem:[#allocation10 + $0x6b8] sm:$0xff]
    %v7491 = vld [vmem:[#allocation10 + $0x6c0] sm:$0xff]
    %v7492 = vld [vmem:[#allocation10 + $0x6c8] sm:$0xff]
    %v7493 = vld [vmem:[#allocation10 + $0x6d0] sm:$0xff]
    %v7494 = vld [vmem:[#allocation10 + $0x6d8] sm:$0xff]
    %v7495 = vld [vmem:[#allocation10 + $0x6e0] sm:$0xff]
    %v7496 = vld [vmem:[#allocation10 + $0x6e8] sm:$0xff]
    %v7497 = vld [vmem:[#allocation10 + $0x6f0] sm:$0xff]
    %v7498 = vld [vmem:[#allocation10 + $0x6f8] sm:$0xff]
    %v7499 = vld [vmem:[#allocation10 + $0x700] sm:$0xff]
    %v7500 = vld [vmem:[#allocation10 + $0x708] sm:$0xff]
    %v7501 = vld [vmem:[#allocation10 + $0x710] sm:$0xff]
    %v7502 = vld [vmem:[#allocation10 + $0x718] sm:$0xff]
    %v7503 = vld [vmem:[#allocation10 + $0x720] sm:$0xff]
    %v7504 = vld [vmem:[#allocation10 + $0x728] sm:$0xff]
    %v7505 = vld [vmem:[#allocation10 + $0x730] sm:$0xff]
    %v7506 = vld [vmem:[#allocation10 + $0x738] sm:$0xff]
    %v7507 = vld [vmem:[#allocation10 + $0x740] sm:$0xff]
    %v7508 = vld [vmem:[#allocation10 + $0x748] sm:$0xff]
    %v7509 = vld [vmem:[#allocation10 + $0x750] sm:$0xff]
    %v7510 = vld [vmem:[#allocation10 + $0x758] sm:$0xff]
    %v7511 = vld [vmem:[#allocation10 + $0x760] sm:$0xff]
    %v7512 = vld [vmem:[#allocation10 + $0x768] sm:$0xff]
    %v7513 = vld [vmem:[#allocation10 + $0x770] sm:$0xff]
    %v7514 = vld [vmem:[#allocation10 + $0x778] sm:$0xff]
    %v7515 = vld [vmem:[#allocation10 + $0x780] sm:$0xff]
    %v7516 = vld [vmem:[#allocation10 + $0x788] sm:$0xff]
    %v7517 = vld [vmem:[#allocation10 + $0x790] sm:$0xff]
    %v7518 = vld [vmem:[#allocation10 + $0x798] sm:$0xff]
    %v7519 = vld [vmem:[#allocation10 + $0x7a0] sm:$0xff]
    %v7520 = vld [vmem:[#allocation10 + $0x7a8] sm:$0xff]
    %v7521 = vld [vmem:[#allocation10 + $0x7b0] sm:$0xff]
    %v7522 = vld [vmem:[#allocation10 + $0x7b8] sm:$0xff]
    %v7523 = vld [vmem:[#allocation10 + $0x7c0] sm:$0xff]
    %v7524 = vld [vmem:[#allocation10 + $0x7c8] sm:$0xff]
    %v7525 = vld [vmem:[#allocation10 + $0x7d0] sm:$0xff]
    %v7526 = vld [vmem:[#allocation10 + $0x7d8] sm:$0xff]
    %v7527 = vld [vmem:[#allocation10 + $0x7e0] sm:$0xff]
    %v7528 = vld [vmem:[#allocation10 + $0x7e8] sm:$0xff]
    %v7529 = vld [vmem:[#allocation10 + $0x7f0] sm:$0xff]
    %v7530 = vld [vmem:[#allocation10 + $0x7f8] sm:$0xff]
    %v7531 = vld [vmem:[#allocation10 + $0x800] sm:$0xff]
    %v7532 = vld [vmem:[#allocation10 + $0x808] sm:$0xff]
    %v7533 = vld [vmem:[#allocation10 + $0x810] sm:$0xff]
    %v7534 = vld [vmem:[#allocation10 + $0x818] sm:$0xff]
    %v7535 = vld [vmem:[#allocation10 + $0x820] sm:$0xff]
    %v7536 = vld [vmem:[#allocation10 + $0x828] sm:$0xff]
    %v7537 = vld [vmem:[#allocation10 + $0x830] sm:$0xff]
    %v7538 = vld [vmem:[#allocation10 + $0x838] sm:$0xff]
    %v7539 = vld [vmem:[#allocation10 + $0x840] sm:$0xff]
    %v7540 = vld [vmem:[#allocation10 + $0x848] sm:$0xff]
    %v7541 = vld [vmem:[#allocation10 + $0x850] sm:$0xff]
    %v7542 = vld [vmem:[#allocation10 + $0x858] sm:$0xff]
    %v7543 = vld [vmem:[#allocation10 + $0x860] sm:$0xff]
    %v7544 = vld [vmem:[#allocation10 + $0x868] sm:$0xff]
    %v7545 = vld [vmem:[#allocation10 + $0x870] sm:$0xff]
    %v7546 = vld [vmem:[#allocation10 + $0x878] sm:$0xff]
    %v7547 = vld [vmem:[#allocation10 + $0x880] sm:$0xff]
    %v7548 = vld [vmem:[#allocation10 + $0x888] sm:$0xff]
    %v7549 = vld [vmem:[#allocation10 + $0x890] sm:$0xff]
    %v7550 = vld [vmem:[#allocation10 + $0x898] sm:$0xff]
    %v7551 = vld [vmem:[#allocation10 + $0x8a0] sm:$0xff]
    %v7552 = vld [vmem:[#allocation10 + $0x8a8] sm:$0xff]
    %v7553 = vld [vmem:[#allocation10 + $0x8b0] sm:$0xff]
    %v7554 = vld [vmem:[#allocation10 + $0x8b8] sm:$0xff]
    %v7555 = vld [vmem:[#allocation10 + $0x8c0] sm:$0xff]
    %v7556 = vld [vmem:[#allocation10 + $0x8c8] sm:$0xff]
    %v7557 = vld [vmem:[#allocation10 + $0x8d0] sm:$0xff]
    %v7558 = vld [vmem:[#allocation10 + $0x8d8] sm:$0xff]
    %v7559 = vld [vmem:[#allocation10 + $0x8e0] sm:$0xff]
    %v7560 = vld [vmem:[#allocation10 + $0x8e8] sm:$0xff]
    %v7561 = vld [vmem:[#allocation10 + $0x8f0] sm:$0xff]
    %v7562 = vld [vmem:[#allocation10 + $0x8f8] sm:$0xff]
    %v7563 = vld [vmem:[#allocation10 + $0x900] sm:$0xff]
    %v7564 = vld [vmem:[#allocation10 + $0x908] sm:$0xff]
    %v7565 = vld [vmem:[#allocation10 + $0x910] sm:$0xff]
    %v7566 = vld [vmem:[#allocation10 + $0x918] sm:$0xff]
    %v7567 = vld [vmem:[#allocation10 + $0x920] sm:$0xff]
    %v7568 = vld [vmem:[#allocation10 + $0x928] sm:$0xff]
    %v7569 = vld [vmem:[#allocation10 + $0x930] sm:$0xff]
    %v7570 = vld [vmem:[#allocation10 + $0x938] sm:$0xff]
    %v7571 = vld [vmem:[#allocation10 + $0x940] sm:$0xff]
    %v7572 = vld [vmem:[#allocation10 + $0x948] sm:$0xff]
    %v7573 = vld [vmem:[#allocation10 + $0x950] sm:$0xff]
    %v7574 = vld [vmem:[#allocation10 + $0x958] sm:$0xff]
    %v7575 = vld [vmem:[#allocation10 + $0x960] sm:$0xff]
    %v7576 = vld [vmem:[#allocation10 + $0x968] sm:$0xff]
    %v7577 = vld [vmem:[#allocation10 + $0x970] sm:$0xff]
    %v7578 = vld [vmem:[#allocation10 + $0x978] sm:$0xff]
    %v7579 = vld [vmem:[#allocation10 + $0x980] sm:$0xff]
    %v7580 = vld [vmem:[#allocation10 + $0x988] sm:$0xff]
    %v7581 = vld [vmem:[#allocation10 + $0x990] sm:$0xff]
    %v7582 = vld [vmem:[#allocation10 + $0x998] sm:$0xff]
    %v7583 = vld [vmem:[#allocation10 + $0x9a0] sm:$0xff]
    %v7584 = vld [vmem:[#allocation10 + $0x9a8] sm:$0xff]
    %v7585 = vld [vmem:[#allocation10 + $0x9b0] sm:$0xff]
    %v7586 = vld [vmem:[#allocation10 + $0x9b8] sm:$0xff]
    %v7587 = vld [vmem:[#allocation10 + $0x9c0] sm:$0xff]
    %v7588 = vld [vmem:[#allocation10 + $0x9c8] sm:$0xff]
    %v7589 = vld [vmem:[#allocation10 + $0x9d0] sm:$0xff]
    %v7590 = vld [vmem:[#allocation10 + $0x9d8] sm:$0xff]
    %v7591 = vld [vmem:[#allocation10 + $0x9e0] sm:$0xff]
    %v7592 = vld [vmem:[#allocation10 + $0x9e8] sm:$0xff]
    %v7593 = vld [vmem:[#allocation10 + $0x9f0] sm:$0xff]
    %v7594 = vld [vmem:[#allocation10 + $0x9f8] sm:$0xff]
    %v7595 = vld [vmem:[#allocation10 + $0xa00] sm:$0xff]
    %v7596 = vld [vmem:[#allocation10 + $0xa08] sm:$0xff]
    %v7597 = vld [vmem:[#allocation10 + $0xa10] sm:$0xff]
    %v7598 = vld [vmem:[#allocation10 + $0xa18] sm:$0xff]
    %v7599 = vld [vmem:[#allocation10 + $0xa20] sm:$0xff]
    %v7600 = vld [vmem:[#allocation10 + $0xa28] sm:$0xff]
    %v7601 = vld [vmem:[#allocation10 + $0xa30] sm:$0xff]
    %v7602 = vld [vmem:[#allocation10 + $0xa38] sm:$0xff]
    %v7603 = vld [vmem:[#allocation10 + $0xa40] sm:$0xff]
    %v7604 = vld [vmem:[#allocation10 + $0xa48] sm:$0xff]
    %v7605 = vld [vmem:[#allocation10 + $0xa50] sm:$0xff]
    %v7606 = vld [vmem:[#allocation10 + $0xa58] sm:$0xff]
    %v7607 = vld [vmem:[#allocation10 + $0xa60] sm:$0xff]
    %v7608 = vld [vmem:[#allocation10 + $0xa68] sm:$0xff]
    %v7609 = vld [vmem:[#allocation10 + $0xa70] sm:$0xff]
    %v7610 = vld [vmem:[#allocation10 + $0xa78] sm:$0xff]
    %v7611 = vld [vmem:[#allocation10 + $0xa80] sm:$0xff]
    %v7612 = vld [vmem:[#allocation10 + $0xa88] sm:$0xff]
    %v7613 = vld [vmem:[#allocation10 + $0xa90] sm:$0xff]
    %v7614 = vld [vmem:[#allocation10 + $0xa98] sm:$0xff]
    %v7615 = vld [vmem:[#allocation10 + $0xaa0] sm:$0xff]
    %v7616 = vld [vmem:[#allocation10 + $0xaa8] sm:$0xff]
    %v7617 = vld [vmem:[#allocation10 + $0xab0] sm:$0xff]
    %v7618 = vld [vmem:[#allocation10 + $0xab8] sm:$0xff]
    %v7619 = vld [vmem:[#allocation10 + $0xac0] sm:$0xff]
    %v7620 = vld [vmem:[#allocation10 + $0xac8] sm:$0xff]
    %v7621 = vld [vmem:[#allocation10 + $0xad0] sm:$0xff]
    %v7622 = vld [vmem:[#allocation10 + $0xad8] sm:$0xff]
    %v7623 = vld [vmem:[#allocation10 + $0xae0] sm:$0xff]
    %v7624 = vld [vmem:[#allocation10 + $0xae8] sm:$0xff]
    %v7625 = vld [vmem:[#allocation10 + $0xaf0] sm:$0xff]
    %v7626 = vld [vmem:[#allocation10 + $0xaf8] sm:$0xff]
    %v7627 = vld [vmem:[#allocation10 + $0xb00] sm:$0xff]
    %v7628 = vld [vmem:[#allocation10 + $0xb08] sm:$0xff]
    %v7629 = vld [vmem:[#allocation10 + $0xb10] sm:$0xff]
    %v7630 = vld [vmem:[#allocation10 + $0xb18] sm:$0xff]
    %v7631 = vld [vmem:[#allocation10 + $0xb20] sm:$0xff]
    %v7632 = vld [vmem:[#allocation10 + $0xb28] sm:$0xff]
    %v7633 = vld [vmem:[#allocation10 + $0xb30] sm:$0xff]
    %v7634 = vld [vmem:[#allocation10 + $0xb38] sm:$0xff]
    %v7635 = vld [vmem:[#allocation10 + $0xb40] sm:$0xff]
    %v7636 = vld [vmem:[#allocation10 + $0xb48] sm:$0xff]
    %v7637 = vld [vmem:[#allocation10 + $0xb50] sm:$0xff]
    %v7638 = vld [vmem:[#allocation10 + $0xb58] sm:$0xff]
    %v7639 = vld [vmem:[#allocation10 + $0xb60] sm:$0xff]
    %v7640 = vld [vmem:[#allocation10 + $0xb68] sm:$0xff]
    %v7641 = vld [vmem:[#allocation10 + $0xb70] sm:$0xff]
    %v7642 = vld [vmem:[#allocation10 + $0xb78] sm:$0xff]
    %v7643 = vld [vmem:[#allocation10 + $0xb80] sm:$0xff]
    %v7644 = vld [vmem:[#allocation10 + $0xb88] sm:$0xff]
    %v7645 = vld [vmem:[#allocation10 + $0xb90] sm:$0xff]
    %v7646 = vld [vmem:[#allocation10 + $0xb98] sm:$0xff]
    %v7647 = vld [vmem:[#allocation10 + $0xba0] sm:$0xff]
    %v7648 = vld [vmem:[#allocation10 + $0xba8] sm:$0xff]
    %v7649 = vld [vmem:[#allocation10 + $0xbb0] sm:$0xff]
    %v7650 = vld [vmem:[#allocation10 + $0xbb8] sm:$0xff]
    %v7651 = vld [vmem:[#allocation10 + $0xbc0] sm:$0xff]
    %v7652 = vld [vmem:[#allocation10 + $0xbc8] sm:$0xff]
    %v7653 = vld [vmem:[#allocation10 + $0xbd0] sm:$0xff]
    %v7654 = vld [vmem:[#allocation10 + $0xbd8] sm:$0xff]
    %v7655 = vld [vmem:[#allocation10 + $0xbe0] sm:$0xff]
    %v7656 = vld [vmem:[#allocation10 + $0xbe8] sm:$0xff]
    %v7657 = vld [vmem:[#allocation10 + $0xbf0] sm:$0xff]
    %v7658 = vld [vmem:[#allocation10 + $0xbf8] sm:$0xff]
    %v7659 = vld [vmem:[#allocation10 + $0xc00] sm:$0xff]
    %v7660 = vld [vmem:[#allocation10 + $0xc08] sm:$0xff]
    %v7661 = vld [vmem:[#allocation10 + $0xc10] sm:$0xff]
    %v7662 = vld [vmem:[#allocation10 + $0xc18] sm:$0xff]
    %v7663 = vld [vmem:[#allocation10 + $0xc20] sm:$0xff]
    %v7664 = vld [vmem:[#allocation10 + $0xc28] sm:$0xff]
    %v7665 = vld [vmem:[#allocation10 + $0xc30] sm:$0xff]
    %v7666 = vld [vmem:[#allocation10 + $0xc38] sm:$0xff]
    %v7667 = vld [vmem:[#allocation10 + $0xc40] sm:$0xff]
    %v7668 = vld [vmem:[#allocation10 + $0xc48] sm:$0xff]
    %v7669 = vld [vmem:[#allocation10 + $0xc50] sm:$0xff]
    %v7670 = vld [vmem:[#allocation10 + $0xc58] sm:$0xff]
    %v7671 = vld [vmem:[#allocation10 + $0xc60] sm:$0xff]
    %v7672 = vld [vmem:[#allocation10 + $0xc68] sm:$0xff]
    %v7673 = vld [vmem:[#allocation10 + $0xc70] sm:$0xff]
    %v7674 = vld [vmem:[#allocation10 + $0xc78] sm:$0xff]
    %v7675 = vld [vmem:[#allocation10 + $0xc80] sm:$0xff]
    %v7676 = vld [vmem:[#allocation10 + $0xc88] sm:$0xff]
    %v7677 = vld [vmem:[#allocation10 + $0xc90] sm:$0xff]
    %v7678 = vld [vmem:[#allocation10 + $0xc98] sm:$0xff]
    %v7679 = vld [vmem:[#allocation10 + $0xca0] sm:$0xff]
    %v7680 = vld [vmem:[#allocation10 + $0xca8] sm:$0xff]
    %v7681 = vld [vmem:[#allocation10 + $0xcb0] sm:$0xff]
    %v7682 = vld [vmem:[#allocation10 + $0xcb8] sm:$0xff]
    %v7683 = vld [vmem:[#allocation10 + $0xcc0] sm:$0xff]
    %v7684 = vld [vmem:[#allocation10 + $0xcc8] sm:$0xff]
    %v7685 = vld [vmem:[#allocation10 + $0xcd0] sm:$0xff]
    %v7686 = vld [vmem:[#allocation10 + $0xcd8] sm:$0xff]
    %v7687 = vld [vmem:[#allocation10 + $0xce0] sm:$0xff]
    %v7688 = vld [vmem:[#allocation10 + $0xce8] sm:$0xff]
    %v7689 = vld [vmem:[#allocation10 + $0xcf0] sm:$0xff]
    %v7690 = vld [vmem:[#allocation10 + $0xcf8] sm:$0xff]
    %v7691 = vld [vmem:[#allocation10 + $0xd00] sm:$0xff]
    %v7692 = vld [vmem:[#allocation10 + $0xd08] sm:$0xff]
    %v7693 = vld [vmem:[#allocation10 + $0xd10] sm:$0xff]
    %v7694 = vld [vmem:[#allocation10 + $0xd18] sm:$0xff]
    %v7695 = vld [vmem:[#allocation10 + $0xd20] sm:$0xff]
    %v7696 = vld [vmem:[#allocation10 + $0xd28] sm:$0xff]
    %v7697 = vld [vmem:[#allocation10 + $0xd30] sm:$0xff]
    %v7698 = vld [vmem:[#allocation10 + $0xd38] sm:$0xff]
    %v7699 = vld [vmem:[#allocation10 + $0xd40] sm:$0xff]
    %v7700 = vld [vmem:[#allocation10 + $0xd48] sm:$0xff]
    %v7701 = vld [vmem:[#allocation10 + $0xd50] sm:$0xff]
    %v7702 = vld [vmem:[#allocation10 + $0xd58] sm:$0xff]
    %v7703 = vld [vmem:[#allocation10 + $0xd60] sm:$0xff]
    %v7704 = vld [vmem:[#allocation10 + $0xd68] sm:$0xff]
    %v7705 = vld [vmem:[#allocation10 + $0xd70] sm:$0xff]
    %v7706 = vld [vmem:[#allocation10 + $0xd78] sm:$0xff]
    %v7707 = vld [vmem:[#allocation10 + $0xd80] sm:$0xff]
    %v7708 = vld [vmem:[#allocation10 + $0xd88] sm:$0xff]
    %v7709 = vld [vmem:[#allocation10 + $0xd90] sm:$0xff]
    %v7710 = vld [vmem:[#allocation10 + $0xd98] sm:$0xff]
    %v7711 = vld [vmem:[#allocation10 + $0xda0] sm:$0xff]
    %v7712 = vld [vmem:[#allocation10 + $0xda8] sm:$0xff]
    %v7713 = vld [vmem:[#allocation10 + $0xdb0] sm:$0xff]
    %v7714 = vld [vmem:[#allocation10 + $0xdb8] sm:$0xff]
    %v7715 = vld [vmem:[#allocation10 + $0xdc0] sm:$0xff]
    %v7716 = vld [vmem:[#allocation10 + $0xdc8] sm:$0xff]
    %v7717 = vld [vmem:[#allocation10 + $0xdd0] sm:$0xff]
    %v7718 = vld [vmem:[#allocation10 + $0xdd8] sm:$0xff]
    %v7719 = vld [vmem:[#allocation10 + $0xde0] sm:$0xff]
    %v7720 = vld [vmem:[#allocation10 + $0xde8] sm:$0xff]
    %v7721 = vld [vmem:[#allocation10 + $0xdf0] sm:$0xff]
    %v7722 = vld [vmem:[#allocation10 + $0xdf8] sm:$0xff]
    %v7723 = vld [vmem:[#allocation10 + $0xe00] sm:$0xff]
    %v7724 = vld [vmem:[#allocation10 + $0xe08] sm:$0xff]
    %v7725 = vld [vmem:[#allocation10 + $0xe10] sm:$0xff]
    %v7726 = vld [vmem:[#allocation10 + $0xe18] sm:$0xff]
    %v7727 = vld [vmem:[#allocation10 + $0xe20] sm:$0xff]
    %v7728 = vld [vmem:[#allocation10 + $0xe28] sm:$0xff]
    %v7729 = vld [vmem:[#allocation10 + $0xe30] sm:$0xff]
    %v7730 = vld [vmem:[#allocation10 + $0xe38] sm:$0xff]
    %v7731 = vld [vmem:[#allocation10 + $0xe40] sm:$0xff]
    %v7732 = vld [vmem:[#allocation10 + $0xe48] sm:$0xff]
    %v7733 = vld [vmem:[#allocation10 + $0xe50] sm:$0xff]
    %v7734 = vld [vmem:[#allocation10 + $0xe58] sm:$0xff]
    %v7735 = vld [vmem:[#allocation10 + $0xe60] sm:$0xff]
    %v7736 = vld [vmem:[#allocation10 + $0xe68] sm:$0xff]
    %v7737 = vld [vmem:[#allocation10 + $0xe70] sm:$0xff]
    %v7738 = vld [vmem:[#allocation10 + $0xe78] sm:$0xff]
    %v7739 = vld [vmem:[#allocation10 + $0xe80] sm:$0xff]
    %v7740 = vld [vmem:[#allocation10 + $0xe88] sm:$0xff]
    %v7741 = vld [vmem:[#allocation10 + $0xe90] sm:$0xff]
    %v7742 = vld [vmem:[#allocation10 + $0xe98] sm:$0xff]
    %v7743 = vld [vmem:[#allocation10 + $0xea0] sm:$0xff]
    %v7744 = vld [vmem:[#allocation10 + $0xea8] sm:$0xff]
    %v7745 = vld [vmem:[#allocation10 + $0xeb0] sm:$0xff]
    %v7746 = vld [vmem:[#allocation10 + $0xeb8] sm:$0xff]
    %v7747 = vld [vmem:[#allocation10 + $0xec0] sm:$0xff]
    %v7748 = vld [vmem:[#allocation10 + $0xec8] sm:$0xff]
    %v7749 = vld [vmem:[#allocation10 + $0xed0] sm:$0xff]
    %v7750 = vld [vmem:[#allocation10 + $0xed8] sm:$0xff]
    %v7751 = vld [vmem:[#allocation10 + $0xee0] sm:$0xff]
    %v7752 = vld [vmem:[#allocation10 + $0xee8] sm:$0xff]
    %v7753 = vld [vmem:[#allocation10 + $0xef0] sm:$0xff]
    %v7754 = vld [vmem:[#allocation10 + $0xef8] sm:$0xff]
    %v7755 = vld [vmem:[#allocation10 + $0xf00] sm:$0xff]
    %v7756 = vld [vmem:[#allocation10 + $0xf08] sm:$0xff]
    %v7757 = vld [vmem:[#allocation10 + $0xf10] sm:$0xff]
    %v7758 = vld [vmem:[#allocation10 + $0xf18] sm:$0xff]
    %v7759 = vld [vmem:[#allocation10 + $0xf20] sm:$0xff]
    %v7760 = vld [vmem:[#allocation10 + $0xf28] sm:$0xff]
    %v7761 = vld [vmem:[#allocation10 + $0xf30] sm:$0xff]
    %v7762 = vld [vmem:[#allocation10 + $0xf38] sm:$0xff]
    %v7763 = vld [vmem:[#allocation10 + $0xf40] sm:$0xff]
    %v7764 = vld [vmem:[#allocation10 + $0xf48] sm:$0xff]
    %v7765 = vld [vmem:[#allocation10 + $0xf50] sm:$0xff]
    %v7766 = vld [vmem:[#allocation10 + $0xf58] sm:$0xff]
    %v7767 = vld [vmem:[#allocation10 + $0xf60] sm:$0xff]
    %v7768 = vld [vmem:[#allocation10 + $0xf68] sm:$0xff]
    %v7769 = vld [vmem:[#allocation10 + $0xf70] sm:$0xff]
    %v7770 = vld [vmem:[#allocation10 + $0xf78] sm:$0xff]
    %v7771 = vld [vmem:[#allocation10 + $0xf80] sm:$0xff]
    %v7772 = vld [vmem:[#allocation10 + $0xf88] sm:$0xff]
    %v7773 = vld [vmem:[#allocation10 + $0xf90] sm:$0xff]
    %v7774 = vld [vmem:[#allocation10 + $0xf98] sm:$0xff]
    %v7775 = vld [vmem:[#allocation10 + $0xfa0] sm:$0xff]
    %v7776 = vld [vmem:[#allocation10 + $0xfa8] sm:$0xff]
    %v7777 = vld [vmem:[#allocation10 + $0xfb0] sm:$0xff]
    %v7778 = vld [vmem:[#allocation10 + $0xfb8] sm:$0xff]
    %v7779 = vld [vmem:[#allocation10 + $0xfc0] sm:$0xff]
    %v7780 = vld [vmem:[#allocation10 + $0xfc8] sm:$0xff]
    %v7781 = vld [vmem:[#allocation10 + $0xfd0] sm:$0xff]
    %v7782 = vld [vmem:[#allocation10 + $0xfd8] sm:$0xff]
    %v7783 = vld [vmem:[#allocation10 + $0xfe0] sm:$0xff]
    %v7784 = vld [vmem:[#allocation10 + $0xfe8] sm:$0xff]
    %v7785 = vld [vmem:[#allocation10 + $0xff0] sm:$0xff]
    %v7786 = vld [vmem:[#allocation10 + $0xff8] sm:$0xff]
    %v7787 = vld [vmem:[#allocation12] sm:$0xff]
    %v7789 = vlaneseq
    %v7790 = vshrl.u32 %v7789, 7
    %v7791 = vsub.s32 0, %v7790
    %v7792 = vrot.slane %v7787, %v7791
    %v7793 = vlaneseq
    %v7794 = vshrl.u32 %v7793, 7
    %v7795 = vsub.s32 1, %v7794
    %v7796 = vrot.slane %v7787, %v7795
    %v7797 = vlaneseq
    %v7798 = vshrl.u32 %v7797, 7
    %v7799 = vsub.s32 2, %v7798
    %v7800 = vrot.slane %v7787, %v7799
    %v7801 = vlaneseq
    %v7802 = vshrl.u32 %v7801, 7
    %v7803 = vsub.s32 3, %v7802
    %v7804 = vrot.slane %v7787, %v7803
    %v7805 = vlaneseq
    %v7806 = vshrl.u32 %v7805, 7
    %v7807 = vsub.s32 4, %v7806
    %v7808 = vrot.slane %v7787, %v7807
    %v7809 = vlaneseq
    %v7810 = vshrl.u32 %v7809, 7
    %v7811 = vsub.s32 5, %v7810
    %v7812 = vrot.slane %v7787, %v7811
    %v7813 = vlaneseq
    %v7814 = vshrl.u32 %v7813, 7
    %v7815 = vsub.s32 6, %v7814
    %v7816 = vrot.slane %v7787, %v7815
    %v7817 = vlaneseq
    %v7818 = vshrl.u32 %v7817, 7
    %v7819 = vsub.s32 7, %v7818
    %v7820 = vrot.slane %v7787, %v7819
    %v8341 = vunpack.c.l.b16 %v7275
    %v8342 = vunpack.c.h.b16 %v7275
    %v8343 = vunpack.c.l.b16 %v7276
    %v8344 = vunpack.c.h.b16 %v7276
    %v8345 = vunpack.c.l.b16 %v7277
    %v8346 = vunpack.c.h.b16 %v7277
    %v8347 = vunpack.c.l.b16 %v7278
    %v8348 = vunpack.c.h.b16 %v7278
    %v8349 = vunpack.c.l.b16 %v7279
    %v8350 = vunpack.c.h.b16 %v7279
    %v8351 = vunpack.c.l.b16 %v7280
    %v8352 = vunpack.c.h.b16 %v7280
    %v8353 = vunpack.c.l.b16 %v7281
    %v8354 = vunpack.c.h.b16 %v7281
    %v8355 = vunpack.c.l.b16 %v7282
    %v8356 = vunpack.c.h.b16 %v7282
    %v8357 = vunpack.c.l.b16 %v7283
    %v8358 = vunpack.c.h.b16 %v7283
    %v8359 = vunpack.c.l.b16 %v7284
    %v8360 = vunpack.c.h.b16 %v7284
    %v8361 = vunpack.c.l.b16 %v7285
    %v8362 = vunpack.c.h.b16 %v7285
    %v8363 = vunpack.c.l.b16 %v7286
    %v8364 = vunpack.c.h.b16 %v7286
    %v8365 = vunpack.c.l.b16 %v7287
    %v8366 = vunpack.c.h.b16 %v7287
    %v8367 = vunpack.c.l.b16 %v7288
    %v8368 = vunpack.c.h.b16 %v7288
    %v8369 = vunpack.c.l.b16 %v7289
    %v8370 = vunpack.c.h.b16 %v7289
    %v8371 = vunpack.c.l.b16 %v7290
    %v8372 = vunpack.c.h.b16 %v7290
    %v8373 = vunpack.c.l.b16 %v7291
    %v8374 = vunpack.c.h.b16 %v7291
    %v8375 = vunpack.c.l.b16 %v7292
    %v8376 = vunpack.c.h.b16 %v7292
    %v8377 = vunpack.c.l.b16 %v7293
    %v8378 = vunpack.c.h.b16 %v7293
    %v8379 = vunpack.c.l.b16 %v7294
    %v8380 = vunpack.c.h.b16 %v7294
    %v8381 = vunpack.c.l.b16 %v7295
    %v8382 = vunpack.c.h.b16 %v7295
    %v8383 = vunpack.c.l.b16 %v7296
    %v8384 = vunpack.c.h.b16 %v7296
    %v8385 = vunpack.c.l.b16 %v7297
    %v8386 = vunpack.c.h.b16 %v7297
    %v8387 = vunpack.c.l.b16 %v7298
    %v8388 = vunpack.c.h.b16 %v7298
    %v8389 = vunpack.c.l.b16 %v7299
    %v8390 = vunpack.c.h.b16 %v7299
    %v8391 = vunpack.c.l.b16 %v7300
    %v8392 = vunpack.c.h.b16 %v7300
    %v8393 = vunpack.c.l.b16 %v7301
    %v8394 = vunpack.c.h.b16 %v7301
    %v8395 = vunpack.c.l.b16 %v7302
    %v8396 = vunpack.c.h.b16 %v7302
    %v8397 = vunpack.c.l.b16 %v7303
    %v8398 = vunpack.c.h.b16 %v7303
    %v8399 = vunpack.c.l.b16 %v7304
    %v8400 = vunpack.c.h.b16 %v7304
    %v8401 = vunpack.c.l.b16 %v7305
    %v8402 = vunpack.c.h.b16 %v7305
    %v8403 = vunpack.c.l.b16 %v7306
    %v8404 = vunpack.c.h.b16 %v7306
    %v8405 = vunpack.c.l.b16 %v7307
    %v8406 = vunpack.c.h.b16 %v7307
    %v8407 = vunpack.c.l.b16 %v7308
    %v8408 = vunpack.c.h.b16 %v7308
    %v8409 = vunpack.c.l.b16 %v7309
    %v8410 = vunpack.c.h.b16 %v7309
    %v8411 = vunpack.c.l.b16 %v7310
    %v8412 = vunpack.c.h.b16 %v7310
    %v8413 = vunpack.c.l.b16 %v7311
    %v8414 = vunpack.c.h.b16 %v7311
    %v8415 = vunpack.c.l.b16 %v7312
    %v8416 = vunpack.c.h.b16 %v7312
    %v8417 = vunpack.c.l.b16 %v7313
    %v8418 = vunpack.c.h.b16 %v7313
    %v8419 = vunpack.c.l.b16 %v7314
    %v8420 = vunpack.c.h.b16 %v7314
    %v8421 = vunpack.c.l.b16 %v7315
    %v8422 = vunpack.c.h.b16 %v7315
    %v8423 = vunpack.c.l.b16 %v7316
    %v8424 = vunpack.c.h.b16 %v7316
    %v8425 = vunpack.c.l.b16 %v7317
    %v8426 = vunpack.c.h.b16 %v7317
    %v8427 = vunpack.c.l.b16 %v7318
    %v8428 = vunpack.c.h.b16 %v7318
    %v8429 = vunpack.c.l.b16 %v7319
    %v8430 = vunpack.c.h.b16 %v7319
    %v8431 = vunpack.c.l.b16 %v7320
    %v8432 = vunpack.c.h.b16 %v7320
    %v8433 = vunpack.c.l.b16 %v7321
    %v8434 = vunpack.c.h.b16 %v7321
    %v8435 = vunpack.c.l.b16 %v7322
    %v8436 = vunpack.c.h.b16 %v7322
    %v8437 = vunpack.c.l.b16 %v7323
    %v8438 = vunpack.c.h.b16 %v7323
    %v8439 = vunpack.c.l.b16 %v7324
    %v8440 = vunpack.c.h.b16 %v7324
    %v8441 = vunpack.c.l.b16 %v7325
    %v8442 = vunpack.c.h.b16 %v7325
    %v8443 = vunpack.c.l.b16 %v7326
    %v8444 = vunpack.c.h.b16 %v7326
    %v8445 = vunpack.c.l.b16 %v7327
    %v8446 = vunpack.c.h.b16 %v7327
    %v8447 = vunpack.c.l.b16 %v7328
    %v8448 = vunpack.c.h.b16 %v7328
    %v8449 = vunpack.c.l.b16 %v7329
    %v8450 = vunpack.c.h.b16 %v7329
    %v8451 = vunpack.c.l.b16 %v7330
    %v8452 = vunpack.c.h.b16 %v7330
    %v8453 = vunpack.c.l.b16 %v7331
    %v8454 = vunpack.c.h.b16 %v7331
    %v8455 = vunpack.c.l.b16 %v7332
    %v8456 = vunpack.c.h.b16 %v7332
    %v8457 = vunpack.c.l.b16 %v7333
    %v8458 = vunpack.c.h.b16 %v7333
    %v8459 = vunpack.c.l.b16 %v7334
    %v8460 = vunpack.c.h.b16 %v7334
    %v8461 = vunpack.c.l.b16 %v7335
    %v8462 = vunpack.c.h.b16 %v7335
    %v8463 = vunpack.c.l.b16 %v7336
    %v8464 = vunpack.c.h.b16 %v7336
    %v8465 = vunpack.c.l.b16 %v7337
    %v8466 = vunpack.c.h.b16 %v7337
    %v8467 = vunpack.c.l.b16 %v7338
    %v8468 = vunpack.c.h.b16 %v7338
    %v8469 = vunpack.c.l.b16 %v7339
    %v8470 = vunpack.c.h.b16 %v7339
    %v8471 = vunpack.c.l.b16 %v7340
    %v8472 = vunpack.c.h.b16 %v7340
    %v8473 = vunpack.c.l.b16 %v7341
    %v8474 = vunpack.c.h.b16 %v7341
    %v8475 = vunpack.c.l.b16 %v7342
    %v8476 = vunpack.c.h.b16 %v7342
    %v8477 = vunpack.c.l.b16 %v7343
    %v8478 = vunpack.c.h.b16 %v7343
    %v8479 = vunpack.c.l.b16 %v7344
    %v8480 = vunpack.c.h.b16 %v7344
    %v8481 = vunpack.c.l.b16 %v7345
    %v8482 = vunpack.c.h.b16 %v7345
    %v8483 = vunpack.c.l.b16 %v7346
    %v8484 = vunpack.c.h.b16 %v7346
    %v8485 = vunpack.c.l.b16 %v7347
    %v8486 = vunpack.c.h.b16 %v7347
    %v8487 = vunpack.c.l.b16 %v7348
    %v8488 = vunpack.c.h.b16 %v7348
    %v8489 = vunpack.c.l.b16 %v7349
    %v8490 = vunpack.c.h.b16 %v7349
    %v8491 = vunpack.c.l.b16 %v7350
    %v8492 = vunpack.c.h.b16 %v7350
    %v8493 = vunpack.c.l.b16 %v7351
    %v8494 = vunpack.c.h.b16 %v7351
    %v8495 = vunpack.c.l.b16 %v7352
    %v8496 = vunpack.c.h.b16 %v7352
    %v8497 = vunpack.c.l.b16 %v7353
    %v8498 = vunpack.c.h.b16 %v7353
    %v8499 = vunpack.c.l.b16 %v7354
    %v8500 = vunpack.c.h.b16 %v7354
    %v8501 = vunpack.c.l.b16 %v7355
    %v8502 = vunpack.c.h.b16 %v7355
    %v8503 = vunpack.c.l.b16 %v7356
    %v8504 = vunpack.c.h.b16 %v7356
    %v8505 = vunpack.c.l.b16 %v7357
    %v8506 = vunpack.c.h.b16 %v7357
    %v8507 = vunpack.c.l.b16 %v7358
    %v8508 = vunpack.c.h.b16 %v7358
    %v8509 = vunpack.c.l.b16 %v7359
    %v8510 = vunpack.c.h.b16 %v7359
    %v8511 = vunpack.c.l.b16 %v7360
    %v8512 = vunpack.c.h.b16 %v7360
    %v8513 = vunpack.c.l.b16 %v7361
    %v8514 = vunpack.c.h.b16 %v7361
    %v8515 = vunpack.c.l.b16 %v7362
    %v8516 = vunpack.c.h.b16 %v7362
    %v8517 = vunpack.c.l.b16 %v7363
    %v8518 = vunpack.c.h.b16 %v7363
    %v8519 = vunpack.c.l.b16 %v7364
    %v8520 = vunpack.c.h.b16 %v7364
    %v8521 = vunpack.c.l.b16 %v7365
    %v8522 = vunpack.c.h.b16 %v7365
    %v8523 = vunpack.c.l.b16 %v7366
    %v8524 = vunpack.c.h.b16 %v7366
    %v8525 = vunpack.c.l.b16 %v7367
    %v8526 = vunpack.c.h.b16 %v7367
    %v8527 = vunpack.c.l.b16 %v7368
    %v8528 = vunpack.c.h.b16 %v7368
    %v8529 = vunpack.c.l.b16 %v7369
    %v8530 = vunpack.c.h.b16 %v7369
    %v8531 = vunpack.c.l.b16 %v7370
    %v8532 = vunpack.c.h.b16 %v7370
    %v8533 = vunpack.c.l.b16 %v7371
    %v8534 = vunpack.c.h.b16 %v7371
    %v8535 = vunpack.c.l.b16 %v7372
    %v8536 = vunpack.c.h.b16 %v7372
    %v8537 = vunpack.c.l.b16 %v7373
    %v8538 = vunpack.c.h.b16 %v7373
    %v8539 = vunpack.c.l.b16 %v7374
    %v8540 = vunpack.c.h.b16 %v7374
    %v8541 = vunpack.c.l.b16 %v7375
    %v8542 = vunpack.c.h.b16 %v7375
    %v8543 = vunpack.c.l.b16 %v7376
    %v8544 = vunpack.c.h.b16 %v7376
    %v8545 = vunpack.c.l.b16 %v7377
    %v8546 = vunpack.c.h.b16 %v7377
    %v8547 = vunpack.c.l.b16 %v7378
    %v8548 = vunpack.c.h.b16 %v7378
    %v8549 = vunpack.c.l.b16 %v7379
    %v8550 = vunpack.c.h.b16 %v7379
    %v8551 = vunpack.c.l.b16 %v7380
    %v8552 = vunpack.c.h.b16 %v7380
    %v8553 = vunpack.c.l.b16 %v7381
    %v8554 = vunpack.c.h.b16 %v7381
    %v8555 = vunpack.c.l.b16 %v7382
    %v8556 = vunpack.c.h.b16 %v7382
    %v8557 = vunpack.c.l.b16 %v7383
    %v8558 = vunpack.c.h.b16 %v7383
    %v8559 = vunpack.c.l.b16 %v7384
    %v8560 = vunpack.c.h.b16 %v7384
    %v8561 = vunpack.c.l.b16 %v7385
    %v8562 = vunpack.c.h.b16 %v7385
    %v8563 = vunpack.c.l.b16 %v7386
    %v8564 = vunpack.c.h.b16 %v7386
    %v8565 = vunpack.c.l.b16 %v7387
    %v8566 = vunpack.c.h.b16 %v7387
    %v8567 = vunpack.c.l.b16 %v7388
    %v8568 = vunpack.c.h.b16 %v7388
    %v8569 = vunpack.c.l.b16 %v7389
    %v8570 = vunpack.c.h.b16 %v7389
    %v8571 = vunpack.c.l.b16 %v7390
    %v8572 = vunpack.c.h.b16 %v7390
    %v8573 = vunpack.c.l.b16 %v7391
    %v8574 = vunpack.c.h.b16 %v7391
    %v8575 = vunpack.c.l.b16 %v7392
    %v8576 = vunpack.c.h.b16 %v7392
    %v8577 = vunpack.c.l.b16 %v7393
    %v8578 = vunpack.c.h.b16 %v7393
    %v8579 = vunpack.c.l.b16 %v7394
    %v8580 = vunpack.c.h.b16 %v7394
    %v8581 = vunpack.c.l.b16 %v7395
    %v8582 = vunpack.c.h.b16 %v7395
    %v8583 = vunpack.c.l.b16 %v7396
    %v8584 = vunpack.c.h.b16 %v7396
    %v8585 = vunpack.c.l.b16 %v7397
    %v8586 = vunpack.c.h.b16 %v7397
    %v8587 = vunpack.c.l.b16 %v7398
    %v8588 = vunpack.c.h.b16 %v7398
    %v8589 = vunpack.c.l.b16 %v7399
    %v8590 = vunpack.c.h.b16 %v7399
    %v8591 = vunpack.c.l.b16 %v7400
    %v8592 = vunpack.c.h.b16 %v7400
    %v8593 = vunpack.c.l.b16 %v7401
    %v8594 = vunpack.c.h.b16 %v7401
    %v8595 = vunpack.c.l.b16 %v7402
    %v8596 = vunpack.c.h.b16 %v7402
    %v8597 = vunpack.c.l.b16 %v7403
    %v8598 = vunpack.c.h.b16 %v7403
    %v8599 = vunpack.c.l.b16 %v7404
    %v8600 = vunpack.c.h.b16 %v7404
    %v8601 = vunpack.c.l.b16 %v7405
    %v8602 = vunpack.c.h.b16 %v7405
    %v8603 = vunpack.c.l.b16 %v7406
    %v8604 = vunpack.c.h.b16 %v7406
    %v8605 = vunpack.c.l.b16 %v7407
    %v8606 = vunpack.c.h.b16 %v7407
    %v8607 = vunpack.c.l.b16 %v7408
    %v8608 = vunpack.c.h.b16 %v7408
    %v8609 = vunpack.c.l.b16 %v7409
    %v8610 = vunpack.c.h.b16 %v7409
    %v8611 = vunpack.c.l.b16 %v7410
    %v8612 = vunpack.c.h.b16 %v7410
    %v8613 = vunpack.c.l.b16 %v7411
    %v8614 = vunpack.c.h.b16 %v7411
    %v8615 = vunpack.c.l.b16 %v7412
    %v8616 = vunpack.c.h.b16 %v7412
    %v8617 = vunpack.c.l.b16 %v7413
    %v8618 = vunpack.c.h.b16 %v7413
    %v8619 = vunpack.c.l.b16 %v7414
    %v8620 = vunpack.c.h.b16 %v7414
    %v8621 = vunpack.c.l.b16 %v7415
    %v8622 = vunpack.c.h.b16 %v7415
    %v8623 = vunpack.c.l.b16 %v7416
    %v8624 = vunpack.c.h.b16 %v7416
    %v8625 = vunpack.c.l.b16 %v7417
    %v8626 = vunpack.c.h.b16 %v7417
    %v8627 = vunpack.c.l.b16 %v7418
    %v8628 = vunpack.c.h.b16 %v7418
    %v8629 = vunpack.c.l.b16 %v7419
    %v8630 = vunpack.c.h.b16 %v7419
    %v8631 = vunpack.c.l.b16 %v7420
    %v8632 = vunpack.c.h.b16 %v7420
    %v8633 = vunpack.c.l.b16 %v7421
    %v8634 = vunpack.c.h.b16 %v7421
    %v8635 = vunpack.c.l.b16 %v7422
    %v8636 = vunpack.c.h.b16 %v7422
    %v8637 = vunpack.c.l.b16 %v7423
    %v8638 = vunpack.c.h.b16 %v7423
    %v8639 = vunpack.c.l.b16 %v7424
    %v8640 = vunpack.c.h.b16 %v7424
    %v8641 = vunpack.c.l.b16 %v7425
    %v8642 = vunpack.c.h.b16 %v7425
    %v8643 = vunpack.c.l.b16 %v7426
    %v8644 = vunpack.c.h.b16 %v7426
    %v8645 = vunpack.c.l.b16 %v7427
    %v8646 = vunpack.c.h.b16 %v7427
    %v8647 = vunpack.c.l.b16 %v7428
    %v8648 = vunpack.c.h.b16 %v7428
    %v8649 = vunpack.c.l.b16 %v7429
    %v8650 = vunpack.c.h.b16 %v7429
    %v8651 = vunpack.c.l.b16 %v7430
    %v8652 = vunpack.c.h.b16 %v7430
    %v8653 = vunpack.c.l.b16 %v7431
    %v8654 = vunpack.c.h.b16 %v7431
    %v8655 = vunpack.c.l.b16 %v7432
    %v8656 = vunpack.c.h.b16 %v7432
    %v8657 = vunpack.c.l.b16 %v7433
    %v8658 = vunpack.c.h.b16 %v7433
    %v8659 = vunpack.c.l.b16 %v7434
    %v8660 = vunpack.c.h.b16 %v7434
    %v8661 = vunpack.c.l.b16 %v7435
    %v8662 = vunpack.c.h.b16 %v7435
    %v8663 = vunpack.c.l.b16 %v7436
    %v8664 = vunpack.c.h.b16 %v7436
    %v8665 = vunpack.c.l.b16 %v7437
    %v8666 = vunpack.c.h.b16 %v7437
    %v8667 = vunpack.c.l.b16 %v7438
    %v8668 = vunpack.c.h.b16 %v7438
    %v8669 = vunpack.c.l.b16 %v7439
    %v8670 = vunpack.c.h.b16 %v7439
    %v8671 = vunpack.c.l.b16 %v7440
    %v8672 = vunpack.c.h.b16 %v7440
    %v8673 = vunpack.c.l.b16 %v7441
    %v8674 = vunpack.c.h.b16 %v7441
    %v8675 = vunpack.c.l.b16 %v7442
    %v8676 = vunpack.c.h.b16 %v7442
    %v8677 = vunpack.c.l.b16 %v7443
    %v8678 = vunpack.c.h.b16 %v7443
    %v8679 = vunpack.c.l.b16 %v7444
    %v8680 = vunpack.c.h.b16 %v7444
    %v8681 = vunpack.c.l.b16 %v7445
    %v8682 = vunpack.c.h.b16 %v7445
    %v8683 = vunpack.c.l.b16 %v7446
    %v8684 = vunpack.c.h.b16 %v7446
    %v8685 = vunpack.c.l.b16 %v7447
    %v8686 = vunpack.c.h.b16 %v7447
    %v8687 = vunpack.c.l.b16 %v7448
    %v8688 = vunpack.c.h.b16 %v7448
    %v8689 = vunpack.c.l.b16 %v7449
    %v8690 = vunpack.c.h.b16 %v7449
    %v8691 = vunpack.c.l.b16 %v7450
    %v8692 = vunpack.c.h.b16 %v7450
    %v8693 = vunpack.c.l.b16 %v7451
    %v8694 = vunpack.c.h.b16 %v7451
    %v8695 = vunpack.c.l.b16 %v7452
    %v8696 = vunpack.c.h.b16 %v7452
    %v8697 = vunpack.c.l.b16 %v7453
    %v8698 = vunpack.c.h.b16 %v7453
    %v8699 = vunpack.c.l.b16 %v7454
    %v8700 = vunpack.c.h.b16 %v7454
    %v8701 = vunpack.c.l.b16 %v7455
    %v8702 = vunpack.c.h.b16 %v7455
    %v8703 = vunpack.c.l.b16 %v7456
    %v8704 = vunpack.c.h.b16 %v7456
    %v8705 = vunpack.c.l.b16 %v7457
    %v8706 = vunpack.c.h.b16 %v7457
    %v8707 = vunpack.c.l.b16 %v7458
    %v8708 = vunpack.c.h.b16 %v7458
    %v8709 = vunpack.c.l.b16 %v7459
    %v8710 = vunpack.c.h.b16 %v7459
    %v8711 = vunpack.c.l.b16 %v7460
    %v8712 = vunpack.c.h.b16 %v7460
    %v8713 = vunpack.c.l.b16 %v7461
    %v8714 = vunpack.c.h.b16 %v7461
    %v8715 = vunpack.c.l.b16 %v7462
    %v8716 = vunpack.c.h.b16 %v7462
    %v8717 = vunpack.c.l.b16 %v7463
    %v8718 = vunpack.c.h.b16 %v7463
    %v8719 = vunpack.c.l.b16 %v7464
    %v8720 = vunpack.c.h.b16 %v7464
    %v8721 = vunpack.c.l.b16 %v7465
    %v8722 = vunpack.c.h.b16 %v7465
    %v8723 = vunpack.c.l.b16 %v7466
    %v8724 = vunpack.c.h.b16 %v7466
    %v8725 = vunpack.c.l.b16 %v7467
    %v8726 = vunpack.c.h.b16 %v7467
    %v8727 = vunpack.c.l.b16 %v7468
    %v8728 = vunpack.c.h.b16 %v7468
    %v8729 = vunpack.c.l.b16 %v7469
    %v8730 = vunpack.c.h.b16 %v7469
    %v8731 = vunpack.c.l.b16 %v7470
    %v8732 = vunpack.c.h.b16 %v7470
    %v8733 = vunpack.c.l.b16 %v7471
    %v8734 = vunpack.c.h.b16 %v7471
    %v8735 = vunpack.c.l.b16 %v7472
    %v8736 = vunpack.c.h.b16 %v7472
    %v8737 = vunpack.c.l.b16 %v7473
    %v8738 = vunpack.c.h.b16 %v7473
    %v8739 = vunpack.c.l.b16 %v7474
    %v8740 = vunpack.c.h.b16 %v7474
    %v8741 = vunpack.c.l.b16 %v7475
    %v8742 = vunpack.c.h.b16 %v7475
    %v8743 = vunpack.c.l.b16 %v7476
    %v8744 = vunpack.c.h.b16 %v7476
    %v8745 = vunpack.c.l.b16 %v7477
    %v8746 = vunpack.c.h.b16 %v7477
    %v8747 = vunpack.c.l.b16 %v7478
    %v8748 = vunpack.c.h.b16 %v7478
    %v8749 = vunpack.c.l.b16 %v7479
    %v8750 = vunpack.c.h.b16 %v7479
    %v8751 = vunpack.c.l.b16 %v7480
    %v8752 = vunpack.c.h.b16 %v7480
    %v8753 = vunpack.c.l.b16 %v7481
    %v8754 = vunpack.c.h.b16 %v7481
    %v8755 = vunpack.c.l.b16 %v7482
    %v8756 = vunpack.c.h.b16 %v7482
    %v8757 = vunpack.c.l.b16 %v7483
    %v8758 = vunpack.c.h.b16 %v7483
    %v8759 = vunpack.c.l.b16 %v7484
    %v8760 = vunpack.c.h.b16 %v7484
    %v8761 = vunpack.c.l.b16 %v7485
    %v8762 = vunpack.c.h.b16 %v7485
    %v8763 = vunpack.c.l.b16 %v7486
    %v8764 = vunpack.c.h.b16 %v7486
    %v8765 = vunpack.c.l.b16 %v7487
    %v8766 = vunpack.c.h.b16 %v7487
    %v8767 = vunpack.c.l.b16 %v7488
    %v8768 = vunpack.c.h.b16 %v7488
    %v8769 = vunpack.c.l.b16 %v7489
    %v8770 = vunpack.c.h.b16 %v7489
    %v8771 = vunpack.c.l.b16 %v7490
    %v8772 = vunpack.c.h.b16 %v7490
    %v8773 = vunpack.c.l.b16 %v7491
    %v8774 = vunpack.c.h.b16 %v7491
    %v8775 = vunpack.c.l.b16 %v7492
    %v8776 = vunpack.c.h.b16 %v7492
    %v8777 = vunpack.c.l.b16 %v7493
    %v8778 = vunpack.c.h.b16 %v7493
    %v8779 = vunpack.c.l.b16 %v7494
    %v8780 = vunpack.c.h.b16 %v7494
    %v8781 = vunpack.c.l.b16 %v7495
    %v8782 = vunpack.c.h.b16 %v7495
    %v8783 = vunpack.c.l.b16 %v7496
    %v8784 = vunpack.c.h.b16 %v7496
    %v8785 = vunpack.c.l.b16 %v7497
    %v8786 = vunpack.c.h.b16 %v7497
    %v8787 = vunpack.c.l.b16 %v7498
    %v8788 = vunpack.c.h.b16 %v7498
    %v8789 = vunpack.c.l.b16 %v7499
    %v8790 = vunpack.c.h.b16 %v7499
    %v8791 = vunpack.c.l.b16 %v7500
    %v8792 = vunpack.c.h.b16 %v7500
    %v8793 = vunpack.c.l.b16 %v7501
    %v8794 = vunpack.c.h.b16 %v7501
    %v8795 = vunpack.c.l.b16 %v7502
    %v8796 = vunpack.c.h.b16 %v7502
    %v8797 = vunpack.c.l.b16 %v7503
    %v8798 = vunpack.c.h.b16 %v7503
    %v8799 = vunpack.c.l.b16 %v7504
    %v8800 = vunpack.c.h.b16 %v7504
    %v8801 = vunpack.c.l.b16 %v7505
    %v8802 = vunpack.c.h.b16 %v7505
    %v8803 = vunpack.c.l.b16 %v7506
    %v8804 = vunpack.c.h.b16 %v7506
    %v8805 = vunpack.c.l.b16 %v7507
    %v8806 = vunpack.c.h.b16 %v7507
    %v8807 = vunpack.c.l.b16 %v7508
    %v8808 = vunpack.c.h.b16 %v7508
    %v8809 = vunpack.c.l.b16 %v7509
    %v8810 = vunpack.c.h.b16 %v7509
    %v8811 = vunpack.c.l.b16 %v7510
    %v8812 = vunpack.c.h.b16 %v7510
    %v8813 = vunpack.c.l.b16 %v7511
    %v8814 = vunpack.c.h.b16 %v7511
    %v8815 = vunpack.c.l.b16 %v7512
    %v8816 = vunpack.c.h.b16 %v7512
    %v8817 = vunpack.c.l.b16 %v7513
    %v8818 = vunpack.c.h.b16 %v7513
    %v8819 = vunpack.c.l.b16 %v7514
    %v8820 = vunpack.c.h.b16 %v7514
    %v8821 = vunpack.c.l.b16 %v7515
    %v8822 = vunpack.c.h.b16 %v7515
    %v8823 = vunpack.c.l.b16 %v7516
    %v8824 = vunpack.c.h.b16 %v7516
    %v8825 = vunpack.c.l.b16 %v7517
    %v8826 = vunpack.c.h.b16 %v7517
    %v8827 = vunpack.c.l.b16 %v7518
    %v8828 = vunpack.c.h.b16 %v7518
    %v8829 = vunpack.c.l.b16 %v7519
    %v8830 = vunpack.c.h.b16 %v7519
    %v8831 = vunpack.c.l.b16 %v7520
    %v8832 = vunpack.c.h.b16 %v7520
    %v8833 = vunpack.c.l.b16 %v7521
    %v8834 = vunpack.c.h.b16 %v7521
    %v8835 = vunpack.c.l.b16 %v7522
    %v8836 = vunpack.c.h.b16 %v7522
    %v8837 = vunpack.c.l.b16 %v7523
    %v8838 = vunpack.c.h.b16 %v7523
    %v8839 = vunpack.c.l.b16 %v7524
    %v8840 = vunpack.c.h.b16 %v7524
    %v8841 = vunpack.c.l.b16 %v7525
    %v8842 = vunpack.c.h.b16 %v7525
    %v8843 = vunpack.c.l.b16 %v7526
    %v8844 = vunpack.c.h.b16 %v7526
    %v8845 = vunpack.c.l.b16 %v7527
    %v8846 = vunpack.c.h.b16 %v7527
    %v8847 = vunpack.c.l.b16 %v7528
    %v8848 = vunpack.c.h.b16 %v7528
    %v8849 = vunpack.c.l.b16 %v7529
    %v8850 = vunpack.c.h.b16 %v7529
    %v8851 = vunpack.c.l.b16 %v7530
    %v8852 = vunpack.c.h.b16 %v7530
    %v8853 = vunpack.c.l.b16 %v7531
    %v8854 = vunpack.c.h.b16 %v7531
    %v8855 = vunpack.c.l.b16 %v7532
    %v8856 = vunpack.c.h.b16 %v7532
    %v8857 = vunpack.c.l.b16 %v7533
    %v8858 = vunpack.c.h.b16 %v7533
    %v8859 = vunpack.c.l.b16 %v7534
    %v8860 = vunpack.c.h.b16 %v7534
    %v8861 = vunpack.c.l.b16 %v7535
    %v8862 = vunpack.c.h.b16 %v7535
    %v8863 = vunpack.c.l.b16 %v7536
    %v8864 = vunpack.c.h.b16 %v7536
    %v8865 = vunpack.c.l.b16 %v7537
    %v8866 = vunpack.c.h.b16 %v7537
    %v8867 = vunpack.c.l.b16 %v7538
    %v8868 = vunpack.c.h.b16 %v7538
    %v8869 = vunpack.c.l.b16 %v7539
    %v8870 = vunpack.c.h.b16 %v7539
    %v8871 = vunpack.c.l.b16 %v7540
    %v8872 = vunpack.c.h.b16 %v7540
    %v8873 = vunpack.c.l.b16 %v7541
    %v8874 = vunpack.c.h.b16 %v7541
    %v8875 = vunpack.c.l.b16 %v7542
    %v8876 = vunpack.c.h.b16 %v7542
    %v8877 = vunpack.c.l.b16 %v7543
    %v8878 = vunpack.c.h.b16 %v7543
    %v8879 = vunpack.c.l.b16 %v7544
    %v8880 = vunpack.c.h.b16 %v7544
    %v8881 = vunpack.c.l.b16 %v7545
    %v8882 = vunpack.c.h.b16 %v7545
    %v8883 = vunpack.c.l.b16 %v7546
    %v8884 = vunpack.c.h.b16 %v7546
    %v8885 = vunpack.c.l.b16 %v7547
    %v8886 = vunpack.c.h.b16 %v7547
    %v8887 = vunpack.c.l.b16 %v7548
    %v8888 = vunpack.c.h.b16 %v7548
    %v8889 = vunpack.c.l.b16 %v7549
    %v8890 = vunpack.c.h.b16 %v7549
    %v8891 = vunpack.c.l.b16 %v7550
    %v8892 = vunpack.c.h.b16 %v7550
    %v8893 = vunpack.c.l.b16 %v7551
    %v8894 = vunpack.c.h.b16 %v7551
    %v8895 = vunpack.c.l.b16 %v7552
    %v8896 = vunpack.c.h.b16 %v7552
    %v8897 = vunpack.c.l.b16 %v7553
    %v8898 = vunpack.c.h.b16 %v7553
    %v8899 = vunpack.c.l.b16 %v7554
    %v8900 = vunpack.c.h.b16 %v7554
    %v8901 = vunpack.c.l.b16 %v7555
    %v8902 = vunpack.c.h.b16 %v7555
    %v8903 = vunpack.c.l.b16 %v7556
    %v8904 = vunpack.c.h.b16 %v7556
    %v8905 = vunpack.c.l.b16 %v7557
    %v8906 = vunpack.c.h.b16 %v7557
    %v8907 = vunpack.c.l.b16 %v7558
    %v8908 = vunpack.c.h.b16 %v7558
    %v8909 = vunpack.c.l.b16 %v7559
    %v8910 = vunpack.c.h.b16 %v7559
    %v8911 = vunpack.c.l.b16 %v7560
    %v8912 = vunpack.c.h.b16 %v7560
    %v8913 = vunpack.c.l.b16 %v7561
    %v8914 = vunpack.c.h.b16 %v7561
    %v8915 = vunpack.c.l.b16 %v7562
    %v8916 = vunpack.c.h.b16 %v7562
    %v8917 = vunpack.c.l.b16 %v7563
    %v8918 = vunpack.c.h.b16 %v7563
    %v8919 = vunpack.c.l.b16 %v7564
    %v8920 = vunpack.c.h.b16 %v7564
    %v8921 = vunpack.c.l.b16 %v7565
    %v8922 = vunpack.c.h.b16 %v7565
    %v8923 = vunpack.c.l.b16 %v7566
    %v8924 = vunpack.c.h.b16 %v7566
    %v8925 = vunpack.c.l.b16 %v7567
    %v8926 = vunpack.c.h.b16 %v7567
    %v8927 = vunpack.c.l.b16 %v7568
    %v8928 = vunpack.c.h.b16 %v7568
    %v8929 = vunpack.c.l.b16 %v7569
    %v8930 = vunpack.c.h.b16 %v7569
    %v8931 = vunpack.c.l.b16 %v7570
    %v8932 = vunpack.c.h.b16 %v7570
    %v8933 = vunpack.c.l.b16 %v7571
    %v8934 = vunpack.c.h.b16 %v7571
    %v8935 = vunpack.c.l.b16 %v7572
    %v8936 = vunpack.c.h.b16 %v7572
    %v8937 = vunpack.c.l.b16 %v7573
    %v8938 = vunpack.c.h.b16 %v7573
    %v8939 = vunpack.c.l.b16 %v7574
    %v8940 = vunpack.c.h.b16 %v7574
    %v8941 = vunpack.c.l.b16 %v7575
    %v8942 = vunpack.c.h.b16 %v7575
    %v8943 = vunpack.c.l.b16 %v7576
    %v8944 = vunpack.c.h.b16 %v7576
    %v8945 = vunpack.c.l.b16 %v7577
    %v8946 = vunpack.c.h.b16 %v7577
    %v8947 = vunpack.c.l.b16 %v7578
    %v8948 = vunpack.c.h.b16 %v7578
    %v8949 = vunpack.c.l.b16 %v7579
    %v8950 = vunpack.c.h.b16 %v7579
    %v8951 = vunpack.c.l.b16 %v7580
    %v8952 = vunpack.c.h.b16 %v7580
    %v8953 = vunpack.c.l.b16 %v7581
    %v8954 = vunpack.c.h.b16 %v7581
    %v8955 = vunpack.c.l.b16 %v7582
    %v8956 = vunpack.c.h.b16 %v7582
    %v8957 = vunpack.c.l.b16 %v7583
    %v8958 = vunpack.c.h.b16 %v7583
    %v8959 = vunpack.c.l.b16 %v7584
    %v8960 = vunpack.c.h.b16 %v7584
    %v8961 = vunpack.c.l.b16 %v7585
    %v8962 = vunpack.c.h.b16 %v7585
    %v8963 = vunpack.c.l.b16 %v7586
    %v8964 = vunpack.c.h.b16 %v7586
    %v8965 = vunpack.c.l.b16 %v7587
    %v8966 = vunpack.c.h.b16 %v7587
    %v8967 = vunpack.c.l.b16 %v7588
    %v8968 = vunpack.c.h.b16 %v7588
    %v8969 = vunpack.c.l.b16 %v7589
    %v8970 = vunpack.c.h.b16 %v7589
    %v8971 = vunpack.c.l.b16 %v7590
    %v8972 = vunpack.c.h.b16 %v7590
    %v8973 = vunpack.c.l.b16 %v7591
    %v8974 = vunpack.c.h.b16 %v7591
    %v8975 = vunpack.c.l.b16 %v7592
    %v8976 = vunpack.c.h.b16 %v7592
    %v8977 = vunpack.c.l.b16 %v7593
    %v8978 = vunpack.c.h.b16 %v7593
    %v8979 = vunpack.c.l.b16 %v7594
    %v8980 = vunpack.c.h.b16 %v7594
    %v8981 = vunpack.c.l.b16 %v7595
    %v8982 = vunpack.c.h.b16 %v7595
    %v8983 = vunpack.c.l.b16 %v7596
    %v8984 = vunpack.c.h.b16 %v7596
    %v8985 = vunpack.c.l.b16 %v7597
    %v8986 = vunpack.c.h.b16 %v7597
    %v8987 = vunpack.c.l.b16 %v7598
    %v8988 = vunpack.c.h.b16 %v7598
    %v8989 = vunpack.c.l.b16 %v7599
    %v8990 = vunpack.c.h.b16 %v7599
    %v8991 = vunpack.c.l.b16 %v7600
    %v8992 = vunpack.c.h.b16 %v7600
    %v8993 = vunpack.c.l.b16 %v7601
    %v8994 = vunpack.c.h.b16 %v7601
    %v8995 = vunpack.c.l.b16 %v7602
    %v8996 = vunpack.c.h.b16 %v7602
    %v8997 = vunpack.c.l.b16 %v7603
    %v8998 = vunpack.c.h.b16 %v7603
    %v8999 = vunpack.c.l.b16 %v7604
    %v9000 = vunpack.c.h.b16 %v7604
    %v9001 = vunpack.c.l.b16 %v7605
    %v9002 = vunpack.c.h.b16 %v7605
    %v9003 = vunpack.c.l.b16 %v7606
    %v9004 = vunpack.c.h.b16 %v7606
    %v9005 = vunpack.c.l.b16 %v7607
    %v9006 = vunpack.c.h.b16 %v7607
    %v9007 = vunpack.c.l.b16 %v7608
    %v9008 = vunpack.c.h.b16 %v7608
    %v9009 = vunpack.c.l.b16 %v7609
    %v9010 = vunpack.c.h.b16 %v7609
    %v9011 = vunpack.c.l.b16 %v7610
    %v9012 = vunpack.c.h.b16 %v7610
    %v9013 = vunpack.c.l.b16 %v7611
    %v9014 = vunpack.c.h.b16 %v7611
    %v9015 = vunpack.c.l.b16 %v7612
    %v9016 = vunpack.c.h.b16 %v7612
    %v9017 = vunpack.c.l.b16 %v7613
    %v9018 = vunpack.c.h.b16 %v7613
    %v9019 = vunpack.c.l.b16 %v7614
    %v9020 = vunpack.c.h.b16 %v7614
    %v9021 = vunpack.c.l.b16 %v7615
    %v9022 = vunpack.c.h.b16 %v7615
    %v9023 = vunpack.c.l.b16 %v7616
    %v9024 = vunpack.c.h.b16 %v7616
    %v9025 = vunpack.c.l.b16 %v7617
    %v9026 = vunpack.c.h.b16 %v7617
    %v9027 = vunpack.c.l.b16 %v7618
    %v9028 = vunpack.c.h.b16 %v7618
    %v9029 = vunpack.c.l.b16 %v7619
    %v9030 = vunpack.c.h.b16 %v7619
    %v9031 = vunpack.c.l.b16 %v7620
    %v9032 = vunpack.c.h.b16 %v7620
    %v9033 = vunpack.c.l.b16 %v7621
    %v9034 = vunpack.c.h.b16 %v7621
    %v9035 = vunpack.c.l.b16 %v7622
    %v9036 = vunpack.c.h.b16 %v7622
    %v9037 = vunpack.c.l.b16 %v7623
    %v9038 = vunpack.c.h.b16 %v7623
    %v9039 = vunpack.c.l.b16 %v7624
    %v9040 = vunpack.c.h.b16 %v7624
    %v9041 = vunpack.c.l.b16 %v7625
    %v9042 = vunpack.c.h.b16 %v7625
    %v9043 = vunpack.c.l.b16 %v7626
    %v9044 = vunpack.c.h.b16 %v7626
    %v9045 = vunpack.c.l.b16 %v7627
    %v9046 = vunpack.c.h.b16 %v7627
    %v9047 = vunpack.c.l.b16 %v7628
    %v9048 = vunpack.c.h.b16 %v7628
    %v9049 = vunpack.c.l.b16 %v7629
    %v9050 = vunpack.c.h.b16 %v7629
    %v9051 = vunpack.c.l.b16 %v7630
    %v9052 = vunpack.c.h.b16 %v7630
    %v9053 = vunpack.c.l.b16 %v7631
    %v9054 = vunpack.c.h.b16 %v7631
    %v9055 = vunpack.c.l.b16 %v7632
    %v9056 = vunpack.c.h.b16 %v7632
    %v9057 = vunpack.c.l.b16 %v7633
    %v9058 = vunpack.c.h.b16 %v7633
    %v9059 = vunpack.c.l.b16 %v7634
    %v9060 = vunpack.c.h.b16 %v7634
    %v9061 = vunpack.c.l.b16 %v7635
    %v9062 = vunpack.c.h.b16 %v7635
    %v9063 = vunpack.c.l.b16 %v7636
    %v9064 = vunpack.c.h.b16 %v7636
    %v9065 = vunpack.c.l.b16 %v7637
    %v9066 = vunpack.c.h.b16 %v7637
    %v9067 = vunpack.c.l.b16 %v7638
    %v9068 = vunpack.c.h.b16 %v7638
    %v9069 = vunpack.c.l.b16 %v7639
    %v9070 = vunpack.c.h.b16 %v7639
    %v9071 = vunpack.c.l.b16 %v7640
    %v9072 = vunpack.c.h.b16 %v7640
    %v9073 = vunpack.c.l.b16 %v7641
    %v9074 = vunpack.c.h.b16 %v7641
    %v9075 = vunpack.c.l.b16 %v7642
    %v9076 = vunpack.c.h.b16 %v7642
    %v9077 = vunpack.c.l.b16 %v7643
    %v9078 = vunpack.c.h.b16 %v7643
    %v9079 = vunpack.c.l.b16 %v7644
    %v9080 = vunpack.c.h.b16 %v7644
    %v9081 = vunpack.c.l.b16 %v7645
    %v9082 = vunpack.c.h.b16 %v7645
    %v9083 = vunpack.c.l.b16 %v7646
    %v9084 = vunpack.c.h.b16 %v7646
    %v9085 = vunpack.c.l.b16 %v7647
    %v9086 = vunpack.c.h.b16 %v7647
    %v9087 = vunpack.c.l.b16 %v7648
    %v9088 = vunpack.c.h.b16 %v7648
    %v9089 = vunpack.c.l.b16 %v7649
    %v9090 = vunpack.c.h.b16 %v7649
    %v9091 = vunpack.c.l.b16 %v7650
    %v9092 = vunpack.c.h.b16 %v7650
    %v9093 = vunpack.c.l.b16 %v7651
    %v9094 = vunpack.c.h.b16 %v7651
    %v9095 = vunpack.c.l.b16 %v7652
    %v9096 = vunpack.c.h.b16 %v7652
    %v9097 = vunpack.c.l.b16 %v7653
    %v9098 = vunpack.c.h.b16 %v7653
    %v9099 = vunpack.c.l.b16 %v7654
    %v9100 = vunpack.c.h.b16 %v7654
    %v9101 = vunpack.c.l.b16 %v7655
    %v9102 = vunpack.c.h.b16 %v7655
    %v9103 = vunpack.c.l.b16 %v7656
    %v9104 = vunpack.c.h.b16 %v7656
    %v9105 = vunpack.c.l.b16 %v7657
    %v9106 = vunpack.c.h.b16 %v7657
    %v9107 = vunpack.c.l.b16 %v7658
    %v9108 = vunpack.c.h.b16 %v7658
    %v9109 = vunpack.c.l.b16 %v7659
    %v9110 = vunpack.c.h.b16 %v7659
    %v9111 = vunpack.c.l.b16 %v7660
    %v9112 = vunpack.c.h.b16 %v7660
    %v9113 = vunpack.c.l.b16 %v7661
    %v9114 = vunpack.c.h.b16 %v7661
    %v9115 = vunpack.c.l.b16 %v7662
    %v9116 = vunpack.c.h.b16 %v7662
    %v9117 = vunpack.c.l.b16 %v7663
    %v9118 = vunpack.c.h.b16 %v7663
    %v9119 = vunpack.c.l.b16 %v7664
    %v9120 = vunpack.c.h.b16 %v7664
    %v9121 = vunpack.c.l.b16 %v7665
    %v9122 = vunpack.c.h.b16 %v7665
    %v9123 = vunpack.c.l.b16 %v7666
    %v9124 = vunpack.c.h.b16 %v7666
    %v9125 = vunpack.c.l.b16 %v7667
    %v9126 = vunpack.c.h.b16 %v7667
    %v9127 = vunpack.c.l.b16 %v7668
    %v9128 = vunpack.c.h.b16 %v7668
    %v9129 = vunpack.c.l.b16 %v7669
    %v9130 = vunpack.c.h.b16 %v7669
    %v9131 = vunpack.c.l.b16 %v7670
    %v9132 = vunpack.c.h.b16 %v7670
    %v9133 = vunpack.c.l.b16 %v7671
    %v9134 = vunpack.c.h.b16 %v7671
    %v9135 = vunpack.c.l.b16 %v7672
    %v9136 = vunpack.c.h.b16 %v7672
    %v9137 = vunpack.c.l.b16 %v7673
    %v9138 = vunpack.c.h.b16 %v7673
    %v9139 = vunpack.c.l.b16 %v7674
    %v9140 = vunpack.c.h.b16 %v7674
    %v9141 = vunpack.c.l.b16 %v7675
    %v9142 = vunpack.c.h.b16 %v7675
    %v9143 = vunpack.c.l.b16 %v7676
    %v9144 = vunpack.c.h.b16 %v7676
    %v9145 = vunpack.c.l.b16 %v7677
    %v9146 = vunpack.c.h.b16 %v7677
    %v9147 = vunpack.c.l.b16 %v7678
    %v9148 = vunpack.c.h.b16 %v7678
    %v9149 = vunpack.c.l.b16 %v7679
    %v9150 = vunpack.c.h.b16 %v7679
    %v9151 = vunpack.c.l.b16 %v7680
    %v9152 = vunpack.c.h.b16 %v7680
    %v9153 = vunpack.c.l.b16 %v7681
    %v9154 = vunpack.c.h.b16 %v7681
    %v9155 = vunpack.c.l.b16 %v7682
    %v9156 = vunpack.c.h.b16 %v7682
    %v9157 = vunpack.c.l.b16 %v7683
    %v9158 = vunpack.c.h.b16 %v7683
    %v9159 = vunpack.c.l.b16 %v7684
    %v9160 = vunpack.c.h.b16 %v7684
    %v9161 = vunpack.c.l.b16 %v7685
    %v9162 = vunpack.c.h.b16 %v7685
    %v9163 = vunpack.c.l.b16 %v7686
    %v9164 = vunpack.c.h.b16 %v7686
    %v9165 = vunpack.c.l.b16 %v7687
    %v9166 = vunpack.c.h.b16 %v7687
    %v9167 = vunpack.c.l.b16 %v7688
    %v9168 = vunpack.c.h.b16 %v7688
    %v9169 = vunpack.c.l.b16 %v7689
    %v9170 = vunpack.c.h.b16 %v7689
    %v9171 = vunpack.c.l.b16 %v7690
    %v9172 = vunpack.c.h.b16 %v7690
    %v9173 = vunpack.c.l.b16 %v7691
    %v9174 = vunpack.c.h.b16 %v7691
    %v9175 = vunpack.c.l.b16 %v7692
    %v9176 = vunpack.c.h.b16 %v7692
    %v9177 = vunpack.c.l.b16 %v7693
    %v9178 = vunpack.c.h.b16 %v7693
    %v9179 = vunpack.c.l.b16 %v7694
    %v9180 = vunpack.c.h.b16 %v7694
    %v9181 = vunpack.c.l.b16 %v7695
    %v9182 = vunpack.c.h.b16 %v7695
    %v9183 = vunpack.c.l.b16 %v7696
    %v9184 = vunpack.c.h.b16 %v7696
    %v9185 = vunpack.c.l.b16 %v7697
    %v9186 = vunpack.c.h.b16 %v7697
    %v9187 = vunpack.c.l.b16 %v7698
    %v9188 = vunpack.c.h.b16 %v7698
    %v9189 = vunpack.c.l.b16 %v7699
    %v9190 = vunpack.c.h.b16 %v7699
    %v9191 = vunpack.c.l.b16 %v7700
    %v9192 = vunpack.c.h.b16 %v7700
    %v9193 = vunpack.c.l.b16 %v7701
    %v9194 = vunpack.c.h.b16 %v7701
    %v9195 = vunpack.c.l.b16 %v7702
    %v9196 = vunpack.c.h.b16 %v7702
    %v9197 = vunpack.c.l.b16 %v7703
    %v9198 = vunpack.c.h.b16 %v7703
    %v9199 = vunpack.c.l.b16 %v7704
    %v9200 = vunpack.c.h.b16 %v7704
    %v9201 = vunpack.c.l.b16 %v7705
    %v9202 = vunpack.c.h.b16 %v7705
    %v9203 = vunpack.c.l.b16 %v7706
    %v9204 = vunpack.c.h.b16 %v7706
    %v9205 = vunpack.c.l.b16 %v7707
    %v9206 = vunpack.c.h.b16 %v7707
    %v9207 = vunpack.c.l.b16 %v7708
    %v9208 = vunpack.c.h.b16 %v7708
    %v9209 = vunpack.c.l.b16 %v7709
    %v9210 = vunpack.c.h.b16 %v7709
    %v9211 = vunpack.c.l.b16 %v7710
    %v9212 = vunpack.c.h.b16 %v7710
    %v9213 = vunpack.c.l.b16 %v7711
    %v9214 = vunpack.c.h.b16 %v7711
    %v9215 = vunpack.c.l.b16 %v7712
    %v9216 = vunpack.c.h.b16 %v7712
    %v9217 = vunpack.c.l.b16 %v7713
    %v9218 = vunpack.c.h.b16 %v7713
    %v9219 = vunpack.c.l.b16 %v7714
    %v9220 = vunpack.c.h.b16 %v7714
    %v9221 = vunpack.c.l.b16 %v7715
    %v9222 = vunpack.c.h.b16 %v7715
    %v9223 = vunpack.c.l.b16 %v7716
    %v9224 = vunpack.c.h.b16 %v7716
    %v9225 = vunpack.c.l.b16 %v7717
    %v9226 = vunpack.c.h.b16 %v7717
    %v9227 = vunpack.c.l.b16 %v7718
    %v9228 = vunpack.c.h.b16 %v7718
    %v9229 = vunpack.c.l.b16 %v7719
    %v9230 = vunpack.c.h.b16 %v7719
    %v9231 = vunpack.c.l.b16 %v7720
    %v9232 = vunpack.c.h.b16 %v7720
    %v9233 = vunpack.c.l.b16 %v7721
    %v9234 = vunpack.c.h.b16 %v7721
    %v9235 = vunpack.c.l.b16 %v7722
    %v9236 = vunpack.c.h.b16 %v7722
    %v9237 = vunpack.c.l.b16 %v7723
    %v9238 = vunpack.c.h.b16 %v7723
    %v9239 = vunpack.c.l.b16 %v7724
    %v9240 = vunpack.c.h.b16 %v7724
    %v9241 = vunpack.c.l.b16 %v7725
    %v9242 = vunpack.c.h.b16 %v7725
    %v9243 = vunpack.c.l.b16 %v7726
    %v9244 = vunpack.c.h.b16 %v7726
    %v9245 = vunpack.c.l.b16 %v7727
    %v9246 = vunpack.c.h.b16 %v7727
    %v9247 = vunpack.c.l.b16 %v7728
    %v9248 = vunpack.c.h.b16 %v7728
    %v9249 = vunpack.c.l.b16 %v7729
    %v9250 = vunpack.c.h.b16 %v7729
    %v9251 = vunpack.c.l.b16 %v7730
    %v9252 = vunpack.c.h.b16 %v7730
    %v9253 = vunpack.c.l.b16 %v7731
    %v9254 = vunpack.c.h.b16 %v7731
    %v9255 = vunpack.c.l.b16 %v7732
    %v9256 = vunpack.c.h.b16 %v7732
    %v9257 = vunpack.c.l.b16 %v7733
    %v9258 = vunpack.c.h.b16 %v7733
    %v9259 = vunpack.c.l.b16 %v7734
    %v9260 = vunpack.c.h.b16 %v7734
    %v9261 = vunpack.c.l.b16 %v7735
    %v9262 = vunpack.c.h.b16 %v7735
    %v9263 = vunpack.c.l.b16 %v7736
    %v9264 = vunpack.c.h.b16 %v7736
    %v9265 = vunpack.c.l.b16 %v7737
    %v9266 = vunpack.c.h.b16 %v7737
    %v9267 = vunpack.c.l.b16 %v7738
    %v9268 = vunpack.c.h.b16 %v7738
    %v9269 = vunpack.c.l.b16 %v7739
    %v9270 = vunpack.c.h.b16 %v7739
    %v9271 = vunpack.c.l.b16 %v7740
    %v9272 = vunpack.c.h.b16 %v7740
    %v9273 = vunpack.c.l.b16 %v7741
    %v9274 = vunpack.c.h.b16 %v7741
    %v9275 = vunpack.c.l.b16 %v7742
    %v9276 = vunpack.c.h.b16 %v7742
    %v9277 = vunpack.c.l.b16 %v7743
    %v9278 = vunpack.c.h.b16 %v7743
    %v9279 = vunpack.c.l.b16 %v7744
    %v9280 = vunpack.c.h.b16 %v7744
    %v9281 = vunpack.c.l.b16 %v7745
    %v9282 = vunpack.c.h.b16 %v7745
    %v9283 = vunpack.c.l.b16 %v7746
    %v9284 = vunpack.c.h.b16 %v7746
    %v9285 = vunpack.c.l.b16 %v7747
    %v9286 = vunpack.c.h.b16 %v7747
    %v9287 = vunpack.c.l.b16 %v7748
    %v9288 = vunpack.c.h.b16 %v7748
    %v9289 = vunpack.c.l.b16 %v7749
    %v9290 = vunpack.c.h.b16 %v7749
    %v9291 = vunpack.c.l.b16 %v7750
    %v9292 = vunpack.c.h.b16 %v7750
    %v9293 = vunpack.c.l.b16 %v7751
    %v9294 = vunpack.c.h.b16 %v7751
    %v9295 = vunpack.c.l.b16 %v7752
    %v9296 = vunpack.c.h.b16 %v7752
    %v9297 = vunpack.c.l.b16 %v7753
    %v9298 = vunpack.c.h.b16 %v7753
    %v9299 = vunpack.c.l.b16 %v7754
    %v9300 = vunpack.c.h.b16 %v7754
    %v9301 = vunpack.c.l.b16 %v7755
    %v9302 = vunpack.c.h.b16 %v7755
    %v9303 = vunpack.c.l.b16 %v7756
    %v9304 = vunpack.c.h.b16 %v7756
    %v9305 = vunpack.c.l.b16 %v7757
    %v9306 = vunpack.c.h.b16 %v7757
    %v9307 = vunpack.c.l.b16 %v7758
    %v9308 = vunpack.c.h.b16 %v7758
    %v9309 = vunpack.c.l.b16 %v7759
    %v9310 = vunpack.c.h.b16 %v7759
    %v9311 = vunpack.c.l.b16 %v7760
    %v9312 = vunpack.c.h.b16 %v7760
    %v9313 = vunpack.c.l.b16 %v7761
    %v9314 = vunpack.c.h.b16 %v7761
    %v9315 = vunpack.c.l.b16 %v7762
    %v9316 = vunpack.c.h.b16 %v7762
    %v9317 = vunpack.c.l.b16 %v7763
    %v9318 = vunpack.c.h.b16 %v7763
    %v9319 = vunpack.c.l.b16 %v7764
    %v9320 = vunpack.c.h.b16 %v7764
    %v9321 = vunpack.c.l.b16 %v7765
    %v9322 = vunpack.c.h.b16 %v7765
    %v9323 = vunpack.c.l.b16 %v7766
    %v9324 = vunpack.c.h.b16 %v7766
    %v9325 = vunpack.c.l.b16 %v7767
    %v9326 = vunpack.c.h.b16 %v7767
    %v9327 = vunpack.c.l.b16 %v7768
    %v9328 = vunpack.c.h.b16 %v7768
    %v9329 = vunpack.c.l.b16 %v7769
    %v9330 = vunpack.c.h.b16 %v7769
    %v9331 = vunpack.c.l.b16 %v7770
    %v9332 = vunpack.c.h.b16 %v7770
    %v9333 = vunpack.c.l.b16 %v7771
    %v9334 = vunpack.c.h.b16 %v7771
    %v9335 = vunpack.c.l.b16 %v7772
    %v9336 = vunpack.c.h.b16 %v7772
    %v9337 = vunpack.c.l.b16 %v7773
    %v9338 = vunpack.c.h.b16 %v7773
    %v9339 = vunpack.c.l.b16 %v7774
    %v9340 = vunpack.c.h.b16 %v7774
    %v9341 = vunpack.c.l.b16 %v7775
    %v9342 = vunpack.c.h.b16 %v7775
    %v9343 = vunpack.c.l.b16 %v7776
    %v9344 = vunpack.c.h.b16 %v7776
    %v9345 = vunpack.c.l.b16 %v7777
    %v9346 = vunpack.c.h.b16 %v7777
    %v9347 = vunpack.c.l.b16 %v7778
    %v9348 = vunpack.c.h.b16 %v7778
    %v9349 = vunpack.c.l.b16 %v7779
    %v9350 = vunpack.c.h.b16 %v7779
    %v9351 = vunpack.c.l.b16 %v7780
    %v9352 = vunpack.c.h.b16 %v7780
    %v9353 = vunpack.c.l.b16 %v7781
    %v9354 = vunpack.c.h.b16 %v7781
    %v9355 = vunpack.c.l.b16 %v7782
    %v9356 = vunpack.c.h.b16 %v7782
    %v9357 = vunpack.c.l.b16 %v7783
    %v9358 = vunpack.c.h.b16 %v7783
    %v9359 = vunpack.c.l.b16 %v7784
    %v9360 = vunpack.c.h.b16 %v7784
    %v9361 = vunpack.c.l.b16 %v7785
    %v9362 = vunpack.c.h.b16 %v7785
    %v9363 = vunpack.c.l.b16 %v7786
    %v9364 = vunpack.c.h.b16 %v7786
    %v9365 = vpack.c.b16 %v8349, %v8341
    %v9366 = vpack.c.b16 %v8350, %v8342
    %v9367 = vpack.c.b16 %v8351, %v8343
    %v9368 = vpack.c.b16 %v8352, %v8344
    %v9369 = vpack.c.b16 %v8353, %v8345
    %v9370 = vpack.c.b16 %v8354, %v8346
    %v9371 = vpack.c.b16 %v8355, %v8347
    %v9372 = vpack.c.b16 %v8356, %v8348
    %v9373 = vpack.c.b16 %v8365, %v8357
    %v9374 = vpack.c.b16 %v8366, %v8358
    %v9375 = vpack.c.b16 %v8367, %v8359
    %v9376 = vpack.c.b16 %v8368, %v8360
    %v9377 = vpack.c.b16 %v8369, %v8361
    %v9378 = vpack.c.b16 %v8370, %v8362
    %v9379 = vpack.c.b16 %v8371, %v8363
    %v9380 = vpack.c.b16 %v8372, %v8364
    %v9381 = vpack.c.b16 %v8381, %v8373
    %v9382 = vpack.c.b16 %v8382, %v8374
    %v9383 = vpack.c.b16 %v8383, %v8375
    %v9384 = vpack.c.b16 %v8384, %v8376
    %v9385 = vpack.c.b16 %v8385, %v8377
    %v9386 = vpack.c.b16 %v8386, %v8378
    %v9387 = vpack.c.b16 %v8387, %v8379
    %v9388 = vpack.c.b16 %v8388, %v8380
    %v9389 = vpack.c.b16 %v8397, %v8389
    %v9390 = vpack.c.b16 %v8398, %v8390
    %v9391 = vpack.c.b16 %v8399, %v8391
    %v9392 = vpack.c.b16 %v8400, %v8392
    %v9393 = vpack.c.b16 %v8401, %v8393
    %v9394 = vpack.c.b16 %v8402, %v8394
    %v9395 = vpack.c.b16 %v8403, %v8395
    %v9396 = vpack.c.b16 %v8404, %v8396
    %v9397 = vpack.c.b16 %v8413, %v8405
    %v9398 = vpack.c.b16 %v8414, %v8406
    %v9399 = vpack.c.b16 %v8415, %v8407
    %v9400 = vpack.c.b16 %v8416, %v8408
    %v9401 = vpack.c.b16 %v8417, %v8409
    %v9402 = vpack.c.b16 %v8418, %v8410
    %v9403 = vpack.c.b16 %v8419, %v8411
    %v9404 = vpack.c.b16 %v8420, %v8412
    %v9405 = vpack.c.b16 %v8429, %v8421
    %v9406 = vpack.c.b16 %v8430, %v8422
    %v9407 = vpack.c.b16 %v8431, %v8423
    %v9408 = vpack.c.b16 %v8432, %v8424
    %v9409 = vpack.c.b16 %v8433, %v8425
    %v9410 = vpack.c.b16 %v8434, %v8426
    %v9411 = vpack.c.b16 %v8435, %v8427
    %v9412 = vpack.c.b16 %v8436, %v8428
    %v9413 = vpack.c.b16 %v8445, %v8437
    %v9414 = vpack.c.b16 %v8446, %v8438
    %v9415 = vpack.c.b16 %v8447, %v8439
    %v9416 = vpack.c.b16 %v8448, %v8440
    %v9417 = vpack.c.b16 %v8449, %v8441
    %v9418 = vpack.c.b16 %v8450, %v8442
    %v9419 = vpack.c.b16 %v8451, %v8443
    %v9420 = vpack.c.b16 %v8452, %v8444
    %v9421 = vpack.c.b16 %v8461, %v8453
    %v9422 = vpack.c.b16 %v8462, %v8454
    %v9423 = vpack.c.b16 %v8463, %v8455
    %v9424 = vpack.c.b16 %v8464, %v8456
    %v9425 = vpack.c.b16 %v8465, %v8457
    %v9426 = vpack.c.b16 %v8466, %v8458
    %v9427 = vpack.c.b16 %v8467, %v8459
    %v9428 = vpack.c.b16 %v8468, %v8460
    %v9429 = vpack.c.b16 %v8477, %v8469
    %v9430 = vpack.c.b16 %v8478, %v8470
    %v9431 = vpack.c.b16 %v8479, %v8471
    %v9432 = vpack.c.b16 %v8480, %v8472
    %v9433 = vpack.c.b16 %v8481, %v8473
    %v9434 = vpack.c.b16 %v8482, %v8474
    %v9435 = vpack.c.b16 %v8483, %v8475
    %v9436 = vpack.c.b16 %v8484, %v8476
    %v9437 = vpack.c.b16 %v8493, %v8485
    %v9438 = vpack.c.b16 %v8494, %v8486
    %v9439 = vpack.c.b16 %v8495, %v8487
    %v9440 = vpack.c.b16 %v8496, %v8488
    %v9441 = vpack.c.b16 %v8497, %v8489
    %v9442 = vpack.c.b16 %v8498, %v8490
    %v9443 = vpack.c.b16 %v8499, %v8491
    %v9444 = vpack.c.b16 %v8500, %v8492
    %v9445 = vpack.c.b16 %v8509, %v8501
    %v9446 = vpack.c.b16 %v8510, %v8502
    %v9447 = vpack.c.b16 %v8511, %v8503
    %v9448 = vpack.c.b16 %v8512, %v8504
    %v9449 = vpack.c.b16 %v8513, %v8505
    %v9450 = vpack.c.b16 %v8514, %v8506
    %v9451 = vpack.c.b16 %v8515, %v8507
    %v9452 = vpack.c.b16 %v8516, %v8508
    %v9453 = vpack.c.b16 %v8525, %v8517
    %v9454 = vpack.c.b16 %v8526, %v8518
    %v9455 = vpack.c.b16 %v8527, %v8519
    %v9456 = vpack.c.b16 %v8528, %v8520
    %v9457 = vpack.c.b16 %v8529, %v8521
    %v9458 = vpack.c.b16 %v8530, %v8522
    %v9459 = vpack.c.b16 %v8531, %v8523
    %v9460 = vpack.c.b16 %v8532, %v8524
    %v9461 = vpack.c.b16 %v8541, %v8533
    %v9462 = vpack.c.b16 %v8542, %v8534
    %v9463 = vpack.c.b16 %v8543, %v8535
    %v9464 = vpack.c.b16 %v8544, %v8536
    %v9465 = vpack.c.b16 %v8545, %v8537
    %v9466 = vpack.c.b16 %v8546, %v8538
    %v9467 = vpack.c.b16 %v8547, %v8539
    %v9468 = vpack.c.b16 %v8548, %v8540
    %v9469 = vpack.c.b16 %v8557, %v8549
    %v9470 = vpack.c.b16 %v8558, %v8550
    %v9471 = vpack.c.b16 %v8559, %v8551
    %v9472 = vpack.c.b16 %v8560, %v8552
    %v9473 = vpack.c.b16 %v8561, %v8553
    %v9474 = vpack.c.b16 %v8562, %v8554
    %v9475 = vpack.c.b16 %v8563, %v8555
    %v9476 = vpack.c.b16 %v8564, %v8556
    %v9477 = vpack.c.b16 %v8573, %v8565
    %v9478 = vpack.c.b16 %v8574, %v8566
    %v9479 = vpack.c.b16 %v8575, %v8567
    %v9480 = vpack.c.b16 %v8576, %v8568
    %v9481 = vpack.c.b16 %v8577, %v8569
    %v9482 = vpack.c.b16 %v8578, %v8570
    %v9483 = vpack.c.b16 %v8579, %v8571
    %v9484 = vpack.c.b16 %v8580, %v8572
    %v9485 = vpack.c.b16 %v8589, %v8581
    %v9486 = vpack.c.b16 %v8590, %v8582
    %v9487 = vpack.c.b16 %v8591, %v8583
    %v9488 = vpack.c.b16 %v8592, %v8584
    %v9489 = vpack.c.b16 %v8593, %v8585
    %v9490 = vpack.c.b16 %v8594, %v8586
    %v9491 = vpack.c.b16 %v8595, %v8587
    %v9492 = vpack.c.b16 %v8596, %v8588
    %v9493 = vpack.c.b16 %v8605, %v8597
    %v9494 = vpack.c.b16 %v8606, %v8598
    %v9495 = vpack.c.b16 %v8607, %v8599
    %v9496 = vpack.c.b16 %v8608, %v8600
    %v9497 = vpack.c.b16 %v8609, %v8601
    %v9498 = vpack.c.b16 %v8610, %v8602
    %v9499 = vpack.c.b16 %v8611, %v8603
    %v9500 = vpack.c.b16 %v8612, %v8604
    %v9501 = vpack.c.b16 %v8621, %v8613
    %v9502 = vpack.c.b16 %v8622, %v8614
    %v9503 = vpack.c.b16 %v8623, %v8615
    %v9504 = vpack.c.b16 %v8624, %v8616
    %v9505 = vpack.c.b16 %v8625, %v8617
    %v9506 = vpack.c.b16 %v8626, %v8618
    %v9507 = vpack.c.b16 %v8627, %v8619
    %v9508 = vpack.c.b16 %v8628, %v8620
    %v9509 = vpack.c.b16 %v8637, %v8629
    %v9510 = vpack.c.b16 %v8638, %v8630
    %v9511 = vpack.c.b16 %v8639, %v8631
    %v9512 = vpack.c.b16 %v8640, %v8632
    %v9513 = vpack.c.b16 %v8641, %v8633
    %v9514 = vpack.c.b16 %v8642, %v8634
    %v9515 = vpack.c.b16 %v8643, %v8635
    %v9516 = vpack.c.b16 %v8644, %v8636
    %v9517 = vpack.c.b16 %v8653, %v8645
    %v9518 = vpack.c.b16 %v8654, %v8646
    %v9519 = vpack.c.b16 %v8655, %v8647
    %v9520 = vpack.c.b16 %v8656, %v8648
    %v9521 = vpack.c.b16 %v8657, %v8649
    %v9522 = vpack.c.b16 %v8658, %v8650
    %v9523 = vpack.c.b16 %v8659, %v8651
    %v9524 = vpack.c.b16 %v8660, %v8652
    %v9525 = vpack.c.b16 %v8669, %v8661
    %v9526 = vpack.c.b16 %v8670, %v8662
    %v9527 = vpack.c.b16 %v8671, %v8663
    %v9528 = vpack.c.b16 %v8672, %v8664
    %v9529 = vpack.c.b16 %v8673, %v8665
    %v9530 = vpack.c.b16 %v8674, %v8666
    %v9531 = vpack.c.b16 %v8675, %v8667
    %v9532 = vpack.c.b16 %v8676, %v8668
    %v9533 = vpack.c.b16 %v8685, %v8677
    %v9534 = vpack.c.b16 %v8686, %v8678
    %v9535 = vpack.c.b16 %v8687, %v8679
    %v9536 = vpack.c.b16 %v8688, %v8680
    %v9537 = vpack.c.b16 %v8689, %v8681
    %v9538 = vpack.c.b16 %v8690, %v8682
    %v9539 = vpack.c.b16 %v8691, %v8683
    %v9540 = vpack.c.b16 %v8692, %v8684
    %v9541 = vpack.c.b16 %v8701, %v8693
    %v9542 = vpack.c.b16 %v8702, %v8694
    %v9543 = vpack.c.b16 %v8703, %v8695
    %v9544 = vpack.c.b16 %v8704, %v8696
    %v9545 = vpack.c.b16 %v8705, %v8697
    %v9546 = vpack.c.b16 %v8706, %v8698
    %v9547 = vpack.c.b16 %v8707, %v8699
    %v9548 = vpack.c.b16 %v8708, %v8700
    %v9549 = vpack.c.b16 %v8717, %v8709
    %v9550 = vpack.c.b16 %v8718, %v8710
    %v9551 = vpack.c.b16 %v8719, %v8711
    %v9552 = vpack.c.b16 %v8720, %v8712
    %v9553 = vpack.c.b16 %v8721, %v8713
    %v9554 = vpack.c.b16 %v8722, %v8714
    %v9555 = vpack.c.b16 %v8723, %v8715
    %v9556 = vpack.c.b16 %v8724, %v8716
    %v9557 = vpack.c.b16 %v8733, %v8725
    %v9558 = vpack.c.b16 %v8734, %v8726
    %v9559 = vpack.c.b16 %v8735, %v8727
    %v9560 = vpack.c.b16 %v8736, %v8728
    %v9561 = vpack.c.b16 %v8737, %v8729
    %v9562 = vpack.c.b16 %v8738, %v8730
    %v9563 = vpack.c.b16 %v8739, %v8731
    %v9564 = vpack.c.b16 %v8740, %v8732
    %v9565 = vpack.c.b16 %v8749, %v8741
    %v9566 = vpack.c.b16 %v8750, %v8742
    %v9567 = vpack.c.b16 %v8751, %v8743
    %v9568 = vpack.c.b16 %v8752, %v8744
    %v9569 = vpack.c.b16 %v8753, %v8745
    %v9570 = vpack.c.b16 %v8754, %v8746
    %v9571 = vpack.c.b16 %v8755, %v8747
    %v9572 = vpack.c.b16 %v8756, %v8748
    %v9573 = vpack.c.b16 %v8765, %v8757
    %v9574 = vpack.c.b16 %v8766, %v8758
    %v9575 = vpack.c.b16 %v8767, %v8759
    %v9576 = vpack.c.b16 %v8768, %v8760
    %v9577 = vpack.c.b16 %v8769, %v8761
    %v9578 = vpack.c.b16 %v8770, %v8762
    %v9579 = vpack.c.b16 %v8771, %v8763
    %v9580 = vpack.c.b16 %v8772, %v8764
    %v9581 = vpack.c.b16 %v8781, %v8773
    %v9582 = vpack.c.b16 %v8782, %v8774
    %v9583 = vpack.c.b16 %v8783, %v8775
    %v9584 = vpack.c.b16 %v8784, %v8776
    %v9585 = vpack.c.b16 %v8785, %v8777
    %v9586 = vpack.c.b16 %v8786, %v8778
    %v9587 = vpack.c.b16 %v8787, %v8779
    %v9588 = vpack.c.b16 %v8788, %v8780
    %v9589 = vpack.c.b16 %v8797, %v8789
    %v9590 = vpack.c.b16 %v8798, %v8790
    %v9591 = vpack.c.b16 %v8799, %v8791
    %v9592 = vpack.c.b16 %v8800, %v8792
    %v9593 = vpack.c.b16 %v8801, %v8793
    %v9594 = vpack.c.b16 %v8802, %v8794
    %v9595 = vpack.c.b16 %v8803, %v8795
    %v9596 = vpack.c.b16 %v8804, %v8796
    %v9597 = vpack.c.b16 %v8813, %v8805
    %v9598 = vpack.c.b16 %v8814, %v8806
    %v9599 = vpack.c.b16 %v8815, %v8807
    %v9600 = vpack.c.b16 %v8816, %v8808
    %v9601 = vpack.c.b16 %v8817, %v8809
    %v9602 = vpack.c.b16 %v8818, %v8810
    %v9603 = vpack.c.b16 %v8819, %v8811
    %v9604 = vpack.c.b16 %v8820, %v8812
    %v9605 = vpack.c.b16 %v8829, %v8821
    %v9606 = vpack.c.b16 %v8830, %v8822
    %v9607 = vpack.c.b16 %v8831, %v8823
    %v9608 = vpack.c.b16 %v8832, %v8824
    %v9609 = vpack.c.b16 %v8833, %v8825
    %v9610 = vpack.c.b16 %v8834, %v8826
    %v9611 = vpack.c.b16 %v8835, %v8827
    %v9612 = vpack.c.b16 %v8836, %v8828
    %v9613 = vpack.c.b16 %v8845, %v8837
    %v9614 = vpack.c.b16 %v8846, %v8838
    %v9615 = vpack.c.b16 %v8847, %v8839
    %v9616 = vpack.c.b16 %v8848, %v8840
    %v9617 = vpack.c.b16 %v8849, %v8841
    %v9618 = vpack.c.b16 %v8850, %v8842
    %v9619 = vpack.c.b16 %v8851, %v8843
    %v9620 = vpack.c.b16 %v8852, %v8844
    %v9621 = vpack.c.b16 %v8861, %v8853
    %v9622 = vpack.c.b16 %v8862, %v8854
    %v9623 = vpack.c.b16 %v8863, %v8855
    %v9624 = vpack.c.b16 %v8864, %v8856
    %v9625 = vpack.c.b16 %v8865, %v8857
    %v9626 = vpack.c.b16 %v8866, %v8858
    %v9627 = vpack.c.b16 %v8867, %v8859
    %v9628 = vpack.c.b16 %v8868, %v8860
    %v9629 = vpack.c.b16 %v8877, %v8869
    %v9630 = vpack.c.b16 %v8878, %v8870
    %v9631 = vpack.c.b16 %v8879, %v8871
    %v9632 = vpack.c.b16 %v8880, %v8872
    %v9633 = vpack.c.b16 %v8881, %v8873
    %v9634 = vpack.c.b16 %v8882, %v8874
    %v9635 = vpack.c.b16 %v8883, %v8875
    %v9636 = vpack.c.b16 %v8884, %v8876
    %v9637 = vpack.c.b16 %v8893, %v8885
    %v9638 = vpack.c.b16 %v8894, %v8886
    %v9639 = vpack.c.b16 %v8895, %v8887
    %v9640 = vpack.c.b16 %v8896, %v8888
    %v9641 = vpack.c.b16 %v8897, %v8889
    %v9642 = vpack.c.b16 %v8898, %v8890
    %v9643 = vpack.c.b16 %v8899, %v8891
    %v9644 = vpack.c.b16 %v8900, %v8892
    %v9645 = vpack.c.b16 %v8909, %v8901
    %v9646 = vpack.c.b16 %v8910, %v8902
    %v9647 = vpack.c.b16 %v8911, %v8903
    %v9648 = vpack.c.b16 %v8912, %v8904
    %v9649 = vpack.c.b16 %v8913, %v8905
    %v9650 = vpack.c.b16 %v8914, %v8906
    %v9651 = vpack.c.b16 %v8915, %v8907
    %v9652 = vpack.c.b16 %v8916, %v8908
    %v9653 = vpack.c.b16 %v8925, %v8917
    %v9654 = vpack.c.b16 %v8926, %v8918
    %v9655 = vpack.c.b16 %v8927, %v8919
    %v9656 = vpack.c.b16 %v8928, %v8920
    %v9657 = vpack.c.b16 %v8929, %v8921
    %v9658 = vpack.c.b16 %v8930, %v8922
    %v9659 = vpack.c.b16 %v8931, %v8923
    %v9660 = vpack.c.b16 %v8932, %v8924
    %v9661 = vpack.c.b16 %v8941, %v8933
    %v9662 = vpack.c.b16 %v8942, %v8934
    %v9663 = vpack.c.b16 %v8943, %v8935
    %v9664 = vpack.c.b16 %v8944, %v8936
    %v9665 = vpack.c.b16 %v8945, %v8937
    %v9666 = vpack.c.b16 %v8946, %v8938
    %v9667 = vpack.c.b16 %v8947, %v8939
    %v9668 = vpack.c.b16 %v8948, %v8940
    %v9669 = vpack.c.b16 %v8957, %v8949
    %v9670 = vpack.c.b16 %v8958, %v8950
    %v9671 = vpack.c.b16 %v8959, %v8951
    %v9672 = vpack.c.b16 %v8960, %v8952
    %v9673 = vpack.c.b16 %v8961, %v8953
    %v9674 = vpack.c.b16 %v8962, %v8954
    %v9675 = vpack.c.b16 %v8963, %v8955
    %v9676 = vpack.c.b16 %v8964, %v8956
    %v9677 = vpack.c.b16 %v8973, %v8965
    %v9678 = vpack.c.b16 %v8974, %v8966
    %v9679 = vpack.c.b16 %v8975, %v8967
    %v9680 = vpack.c.b16 %v8976, %v8968
    %v9681 = vpack.c.b16 %v8977, %v8969
    %v9682 = vpack.c.b16 %v8978, %v8970
    %v9683 = vpack.c.b16 %v8979, %v8971
    %v9684 = vpack.c.b16 %v8980, %v8972
    %v9685 = vpack.c.b16 %v8989, %v8981
    %v9686 = vpack.c.b16 %v8990, %v8982
    %v9687 = vpack.c.b16 %v8991, %v8983
    %v9688 = vpack.c.b16 %v8992, %v8984
    %v9689 = vpack.c.b16 %v8993, %v8985
    %v9690 = vpack.c.b16 %v8994, %v8986
    %v9691 = vpack.c.b16 %v8995, %v8987
    %v9692 = vpack.c.b16 %v8996, %v8988
    %v9693 = vpack.c.b16 %v9005, %v8997
    %v9694 = vpack.c.b16 %v9006, %v8998
    %v9695 = vpack.c.b16 %v9007, %v8999
    %v9696 = vpack.c.b16 %v9008, %v9000
    %v9697 = vpack.c.b16 %v9009, %v9001
    %v9698 = vpack.c.b16 %v9010, %v9002
    %v9699 = vpack.c.b16 %v9011, %v9003
    %v9700 = vpack.c.b16 %v9012, %v9004
    %v9701 = vpack.c.b16 %v9021, %v9013
    %v9702 = vpack.c.b16 %v9022, %v9014
    %v9703 = vpack.c.b16 %v9023, %v9015
    %v9704 = vpack.c.b16 %v9024, %v9016
    %v9705 = vpack.c.b16 %v9025, %v9017
    %v9706 = vpack.c.b16 %v9026, %v9018
    %v9707 = vpack.c.b16 %v9027, %v9019
    %v9708 = vpack.c.b16 %v9028, %v9020
    %v9709 = vpack.c.b16 %v9037, %v9029
    %v9710 = vpack.c.b16 %v9038, %v9030
    %v9711 = vpack.c.b16 %v9039, %v9031
    %v9712 = vpack.c.b16 %v9040, %v9032
    %v9713 = vpack.c.b16 %v9041, %v9033
    %v9714 = vpack.c.b16 %v9042, %v9034
    %v9715 = vpack.c.b16 %v9043, %v9035
    %v9716 = vpack.c.b16 %v9044, %v9036
    %v9717 = vpack.c.b16 %v9053, %v9045
    %v9718 = vpack.c.b16 %v9054, %v9046
    %v9719 = vpack.c.b16 %v9055, %v9047
    %v9720 = vpack.c.b16 %v9056, %v9048
    %v9721 = vpack.c.b16 %v9057, %v9049
    %v9722 = vpack.c.b16 %v9058, %v9050
    %v9723 = vpack.c.b16 %v9059, %v9051
    %v9724 = vpack.c.b16 %v9060, %v9052
    %v9725 = vpack.c.b16 %v9069, %v9061
    %v9726 = vpack.c.b16 %v9070, %v9062
    %v9727 = vpack.c.b16 %v9071, %v9063
    %v9728 = vpack.c.b16 %v9072, %v9064
    %v9729 = vpack.c.b16 %v9073, %v9065
    %v9730 = vpack.c.b16 %v9074, %v9066
    %v9731 = vpack.c.b16 %v9075, %v9067
    %v9732 = vpack.c.b16 %v9076, %v9068
    %v9733 = vpack.c.b16 %v9085, %v9077
    %v9734 = vpack.c.b16 %v9086, %v9078
    %v9735 = vpack.c.b16 %v9087, %v9079
    %v9736 = vpack.c.b16 %v9088, %v9080
    %v9737 = vpack.c.b16 %v9089, %v9081
    %v9738 = vpack.c.b16 %v9090, %v9082
    %v9739 = vpack.c.b16 %v9091, %v9083
    %v9740 = vpack.c.b16 %v9092, %v9084
    %v9741 = vpack.c.b16 %v9101, %v9093
    %v9742 = vpack.c.b16 %v9102, %v9094
    %v9743 = vpack.c.b16 %v9103, %v9095
    %v9744 = vpack.c.b16 %v9104, %v9096
    %v9745 = vpack.c.b16 %v9105, %v9097
    %v9746 = vpack.c.b16 %v9106, %v9098
    %v9747 = vpack.c.b16 %v9107, %v9099
    %v9748 = vpack.c.b16 %v9108, %v9100
    %v9749 = vpack.c.b16 %v9117, %v9109
    %v9750 = vpack.c.b16 %v9118, %v9110
    %v9751 = vpack.c.b16 %v9119, %v9111
    %v9752 = vpack.c.b16 %v9120, %v9112
    %v9753 = vpack.c.b16 %v9121, %v9113
    %v9754 = vpack.c.b16 %v9122, %v9114
    %v9755 = vpack.c.b16 %v9123, %v9115
    %v9756 = vpack.c.b16 %v9124, %v9116
    %v9757 = vpack.c.b16 %v9133, %v9125
    %v9758 = vpack.c.b16 %v9134, %v9126
    %v9759 = vpack.c.b16 %v9135, %v9127
    %v9760 = vpack.c.b16 %v9136, %v9128
    %v9761 = vpack.c.b16 %v9137, %v9129
    %v9762 = vpack.c.b16 %v9138, %v9130
    %v9763 = vpack.c.b16 %v9139, %v9131
    %v9764 = vpack.c.b16 %v9140, %v9132
    %v9765 = vpack.c.b16 %v9149, %v9141
    %v9766 = vpack.c.b16 %v9150, %v9142
    %v9767 = vpack.c.b16 %v9151, %v9143
    %v9768 = vpack.c.b16 %v9152, %v9144
    %v9769 = vpack.c.b16 %v9153, %v9145
    %v9770 = vpack.c.b16 %v9154, %v9146
    %v9771 = vpack.c.b16 %v9155, %v9147
    %v9772 = vpack.c.b16 %v9156, %v9148
    %v9773 = vpack.c.b16 %v9165, %v9157
    %v9774 = vpack.c.b16 %v9166, %v9158
    %v9775 = vpack.c.b16 %v9167, %v9159
    %v9776 = vpack.c.b16 %v9168, %v9160
    %v9777 = vpack.c.b16 %v9169, %v9161
    %v9778 = vpack.c.b16 %v9170, %v9162
    %v9779 = vpack.c.b16 %v9171, %v9163
    %v9780 = vpack.c.b16 %v9172, %v9164
    %v9781 = vpack.c.b16 %v9181, %v9173
    %v9782 = vpack.c.b16 %v9182, %v9174
    %v9783 = vpack.c.b16 %v9183, %v9175
    %v9784 = vpack.c.b16 %v9184, %v9176
    %v9785 = vpack.c.b16 %v9185, %v9177
    %v9786 = vpack.c.b16 %v9186, %v9178
    %v9787 = vpack.c.b16 %v9187, %v9179
    %v9788 = vpack.c.b16 %v9188, %v9180
    %v9789 = vpack.c.b16 %v9197, %v9189
    %v9790 = vpack.c.b16 %v9198, %v9190
    %v9791 = vpack.c.b16 %v9199, %v9191
    %v9792 = vpack.c.b16 %v9200, %v9192
    %v9793 = vpack.c.b16 %v9201, %v9193
    %v9794 = vpack.c.b16 %v9202, %v9194
    %v9795 = vpack.c.b16 %v9203, %v9195
    %v9796 = vpack.c.b16 %v9204, %v9196
    %v9797 = vpack.c.b16 %v9213, %v9205
    %v9798 = vpack.c.b16 %v9214, %v9206
    %v9799 = vpack.c.b16 %v9215, %v9207
    %v9800 = vpack.c.b16 %v9216, %v9208
    %v9801 = vpack.c.b16 %v9217, %v9209
    %v9802 = vpack.c.b16 %v9218, %v9210
    %v9803 = vpack.c.b16 %v9219, %v9211
    %v9804 = vpack.c.b16 %v9220, %v9212
    %v9805 = vpack.c.b16 %v9229, %v9221
    %v9806 = vpack.c.b16 %v9230, %v9222
    %v9807 = vpack.c.b16 %v9231, %v9223
    %v9808 = vpack.c.b16 %v9232, %v9224
    %v9809 = vpack.c.b16 %v9233, %v9225
    %v9810 = vpack.c.b16 %v9234, %v9226
    %v9811 = vpack.c.b16 %v9235, %v9227
    %v9812 = vpack.c.b16 %v9236, %v9228
    %v9813 = vpack.c.b16 %v9245, %v9237
    %v9814 = vpack.c.b16 %v9246, %v9238
    %v9815 = vpack.c.b16 %v9247, %v9239
    %v9816 = vpack.c.b16 %v9248, %v9240
    %v9817 = vpack.c.b16 %v9249, %v9241
    %v9818 = vpack.c.b16 %v9250, %v9242
    %v9819 = vpack.c.b16 %v9251, %v9243
    %v9820 = vpack.c.b16 %v9252, %v9244
    %v9821 = vpack.c.b16 %v9261, %v9253
    %v9822 = vpack.c.b16 %v9262, %v9254
    %v9823 = vpack.c.b16 %v9263, %v9255
    %v9824 = vpack.c.b16 %v9264, %v9256
    %v9825 = vpack.c.b16 %v9265, %v9257
    %v9826 = vpack.c.b16 %v9266, %v9258
    %v9827 = vpack.c.b16 %v9267, %v9259
    %v9828 = vpack.c.b16 %v9268, %v9260
    %v9829 = vpack.c.b16 %v9277, %v9269
    %v9830 = vpack.c.b16 %v9278, %v9270
    %v9831 = vpack.c.b16 %v9279, %v9271
    %v9832 = vpack.c.b16 %v9280, %v9272
    %v9833 = vpack.c.b16 %v9281, %v9273
    %v9834 = vpack.c.b16 %v9282, %v9274
    %v9835 = vpack.c.b16 %v9283, %v9275
    %v9836 = vpack.c.b16 %v9284, %v9276
    %v9837 = vpack.c.b16 %v9293, %v9285
    %v9838 = vpack.c.b16 %v9294, %v9286
    %v9839 = vpack.c.b16 %v9295, %v9287
    %v9840 = vpack.c.b16 %v9296, %v9288
    %v9841 = vpack.c.b16 %v9297, %v9289
    %v9842 = vpack.c.b16 %v9298, %v9290
    %v9843 = vpack.c.b16 %v9299, %v9291
    %v9844 = vpack.c.b16 %v9300, %v9292
    %v9845 = vpack.c.b16 %v9309, %v9301
    %v9846 = vpack.c.b16 %v9310, %v9302
    %v9847 = vpack.c.b16 %v9311, %v9303
    %v9848 = vpack.c.b16 %v9312, %v9304
    %v9849 = vpack.c.b16 %v9313, %v9305
    %v9850 = vpack.c.b16 %v9314, %v9306
    %v9851 = vpack.c.b16 %v9315, %v9307
    %v9852 = vpack.c.b16 %v9316, %v9308
    %v9853 = vpack.c.b16 %v9325, %v9317
    %v9854 = vpack.c.b16 %v9326, %v9318
    %v9855 = vpack.c.b16 %v9327, %v9319
    %v9856 = vpack.c.b16 %v9328, %v9320
    %v9857 = vpack.c.b16 %v9329, %v9321
    %v9858 = vpack.c.b16 %v9330, %v9322
    %v9859 = vpack.c.b16 %v9331, %v9323
    %v9860 = vpack.c.b16 %v9332, %v9324
    %v9861 = vpack.c.b16 %v9341, %v9333
    %v9862 = vpack.c.b16 %v9342, %v9334
    %v9863 = vpack.c.b16 %v9343, %v9335
    %v9864 = vpack.c.b16 %v9344, %v9336
    %v9865 = vpack.c.b16 %v9345, %v9337
    %v9866 = vpack.c.b16 %v9346, %v9338
    %v9867 = vpack.c.b16 %v9347, %v9339
    %v9868 = vpack.c.b16 %v9348, %v9340
    %v9869 = vpack.c.b16 %v9357, %v9349
    %v9870 = vpack.c.b16 %v9358, %v9350
    %v9871 = vpack.c.b16 %v9359, %v9351
    %v9872 = vpack.c.b16 %v9360, %v9352
    %v9873 = vpack.c.b16 %v9361, %v9353
    %v9874 = vpack.c.b16 %v9362, %v9354
    %v9875 = vpack.c.b16 %v9363, %v9355
    %v9876 = vpack.c.b16 %v9364, %v9356
    %10389 = vmatprep.subr.bf16.mxu0 %v9366
    %10390 = vmatpush1.bf16.msra.mxu0 %v9365
    %10391 = vmatprep.subr.bf16.mxu0 %v9374
    %10392 = vmatpush1.bf16.msra.mxu0 %v9373
    %10393 = vmatprep.subr.bf16.mxu0 %v9382
    %10394 = vmatpush1.bf16.msra.mxu0 %v9381
    %10395 = vmatprep.subr.bf16.mxu0 %v9390
    %10396 = vmatpush1.bf16.msra.mxu0 %v9389
    %10397 = vmatprep.subr.bf16.mxu0 %v9398
    %10398 = vmatpush1.bf16.msra.mxu0 %v9397
    %10399 = vmatprep.subr.bf16.mxu0 %v9406
    %10400 = vmatpush1.bf16.msra.mxu0 %v9405
    %10401 = vmatprep.subr.bf16.mxu0 %v9414
    %10402 = vmatpush1.bf16.msra.mxu0 %v9413
    %10403 = vmatprep.subr.bf16.mxu0 %v9422
    %10404 = vmatpush1.bf16.msra.mxu0 %v9421
    %10405 = vmatprep.subr.bf16.mxu0 %v9430
    %10406 = vmatpush1.bf16.msra.mxu0 %v9429
    %10407 = vmatprep.subr.bf16.mxu0 %v9438
    %10408 = vmatpush1.bf16.msra.mxu0 %v9437
    %10409 = vmatprep.subr.bf16.mxu0 %v9446
    %10410 = vmatpush1.bf16.msra.mxu0 %v9445
    %10411 = vmatprep.subr.bf16.mxu0 %v9454
    %10412 = vmatpush1.bf16.msra.mxu0 %v9453
    %10413 = vmatprep.subr.bf16.mxu0 %v9462
    %10414 = vmatpush1.bf16.msra.mxu0 %v9461
    %10415 = vmatprep.subr.bf16.mxu0 %v9470
    %10416 = vmatpush1.bf16.msra.mxu0 %v9469
    %10417 = vmatprep.subr.bf16.mxu0 %v9478
    %10418 = vmatpush1.bf16.msra.mxu0 %v9477
    %10419 = vmatprep.subr.bf16.mxu0 %v9486
    %10420 = vmatpush1.bf16.msra.mxu0 %v9485
    %10421 = vmatprep.mubr.bf16.mxu0 %v7252
    %10422 = vmatmul.mubr.bf16.gmra.mrb[0].mxu0 %v7251
    %v10423 = vpop.f32.mrb[0].mxu0
    %v10424 = vadd.f32 %v7792, %v10423
    %v10425 = vpop.f32.mrb[0].mxu0
    %v10426 = vadd.f32 %v7796, %v10425
    %v10427 = vpop.f32.mrb[0].mxu0
    %v10428 = vadd.f32 %v7792, %v10427
    %v10429 = vpop.f32.mrb[0].mxu0
    %v10430 = vadd.f32 %v7796, %v10429
    %10431 = vmatprep.mubr.bf16.mxu0 %v7260
    %10432 = vmatmul.mubr.bf16.gmra.mrb[0].mxu0 %v7259
    %v10433 = vpop.f32.mrb[0].mxu0
    %v10434 = vadd.f32 %v7792, %v10433
    %v10435 = vpop.f32.mrb[0].mxu0
    %v10436 = vadd.f32 %v7796, %v10435
    %v10437 = vpop.f32.mrb[0].mxu0
    %v10438 = vadd.f32 %v7792, %v10437
    %v10439 = vpop.f32.mrb[0].mxu0
    %v10440 = vadd.f32 %v7796, %v10439
    %10441 = vmatprep.mubr.bf16.mxu0 %v7268
    %10442 = vmatmul.mubr.bf16.gmra.mrb[0].mxu0 %v7267
    %v10443 = vpop.f32.mrb[0].mxu0
    %v10444 = vadd.f32 %v7792, %v10443
    %v10445 = vpop.f32.mrb[0].mxu0
    %v10446 = vadd.f32 %v7796, %v10445
    %v10447 = vpop.f32.mrb[0].mxu0
    %v10448 = vadd.f32 %v7792, %v10447
    %v10449 = vpop.f32.mrb[0].mxu0
    %v10450 = vadd.f32 %v7796, %v10449
    %10451 = vdwg.mxu0
    %10452 = vmatprep.subr.bf16.mxu0 %v9494
    %10453 = vmatpush1.bf16.msra.mxu0 %v9493
    %10454 = vmatprep.subr.bf16.mxu0 %v9502
    %10455 = vmatpush1.bf16.msra.mxu0 %v9501
    %10456 = vmatprep.subr.bf16.mxu0 %v9510
    %10457 = vmatpush1.bf16.msra.mxu0 %v9509
    %10458 = vmatprep.subr.bf16.mxu0 %v9518
    %10459 = vmatpush1.bf16.msra.mxu0 %v9517
    %10460 = vmatprep.subr.bf16.mxu0 %v9526
    %10461 = vmatpush1.bf16.msra.mxu0 %v9525
    %10462 = vmatprep.subr.bf16.mxu0 %v9534
    %10463 = vmatpush1.bf16.msra.mxu0 %v9533
    %10464 = vmatprep.subr.bf16.mxu0 %v9542
    %10465 = vmatpush1.bf16.msra.mxu0 %v9541
    %10466 = vmatprep.subr.bf16.mxu0 %v9550
    %10467 = vmatpush1.bf16.msra.mxu0 %v9549
    %10468 = vmatprep.subr.bf16.mxu0 %v9558
    %10469 = vmatpush1.bf16.msra.mxu0 %v9557
    %10470 = vmatprep.subr.bf16.mxu0 %v9566
    %10471 = vmatpush1.bf16.msra.mxu0 %v9565
    %10472 = vmatprep.subr.bf16.mxu0 %v9574
    %10473 = vmatpush1.bf16.msra.mxu0 %v9573
    %10474 = vmatprep.subr.bf16.mxu0 %v9582
    %10475 = vmatpush1.bf16.msra.mxu0 %v9581
    %10476 = vmatprep.subr.bf16.mxu0 %v9590
    %10477 = vmatpush1.bf16.msra.mxu0 %v9589
    %10478 = vmatprep.subr.bf16.mxu0 %v9598
    %10479 = vmatpush1.bf16.msra.mxu0 %v9597
    %10480 = vmatprep.subr.bf16.mxu0 %v9606
    %10481 = vmatpush1.bf16.msra.mxu0 %v9605
    %10482 = vmatprep.subr.bf16.mxu0 %v9614
    %10483 = vmatpush1.bf16.msra.mxu0 %v9613
    %10484 = vmatprep.mubr.bf16.mxu0 %v7254
    %10485 = vmatmul.mubr.bf16.gmra.mrb[0].mxu0 %v7253
    %v10486 = vpop.f32.mrb[0].mxu0
    %v10487 = vadd.f32 %v10424, %v10486
    %v10488 = vpop.f32.mrb[0].mxu0
    %v10489 = vadd.f32 %v10426, %v10488
    %v10490 = vpop.f32.mrb[0].mxu0
    %v10491 = vadd.f32 %v10428, %v10490
    %v10492 = vpop.f32.mrb[0].mxu0
    %v10493 = vadd.f32 %v10430, %v10492
    %10494 = vmatprep.mubr.bf16.mxu0 %v7262
    %10495 = vmatmul.mubr.bf16.gmra.mrb[0].mxu0 %v7261
    %v10496 = vpop.f32.mrb[0].mxu0
    %v10497 = vadd.f32 %v10434, %v10496
    %v10498 = vpop.f32.mrb[0].mxu0
    %v10499 = vadd.f32 %v10436, %v10498
    %v10500 = vpop.f32.mrb[0].mxu0
    %v10501 = vadd.f32 %v10438, %v10500
    %v10502 = vpop.f32.mrb[0].mxu0
    %v10503 = vadd.f32 %v10440, %v10502
    %10504 = vmatprep.mubr.bf16.mxu0 %v7270
    %10505 = vmatmul.mubr.bf16.gmra.mrb[0].mxu0 %v7269
    %v10506 = vpop.f32.mrb[0].mxu0
    %v10507 = vadd.f32 %v10444, %v10506
    %v10508 = vpop.f32.mrb[0].mxu0
    %v10509 = vadd.f32 %v10446, %v10508
    %v10510 = vpop.f32.mrb[0].mxu0
    %v10511 = vadd.f32 %v10448, %v10510
    %v10512 = vpop.f32.mrb[0].mxu0
    %v10513 = vadd.f32 %v10450, %v10512
    %10514 = vdwg.mxu0
    %10515 = vmatprep.subr.bf16.mxu0 %v9622
    %10516 = vmatpush1.bf16.msra.mxu0 %v9621
    %10517 = vmatprep.subr.bf16.mxu0 %v9630
    %10518 = vmatpush1.bf16.msra.mxu0 %v9629
    %10519 = vmatprep.subr.bf16.mxu0 %v9638
    %10520 = vmatpush1.bf16.msra.mxu0 %v9637
    %10521 = vmatprep.subr.bf16.mxu0 %v9646
    %10522 = vmatpush1.bf16.msra.mxu0 %v9645
    %10523 = vmatprep.subr.bf16.mxu0 %v9654
    %10524 = vmatpush1.bf16.msra.mxu0 %v9653
    %10525 = vmatprep.subr.bf16.mxu0 %v9662
    %10526 = vmatpush1.bf16.msra.mxu0 %v9661
    %10527 = vmatprep.subr.bf16.mxu0 %v9670
    %10528 = vmatpush1.bf16.msra.mxu0 %v9669
    %10529 = vmatprep.subr.bf16.mxu0 %v9678
    %10530 = vmatpush1.bf16.msra.mxu0 %v9677
    %10531 = vmatprep.subr.bf16.mxu0 %v9686
    %10532 = vmatpush1.bf16.msra.mxu0 %v9685
    %10533 = vmatprep.subr.bf16.mxu0 %v9694
    %10534 = vmatpush1.bf16.msra.mxu0 %v9693
    %10535 = vmatprep.subr.bf16.mxu0 %v9702
    %10536 = vmatpush1.bf16.msra.mxu0 %v9701
    %10537 = vmatprep.subr.bf16.mxu0 %v9710
    %10538 = vmatpush1.bf16.msra.mxu0 %v9709
    %10539 = vmatprep.subr.bf16.mxu0 %v9718
    %10540 = vmatpush1.bf16.msra.mxu0 %v9717
    %10541 = vmatprep.subr.bf16.mxu0 %v9726
    %10542 = vmatpush1.bf16.msra.mxu0 %v9725
    %10543 = vmatprep.subr.bf16.mxu0 %v9734
    %10544 = vmatpush1.bf16.msra.mxu0 %v9733
    %10545 = vmatprep.subr.bf16.mxu0 %v9742
    %10546 = vmatpush1.bf16.msra.mxu0 %v9741
    %10547 = vmatprep.mubr.bf16.mxu0 %v7256
    %10548 = vmatmul.mubr.bf16.gmra.mrb[0].mxu0 %v7255
    %v10549 = vpop.f32.mrb[0].mxu0
    %v10550 = vadd.f32 %v10487, %v10549
    %v10551 = vpop.f32.mrb[0].mxu0
    %v10552 = vadd.f32 %v10489, %v10551
    %v10553 = vpop.f32.mrb[0].mxu0
    %v10554 = vadd.f32 %v10491, %v10553
    %v10555 = vpop.f32.mrb[0].mxu0
    %v10556 = vadd.f32 %v10493, %v10555
    %10557 = vmatprep.mubr.bf16.mxu0 %v7264
    %10558 = vmatmul.mubr.bf16.gmra.mrb[0].mxu0 %v7263
    %v10559 = vpop.f32.mrb[0].mxu0
    %v10560 = vadd.f32 %v10497, %v10559
    %v10561 = vpop.f32.mrb[0].mxu0
    %v10562 = vadd.f32 %v10499, %v10561
    %v10563 = vpop.f32.mrb[0].mxu0
    %v10564 = vadd.f32 %v10501, %v10563
    %v10565 = vpop.f32.mrb[0].mxu0
    %v10566 = vadd.f32 %v10503, %v10565
    %10567 = vmatprep.mubr.bf16.mxu0 %v7272
    %10568 = vmatmul.mubr.bf16.gmra.mrb[0].mxu0 %v7271
    %v10569 = vpop.f32.mrb[0].mxu0
    %v10570 = vadd.f32 %v10507, %v10569
    %v10571 = vpop.f32.mrb[0].mxu0
    %v10572 = vadd.f32 %v10509, %v10571
    %v10573 = vpop.f32.mrb[0].mxu0
    %v10574 = vadd.f32 %v10511, %v10573
    %v10575 = vpop.f32.mrb[0].mxu0
    %v10576 = vadd.f32 %v10513, %v10575
    %10577 = vdwg.mxu0
    %10578 = vmatprep.subr.bf16.mxu0 %v9750
    %10579 = vmatpush1.bf16.msra.mxu0 %v9749
    %10580 = vmatprep.subr.bf16.mxu0 %v9758
    %10581 = vmatpush1.bf16.msra.mxu0 %v9757
    %10582 = vmatprep.subr.bf16.mxu0 %v9766
    %10583 = vmatpush1.bf16.msra.mxu0 %v9765
    %10584 = vmatprep.subr.bf16.mxu0 %v9774
    %10585 = vmatpush1.bf16.msra.mxu0 %v9773
    %10586 = vmatprep.subr.bf16.mxu0 %v9782
    %10587 = vmatpush1.bf16.msra.mxu0 %v9781
    %10588 = vmatprep.subr.bf16.mxu0 %v9790
    %10589 = vmatpush1.bf16.msra.mxu0 %v9789
    %10590 = vmatprep.subr.bf16.mxu0 %v9798
    %10591 = vmatpush1.bf16.msra.mxu0 %v9797
    %10592 = vmatprep.subr.bf16.mxu0 %v9806
    %10593 = vmatpush1.bf16.msra.mxu0 %v9805
    %10594 = vmatprep.subr.bf16.mxu0 %v9814
    %10595 = vmatpush1.bf16.msra.mxu0 %v9813
    %10596 = vmatprep.subr.bf16.mxu0 %v9822
    %10597 = vmatpush1.bf16.msra.mxu0 %v9821
    %10598 = vmatprep.subr.bf16.mxu0 %v9830
    %10599 = vmatpush1.bf16.msra.mxu0 %v9829
    %10600 = vmatprep.subr.bf16.mxu0 %v9838
    %10601 = vmatpush1.bf16.msra.mxu0 %v9837
    %10602 = vmatprep.subr.bf16.mxu0 %v9846
    %10603 = vmatpush1.bf16.msra.mxu0 %v9845
    %10604 = vmatprep.subr.bf16.mxu0 %v9854
    %10605 = vmatpush1.bf16.msra.mxu0 %v9853
    %10606 = vmatprep.subr.bf16.mxu0 %v9862
    %10607 = vmatpush1.bf16.msra.mxu0 %v9861
    %10608 = vmatprep.subr.bf16.mxu0 %v9870
    %10609 = vmatpush1.bf16.msra.mxu0 %v9869
    %10610 = vmatprep.mubr.bf16.mxu0 %v7258
    %10611 = vmatmul.mubr.bf16.gmra.mrb[0].mxu0 %v7257
    %v10612 = vpop.f32.mrb[0].mxu0
    %v10613 = vadd.f32 %v10550, %v10612
    %v10614 = vpop.f32.mrb[0].mxu0
    %v10615 = vadd.f32 %v10552, %v10614
    %v10616 = vpop.f32.mrb[0].mxu0
    %v10617 = vadd.f32 %v10554, %v10616
    %v10618 = vpop.f32.mrb[0].mxu0
    %v10619 = vadd.f32 %v10556, %v10618
    %10620 = vmatprep.mubr.bf16.mxu0 %v7266
    %10621 = vmatmul.mubr.bf16.gmra.mrb[0].mxu0 %v7265
    %v10622 = vpop.f32.mrb[0].mxu0
    %v10623 = vadd.f32 %v10560, %v10622
    %v10624 = vpop.f32.mrb[0].mxu0
    %v10625 = vadd.f32 %v10562, %v10624
    %v10626 = vpop.f32.mrb[0].mxu0
    %v10627 = vadd.f32 %v10564, %v10626
    %v10628 = vpop.f32.mrb[0].mxu0
    %v10629 = vadd.f32 %v10566, %v10628
    %10630 = vmatprep.mubr.bf16.mxu0 %v7274
    %10631 = vmatmul.mubr.bf16.gmra.mrb[0].mxu0 %v7273
    %v10632 = vpop.f32.mrb[0].mxu0
    %v10633 = vadd.f32 %v10570, %v10632
    %v10634 = vpop.f32.mrb[0].mxu0
    %v10635 = vadd.f32 %v10572, %v10634
    %v10636 = vpop.f32.mrb[0].mxu0
    %v10637 = vadd.f32 %v10574, %v10636
    %v10638 = vpop.f32.mrb[0].mxu0
    %v10639 = vadd.f32 %v10576, %v10638
    %10640 = vdwg.mxu0
    %10641 = vmatprep.subr.bf16.mxu0 %v9368
    %10642 = vmatpush1.bf16.msra.mxu0 %v9367
    %10643 = vmatprep.subr.bf16.mxu0 %v9376
    %10644 = vmatpush1.bf16.msra.mxu0 %v9375
    %10645 = vmatprep.subr.bf16.mxu0 %v9384
    %10646 = vmatpush1.bf16.msra.mxu0 %v9383
    %10647 = vmatprep.subr.bf16.mxu0 %v9392
    %10648 = vmatpush1.bf16.msra.mxu0 %v9391
    %10649 = vmatprep.subr.bf16.mxu0 %v9400
    %10650 = vmatpush1.bf16.msra.mxu0 %v9399
    %10651 = vmatprep.subr.bf16.mxu0 %v9408
    %10652 = vmatpush1.bf16.msra.mxu0 %v9407
    %10653 = vmatprep.subr.bf16.mxu0 %v9416
    %10654 = vmatpush1.bf16.msra.mxu0 %v9415
    %10655 = vmatprep.subr.bf16.mxu0 %v9424
    %10656 = vmatpush1.bf16.msra.mxu0 %v9423
    %10657 = vmatprep.subr.bf16.mxu0 %v9432
    %10658 = vmatpush1.bf16.msra.mxu0 %v9431
    %10659 = vmatprep.subr.bf16.mxu0 %v9440
    %10660 = vmatpush1.bf16.msra.mxu0 %v9439
    %10661 = vmatprep.subr.bf16.mxu0 %v9448
    %10662 = vmatpush1.bf16.msra.mxu0 %v9447
    %10663 = vmatprep.subr.bf16.mxu0 %v9456
    %10664 = vmatpush1.bf16.msra.mxu0 %v9455
    %10665 = vmatprep.subr.bf16.mxu0 %v9464
    %10666 = vmatpush1.bf16.msra.mxu0 %v9463
    %10667 = vmatprep.subr.bf16.mxu0 %v9472
    %10668 = vmatpush1.bf16.msra.mxu0 %v9471
    %10669 = vmatprep.subr.bf16.mxu0 %v9480
    %10670 = vmatpush1.bf16.msra.mxu0 %v9479
    %10671 = vmatprep.subr.bf16.mxu0 %v9488
    %10672 = vmatpush1.bf16.msra.mxu0 %v9487
    %10673 = vmatprep.mubr.bf16.mxu0 %v7252
    %10674 = vmatmul.mubr.bf16.gmra.mrb[0].mxu0 %v7251
    %v10675 = vpop.f32.mrb[0].mxu0
    %v10676 = vadd.f32 %v7800, %v10675
    %v10677 = vpop.f32.mrb[0].mxu0
    %v10678 = vadd.f32 %v7804, %v10677
    %v10679 = vpop.f32.mrb[0].mxu0
    %v10680 = vadd.f32 %v7800, %v10679
    %v10681 = vpop.f32.mrb[0].mxu0
    %v10682 = vadd.f32 %v7804, %v10681
    %10683 = vmatprep.mubr.bf16.mxu0 %v7260
    %10684 = vmatmul.mubr.bf16.gmra.mrb[0].mxu0 %v7259
    %v10685 = vpop.f32.mrb[0].mxu0
    %v10686 = vadd.f32 %v7800, %v10685
    %v10687 = vpop.f32.mrb[0].mxu0
    %v10688 = vadd.f32 %v7804, %v10687
    %v10689 = vpop.f32.mrb[0].mxu0
    %v10690 = vadd.f32 %v7800, %v10689
    %v10691 = vpop.f32.mrb[0].mxu0
    %v10692 = vadd.f32 %v7804, %v10691
    %10693 = vmatprep.mubr.bf16.mxu0 %v7268
    %10694 = vmatmul.mubr.bf16.gmra.mrb[0].mxu0 %v7267
    %v10695 = vpop.f32.mrb[0].mxu0
    %v10696 = vadd.f32 %v7800, %v10695
    %v10697 = vpop.f32.mrb[0].mxu0
    %v10698 = vadd.f32 %v7804, %v10697
    %v10699 = vpop.f32.mrb[0].mxu0
    %v10700 = vadd.f32 %v7800, %v10699
    %v10701 = vpop.f32.mrb[0].mxu0
    %v10702 = vadd.f32 %v7804, %v10701
    %10703 = vdwg.mxu0
    %10704 = vmatprep.subr.bf16.mxu0 %v9496
    %10705 = vmatpush1.bf16.msra.mxu0 %v9495
    %10706 = vmatprep.subr.bf16.mxu0 %v9504
    %10707 = vmatpush1.bf16.msra.mxu0 %v9503
    %10708 = vmatprep.subr.bf16.mxu0 %v9512
    %10709 = vmatpush1.bf16.msra.mxu0 %v9511
    %10710 = vmatprep.subr.bf16.mxu0 %v9520
    %10711 = vmatpush1.bf16.msra.mxu0 %v9519
    %10712 = vmatprep.subr.bf16.mxu0 %v9528
    %10713 = vmatpush1.bf16.msra.mxu0 %v9527
    %10714 = vmatprep.subr.bf16.mxu0 %v9536
    %10715 = vmatpush1.bf16.msra.mxu0 %v9535
    %10716 = vmatprep.subr.bf16.mxu0 %v9544
    %10717 = vmatpush1.bf16.msra.mxu0 %v9543
    %10718 = vmatprep.subr.bf16.mxu0 %v9552
    %10719 = vmatpush1.bf16.msra.mxu0 %v9551
    %10720 = vmatprep.subr.bf16.mxu0 %v9560
    %10721 = vmatpush1.bf16.msra.mxu0 %v9559
    %10722 = vmatprep.subr.bf16.mxu0 %v9568
    %10723 = vmatpush1.bf16.msra.mxu0 %v9567
    %10724 = vmatprep.subr.bf16.mxu0 %v9576
    %10725 = vmatpush1.bf16.msra.mxu0 %v9575
    %10726 = vmatprep.subr.bf16.mxu0 %v9584
    %10727 = vmatpush1.bf16.msra.mxu0 %v9583
    %10728 = vmatprep.subr.bf16.mxu0 %v9592
    %10729 = vmatpush1.bf16.msra.mxu0 %v9591
    %10730 = vmatprep.subr.bf16.mxu0 %v9600
    %10731 = vmatpush1.bf16.msra.mxu0 %v9599
    %10732 = vmatprep.subr.bf16.mxu0 %v9608
    %10733 = vmatpush1.bf16.msra.mxu0 %v9607
    %10734 = vmatprep.subr.bf16.mxu0 %v9616
    %10735 = vmatpush1.bf16.msra.mxu0 %v9615
    %10736 = vmatprep.mubr.bf16.mxu0 %v7254
    %10737 = vmatmul.mubr.bf16.gmra.mrb[0].mxu0 %v7253
    %v10738 = vpop.f32.mrb[0].mxu0
    %v10739 = vadd.f32 %v10676, %v10738
    %v10740 = vpop.f32.mrb[0].mxu0
    %v10741 = vadd.f32 %v10678, %v10740
    %v10742 = vpop.f32.mrb[0].mxu0
    %v10743 = vadd.f32 %v10680, %v10742
    %v10744 = vpop.f32.mrb[0].mxu0
    %v10745 = vadd.f32 %v10682, %v10744
    %10746 = vmatprep.mubr.bf16.mxu0 %v7262
    %10747 = vmatmul.mubr.bf16.gmra.mrb[0].mxu0 %v7261
    %v10748 = vpop.f32.mrb[0].mxu0
    %v10749 = vadd.f32 %v10686, %v10748
    %v10750 = vpop.f32.mrb[0].mxu0
    %v10751 = vadd.f32 %v10688, %v10750
    %v10752 = vpop.f32.mrb[0].mxu0
    %v10753 = vadd.f32 %v10690, %v10752
    %v10754 = vpop.f32.mrb[0].mxu0
    %v10755 = vadd.f32 %v10692, %v10754
    %10756 = vmatprep.mubr.bf16.mxu0 %v7270
    %10757 = vmatmul.mubr.bf16.gmra.mrb[0].mxu0 %v7269
    %v10758 = vpop.f32.mrb[0].mxu0
    %v10759 = vadd.f32 %v10696, %v10758
    %v10760 = vpop.f32.mrb[0].mxu0
    %v10761 = vadd.f32 %v10698, %v10760
    %v10762 = vpop.f32.mrb[0].mxu0
    %v10763 = vadd.f32 %v10700, %v10762
    %v10764 = vpop.f32.mrb[0].mxu0
    %v10765 = vadd.f32 %v10702, %v10764
    %10766 = vdwg.mxu0
    %10767 = vmatprep.subr.bf16.mxu0 %v9624
    %10768 = vmatpush1.bf16.msra.mxu0 %v9623
    %10769 = vmatprep.subr.bf16.mxu0 %v9632
    %10770 = vmatpush1.bf16.msra.mxu0 %v9631
    %10771 = vmatprep.subr.bf16.mxu0 %v9640
    %10772 = vmatpush1.bf16.msra.mxu0 %v9639
    %10773 = vmatprep.subr.bf16.mxu0 %v9648
    %10774 = vmatpush1.bf16.msra.mxu0 %v9647
    %10775 = vmatprep.subr.bf16.mxu0 %v9656
    %10776 = vmatpush1.bf16.msra.mxu0 %v9655
    %10777 = vmatprep.subr.bf16.mxu0 %v9664
    %10778 = vmatpush1.bf16.msra.mxu0 %v9663
    %10779 = vmatprep.subr.bf16.mxu0 %v9672
    %10780 = vmatpush1.bf16.msra.mxu0 %v9671
    %10781 = vmatprep.subr.bf16.mxu0 %v9680
    %10782 = vmatpush1.bf16.msra.mxu0 %v9679
    %10783 = vmatprep.subr.bf16.mxu0 %v9688
    %10784 = vmatpush1.bf16.msra.mxu0 %v9687
    %10785 = vmatprep.subr.bf16.mxu0 %v9696
    %10786 = vmatpush1.bf16.msra.mxu0 %v9695
    %10787 = vmatprep.subr.bf16.mxu0 %v9704
    %10788 = vmatpush1.bf16.msra.mxu0 %v9703
    %10789 = vmatprep.subr.bf16.mxu0 %v9712
    %10790 = vmatpush1.bf16.msra.mxu0 %v9711
    %10791 = vmatprep.subr.bf16.mxu0 %v9720
    %10792 = vmatpush1.bf16.msra.mxu0 %v9719
    %10793 = vmatprep.subr.bf16.mxu0 %v9728
    %10794 = vmatpush1.bf16.msra.mxu0 %v9727
    %10795 = vmatprep.subr.bf16.mxu0 %v9736
    %10796 = vmatpush1.bf16.msra.mxu0 %v9735
    %10797 = vmatprep.subr.bf16.mxu0 %v9744
    %10798 = vmatpush1.bf16.msra.mxu0 %v9743
    %10799 = vmatprep.mubr.bf16.mxu0 %v7256
    %10800 = vmatmul.mubr.bf16.gmra.mrb[0].mxu0 %v7255
    %v10801 = vpop.f32.mrb[0].mxu0
    %v10802 = vadd.f32 %v10739, %v10801
    %v10803 = vpop.f32.mrb[0].mxu0
    %v10804 = vadd.f32 %v10741, %v10803
    %v10805 = vpop.f32.mrb[0].mxu0
    %v10806 = vadd.f32 %v10743, %v10805
    %v10807 = vpop.f32.mrb[0].mxu0
    %v10808 = vadd.f32 %v10745, %v10807
    %10809 = vmatprep.mubr.bf16.mxu0 %v7264
    %10810 = vmatmul.mubr.bf16.gmra.mrb[0].mxu0 %v7263
    %v10811 = vpop.f32.mrb[0].mxu0
    %v10812 = vadd.f32 %v10749, %v10811
    %v10813 = vpop.f32.mrb[0].mxu0
    %v10814 = vadd.f32 %v10751, %v10813
    %v10815 = vpop.f32.mrb[0].mxu0
    %v10816 = vadd.f32 %v10753, %v10815
    %v10817 = vpop.f32.mrb[0].mxu0
    %v10818 = vadd.f32 %v10755, %v10817
    %10819 = vmatprep.mubr.bf16.mxu0 %v7272
    %10820 = vmatmul.mubr.bf16.gmra.mrb[0].mxu0 %v7271
    %v10821 = vpop.f32.mrb[0].mxu0
    %v10822 = vadd.f32 %v10759, %v10821
    %v10823 = vpop.f32.mrb[0].mxu0
    %v10824 = vadd.f32 %v10761, %v10823
    %v10825 = vpop.f32.mrb[0].mxu0
    %v10826 = vadd.f32 %v10763, %v10825
    %v10827 = vpop.f32.mrb[0].mxu0
    %v10828 = vadd.f32 %v10765, %v10827
    %10829 = vdwg.mxu0
    %10830 = vmatprep.subr.bf16.mxu0 %v9752
    %10831 = vmatpush1.bf16.msra.mxu0 %v9751
    %10832 = vmatprep.subr.bf16.mxu0 %v9760
    %10833 = vmatpush1.bf16.msra.mxu0 %v9759
    %10834 = vmatprep.subr.bf16.mxu0 %v9768
    %10835 = vmatpush1.bf16.msra.mxu0 %v9767
    %10836 = vmatprep.subr.bf16.mxu0 %v9776
    %10837 = vmatpush1.bf16.msra.mxu0 %v9775
    %10838 = vmatprep.subr.bf16.mxu0 %v9784
    %10839 = vmatpush1.bf16.msra.mxu0 %v9783
    %10840 = vmatprep.subr.bf16.mxu0 %v9792
    %10841 = vmatpush1.bf16.msra.mxu0 %v9791
    %10842 = vmatprep.subr.bf16.mxu0 %v9800
    %10843 = vmatpush1.bf16.msra.mxu0 %v9799
    %10844 = vmatprep.subr.bf16.mxu0 %v9808
    %10845 = vmatpush1.bf16.msra.mxu0 %v9807
    %10846 = vmatprep.subr.bf16.mxu0 %v9816
    %10847 = vmatpush1.bf16.msra.mxu0 %v9815
    %10848 = vmatprep.subr.bf16.mxu0 %v9824
    %10849 = vmatpush1.bf16.msra.mxu0 %v9823
    %10850 = vmatprep.subr.bf16.mxu0 %v9832
    %10851 = vmatpush1.bf16.msra.mxu0 %v9831
    %10852 = vmatprep.subr.bf16.mxu0 %v9840
    %10853 = vmatpush1.bf16.msra.mxu0 %v9839
    %10854 = vmatprep.subr.bf16.mxu0 %v9848
    %10855 = vmatpush1.bf16.msra.mxu0 %v9847
    %10856 = vmatprep.subr.bf16.mxu0 %v9856
    %10857 = vmatpush1.bf16.msra.mxu0 %v9855
    %10858 = vmatprep.subr.bf16.mxu0 %v9864
    %10859 = vmatpush1.bf16.msra.mxu0 %v9863
    %10860 = vmatprep.subr.bf16.mxu0 %v9872
    %10861 = vmatpush1.bf16.msra.mxu0 %v9871
    %10862 = vmatprep.mubr.bf16.mxu0 %v7258
    %10863 = vmatmul.mubr.bf16.gmra.mrb[0].mxu0 %v7257
    %v10864 = vpop.f32.mrb[0].mxu0
    %v10865 = vadd.f32 %v10802, %v10864
    %v10866 = vpop.f32.mrb[0].mxu0
    %v10867 = vadd.f32 %v10804, %v10866
    %v10868 = vpop.f32.mrb[0].mxu0
    %v10869 = vadd.f32 %v10806, %v10868
    %v10870 = vpop.f32.mrb[0].mxu0
    %v10871 = vadd.f32 %v10808, %v10870
    %10872 = vmatprep.mubr.bf16.mxu0 %v7266
    %10873 = vmatmul.mubr.bf16.gmra.mrb[0].mxu0 %v7265
    %v10874 = vpop.f32.mrb[0].mxu0
    %v10875 = vadd.f32 %v10812, %v10874
    %v10876 = vpop.f32.mrb[0].mxu0
    %v10877 = vadd.f32 %v10814, %v10876
    %v10878 = vpop.f32.mrb[0].mxu0
    %v10879 = vadd.f32 %v10816, %v10878
    %v10880 = vpop.f32.mrb[0].mxu0
    %v10881 = vadd.f32 %v10818, %v10880
    %10882 = vmatprep.mubr.bf16.mxu0 %v7274
    %10883 = vmatmul.mubr.bf16.gmra.mrb[0].mxu0 %v7273
    %v10884 = vpop.f32.mrb[0].mxu0
    %v10885 = vadd.f32 %v10822, %v10884
    %v10886 = vpop.f32.mrb[0].mxu0
    %v10887 = vadd.f32 %v10824, %v10886
    %v10888 = vpop.f32.mrb[0].mxu0
    %v10889 = vadd.f32 %v10826, %v10888
    %v10890 = vpop.f32.mrb[0].mxu0
    %v10891 = vadd.f32 %v10828, %v10890
    %10892 = vdwg.mxu0
    %10893 = vmatprep.subr.bf16.mxu0 %v9370
    %10894 = vmatpush1.bf16.msra.mxu0 %v9369
    %10895 = vmatprep.subr.bf16.mxu0 %v9378
    %10896 = vmatpush1.bf16.msra.mxu0 %v9377
    %10897 = vmatprep.subr.bf16.mxu0 %v9386
    %10898 = vmatpush1.bf16.msra.mxu0 %v9385
    %10899 = vmatprep.subr.bf16.mxu0 %v9394
    %10900 = vmatpush1.bf16.msra.mxu0 %v9393
    %10901 = vmatprep.subr.bf16.mxu0 %v9402
    %10902 = vmatpush1.bf16.msra.mxu0 %v9401
    %10903 = vmatprep.subr.bf16.mxu0 %v9410
    %10904 = vmatpush1.bf16.msra.mxu0 %v9409
    %10905 = vmatprep.subr.bf16.mxu0 %v9418
    %10906 = vmatpush1.bf16.msra.mxu0 %v9417
    %10907 = vmatprep.subr.bf16.mxu0 %v9426
    %10908 = vmatpush1.bf16.msra.mxu0 %v9425
    %10909 = vmatprep.subr.bf16.mxu0 %v9434
    %10910 = vmatpush1.bf16.msra.mxu0 %v9433
    %10911 = vmatprep.subr.bf16.mxu0 %v9442
    %10912 = vmatpush1.bf16.msra.mxu0 %v9441
    %10913 = vmatprep.subr.bf16.mxu0 %v9450
    %10914 = vmatpush1.bf16.msra.mxu0 %v9449
    %10915 = vmatprep.subr.bf16.mxu0 %v9458
    %10916 = vmatpush1.bf16.msra.mxu0 %v9457
    %10917 = vmatprep.subr.bf16.mxu0 %v9466
    %10918 = vmatpush1.bf16.msra.mxu0 %v9465
    %10919 = vmatprep.subr.bf16.mxu0 %v9474
    %10920 = vmatpush1.bf16.msra.mxu0 %v9473
    %10921 = vmatprep.subr.bf16.mxu0 %v9482
    %10922 = vmatpush1.bf16.msra.mxu0 %v9481
    %10923 = vmatprep.subr.bf16.mxu0 %v9490
    %10924 = vmatpush1.bf16.msra.mxu0 %v9489
    %10925 = vmatprep.mubr.bf16.mxu0 %v7252
    %10926 = vmatmul.mubr.bf16.gmra.mrb[0].mxu0 %v7251
    %v10927 = vpop.f32.mrb[0].mxu0
    %v10928 = vadd.f32 %v7808, %v10927
    %v10929 = vpop.f32.mrb[0].mxu0
    %v10930 = vadd.f32 %v7812, %v10929
    %v10931 = vpop.f32.mrb[0].mxu0
    %v10932 = vadd.f32 %v7808, %v10931
    %v10933 = vpop.f32.mrb[0].mxu0
    %v10934 = vadd.f32 %v7812, %v10933
    %10935 = vmatprep.mubr.bf16.mxu0 %v7260
    %10936 = vmatmul.mubr.bf16.gmra.mrb[0].mxu0 %v7259
    %v10937 = vpop.f32.mrb[0].mxu0
    %v10938 = vadd.f32 %v7808, %v10937
    %v10939 = vpop.f32.mrb[0].mxu0
    %v10940 = vadd.f32 %v7812, %v10939
    %v10941 = vpop.f32.mrb[0].mxu0
    %v10942 = vadd.f32 %v7808, %v10941
    %v10943 = vpop.f32.mrb[0].mxu0
    %v10944 = vadd.f32 %v7812, %v10943
    %10945 = vmatprep.mubr.bf16.mxu0 %v7268
    %10946 = vmatmul.mubr.bf16.gmra.mrb[0].mxu0 %v7267
    %v10947 = vpop.f32.mrb[0].mxu0
    %v10948 = vadd.f32 %v7808, %v10947
    %v10949 = vpop.f32.mrb[0].mxu0
    %v10950 = vadd.f32 %v7812, %v10949
    %v10951 = vpop.f32.mrb[0].mxu0
    %v10952 = vadd.f32 %v7808, %v10951
    %v10953 = vpop.f32.mrb[0].mxu0
    %v10954 = vadd.f32 %v7812, %v10953
    %10955 = vdwg.mxu0
    %10956 = vmatprep.subr.bf16.mxu0 %v9498
    %10957 = vmatpush1.bf16.msra.mxu0 %v9497
    %10958 = vmatprep.subr.bf16.mxu0 %v9506
    %10959 = vmatpush1.bf16.msra.mxu0 %v9505
    %10960 = vmatprep.subr.bf16.mxu0 %v9514
    %10961 = vmatpush1.bf16.msra.mxu0 %v9513
    %10962 = vmatprep.subr.bf16.mxu0 %v9522
    %10963 = vmatpush1.bf16.msra.mxu0 %v9521
    %10964 = vmatprep.subr.bf16.mxu0 %v9530
    %10965 = vmatpush1.bf16.msra.mxu0 %v9529
    %10966 = vmatprep.subr.bf16.mxu0 %v9538
    %10967 = vmatpush1.bf16.msra.mxu0 %v9537
    %10968 = vmatprep.subr.bf16.mxu0 %v9546
    %10969 = vmatpush1.bf16.msra.mxu0 %v9545
    %10970 = vmatprep.subr.bf16.mxu0 %v9554
    %10971 = vmatpush1.bf16.msra.mxu0 %v9553
    %10972 = vmatprep.subr.bf16.mxu0 %v9562
    %10973 = vmatpush1.bf16.msra.mxu0 %v9561
    %10974 = vmatprep.subr.bf16.mxu0 %v9570
    %10975 = vmatpush1.bf16.msra.mxu0 %v9569
    %10976 = vmatprep.subr.bf16.mxu0 %v9578
    %10977 = vmatpush1.bf16.msra.mxu0 %v9577
    %10978 = vmatprep.subr.bf16.mxu0 %v9586
    %10979 = vmatpush1.bf16.msra.mxu0 %v9585
    %10980 = vmatprep.subr.bf16.mxu0 %v9594
    %10981 = vmatpush1.bf16.msra.mxu0 %v9593
    %10982 = vmatprep.subr.bf16.mxu0 %v9602
    %10983 = vmatpush1.bf16.msra.mxu0 %v9601
    %10984 = vmatprep.subr.bf16.mxu0 %v9610
    %10985 = vmatpush1.bf16.msra.mxu0 %v9609
    %10986 = vmatprep.subr.bf16.mxu0 %v9618
    %10987 = vmatpush1.bf16.msra.mxu0 %v9617
    %10988 = vmatprep.mubr.bf16.mxu0 %v7254
    %10989 = vmatmul.mubr.bf16.gmra.mrb[0].mxu0 %v7253
    %v10990 = vpop.f32.mrb[0].mxu0
    %v10991 = vadd.f32 %v10928, %v10990
    %v10992 = vpop.f32.mrb[0].mxu0
    %v10993 = vadd.f32 %v10930, %v10992
    %v10994 = vpop.f32.mrb[0].mxu0
    %v10995 = vadd.f32 %v10932, %v10994
    %v10996 = vpop.f32.mrb[0].mxu0
    %v10997 = vadd.f32 %v10934, %v10996
    %10998 = vmatprep.mubr.bf16.mxu0 %v7262
    %10999 = vmatmul.mubr.bf16.gmra.mrb[0].mxu0 %v7261
    %v11000 = vpop.f32.mrb[0].mxu0
    %v11001 = vadd.f32 %v10938, %v11000
    %v11002 = vpop.f32.mrb[0].mxu0
    %v11003 = vadd.f32 %v10940, %v11002
    %v11004 = vpop.f32.mrb[0].mxu0
    %v11005 = vadd.f32 %v10942, %v11004
    %v11006 = vpop.f32.mrb[0].mxu0
    %v11007 = vadd.f32 %v10944, %v11006
    %11008 = vmatprep.mubr.bf16.mxu0 %v7270
    %11009 = vmatmul.mubr.bf16.gmra.mrb[0].mxu0 %v7269
    %v11010 = vpop.f32.mrb[0].mxu0
    %v11011 = vadd.f32 %v10948, %v11010
    %v11012 = vpop.f32.mrb[0].mxu0
    %v11013 = vadd.f32 %v10950, %v11012
    %v11014 = vpop.f32.mrb[0].mxu0
    %v11015 = vadd.f32 %v10952, %v11014
    %v11016 = vpop.f32.mrb[0].mxu0
    %v11017 = vadd.f32 %v10954, %v11016
    %11018 = vdwg.mxu0
    %11019 = vmatprep.subr.bf16.mxu0 %v9626
    %11020 = vmatpush1.bf16.msra.mxu0 %v9625
    %11021 = vmatprep.subr.bf16.mxu0 %v9634
    %11022 = vmatpush1.bf16.msra.mxu0 %v9633
    %11023 = vmatprep.subr.bf16.mxu0 %v9642
    %11024 = vmatpush1.bf16.msra.mxu0 %v9641
    %11025 = vmatprep.subr.bf16.mxu0 %v9650
    %11026 = vmatpush1.bf16.msra.mxu0 %v9649
    %11027 = vmatprep.subr.bf16.mxu0 %v9658
    %11028 = vmatpush1.bf16.msra.mxu0 %v9657
    %11029 = vmatprep.subr.bf16.mxu0 %v9666
    %11030 = vmatpush1.bf16.msra.mxu0 %v9665
    %11031 = vmatprep.subr.bf16.mxu0 %v9674
    %11032 = vmatpush1.bf16.msra.mxu0 %v9673
    %11033 = vmatprep.subr.bf16.mxu0 %v9682
    %11034 = vmatpush1.bf16.msra.mxu0 %v9681
    %11035 = vmatprep.subr.bf16.mxu0 %v9690
    %11036 = vmatpush1.bf16.msra.mxu0 %v9689
    %11037 = vmatprep.subr.bf16.mxu0 %v9698
    %11038 = vmatpush1.bf16.msra.mxu0 %v9697
    %11039 = vmatprep.subr.bf16.mxu0 %v9706
    %11040 = vmatpush1.bf16.msra.mxu0 %v9705
    %11041 = vmatprep.subr.bf16.mxu0 %v9714
    %11042 = vmatpush1.bf16.msra.mxu0 %v9713
    %11043 = vmatprep.subr.bf16.mxu0 %v9722
    %11044 = vmatpush1.bf16.msra.mxu0 %v9721
    %11045 = vmatprep.subr.bf16.mxu0 %v9730
    %11046 = vmatpush1.bf16.msra.mxu0 %v9729
    %11047 = vmatprep.subr.bf16.mxu0 %v9738
    %11048 = vmatpush1.bf16.msra.mxu0 %v9737
    %11049 = vmatprep.subr.bf16.mxu0 %v9746
    %11050 = vmatpush1.bf16.msra.mxu0 %v9745
    %11051 = vmatprep.mubr.bf16.mxu0 %v7256
    %11052 = vmatmul.mubr.bf16.gmra.mrb[0].mxu0 %v7255
    %v11053 = vpop.f32.mrb[0].mxu0
    %v11054 = vadd.f32 %v10991, %v11053
    %v11055 = vpop.f32.mrb[0].mxu0
    %v11056 = vadd.f32 %v10993, %v11055
    %v11057 = vpop.f32.mrb[0].mxu0
    %v11058 = vadd.f32 %v10995, %v11057
    %v11059 = vpop.f32.mrb[0].mxu0
    %v11060 = vadd.f32 %v10997, %v11059
    %11061 = vmatprep.mubr.bf16.mxu0 %v7264
    %11062 = vmatmul.mubr.bf16.gmra.mrb[0].mxu0 %v7263
    %v11063 = vpop.f32.mrb[0].mxu0
    %v11064 = vadd.f32 %v11001, %v11063
    %v11065 = vpop.f32.mrb[0].mxu0
    %v11066 = vadd.f32 %v11003, %v11065
    %v11067 = vpop.f32.mrb[0].mxu0
    %v11068 = vadd.f32 %v11005, %v11067
    %v11069 = vpop.f32.mrb[0].mxu0
    %v11070 = vadd.f32 %v11007, %v11069
    %11071 = vmatprep.mubr.bf16.mxu0 %v7272
    %11072 = vmatmul.mubr.bf16.gmra.mrb[0].mxu0 %v7271
    %v11073 = vpop.f32.mrb[0].mxu0
    %v11074 = vadd.f32 %v11011, %v11073
    %v11075 = vpop.f32.mrb[0].mxu0
    %v11076 = vadd.f32 %v11013, %v11075
    %v11077 = vpop.f32.mrb[0].mxu0
    %v11078 = vadd.f32 %v11015, %v11077
    %v11079 = vpop.f32.mrb[0].mxu0
    %v11080 = vadd.f32 %v11017, %v11079
    %11081 = vdwg.mxu0
    %11082 = vmatprep.subr.bf16.mxu0 %v9754
    %11083 = vmatpush1.bf16.msra.mxu0 %v9753
    %11084 = vmatprep.subr.bf16.mxu0 %v9762
    %11085 = vmatpush1.bf16.msra.mxu0 %v9761
    %11086 = vmatprep.subr.bf16.mxu0 %v9770
    %11087 = vmatpush1.bf16.msra.mxu0 %v9769
    %11088 = vmatprep.subr.bf16.mxu0 %v9778
    %11089 = vmatpush1.bf16.msra.mxu0 %v9777
    %11090 = vmatprep.subr.bf16.mxu0 %v9786
    %11091 = vmatpush1.bf16.msra.mxu0 %v9785
    %11092 = vmatprep.subr.bf16.mxu0 %v9794
    %11093 = vmatpush1.bf16.msra.mxu0 %v9793
    %11094 = vmatprep.subr.bf16.mxu0 %v9802
    %11095 = vmatpush1.bf16.msra.mxu0 %v9801
    %11096 = vmatprep.subr.bf16.mxu0 %v9810
    %11097 = vmatpush1.bf16.msra.mxu0 %v9809
    %11098 = vmatprep.subr.bf16.mxu0 %v9818
    %11099 = vmatpush1.bf16.msra.mxu0 %v9817
    %11100 = vmatprep.subr.bf16.mxu0 %v9826
    %11101 = vmatpush1.bf16.msra.mxu0 %v9825
    %11102 = vmatprep.subr.bf16.mxu0 %v9834
    %11103 = vmatpush1.bf16.msra.mxu0 %v9833
    %11104 = vmatprep.subr.bf16.mxu0 %v9842
    %11105 = vmatpush1.bf16.msra.mxu0 %v9841
    %11106 = vmatprep.subr.bf16.mxu0 %v9850
    %11107 = vmatpush1.bf16.msra.mxu0 %v9849
    %11108 = vmatprep.subr.bf16.mxu0 %v9858
    %11109 = vmatpush1.bf16.msra.mxu0 %v9857
    %11110 = vmatprep.subr.bf16.mxu0 %v9866
    %11111 = vmatpush1.bf16.msra.mxu0 %v9865
    %11112 = vmatprep.subr.bf16.mxu0 %v9874
    %11113 = vmatpush1.bf16.msra.mxu0 %v9873
    %11114 = vmatprep.mubr.bf16.mxu0 %v7258
    %11115 = vmatmul.mubr.bf16.gmra.mrb[0].mxu0 %v7257
    %v11116 = vpop.f32.mrb[0].mxu0
    %v11117 = vadd.f32 %v11054, %v11116
    %v11118 = vpop.f32.mrb[0].mxu0
    %v11119 = vadd.f32 %v11056, %v11118
    %v11120 = vpop.f32.mrb[0].mxu0
    %v11121 = vadd.f32 %v11058, %v11120
    %v11122 = vpop.f32.mrb[0].mxu0
    %v11123 = vadd.f32 %v11060, %v11122
    %11124 = vmatprep.mubr.bf16.mxu0 %v7266
    %11125 = vmatmul.mubr.bf16.gmra.mrb[0].mxu0 %v7265
    %v11126 = vpop.f32.mrb[0].mxu0
    %v11127 = vadd.f32 %v11064, %v11126
    %v11128 = vpop.f32.mrb[0].mxu0
    %v11129 = vadd.f32 %v11066, %v11128
    %v11130 = vpop.f32.mrb[0].mxu0
    %v11131 = vadd.f32 %v11068, %v11130
    %v11132 = vpop.f32.mrb[0].mxu0
    %v11133 = vadd.f32 %v11070, %v11132
    %11134 = vmatprep.mubr.bf16.mxu0 %v7274
    %11135 = vmatmul.mubr.bf16.gmra.mrb[0].mxu0 %v7273
    %v11136 = vpop.f32.mrb[0].mxu0
    %v11137 = vadd.f32 %v11074, %v11136
    %v11138 = vpop.f32.mrb[0].mxu0
    %v11139 = vadd.f32 %v11076, %v11138
    %v11140 = vpop.f32.mrb[0].mxu0
    %v11141 = vadd.f32 %v11078, %v11140
    %v11142 = vpop.f32.mrb[0].mxu0
    %v11143 = vadd.f32 %v11080, %v11142
    %11144 = vdwg.mxu0
    %11145 = vmatprep.subr.bf16.mxu0 %v9372
    %11146 = vmatpush1.bf16.msra.mxu0 %v9371
    %11147 = vmatprep.subr.bf16.mxu0 %v9380
    %11148 = vmatpush1.bf16.msra.mxu0 %v9379
    %11149 = vmatprep.subr.bf16.mxu0 %v9388
    %11150 = vmatpush1.bf16.msra.mxu0 %v9387
    %11151 = vmatprep.subr.bf16.mxu0 %v9396
    %11152 = vmatpush1.bf16.msra.mxu0 %v9395
    %11153 = vmatprep.subr.bf16.mxu0 %v9404
    %11154 = vmatpush1.bf16.msra.mxu0 %v9403
    %11155 = vmatprep.subr.bf16.mxu0 %v9412
    %11156 = vmatpush1.bf16.msra.mxu0 %v9411
    %11157 = vmatprep.subr.bf16.mxu0 %v9420
    %11158 = vmatpush1.bf16.msra.mxu0 %v9419
    %11159 = vmatprep.subr.bf16.mxu0 %v9428
    %11160 = vmatpush1.bf16.msra.mxu0 %v9427
    %11161 = vmatprep.subr.bf16.mxu0 %v9436
    %11162 = vmatpush1.bf16.msra.mxu0 %v9435
    %11163 = vmatprep.subr.bf16.mxu0 %v9444
    %11164 = vmatpush1.bf16.msra.mxu0 %v9443
    %11165 = vmatprep.subr.bf16.mxu0 %v9452
    %11166 = vmatpush1.bf16.msra.mxu0 %v9451
    %11167 = vmatprep.subr.bf16.mxu0 %v9460
    %11168 = vmatpush1.bf16.msra.mxu0 %v9459
    %11169 = vmatprep.subr.bf16.mxu0 %v9468
    %11170 = vmatpush1.bf16.msra.mxu0 %v9467
    %11171 = vmatprep.subr.bf16.mxu0 %v9476
    %11172 = vmatpush1.bf16.msra.mxu0 %v9475
    %11173 = vmatprep.subr.bf16.mxu0 %v9484
    %11174 = vmatpush1.bf16.msra.mxu0 %v9483
    %11175 = vmatprep.subr.bf16.mxu0 %v9492
    %11176 = vmatpush1.bf16.msra.mxu0 %v9491
    %11177 = vmatprep.mubr.bf16.mxu0 %v7252
    %11178 = vmatmul.mubr.bf16.gmra.mrb[0].mxu0 %v7251
    %v11179 = vpop.f32.mrb[0].mxu0
    %v11180 = vadd.f32 %v7816, %v11179
    %v11181 = vpop.f32.mrb[0].mxu0
    %v11182 = vadd.f32 %v7820, %v11181
    %v11183 = vpop.f32.mrb[0].mxu0
    %v11184 = vadd.f32 %v7816, %v11183
    %v11185 = vpop.f32.mrb[0].mxu0
    %v11186 = vadd.f32 %v7820, %v11185
    %11187 = vmatprep.mubr.bf16.mxu0 %v7260
    %11188 = vmatmul.mubr.bf16.gmra.mrb[0].mxu0 %v7259
    %v11189 = vpop.f32.mrb[0].mxu0
    %v11190 = vadd.f32 %v7816, %v11189
    %v11191 = vpop.f32.mrb[0].mxu0
    %v11192 = vadd.f32 %v7820, %v11191
    %v11193 = vpop.f32.mrb[0].mxu0
    %v11194 = vadd.f32 %v7816, %v11193
    %v11195 = vpop.f32.mrb[0].mxu0
    %v11196 = vadd.f32 %v7820, %v11195
    %11197 = vmatprep.mubr.bf16.mxu0 %v7268
    %11198 = vmatmul.mubr.bf16.gmra.mrb[0].mxu0 %v7267
    %v11199 = vpop.f32.mrb[0].mxu0
    %v11200 = vadd.f32 %v7816, %v11199
    %v11201 = vpop.f32.mrb[0].mxu0
    %v11202 = vadd.f32 %v7820, %v11201
    %v11203 = vpop.f32.mrb[0].mxu0
    %v11204 = vadd.f32 %v7816, %v11203
    %v11205 = vpop.f32.mrb[0].mxu0
    %v11206 = vadd.f32 %v7820, %v11205
    %11207 = vdwg.mxu0
    %11208 = vmatprep.subr.bf16.mxu0 %v9500
    %11209 = vmatpush1.bf16.msra.mxu0 %v9499
    %11210 = vmatprep.subr.bf16.mxu0 %v9508
    %11211 = vmatpush1.bf16.msra.mxu0 %v9507
    %11212 = vmatprep.subr.bf16.mxu0 %v9516
    %11213 = vmatpush1.bf16.msra.mxu0 %v9515
    %11214 = vmatprep.subr.bf16.mxu0 %v9524
    %11215 = vmatpush1.bf16.msra.mxu0 %v9523
    %11216 = vmatprep.subr.bf16.mxu0 %v9532
    %11217 = vmatpush1.bf16.msra.mxu0 %v9531
    %11218 = vmatprep.subr.bf16.mxu0 %v9540
    %11219 = vmatpush1.bf16.msra.mxu0 %v9539
    %11220 = vmatprep.subr.bf16.mxu0 %v9548
    %11221 = vmatpush1.bf16.msra.mxu0 %v9547
    %11222 = vmatprep.subr.bf16.mxu0 %v9556
    %11223 = vmatpush1.bf16.msra.mxu0 %v9555
    %11224 = vmatprep.subr.bf16.mxu0 %v9564
    %11225 = vmatpush1.bf16.msra.mxu0 %v9563
    %11226 = vmatprep.subr.bf16.mxu0 %v9572
    %11227 = vmatpush1.bf16.msra.mxu0 %v9571
    %11228 = vmatprep.subr.bf16.mxu0 %v9580
    %11229 = vmatpush1.bf16.msra.mxu0 %v9579
    %11230 = vmatprep.subr.bf16.mxu0 %v9588
    %11231 = vmatpush1.bf16.msra.mxu0 %v9587
    %11232 = vmatprep.subr.bf16.mxu0 %v9596
    %11233 = vmatpush1.bf16.msra.mxu0 %v9595
    %11234 = vmatprep.subr.bf16.mxu0 %v9604
    %11235 = vmatpush1.bf16.msra.mxu0 %v9603
    %11236 = vmatprep.subr.bf16.mxu0 %v9612
    %11237 = vmatpush1.bf16.msra.mxu0 %v9611
    %11238 = vmatprep.subr.bf16.mxu0 %v9620
    %11239 = vmatpush1.bf16.msra.mxu0 %v9619
    %11240 = vmatprep.mubr.bf16.mxu0 %v7254
    %11241 = vmatmul.mubr.bf16.gmra.mrb[0].mxu0 %v7253
    %v11242 = vpop.f32.mrb[0].mxu0
    %v11243 = vadd.f32 %v11180, %v11242
    %v11244 = vpop.f32.mrb[0].mxu0
    %v11245 = vadd.f32 %v11182, %v11244
    %v11246 = vpop.f32.mrb[0].mxu0
    %v11247 = vadd.f32 %v11184, %v11246
    %v11248 = vpop.f32.mrb[0].mxu0
    %v11249 = vadd.f32 %v11186, %v11248
    %11250 = vmatprep.mubr.bf16.mxu0 %v7262
    %11251 = vmatmul.mubr.bf16.gmra.mrb[0].mxu0 %v7261
    %v11252 = vpop.f32.mrb[0].mxu0
    %v11253 = vadd.f32 %v11190, %v11252
    %v11254 = vpop.f32.mrb[0].mxu0
    %v11255 = vadd.f32 %v11192, %v11254
    %v11256 = vpop.f32.mrb[0].mxu0
    %v11257 = vadd.f32 %v11194, %v11256
    %v11258 = vpop.f32.mrb[0].mxu0
    %v11259 = vadd.f32 %v11196, %v11258
    %11260 = vmatprep.mubr.bf16.mxu0 %v7270
    %11261 = vmatmul.mubr.bf16.gmra.mrb[0].mxu0 %v7269
    %v11262 = vpop.f32.mrb[0].mxu0
    %v11263 = vadd.f32 %v11200, %v11262
    %v11264 = vpop.f32.mrb[0].mxu0
    %v11265 = vadd.f32 %v11202, %v11264
    %v11266 = vpop.f32.mrb[0].mxu0
    %v11267 = vadd.f32 %v11204, %v11266
    %v11268 = vpop.f32.mrb[0].mxu0
    %v11269 = vadd.f32 %v11206, %v11268
    %11270 = vdwg.mxu0
    %11271 = vmatprep.subr.bf16.mxu0 %v9628
    %11272 = vmatpush1.bf16.msra.mxu0 %v9627
    %11273 = vmatprep.subr.bf16.mxu0 %v9636
    %11274 = vmatpush1.bf16.msra.mxu0 %v9635
    %11275 = vmatprep.subr.bf16.mxu0 %v9644
    %11276 = vmatpush1.bf16.msra.mxu0 %v9643
    %11277 = vmatprep.subr.bf16.mxu0 %v9652
    %11278 = vmatpush1.bf16.msra.mxu0 %v9651
    %11279 = vmatprep.subr.bf16.mxu0 %v9660
    %11280 = vmatpush1.bf16.msra.mxu0 %v9659
    %11281 = vmatprep.subr.bf16.mxu0 %v9668
    %11282 = vmatpush1.bf16.msra.mxu0 %v9667
    %11283 = vmatprep.subr.bf16.mxu0 %v9676
    %11284 = vmatpush1.bf16.msra.mxu0 %v9675
    %11285 = vmatprep.subr.bf16.mxu0 %v9684
    %11286 = vmatpush1.bf16.msra.mxu0 %v9683
    %11287 = vmatprep.subr.bf16.mxu0 %v9692
    %11288 = vmatpush1.bf16.msra.mxu0 %v9691
    %11289 = vmatprep.subr.bf16.mxu0 %v9700
    %11290 = vmatpush1.bf16.msra.mxu0 %v9699
    %11291 = vmatprep.subr.bf16.mxu0 %v9708
    %11292 = vmatpush1.bf16.msra.mxu0 %v9707
    %11293 = vmatprep.subr.bf16.mxu0 %v9716
    %11294 = vmatpush1.bf16.msra.mxu0 %v9715
    %11295 = vmatprep.subr.bf16.mxu0 %v9724
    %11296 = vmatpush1.bf16.msra.mxu0 %v9723
    %11297 = vmatprep.subr.bf16.mxu0 %v9732
    %11298 = vmatpush1.bf16.msra.mxu0 %v9731
    %11299 = vmatprep.subr.bf16.mxu0 %v9740
    %11300 = vmatpush1.bf16.msra.mxu0 %v9739
    %11301 = vmatprep.subr.bf16.mxu0 %v9748
    %11302 = vmatpush1.bf16.msra.mxu0 %v9747
    %11303 = vmatprep.mubr.bf16.mxu0 %v7256
    %11304 = vmatmul.mubr.bf16.gmra.mrb[0].mxu0 %v7255
    %v11305 = vpop.f32.mrb[0].mxu0
    %v11306 = vadd.f32 %v11243, %v11305
    %v11307 = vpop.f32.mrb[0].mxu0
    %v11308 = vadd.f32 %v11245, %v11307
    %v11309 = vpop.f32.mrb[0].mxu0
    %v11310 = vadd.f32 %v11247, %v11309
    %v11311 = vpop.f32.mrb[0].mxu0
    %v11312 = vadd.f32 %v11249, %v11311
    %11313 = vmatprep.mubr.bf16.mxu0 %v7264
    %11314 = vmatmul.mubr.bf16.gmra.mrb[0].mxu0 %v7263
    %v11315 = vpop.f32.mrb[0].mxu0
    %v11316 = vadd.f32 %v11253, %v11315
    %v11317 = vpop.f32.mrb[0].mxu0
    %v11318 = vadd.f32 %v11255, %v11317
    %v11319 = vpop.f32.mrb[0].mxu0
    %v11320 = vadd.f32 %v11257, %v11319
    %v11321 = vpop.f32.mrb[0].mxu0
    %v11322 = vadd.f32 %v11259, %v11321
    %11323 = vmatprep.mubr.bf16.mxu0 %v7272
    %11324 = vmatmul.mubr.bf16.gmra.mrb[0].mxu0 %v7271
    %v11325 = vpop.f32.mrb[0].mxu0
    %v11326 = vadd.f32 %v11263, %v11325
    %v11327 = vpop.f32.mrb[0].mxu0
    %v11328 = vadd.f32 %v11265, %v11327
    %v11329 = vpop.f32.mrb[0].mxu0
    %v11330 = vadd.f32 %v11267, %v11329
    %v11331 = vpop.f32.mrb[0].mxu0
    %v11332 = vadd.f32 %v11269, %v11331
    %11333 = vdwg.mxu0
    %11334 = vmatprep.subr.bf16.mxu0 %v9756
    %11335 = vmatpush1.bf16.msra.mxu0 %v9755
    %11336 = vmatprep.subr.bf16.mxu0 %v9764
    %11337 = vmatpush1.bf16.msra.mxu0 %v9763
    %11338 = vmatprep.subr.bf16.mxu0 %v9772
    %11339 = vmatpush1.bf16.msra.mxu0 %v9771
    %11340 = vmatprep.subr.bf16.mxu0 %v9780
    %11341 = vmatpush1.bf16.msra.mxu0 %v9779
    %11342 = vmatprep.subr.bf16.mxu0 %v9788
    %11343 = vmatpush1.bf16.msra.mxu0 %v9787
    %11344 = vmatprep.subr.bf16.mxu0 %v9796
    %11345 = vmatpush1.bf16.msra.mxu0 %v9795
    %11346 = vmatprep.subr.bf16.mxu0 %v9804
    %11347 = vmatpush1.bf16.msra.mxu0 %v9803
    %11348 = vmatprep.subr.bf16.mxu0 %v9812
    %11349 = vmatpush1.bf16.msra.mxu0 %v9811
    %11350 = vmatprep.subr.bf16.mxu0 %v9820
    %11351 = vmatpush1.bf16.msra.mxu0 %v9819
    %11352 = vmatprep.subr.bf16.mxu0 %v9828
    %11353 = vmatpush1.bf16.msra.mxu0 %v9827
    %11354 = vmatprep.subr.bf16.mxu0 %v9836
    %11355 = vmatpush1.bf16.msra.mxu0 %v9835
    %11356 = vmatprep.subr.bf16.mxu0 %v9844
    %11357 = vmatpush1.bf16.msra.mxu0 %v9843
    %11358 = vmatprep.subr.bf16.mxu0 %v9852
    %11359 = vmatpush1.bf16.msra.mxu0 %v9851
    %11360 = vmatprep.subr.bf16.mxu0 %v9860
    %11361 = vmatpush1.bf16.msra.mxu0 %v9859
    %11362 = vmatprep.subr.bf16.mxu0 %v9868
    %11363 = vmatpush1.bf16.msra.mxu0 %v9867
    %11364 = vmatprep.subr.bf16.mxu0 %v9876
    %11365 = vmatpush1.bf16.msra.mxu0 %v9875
    %11366 = vmatprep.mubr.bf16.mxu0 %v7258
    %11367 = vmatmul.mubr.bf16.gmra.mrb[0].mxu0 %v7257
    %v11368 = vpop.f32.mrb[0].mxu0
    %v11369 = vadd.f32 %v11306, %v11368
    %v11370 = vpop.f32.mrb[0].mxu0
    %v11371 = vadd.f32 %v11308, %v11370
    %v11372 = vpop.f32.mrb[0].mxu0
    %v11373 = vadd.f32 %v11310, %v11372
    %v11374 = vpop.f32.mrb[0].mxu0
    %v11375 = vadd.f32 %v11312, %v11374
    %11376 = vmatprep.mubr.bf16.mxu0 %v7266
    %11377 = vmatmul.mubr.bf16.gmra.mrb[0].mxu0 %v7265
    %v11378 = vpop.f32.mrb[0].mxu0
    %v11379 = vadd.f32 %v11316, %v11378
    %v11380 = vpop.f32.mrb[0].mxu0
    %v11381 = vadd.f32 %v11318, %v11380
    %v11382 = vpop.f32.mrb[0].mxu0
    %v11383 = vadd.f32 %v11320, %v11382
    %v11384 = vpop.f32.mrb[0].mxu0
    %v11385 = vadd.f32 %v11322, %v11384
    %11386 = vmatprep.mubr.bf16.mxu0 %v7274
    %11387 = vmatmul.mubr.bf16.gmra.mrb[0].mxu0 %v7273
    %v11388 = vpop.f32.mrb[0].mxu0
    %v11389 = vadd.f32 %v11326, %v11388
    %v11390 = vpop.f32.mrb[0].mxu0
    %v11391 = vadd.f32 %v11328, %v11390
    %v11392 = vpop.f32.mrb[0].mxu0
    %v11393 = vadd.f32 %v11330, %v11392
    %v11394 = vpop.f32.mrb[0].mxu0
    %v11395 = vadd.f32 %v11332, %v11394
    %11396 = vdwg.mxu0
    %v11397 = vmax.f32 %v10613, 0.0
    %v11398 = vmax.f32 %v10615, 0.0
    %v11399 = vmax.f32 %v10865, 0.0
    %v11400 = vmax.f32 %v10867, 0.0
    %v11401 = vmax.f32 %v11117, 0.0
    %v11402 = vmax.f32 %v11119, 0.0
    %v11403 = vmax.f32 %v11369, 0.0
    %v11404 = vmax.f32 %v11371, 0.0
    %v11405 = vmax.f32 %v10617, 0.0
    %v11406 = vmax.f32 %v10619, 0.0
    %v11407 = vmax.f32 %v10869, 0.0
    %v11408 = vmax.f32 %v10871, 0.0
    %v11409 = vmax.f32 %v11121, 0.0
    %v11410 = vmax.f32 %v11123, 0.0
    %v11411 = vmax.f32 %v11373, 0.0
    %v11412 = vmax.f32 %v11375, 0.0
    %v11413 = vmax.f32 %v10623, 0.0
    %v11414 = vmax.f32 %v10625, 0.0
    %v11415 = vmax.f32 %v10875, 0.0
    %v11416 = vmax.f32 %v10877, 0.0
    %v11417 = vmax.f32 %v11127, 0.0
    %v11418 = vmax.f32 %v11129, 0.0
    %v11419 = vmax.f32 %v11379, 0.0
    %v11420 = vmax.f32 %v11381, 0.0
    %v11421 = vmax.f32 %v10627, 0.0
    %v11422 = vmax.f32 %v10629, 0.0
    %v11423 = vmax.f32 %v10879, 0.0
    %v11424 = vmax.f32 %v10881, 0.0
    %v11425 = vmax.f32 %v11131, 0.0
    %v11426 = vmax.f32 %v11133, 0.0
    %v11427 = vmax.f32 %v11383, 0.0
    %v11428 = vmax.f32 %v11385, 0.0
    %v11429 = vmax.f32 %v10633, 0.0
    %v11430 = vmax.f32 %v10635, 0.0
    %v11431 = vmax.f32 %v10885, 0.0
    %v11432 = vmax.f32 %v10887, 0.0
    %v11433 = vmax.f32 %v11137, 0.0
    %v11434 = vmax.f32 %v11139, 0.0
    %v11435 = vmax.f32 %v11389, 0.0
    %v11436 = vmax.f32 %v11391, 0.0
    %v11437 = vmax.f32 %v10637, 0.0
    %v11438 = vmax.f32 %v10639, 0.0
    %v11439 = vmax.f32 %v10889, 0.0
    %v11440 = vmax.f32 %v10891, 0.0
    %v11441 = vmax.f32 %v11141, 0.0
    %v11442 = vmax.f32 %v11143, 0.0
    %v11443 = vmax.f32 %v11393, 0.0
    %v11444 = vmax.f32 %v11395, 0.0
    %v11445 = vpack.c.bf16 %v11405, %v11397
    %v11446 = vpack.c.bf16 %v11406, %v11398
    %v11447 = vpack.c.bf16 %v11407, %v11399
    %v11448 = vpack.c.bf16 %v11408, %v11400
    %v11449 = vpack.c.bf16 %v11409, %v11401
    %v11450 = vpack.c.bf16 %v11410, %v11402
    %v11451 = vpack.c.bf16 %v11411, %v11403
    %v11452 = vpack.c.bf16 %v11412, %v11404
    %v11453 = vpack.c.bf16 %v11421, %v11413
    %v11454 = vpack.c.bf16 %v11422, %v11414
    %v11455 = vpack.c.bf16 %v11423, %v11415
    %v11456 = vpack.c.bf16 %v11424, %v11416
    %v11457 = vpack.c.bf16 %v11425, %v11417
    %v11458 = vpack.c.bf16 %v11426, %v11418
    %v11459 = vpack.c.bf16 %v11427, %v11419
    %v11460 = vpack.c.bf16 %v11428, %v11420
    %v11461 = vpack.c.bf16 %v11437, %v11429
    %v11462 = vpack.c.bf16 %v11438, %v11430
    %v11463 = vpack.c.bf16 %v11439, %v11431
    %v11464 = vpack.c.bf16 %v11440, %v11432
    %v11465 = vpack.c.bf16 %v11441, %v11433
    %v11466 = vpack.c.bf16 %v11442, %v11434
    %v11467 = vpack.c.bf16 %v11443, %v11435
    %v11468 = vpack.c.bf16 %v11444, %v11436
    %11469 = vst [vmem:[#allocation3] sm:$0xff] %v11445
    %11470 = vst [vmem:[#allocation3 + $0x8] sm:$0xff] %v11446
    %11471 = vst [vmem:[#allocation3 + $0x10] sm:$0xff] %v11447
    %11472 = vst [vmem:[#allocation3 + $0x18] sm:$0xff] %v11448
    %11473 = vst [vmem:[#allocation3 + $0x20] sm:$0xff] %v11449
    %11474 = vst [vmem:[#allocation3 + $0x28] sm:$0xff] %v11450
    %11475 = vst [vmem:[#allocation3 + $0x30] sm:$0xff] %v11451
    %11476 = vst [vmem:[#allocation3 + $0x38] sm:$0xff] %v11452
    %11477 = vst [vmem:[#allocation3 + $0x40] sm:$0xff] %v11453
    %11478 = vst [vmem:[#allocation3 + $0x48] sm:$0xff] %v11454
    %11479 = vst [vmem:[#allocation3 + $0x50] sm:$0xff] %v11455
    %11480 = vst [vmem:[#allocation3 + $0x58] sm:$0xff] %v11456
    %11481 = vst [vmem:[#allocation3 + $0x60] sm:$0xff] %v11457
    %11482 = vst [vmem:[#allocation3 + $0x68] sm:$0xff] %v11458
    %11483 = vst [vmem:[#allocation3 + $0x70] sm:$0xff] %v11459
    %11484 = vst [vmem:[#allocation3 + $0x78] sm:$0xff] %v11460
    %11485 = vst [vmem:[#allocation3 + $0x80] sm:$0xff] %v11461
    %11486 = vst [vmem:[#allocation3 + $0x88] sm:$0xff] %v11462
    %11487 = vst [vmem:[#allocation3 + $0x90] sm:$0xff] %v11463
    %11488 = vst [vmem:[#allocation3 + $0x98] sm:$0xff] %v11464
    %11489 = vst [vmem:[#allocation3 + $0xa0] sm:$0xff] %v11465
    %11490 = vst [vmem:[#allocation3 + $0xa8] sm:$0xff] %v11466
    %11491 = vst [vmem:[#allocation3 + $0xb0] sm:$0xff] %v11467
    %11492 = vst [vmem:[#allocation3 + $0xb8] sm:$0xff] %v11468
    %v11493 = vld [vmem:[#allocation3] sm:$0xff]
    %v11494 = vld [vmem:[#allocation3 + $0x8] sm:$0xff]
    %v11495 = vld [vmem:[#allocation3 + $0x10] sm:$0xff]
    %v11496 = vld [vmem:[#allocation3 + $0x18] sm:$0xff]
    %v11497 = vld [vmem:[#allocation3 + $0x20] sm:$0xff]
    %v11498 = vld [vmem:[#allocation3 + $0x28] sm:$0xff]
    %v11499 = vld [vmem:[#allocation3 + $0x30] sm:$0xff]
    %v11500 = vld [vmem:[#allocation3 + $0x38] sm:$0xff]
    %v11501 = vld [vmem:[#allocation3 + $0x40] sm:$0xff]
    %v11502 = vld [vmem:[#allocation3 + $0x48] sm:$0xff]
    %v11503 = vld [vmem:[#allocation3 + $0x50] sm:$0xff]
    %v11504 = vld [vmem:[#allocation3 + $0x58] sm:$0xff]
    %v11505 = vld [vmem:[#allocation3 + $0x60] sm:$0xff]
    %v11506 = vld [vmem:[#allocation3 + $0x68] sm:$0xff]
    %v11507 = vld [vmem:[#allocation3 + $0x70] sm:$0xff]
    %v11508 = vld [vmem:[#allocation3 + $0x78] sm:$0xff]
    %v11509 = vld [vmem:[#allocation3 + $0x80] sm:$0xff]
    %v11510 = vld [vmem:[#allocation3 + $0x88] sm:$0xff]
    %v11511 = vld [vmem:[#allocation3 + $0x90] sm:$0xff]
    %v11512 = vld [vmem:[#allocation3 + $0x98] sm:$0xff]
    %v11513 = vld [vmem:[#allocation3 + $0xa0] sm:$0xff]
    %v11514 = vld [vmem:[#allocation3 + $0xa8] sm:$0xff]
    %v11515 = vld [vmem:[#allocation3 + $0xb0] sm:$0xff]
    %v11516 = vld [vmem:[#allocation3 + $0xb8] sm:$0xff]
    %v11517 = vld [vmem:[#allocation13] sm:$0xf]
    %v11518 = vld [vmem:[#allocation13 + $0x4] sm:$0xf]
    %v11519 = vld [vmem:[#allocation13 + $0x8] sm:$0xf]
    %v11520 = vld [vmem:[#allocation13 + $0xc] sm:$0xf]
    %v11521 = vld [vmem:[#allocation13 + $0x10] sm:$0xf]
    %v11522 = vld [vmem:[#allocation13 + $0x14] sm:$0xf]
    %v11523 = vld [vmem:[#allocation13 + $0x18] sm:$0xf]
    %v11524 = vld [vmem:[#allocation13 + $0x1c] sm:$0xf]
    %v11525 = vld [vmem:[#allocation13 + $0x20] sm:$0xf]
    %v11526 = vld [vmem:[#allocation13 + $0x24] sm:$0xf]
    %v11527 = vld [vmem:[#allocation13 + $0x28] sm:$0xf]
    %v11528 = vld [vmem:[#allocation13 + $0x2c] sm:$0xf]
    %v11529 = vld [vmem:[#allocation13 + $0x30] sm:$0xf]
    %v11530 = vld [vmem:[#allocation13 + $0x34] sm:$0xf]
    %v11531 = vld [vmem:[#allocation13 + $0x38] sm:$0xf]
    %v11532 = vld [vmem:[#allocation13 + $0x3c] sm:$0xf]
    %v11533 = vld [vmem:[#allocation13 + $0x40] sm:$0xf]
    %v11534 = vld [vmem:[#allocation13 + $0x44] sm:$0xf]
    %v11535 = vld [vmem:[#allocation13 + $0x48] sm:$0xf]
    %v11536 = vld [vmem:[#allocation13 + $0x4c] sm:$0xf]
    %v11537 = vld [vmem:[#allocation13 + $0x50] sm:$0xf]
    %v11538 = vld [vmem:[#allocation13 + $0x54] sm:$0xf]
    %v11539 = vld [vmem:[#allocation13 + $0x58] sm:$0xf]
    %v11540 = vld [vmem:[#allocation13 + $0x5c] sm:$0xf]
    %v11541 = vld [vmem:[#allocation13 + $0x60] sm:$0xf]
    %v11542 = vld [vmem:[#allocation13 + $0x64] sm:$0xf]
    %v11543 = vld [vmem:[#allocation13 + $0x68] sm:$0xf]
    %v11544 = vld [vmem:[#allocation13 + $0x6c] sm:$0xf]
    %v11545 = vld [vmem:[#allocation13 + $0x70] sm:$0xf]
    %v11546 = vld [vmem:[#allocation13 + $0x74] sm:$0xf]
    %v11547 = vld [vmem:[#allocation13 + $0x78] sm:$0xf]
    %v11548 = vld [vmem:[#allocation13 + $0x7c] sm:$0xf]
    %v11549 = vld [vmem:[#allocation13 + $0x80] sm:$0xf]
    %v11550 = vld [vmem:[#allocation13 + $0x84] sm:$0xf]
    %v11551 = vld [vmem:[#allocation13 + $0x88] sm:$0xf]
    %v11552 = vld [vmem:[#allocation13 + $0x8c] sm:$0xf]
    %v11553 = vld [vmem:[#allocation13 + $0x90] sm:$0xf]
    %v11554 = vld [vmem:[#allocation13 + $0x94] sm:$0xf]
    %v11555 = vld [vmem:[#allocation13 + $0x98] sm:$0xf]
    %v11556 = vld [vmem:[#allocation13 + $0x9c] sm:$0xf]
    %v11557 = vld [vmem:[#allocation13 + $0xa0] sm:$0xf]
    %v11558 = vld [vmem:[#allocation13 + $0xa4] sm:$0xf]
    %v11559 = vld [vmem:[#allocation13 + $0xa8] sm:$0xf]
    %v11560 = vld [vmem:[#allocation13 + $0xac] sm:$0xf]
    %v11561 = vld [vmem:[#allocation13 + $0xb0] sm:$0xf]
    %v11562 = vld [vmem:[#allocation13 + $0xb4] sm:$0xf]
    %v11563 = vld [vmem:[#allocation13 + $0xb8] sm:$0xf]
    %v11564 = vld [vmem:[#allocation13 + $0xbc] sm:$0xf]
    %v11565 = vld [vmem:[#allocation13 + $0xc0] sm:$0xf]
    %v11566 = vld [vmem:[#allocation13 + $0xc4] sm:$0xf]
    %v11567 = vld [vmem:[#allocation13 + $0xc8] sm:$0xf]
    %v11568 = vld [vmem:[#allocation13 + $0xcc] sm:$0xf]
    %v11569 = vld [vmem:[#allocation13 + $0xd0] sm:$0xf]
    %v11570 = vld [vmem:[#allocation13 + $0xd4] sm:$0xf]
    %v11571 = vld [vmem:[#allocation13 + $0xd8] sm:$0xf]
    %v11572 = vld [vmem:[#allocation13 + $0xdc] sm:$0xf]
    %v11573 = vld [vmem:[#allocation13 + $0xe0] sm:$0xf]
    %v11574 = vld [vmem:[#allocation13 + $0xe4] sm:$0xf]
    %v11575 = vld [vmem:[#allocation13 + $0xe8] sm:$0xf]
    %v11576 = vld [vmem:[#allocation13 + $0xec] sm:$0xf]
    %v11577 = vld [vmem:[#allocation13 + $0xf0] sm:$0xf]
    %v11578 = vld [vmem:[#allocation13 + $0xf4] sm:$0xf]
    %v11579 = vld [vmem:[#allocation13 + $0xf8] sm:$0xf]
    %v11580 = vld [vmem:[#allocation13 + $0xfc] sm:$0xf]
    %v11581 = vld [vmem:[#allocation13 + $0x100] sm:$0xf]
    %v11582 = vld [vmem:[#allocation13 + $0x104] sm:$0xf]
    %v11583 = vld [vmem:[#allocation13 + $0x108] sm:$0xf]
    %v11584 = vld [vmem:[#allocation13 + $0x10c] sm:$0xf]
    %v11585 = vld [vmem:[#allocation13 + $0x110] sm:$0xf]
    %v11586 = vld [vmem:[#allocation13 + $0x114] sm:$0xf]
    %v11587 = vld [vmem:[#allocation13 + $0x118] sm:$0xf]
    %v11588 = vld [vmem:[#allocation13 + $0x11c] sm:$0xf]
    %v11589 = vld [vmem:[#allocation13 + $0x120] sm:$0xf]
    %v11590 = vld [vmem:[#allocation13 + $0x124] sm:$0xf]
    %v11591 = vld [vmem:[#allocation13 + $0x128] sm:$0xf]
    %v11592 = vld [vmem:[#allocation13 + $0x12c] sm:$0xf]
    %v11593 = vld [vmem:[#allocation13 + $0x130] sm:$0xf]
    %v11594 = vld [vmem:[#allocation13 + $0x134] sm:$0xf]
    %v11595 = vld [vmem:[#allocation13 + $0x138] sm:$0xf]
    %v11596 = vld [vmem:[#allocation13 + $0x13c] sm:$0xf]
    %v11597 = vld [vmem:[#allocation13 + $0x140] sm:$0xf]
    %v11598 = vld [vmem:[#allocation13 + $0x144] sm:$0xf]
    %v11599 = vld [vmem:[#allocation13 + $0x148] sm:$0xf]
    %v11600 = vld [vmem:[#allocation13 + $0x14c] sm:$0xf]
    %v11601 = vld [vmem:[#allocation13 + $0x150] sm:$0xf]
    %v11602 = vld [vmem:[#allocation13 + $0x154] sm:$0xf]
    %v11603 = vld [vmem:[#allocation13 + $0x158] sm:$0xf]
    %v11604 = vld [vmem:[#allocation13 + $0x15c] sm:$0xf]
    %v11605 = vld [vmem:[#allocation13 + $0x160] sm:$0xf]
    %v11606 = vld [vmem:[#allocation13 + $0x164] sm:$0xf]
    %v11607 = vld [vmem:[#allocation13 + $0x168] sm:$0xf]
    %v11608 = vld [vmem:[#allocation13 + $0x16c] sm:$0xf]
    %v11609 = vld [vmem:[#allocation13 + $0x170] sm:$0xf]
    %v11610 = vld [vmem:[#allocation13 + $0x174] sm:$0xf]
    %v11611 = vld [vmem:[#allocation13 + $0x178] sm:$0xf]
    %v11612 = vld [vmem:[#allocation13 + $0x17c] sm:$0xf]
    %v11613 = vld [vmem:[#allocation13 + $0x180] sm:$0xf]
    %v11614 = vld [vmem:[#allocation13 + $0x184] sm:$0xf]
    %v11615 = vld [vmem:[#allocation13 + $0x188] sm:$0xf]
    %v11616 = vld [vmem:[#allocation13 + $0x18c] sm:$0xf]
    %v11617 = vld [vmem:[#allocation13 + $0x190] sm:$0xf]
    %v11618 = vld [vmem:[#allocation13 + $0x194] sm:$0xf]
    %v11619 = vld [vmem:[#allocation13 + $0x198] sm:$0xf]
    %v11620 = vld [vmem:[#allocation13 + $0x19c] sm:$0xf]
    %v11621 = vld [vmem:[#allocation13 + $0x1a0] sm:$0xf]
    %v11622 = vld [vmem:[#allocation13 + $0x1a4] sm:$0xf]
    %v11623 = vld [vmem:[#allocation13 + $0x1a8] sm:$0xf]
    %v11624 = vld [vmem:[#allocation13 + $0x1ac] sm:$0xf]
    %v11625 = vld [vmem:[#allocation13 + $0x1b0] sm:$0xf]
    %v11626 = vld [vmem:[#allocation13 + $0x1b4] sm:$0xf]
    %v11627 = vld [vmem:[#allocation13 + $0x1b8] sm:$0xf]
    %v11628 = vld [vmem:[#allocation13 + $0x1bc] sm:$0xf]
    %v11629 = vld [vmem:[#allocation13 + $0x1c0] sm:$0xf]
    %v11630 = vld [vmem:[#allocation13 + $0x1c4] sm:$0xf]
    %v11631 = vld [vmem:[#allocation13 + $0x1c8] sm:$0xf]
    %v11632 = vld [vmem:[#allocation13 + $0x1cc] sm:$0xf]
    %v11633 = vld [vmem:[#allocation13 + $0x1d0] sm:$0xf]
    %v11634 = vld [vmem:[#allocation13 + $0x1d4] sm:$0xf]
    %v11635 = vld [vmem:[#allocation13 + $0x1d8] sm:$0xf]
    %v11636 = vld [vmem:[#allocation13 + $0x1dc] sm:$0xf]
    %v11637 = vld [vmem:[#allocation13 + $0x1e0] sm:$0xf]
    %v11638 = vld [vmem:[#allocation13 + $0x1e4] sm:$0xf]
    %v11639 = vld [vmem:[#allocation13 + $0x1e8] sm:$0xf]
    %v11640 = vld [vmem:[#allocation13 + $0x1ec] sm:$0xf]
    %v11641 = vld [vmem:[#allocation13 + $0x1f0] sm:$0xf]
    %v11642 = vld [vmem:[#allocation13 + $0x1f4] sm:$0xf]
    %v11643 = vld [vmem:[#allocation13 + $0x1f8] sm:$0xf]
    %v11644 = vld [vmem:[#allocation13 + $0x1fc] sm:$0xf]
    %v11645 = vld [vmem:[#allocation15] sm:$0x1]
    %v11647 = vlaneseq
    %v11648 = vshrl.u32 %v11647, 7
    %v11649 = vsub.s32 0, %v11648
    %v11650 = vrot.slane %v11645, %v11649
    %v11780 = vunpack.c.l.b16 %v11517
    %v11781 = vunpack.c.l.b16 %v11518
    %v11782 = vunpack.c.l.b16 %v11519
    %v11783 = vunpack.c.l.b16 %v11520
    %v11784 = vunpack.c.l.b16 %v11521
    %v11785 = vunpack.c.l.b16 %v11522
    %v11786 = vunpack.c.l.b16 %v11523
    %v11787 = vunpack.c.l.b16 %v11524
    %v11788 = vunpack.c.l.b16 %v11525
    %v11789 = vunpack.c.l.b16 %v11526
    %v11790 = vunpack.c.l.b16 %v11527
    %v11791 = vunpack.c.l.b16 %v11528
    %v11792 = vunpack.c.l.b16 %v11529
    %v11793 = vunpack.c.l.b16 %v11530
    %v11794 = vunpack.c.l.b16 %v11531
    %v11795 = vunpack.c.l.b16 %v11532
    %v11796 = vunpack.c.l.b16 %v11533
    %v11797 = vunpack.c.l.b16 %v11534
    %v11798 = vunpack.c.l.b16 %v11535
    %v11799 = vunpack.c.l.b16 %v11536
    %v11800 = vunpack.c.l.b16 %v11537
    %v11801 = vunpack.c.l.b16 %v11538
    %v11802 = vunpack.c.l.b16 %v11539
    %v11803 = vunpack.c.l.b16 %v11540
    %v11804 = vunpack.c.l.b16 %v11541
    %v11805 = vunpack.c.l.b16 %v11542
    %v11806 = vunpack.c.l.b16 %v11543
    %v11807 = vunpack.c.l.b16 %v11544
    %v11808 = vunpack.c.l.b16 %v11545
    %v11809 = vunpack.c.l.b16 %v11546
    %v11810 = vunpack.c.l.b16 %v11547
    %v11811 = vunpack.c.l.b16 %v11548
    %v11812 = vunpack.c.l.b16 %v11549
    %v11813 = vunpack.c.l.b16 %v11550
    %v11814 = vunpack.c.l.b16 %v11551
    %v11815 = vunpack.c.l.b16 %v11552
    %v11816 = vunpack.c.l.b16 %v11553
    %v11817 = vunpack.c.l.b16 %v11554
    %v11818 = vunpack.c.l.b16 %v11555
    %v11819 = vunpack.c.l.b16 %v11556
    %v11820 = vunpack.c.l.b16 %v11557
    %v11821 = vunpack.c.l.b16 %v11558
    %v11822 = vunpack.c.l.b16 %v11559
    %v11823 = vunpack.c.l.b16 %v11560
    %v11824 = vunpack.c.l.b16 %v11561
    %v11825 = vunpack.c.l.b16 %v11562
    %v11826 = vunpack.c.l.b16 %v11563
    %v11827 = vunpack.c.l.b16 %v11564
    %v11828 = vunpack.c.l.b16 %v11565
    %v11829 = vunpack.c.l.b16 %v11566
    %v11830 = vunpack.c.l.b16 %v11567
    %v11831 = vunpack.c.l.b16 %v11568
    %v11832 = vunpack.c.l.b16 %v11569
    %v11833 = vunpack.c.l.b16 %v11570
    %v11834 = vunpack.c.l.b16 %v11571
    %v11835 = vunpack.c.l.b16 %v11572
    %v11836 = vunpack.c.l.b16 %v11573
    %v11837 = vunpack.c.l.b16 %v11574
    %v11838 = vunpack.c.l.b16 %v11575
    %v11839 = vunpack.c.l.b16 %v11576
    %v11840 = vunpack.c.l.b16 %v11577
    %v11841 = vunpack.c.l.b16 %v11578
    %v11842 = vunpack.c.l.b16 %v11579
    %v11843 = vunpack.c.l.b16 %v11580
    %v11844 = vunpack.c.l.b16 %v11581
    %v11845 = vunpack.c.l.b16 %v11582
    %v11846 = vunpack.c.l.b16 %v11583
    %v11847 = vunpack.c.l.b16 %v11584
    %v11848 = vunpack.c.l.b16 %v11585
    %v11849 = vunpack.c.l.b16 %v11586
    %v11850 = vunpack.c.l.b16 %v11587
    %v11851 = vunpack.c.l.b16 %v11588
    %v11852 = vunpack.c.l.b16 %v11589
    %v11853 = vunpack.c.l.b16 %v11590
    %v11854 = vunpack.c.l.b16 %v11591
    %v11855 = vunpack.c.l.b16 %v11592
    %v11856 = vunpack.c.l.b16 %v11593
    %v11857 = vunpack.c.l.b16 %v11594
    %v11858 = vunpack.c.l.b16 %v11595
    %v11859 = vunpack.c.l.b16 %v11596
    %v11860 = vunpack.c.l.b16 %v11597
    %v11861 = vunpack.c.l.b16 %v11598
    %v11862 = vunpack.c.l.b16 %v11599
    %v11863 = vunpack.c.l.b16 %v11600
    %v11864 = vunpack.c.l.b16 %v11601
    %v11865 = vunpack.c.l.b16 %v11602
    %v11866 = vunpack.c.l.b16 %v11603
    %v11867 = vunpack.c.l.b16 %v11604
    %v11868 = vunpack.c.l.b16 %v11605
    %v11869 = vunpack.c.l.b16 %v11606
    %v11870 = vunpack.c.l.b16 %v11607
    %v11871 = vunpack.c.l.b16 %v11608
    %v11872 = vunpack.c.l.b16 %v11609
    %v11873 = vunpack.c.l.b16 %v11610
    %v11874 = vunpack.c.l.b16 %v11611
    %v11875 = vunpack.c.l.b16 %v11612
    %v11876 = vunpack.c.l.b16 %v11613
    %v11877 = vunpack.c.l.b16 %v11614
    %v11878 = vunpack.c.l.b16 %v11615
    %v11879 = vunpack.c.l.b16 %v11616
    %v11880 = vunpack.c.l.b16 %v11617
    %v11881 = vunpack.c.l.b16 %v11618
    %v11882 = vunpack.c.l.b16 %v11619
    %v11883 = vunpack.c.l.b16 %v11620
    %v11884 = vunpack.c.l.b16 %v11621
    %v11885 = vunpack.c.l.b16 %v11622
    %v11886 = vunpack.c.l.b16 %v11623
    %v11887 = vunpack.c.l.b16 %v11624
    %v11888 = vunpack.c.l.b16 %v11625
    %v11889 = vunpack.c.l.b16 %v11626
    %v11890 = vunpack.c.l.b16 %v11627
    %v11891 = vunpack.c.l.b16 %v11628
    %v11892 = vunpack.c.l.b16 %v11629
    %v11893 = vunpack.c.l.b16 %v11630
    %v11894 = vunpack.c.l.b16 %v11631
    %v11895 = vunpack.c.l.b16 %v11632
    %v11896 = vunpack.c.l.b16 %v11633
    %v11897 = vunpack.c.l.b16 %v11634
    %v11898 = vunpack.c.l.b16 %v11635
    %v11899 = vunpack.c.l.b16 %v11636
    %v11900 = vunpack.c.l.b16 %v11637
    %v11901 = vunpack.c.l.b16 %v11638
    %v11902 = vunpack.c.l.b16 %v11639
    %v11903 = vunpack.c.l.b16 %v11640
    %v11904 = vunpack.c.l.b16 %v11641
    %v11905 = vunpack.c.l.b16 %v11642
    %v11906 = vunpack.c.l.b16 %v11643
    %v11907 = vunpack.c.l.b16 %v11644
    %v11908 = vpack.c.b16 %v11781, %v11780
    %v11909 = vpack.c.b16 %v11783, %v11782
    %v11910 = vpack.c.b16 %v11785, %v11784
    %v11911 = vpack.c.b16 %v11787, %v11786
    %v11912 = vpack.c.b16 %v11789, %v11788
    %v11913 = vpack.c.b16 %v11791, %v11790
    %v11914 = vpack.c.b16 %v11793, %v11792
    %v11915 = vpack.c.b16 %v11795, %v11794
    %v11916 = vpack.c.b16 %v11797, %v11796
    %v11917 = vpack.c.b16 %v11799, %v11798
    %v11918 = vpack.c.b16 %v11801, %v11800
    %v11919 = vpack.c.b16 %v11803, %v11802
    %v11920 = vpack.c.b16 %v11805, %v11804
    %v11921 = vpack.c.b16 %v11807, %v11806
    %v11922 = vpack.c.b16 %v11809, %v11808
    %v11923 = vpack.c.b16 %v11811, %v11810
    %v11924 = vpack.c.b16 %v11813, %v11812
    %v11925 = vpack.c.b16 %v11815, %v11814
    %v11926 = vpack.c.b16 %v11817, %v11816
    %v11927 = vpack.c.b16 %v11819, %v11818
    %v11928 = vpack.c.b16 %v11821, %v11820
    %v11929 = vpack.c.b16 %v11823, %v11822
    %v11930 = vpack.c.b16 %v11825, %v11824
    %v11931 = vpack.c.b16 %v11827, %v11826
    %v11932 = vpack.c.b16 %v11829, %v11828
    %v11933 = vpack.c.b16 %v11831, %v11830
    %v11934 = vpack.c.b16 %v11833, %v11832
    %v11935 = vpack.c.b16 %v11835, %v11834
    %v11936 = vpack.c.b16 %v11837, %v11836
    %v11937 = vpack.c.b16 %v11839, %v11838
    %v11938 = vpack.c.b16 %v11841, %v11840
    %v11939 = vpack.c.b16 %v11843, %v11842
    %v11940 = vpack.c.b16 %v11845, %v11844
    %v11941 = vpack.c.b16 %v11847, %v11846
    %v11942 = vpack.c.b16 %v11849, %v11848
    %v11943 = vpack.c.b16 %v11851, %v11850
    %v11944 = vpack.c.b16 %v11853, %v11852
    %v11945 = vpack.c.b16 %v11855, %v11854
    %v11946 = vpack.c.b16 %v11857, %v11856
    %v11947 = vpack.c.b16 %v11859, %v11858
    %v11948 = vpack.c.b16 %v11861, %v11860
    %v11949 = vpack.c.b16 %v11863, %v11862
    %v11950 = vpack.c.b16 %v11865, %v11864
    %v11951 = vpack.c.b16 %v11867, %v11866
    %v11952 = vpack.c.b16 %v11869, %v11868
    %v11953 = vpack.c.b16 %v11871, %v11870
    %v11954 = vpack.c.b16 %v11873, %v11872
    %v11955 = vpack.c.b16 %v11875, %v11874
    %v11956 = vpack.c.b16 %v11877, %v11876
    %v11957 = vpack.c.b16 %v11879, %v11878
    %v11958 = vpack.c.b16 %v11881, %v11880
    %v11959 = vpack.c.b16 %v11883, %v11882
    %v11960 = vpack.c.b16 %v11885, %v11884
    %v11961 = vpack.c.b16 %v11887, %v11886
    %v11962 = vpack.c.b16 %v11889, %v11888
    %v11963 = vpack.c.b16 %v11891, %v11890
    %v11964 = vpack.c.b16 %v11893, %v11892
    %v11965 = vpack.c.b16 %v11895, %v11894
    %v11966 = vpack.c.b16 %v11897, %v11896
    %v11967 = vpack.c.b16 %v11899, %v11898
    %v11968 = vpack.c.b16 %v11901, %v11900
    %v11969 = vpack.c.b16 %v11903, %v11902
    %v11970 = vpack.c.b16 %v11905, %v11904
    %v11971 = vpack.c.b16 %v11907, %v11906
    %12036 = vmatprep.subr.bf16.mxu0 0
    %12037 = vmatpush1.bf16.msra.mxu0 %v11908
    %12038 = vmatprep.subr.bf16.mxu0 0
    %12039 = vmatpush1.bf16.msra.mxu0 %v11909
    %12040 = vmatprep.subr.bf16.mxu0 0
    %12041 = vmatpush1.bf16.msra.mxu0 %v11910
    %12042 = vmatprep.subr.bf16.mxu0 0
    %12043 = vmatpush1.bf16.msra.mxu0 %v11911
    %12044 = vmatprep.subr.bf16.mxu0 0
    %12045 = vmatpush1.bf16.msra.mxu0 %v11912
    %12046 = vmatprep.subr.bf16.mxu0 0
    %12047 = vmatpush1.bf16.msra.mxu0 %v11913
    %12048 = vmatprep.subr.bf16.mxu0 0
    %12049 = vmatpush1.bf16.msra.mxu0 %v11914
    %12050 = vmatprep.subr.bf16.mxu0 0
    %12051 = vmatpush1.bf16.msra.mxu0 %v11915
    %12052 = vmatprep.subr.bf16.mxu0 0
    %12053 = vmatpush1.bf16.msra.mxu0 %v11916
    %12054 = vmatprep.subr.bf16.mxu0 0
    %12055 = vmatpush1.bf16.msra.mxu0 %v11917
    %12056 = vmatprep.subr.bf16.mxu0 0
    %12057 = vmatpush1.bf16.msra.mxu0 %v11918
    %12058 = vmatprep.subr.bf16.mxu0 0
    %12059 = vmatpush1.bf16.msra.mxu0 %v11919
    %12060 = vmatprep.subr.bf16.mxu0 0
    %12061 = vmatpush1.bf16.msra.mxu0 %v11920
    %12062 = vmatprep.subr.bf16.mxu0 0
    %12063 = vmatpush1.bf16.msra.mxu0 %v11921
    %12064 = vmatprep.subr.bf16.mxu0 0
    %12065 = vmatpush1.bf16.msra.mxu0 %v11922
    %12066 = vmatprep.subr.bf16.mxu0 0
    %12067 = vmatpush1.bf16.msra.mxu0 %v11923
    %12068 = vmatprep.mubr.bf16.mxu0 %v11494
    %12069 = vmatmul.mubr.bf16.gmra.mrb[0].mxu0 %v11493
    %v12070 = vpop.f32.mrb[0].mxu0
    %v12071 = vadd.f32 %v11650, %v12070
    %v12072 = vpop.f32.mrb[0].mxu0
    %v12073 = vpop.f32.mrb[0].mxu0
    %v12074 = vadd.f32 %v11650, %v12073
    %v12075 = vpop.f32.mrb[0].mxu0
    %12076 = vmatprep.mubr.bf16.mxu0 %v11502
    %12077 = vmatmul.mubr.bf16.gmra.mrb[0].mxu0 %v11501
    %v12078 = vpop.f32.mrb[0].mxu0
    %v12079 = vadd.f32 %v11650, %v12078
    %v12080 = vpop.f32.mrb[0].mxu0
    %v12081 = vpop.f32.mrb[0].mxu0
    %v12082 = vadd.f32 %v11650, %v12081
    %v12083 = vpop.f32.mrb[0].mxu0
    %12084 = vmatprep.mubr.bf16.mxu0 %v11510
    %12085 = vmatmul.mubr.bf16.gmra.mrb[0].mxu0 %v11509
    %v12086 = vpop.f32.mrb[0].mxu0
    %v12087 = vadd.f32 %v11650, %v12086
    %v12088 = vpop.f32.mrb[0].mxu0
    %v12089 = vpop.f32.mrb[0].mxu0
    %v12090 = vadd.f32 %v11650, %v12089
    %v12091 = vpop.f32.mrb[0].mxu0
    %12092 = vdwg.mxu0
    %12093 = vmatprep.subr.bf16.mxu0 0
    %12094 = vmatpush1.bf16.msra.mxu0 %v11924
    %12095 = vmatprep.subr.bf16.mxu0 0
    %12096 = vmatpush1.bf16.msra.mxu0 %v11925
    %12097 = vmatprep.subr.bf16.mxu0 0
    %12098 = vmatpush1.bf16.msra.mxu0 %v11926
    %12099 = vmatprep.subr.bf16.mxu0 0
    %12100 = vmatpush1.bf16.msra.mxu0 %v11927
    %12101 = vmatprep.subr.bf16.mxu0 0
    %12102 = vmatpush1.bf16.msra.mxu0 %v11928
    %12103 = vmatprep.subr.bf16.mxu0 0
    %12104 = vmatpush1.bf16.msra.mxu0 %v11929
    %12105 = vmatprep.subr.bf16.mxu0 0
    %12106 = vmatpush1.bf16.msra.mxu0 %v11930
    %12107 = vmatprep.subr.bf16.mxu0 0
    %12108 = vmatpush1.bf16.msra.mxu0 %v11931
    %12109 = vmatprep.subr.bf16.mxu0 0
    %12110 = vmatpush1.bf16.msra.mxu0 %v11932
    %12111 = vmatprep.subr.bf16.mxu0 0
    %12112 = vmatpush1.bf16.msra.mxu0 %v11933
    %12113 = vmatprep.subr.bf16.mxu0 0
    %12114 = vmatpush1.bf16.msra.mxu0 %v11934
    %12115 = vmatprep.subr.bf16.mxu0 0
    %12116 = vmatpush1.bf16.msra.mxu0 %v11935
    %12117 = vmatprep.subr.bf16.mxu0 0
    %12118 = vmatpush1.bf16.msra.mxu0 %v11936
    %12119 = vmatprep.subr.bf16.mxu0 0
    %12120 = vmatpush1.bf16.msra.mxu0 %v11937
    %12121 = vmatprep.subr.bf16.mxu0 0
    %12122 = vmatpush1.bf16.msra.mxu0 %v11938
    %12123 = vmatprep.subr.bf16.mxu0 0
    %12124 = vmatpush1.bf16.msra.mxu0 %v11939
    %12125 = vmatprep.mubr.bf16.mxu0 %v11496
    %12126 = vmatmul.mubr.bf16.gmra.mrb[0].mxu0 %v11495
    %v12127 = vpop.f32.mrb[0].mxu0
    %v12128 = vadd.f32 %v12071, %v12127
    %v12129 = vpop.f32.mrb[0].mxu0
    %v12130 = vpop.f32.mrb[0].mxu0
    %v12131 = vadd.f32 %v12074, %v12130
    %v12132 = vpop.f32.mrb[0].mxu0
    %12133 = vmatprep.mubr.bf16.mxu0 %v11504
    %12134 = vmatmul.mubr.bf16.gmra.mrb[0].mxu0 %v11503
    %v12135 = vpop.f32.mrb[0].mxu0
    %v12136 = vadd.f32 %v12079, %v12135
    %v12137 = vpop.f32.mrb[0].mxu0
    %v12138 = vpop.f32.mrb[0].mxu0
    %v12139 = vadd.f32 %v12082, %v12138
    %v12140 = vpop.f32.mrb[0].mxu0
    %12141 = vmatprep.mubr.bf16.mxu0 %v11512
    %12142 = vmatmul.mubr.bf16.gmra.mrb[0].mxu0 %v11511
    %v12143 = vpop.f32.mrb[0].mxu0
    %v12144 = vadd.f32 %v12087, %v12143
    %v12145 = vpop.f32.mrb[0].mxu0
    %v12146 = vpop.f32.mrb[0].mxu0
    %v12147 = vadd.f32 %v12090, %v12146
    %v12148 = vpop.f32.mrb[0].mxu0
    %12149 = vdwg.mxu0
    %12150 = vmatprep.subr.bf16.mxu0 0
    %12151 = vmatpush1.bf16.msra.mxu0 %v11940
    %12152 = vmatprep.subr.bf16.mxu0 0
    %12153 = vmatpush1.bf16.msra.mxu0 %v11941
    %12154 = vmatprep.subr.bf16.mxu0 0
    %12155 = vmatpush1.bf16.msra.mxu0 %v11942
    %12156 = vmatprep.subr.bf16.mxu0 0
    %12157 = vmatpush1.bf16.msra.mxu0 %v11943
    %12158 = vmatprep.subr.bf16.mxu0 0
    %12159 = vmatpush1.bf16.msra.mxu0 %v11944
    %12160 = vmatprep.subr.bf16.mxu0 0
    %12161 = vmatpush1.bf16.msra.mxu0 %v11945
    %12162 = vmatprep.subr.bf16.mxu0 0
    %12163 = vmatpush1.bf16.msra.mxu0 %v11946
    %12164 = vmatprep.subr.bf16.mxu0 0
    %12165 = vmatpush1.bf16.msra.mxu0 %v11947
    %12166 = vmatprep.subr.bf16.mxu0 0
    %12167 = vmatpush1.bf16.msra.mxu0 %v11948
    %12168 = vmatprep.subr.bf16.mxu0 0
    %12169 = vmatpush1.bf16.msra.mxu0 %v11949
    %12170 = vmatprep.subr.bf16.mxu0 0
    %12171 = vmatpush1.bf16.msra.mxu0 %v11950
    %12172 = vmatprep.subr.bf16.mxu0 0
    %12173 = vmatpush1.bf16.msra.mxu0 %v11951
    %12174 = vmatprep.subr.bf16.mxu0 0
    %12175 = vmatpush1.bf16.msra.mxu0 %v11952
    %12176 = vmatprep.subr.bf16.mxu0 0
    %12177 = vmatpush1.bf16.msra.mxu0 %v11953
    %12178 = vmatprep.subr.bf16.mxu0 0
    %12179 = vmatpush1.bf16.msra.mxu0 %v11954
    %12180 = vmatprep.subr.bf16.mxu0 0
    %12181 = vmatpush1.bf16.msra.mxu0 %v11955
    %12182 = vmatprep.mubr.bf16.mxu0 %v11498
    %12183 = vmatmul.mubr.bf16.gmra.mrb[0].mxu0 %v11497
    %v12184 = vpop.f32.mrb[0].mxu0
    %v12185 = vadd.f32 %v12128, %v12184
    %v12186 = vpop.f32.mrb[0].mxu0
    %v12187 = vpop.f32.mrb[0].mxu0
    %v12188 = vadd.f32 %v12131, %v12187
    %v12189 = vpop.f32.mrb[0].mxu0
    %12190 = vmatprep.mubr.bf16.mxu0 %v11506
    %12191 = vmatmul.mubr.bf16.gmra.mrb[0].mxu0 %v11505
    %v12192 = vpop.f32.mrb[0].mxu0
    %v12193 = vadd.f32 %v12136, %v12192
    %v12194 = vpop.f32.mrb[0].mxu0
    %v12195 = vpop.f32.mrb[0].mxu0
    %v12196 = vadd.f32 %v12139, %v12195
    %v12197 = vpop.f32.mrb[0].mxu0
    %12198 = vmatprep.mubr.bf16.mxu0 %v11514
    %12199 = vmatmul.mubr.bf16.gmra.mrb[0].mxu0 %v11513
    %v12200 = vpop.f32.mrb[0].mxu0
    %v12201 = vadd.f32 %v12144, %v12200
    %v12202 = vpop.f32.mrb[0].mxu0
    %v12203 = vpop.f32.mrb[0].mxu0
    %v12204 = vadd.f32 %v12147, %v12203
    %v12205 = vpop.f32.mrb[0].mxu0
    %12206 = vdwg.mxu0
    %12207 = vmatprep.subr.bf16.mxu0 0
    %12208 = vmatpush1.bf16.msra.mxu0 %v11956
    %12209 = vmatprep.subr.bf16.mxu0 0
    %12210 = vmatpush1.bf16.msra.mxu0 %v11957
    %12211 = vmatprep.subr.bf16.mxu0 0
    %12212 = vmatpush1.bf16.msra.mxu0 %v11958
    %12213 = vmatprep.subr.bf16.mxu0 0
    %12214 = vmatpush1.bf16.msra.mxu0 %v11959
    %12215 = vmatprep.subr.bf16.mxu0 0
    %12216 = vmatpush1.bf16.msra.mxu0 %v11960
    %12217 = vmatprep.subr.bf16.mxu0 0
    %12218 = vmatpush1.bf16.msra.mxu0 %v11961
    %12219 = vmatprep.subr.bf16.mxu0 0
    %12220 = vmatpush1.bf16.msra.mxu0 %v11962
    %12221 = vmatprep.subr.bf16.mxu0 0
    %12222 = vmatpush1.bf16.msra.mxu0 %v11963
    %12223 = vmatprep.subr.bf16.mxu0 0
    %12224 = vmatpush1.bf16.msra.mxu0 %v11964
    %12225 = vmatprep.subr.bf16.mxu0 0
    %12226 = vmatpush1.bf16.msra.mxu0 %v11965
    %12227 = vmatprep.subr.bf16.mxu0 0
    %12228 = vmatpush1.bf16.msra.mxu0 %v11966
    %12229 = vmatprep.subr.bf16.mxu0 0
    %12230 = vmatpush1.bf16.msra.mxu0 %v11967
    %12231 = vmatprep.subr.bf16.mxu0 0
    %12232 = vmatpush1.bf16.msra.mxu0 %v11968
    %12233 = vmatprep.subr.bf16.mxu0 0
    %12234 = vmatpush1.bf16.msra.mxu0 %v11969
    %12235 = vmatprep.subr.bf16.mxu0 0
    %12236 = vmatpush1.bf16.msra.mxu0 %v11970
    %12237 = vmatprep.subr.bf16.mxu0 0
    %12238 = vmatpush1.bf16.msra.mxu0 %v11971
    %12239 = vmatprep.mubr.bf16.mxu0 %v11500
    %12240 = vmatmul.mubr.bf16.gmra.mrb[0].mxu0 %v11499
    %v12241 = vpop.f32.mrb[0].mxu0
    %v12242 = vadd.f32 %v12185, %v12241
    %v12243 = vpop.f32.mrb[0].mxu0
    %v12244 = vpop.f32.mrb[0].mxu0
    %v12245 = vadd.f32 %v12188, %v12244
    %v12246 = vpop.f32.mrb[0].mxu0
    %12247 = vmatprep.mubr.bf16.mxu0 %v11508
    %12248 = vmatmul.mubr.bf16.gmra.mrb[0].mxu0 %v11507
    %v12249 = vpop.f32.mrb[0].mxu0
    %v12250 = vadd.f32 %v12193, %v12249
    %v12251 = vpop.f32.mrb[0].mxu0
    %v12252 = vpop.f32.mrb[0].mxu0
    %v12253 = vadd.f32 %v12196, %v12252
    %v12254 = vpop.f32.mrb[0].mxu0
    %12255 = vmatprep.mubr.bf16.mxu0 %v11516
    %12256 = vmatmul.mubr.bf16.gmra.mrb[0].mxu0 %v11515
    %v12257 = vpop.f32.mrb[0].mxu0
    %v12258 = vadd.f32 %v12201, %v12257
    %v12259 = vpop.f32.mrb[0].mxu0
    %v12260 = vpop.f32.mrb[0].mxu0
    %v12261 = vadd.f32 %v12204, %v12260
    %v12262 = vpop.f32.mrb[0].mxu0
    %12263 = vdwg.mxu0
    %12264 = vst [vmem:[#allocation16] sm:$0xff] %v12242
    %12265 = vst [vmem:[#allocation16 + $0x8] sm:$0xff] %v12245
    %12266 = vst [vmem:[#allocation16 + $0x10] sm:$0xff] %v12250
    %12267 = vst [vmem:[#allocation16 + $0x18] sm:$0xff] %v12253
    %12268 = vst [vmem:[#allocation16 + $0x20] sm:$0xff] %v12258
    %12269 = vst [vmem:[#allocation16 + $0x28] sm:$0xff] %v12261
    // Predicated region
    $region58: #{tpu_custom_call.1} parent=1 // pred_check
      _
    $region59: #{tpu_custom_call.1} parent=1 // pred_check_branch
      %12271 = sbr.rel (0) target = $region61
    $region60: #{tpu_custom_call.1} parent=1 // pred_region
      %s12273 = ssub.s32 768, 768
      %12274 = vsyncadd [#allocation6], %s12273
      %s12275 = sshll.u32 [#allocation16], 4
      %s12276 = int_to_ptr.vmem [resolvable:$true] %s12275
      %12281 = dma.vmem_to_hbm [thread:$0]  %s12276, 768, %s7, [#allocation6], 128, 128, 8
    $region61: #{tpu_custom_call.1} parent=1 // pred_fallthru
      _
    // Predicated region
    $region62: #{tpu_custom_call.1} parent=1 // pred_check
      _
    $region63: #{tpu_custom_call.1} parent=1 // pred_check_branch
      %12283 = sbr.rel (0) target = $region65
    $region64: #{tpu_custom_call.1} parent=1 // pred_region
      %12284 = dma.done [#allocation6], 768
    $region65: #{tpu_custom_call.1} parent=1 // pred_fallthru
      _
    %12285 = vsyncpa [#allocation5], 1
    %12286 = vsyncpa [#allocation8], 1
    %12287 = vsyncpa [#allocation11], 1
    %12288 = vsyncpa [#allocation14], 1
    %12289 = vsyncpa [#allocation6], 1

</llo_original>
